<compile_context>
chip_gen: v5e
topology: v5e:2x2
jax: 0.10.0
libtpu: 0.0.40
codegen_flags: <defaults>
</compile_context>

<pallas_src>
import jax
import jax.numpy as jnp
from jax.experimental import pallas as pl
from jax.experimental.pallas import tpu as pltpu

_VMEM_LIMIT = 48 * 1024 * 1024
_NEG_INF = -1e30


# --------------------------- kernel 1: one graph branch ---------------------

def _branch_kernel(x_ref, ahat_ref, abias_ref,
                   g1w1_ref, g1b1_ref, g1w2_ref, g1b2_ref,
                   gaw1_ref, gad1_ref, gas1_ref, gab1_ref,
                   gaw2_ref, gad2_ref, gas2_ref, gab2_ref,
                   g3w1_ref, g3b1_ref, g3w2_ref, g3b2_ref,
                   out_ref):
    bf16 = jnp.bfloat16
    ahat = ahat_ref[0]        # [N, N] bf16, D^-1/2 (A+I) D^-1/2
    abias = abias_ref[0]      # [N, N] f32, 0 on edges / -1e30 elsewhere

    def gcn_block(x_bf, w1_ref, b1_ref, w2_ref, b2_ref):
        # GCN.forward (eval): relu(A_hat @ (X W1) + b1) -> relu(A_hat @ (H W2) + b2)
        h = jnp.dot(x_bf, w1_ref[0], preferred_element_type=jnp.float32)
        h = jnp.dot(ahat, h.astype(bf16), preferred_element_type=jnp.float32)
        h = jnp.maximum(h + b1_ref[0], 0.0).astype(bf16)
        h = jnp.dot(h, w2_ref[0], preferred_element_type=jnp.float32)
        h = jnp.dot(ahat, h.astype(bf16), preferred_element_type=jnp.float32)
        return jnp.maximum(h + b2_ref[0], 0.0)                       # f32

    def gat_layer(x_f32, w_ref, d_ref, s_ref, b_ref, heads, out_ch, concat):
        h = jnp.dot(x_f32.astype(bf16), w_ref[0],
                    preferred_element_type=jnp.float32)              # [N, H*C] f32
        # all heads' dst/src scores in one MXU push each (logits stay f32)
        dst = jnp.dot(h, d_ref[0], preferred_element_type=jnp.float32)   # [N, H]
        src = jax.lax.dot_general(s_ref[0], h, (((1,), (1,)), ((), ())),
                                  preferred_element_type=jnp.float32)    # [H, N]
        hb = h.astype(bf16)
        outs = []
        for hd in range(heads):
            e = dst[:, hd:hd + 1] + src[hd:hd + 1, :]                # [N, N]
            e = jnp.where(e > 0, e, 0.2 * e) + abias                 # LeakyReLU + mask
            m = jnp.max(e, axis=1, keepdims=True)
            p = jnp.exp(e - m)
            inv = pl.reciprocal(jnp.sum(p, axis=1, keepdims=True), approx=True)
            alpha = (p * inv).astype(bf16)
            hs = hb[:, hd * out_ch:(hd + 1) * out_ch]
            outs.append(jnp.dot(alpha, hs, preferred_element_type=jnp.float32))
        if concat:
            out = jnp.concatenate(outs, axis=1)
        else:
            out = outs[0]
            for t in outs[1:]:
                out = out + t
            out = out * (1.0 / float(heads))
        return out + b_ref[0]

    # ---- branch forward ----
    emb_a = gcn_block(x_ref[...], g1w1_ref, g1b1_ref, g1w2_ref, g1b2_ref)  # [N, 256]

    h1 = gat_layer(emb_a, gaw1_ref, gad1_ref, gas1_ref, gab1_ref,
                   heads=4, out_ch=128, concat=True)                       # [N, 512]
    h1 = jnp.where(h1 > 0, h1, jnp.exp(h1) - 1.0)                          # ELU
    h2 = gat_layer(h1, gaw2_ref, gad2_ref, gas2_ref, gab2_ref,
                   heads=1, out_ch=256, concat=False)                      # [N, 256]
    m = jnp.max(h2, axis=1, keepdims=True)
    s = h2 - m
    logp = s - jnp.log(jnp.sum(jnp.exp(s), axis=1, keepdims=True))         # log_softmax
    emb_b = jnp.maximum(logp, 0.0)                                         # relu (HiGLDP)

    emb_c = gcn_block(emb_b.astype(bf16), g3w1_ref, g3b1_ref, g3w2_ref, g3b2_ref)

    out_ref[0] = jnp.concatenate([emb_a, emb_c], axis=1)                   # [N, 2*nhid2]


# --------------------------- kernel 2: view attention + MLP head ------------

def _head_kernel(embs_ref, aw1_ref, ab1_ref, aw2_ref,
                 mw1_ref, mb1_ref, mw2_ref, mb2_ref, o_ref):
    xc = embs_ref[0]                                      # [N, 512] f32 (view 1)
    yc = embs_ref[1]                                      # [N, 512] f32 (view 2)
    w1 = aw1_ref[...]
    b1 = ab1_ref[...]
    w2t = aw2_ref[...]                                    # [1, 16]
    tx = jnp.tanh(jnp.dot(xc, w1, preferred_element_type=jnp.float32) + b1)
    ty = jnp.tanh(jnp.dot(yc, w1, preferred_element_type=jnp.float32) + b1)
    wx = jnp.sum(tx * w2t, axis=1, keepdims=True)         # [N, 1]
    wy = jnp.sum(ty * w2t, axis=1, keepdims=True)
    m = jnp.maximum(wx, wy)
    ex = jnp.exp(wx - m)
    ey = jnp.exp(wy - m)
    inv = pl.reciprocal(ex + ey, approx=True)             # softmax over the 2 views
    emb = (ex * inv) * xc + (ey * inv) * yc               # [N, 512]
    h = jnp.tanh(jnp.dot(emb.astype(jnp.bfloat16), mw1_ref[...],
                         preferred_element_type=jnp.float32) + mb1_ref[...])
    z = jnp.dot(h.astype(jnp.bfloat16), mw2_ref[...],
                preferred_element_type=jnp.float32) + mb2_ref[...]
    mz = jnp.max(z, axis=1, keepdims=True)
    s = z - mz
    o_ref[...] = s - jnp.log(jnp.sum(jnp.exp(s), axis=1, keepdims=True))


# --------------------------- forward wrapper --------------------------------

_BRANCH_KEYS = ("g1_w1", "g1_b1", "g1_w2", "g1_b2",
                "ga_w1", "ga_d1", "ga_s1", "ga_b1",
                "ga_w2", "ga_d2", "ga_s2", "ga_b2",
                "g3_w1", "g3_b1", "g3_w2", "g3_b2")


def _branch_spec(arr):
    if arr.ndim == 3:     # branch-stacked: leading axis = view index
        return pl.BlockSpec((1,) + tuple(arr.shape[1:]), lambda b: (b, 0, 0))
    return pl.BlockSpec(tuple(arr.shape), lambda b: (0, 0))   # shared (x)


def higldp_forward(packed, x_bf16, ahat_stack, abias_stack):
    n = x_bf16.shape[0]
    fout = 2 * packed["g1_w2"].shape[2]                       # 2 * nhid2
    nclass = packed["mlp_w2"].shape[1]

    branch_inputs = [x_bf16, ahat_stack, abias_stack] + [packed[k] for k in _BRANCH_KEYS]
    embs = pl.pallas_call(
        _branch_kernel,
        out_shape=jax.ShapeDtypeStruct((2, n, fout), jnp.float32),
        grid=(2,),
        in_specs=[_branch_spec(a) for a in branch_inputs],
        out_specs=pl.BlockSpec((1, n, fout), lambda b: (b, 0, 0)),
        compiler_params=pltpu.CompilerParams(
            dimension_semantics=("parallel",),
            vmem_limit_bytes=_VMEM_LIMIT),
    )(*branch_inputs)

    head_inputs = [embs, packed["att_w1"], packed["att_b1"], packed["att_w2t"],
                   packed["mlp_w1"], packed["mlp_b1"], packed["mlp_w2"], packed["mlp_b2"]]
    return pl.pallas_call(
        _head_kernel,
        out_shape=jax.ShapeDtypeStruct((n, nclass), jnp.float32),
        in_specs=[pl.BlockSpec(memory_space=pltpu.MemorySpace.VMEM)] * len(head_inputs),
        out_specs=pl.BlockSpec(memory_space=pltpu.MemorySpace.VMEM),
        compiler_params=pltpu.CompilerParams(vmem_limit_bytes=_VMEM_LIMIT),
    )(*head_inputs)


# --------------------------- parameter init & packing -----------------------

def init_params(key, nfeat, nclass, nhid1, nhid2):
    ks = iter(jax.random.split(key, 64))

    def dense(fin, fout, scale=None):
        if scale is None:
            scale = 1.0 / (fin ** 0.5)
        return jax.random.normal(next(ks), (fin, fout), jnp.float32) * scale

    def vec(f, scale=0.01):
        return jax.random.normal(next(ks), (f,), jnp.float32) * scale

    def gcn_params(fin, nh, nh2):
        return dict(w1=dense(fin, nh), b1=vec(nh), w2=dense(nh, nh2), b2=vec(nh2))

    def gat_params(fin, nh, nh2, heads=4):
        return dict(
            w1=dense(fin, heads * nh),
            as1=dense(heads, nh, scale=0.1), ad1=dense(heads, nh, scale=0.1),
            b1=vec(heads * nh),
            w2=dense(heads * nh, nh2),
            as2=dense(1, nh2, scale=0.1), ad2=dense(1, nh2, scale=0.1),
            b2=vec(nh2),
        )

    # NOTE: HiGLDP's self.a parameter is never used in forward(); omitted.
    return dict(
        CGCN1=gcn_params(nfeat, nhid1, nhid2),
        CGCN2=gcn_params(nfeat, nhid1, nhid2),
        CGCN3=gcn_params(256, 128, nhid2),
        CGCN4=gcn_params(256, 128, nhid2),
        SGAT1=gat_params(256, 128, 256),
        SGAT2=gat_params(256, 128, 256),
        ATT=dict(w1=dense(2 * nhid2, 16), b1=vec(16), w2t=dense(1, 16)),
        MLP=dict(w1=dense(2 * nhid2, 64), b1=vec(64),
                 w2=dense(64, nclass), b2=vec(nclass)),
    )


def _blockdiag_rows(att):
    """[H, C] per-head attention vectors -> [H, H*C] block row matrix."""
    h, c = att.shape
    eye = jnp.eye(h, dtype=att.dtype)
    return (att[:, None, :] * eye[:, :, None]).reshape(h, h * c)


def pack_params(p):
    bf = jnp.bfloat16

    def stk(a, b, dtype=None):
        s = jnp.stack([a, b])
        return s.astype(dtype) if dtype is not None else s

    def stk_bias(a, b):
        return jnp.stack([a.reshape(1, -1), b.reshape(1, -1)])

    g1a, g1b = p["CGCN1"], p["CGCN2"]
    gaa, gab = p["SGAT1"], p["SGAT2"]
    g3a, g3b = p["CGCN3"], p["CGCN4"]
    return dict(
        g1_w1=stk(g1a["w1"], g1b["w1"], bf), g1_b1=stk_bias(g1a["b1"], g1b["b1"]),
        g1_w2=stk(g1a["w2"], g1b["w2"], bf), g1_b2=stk_bias(g1a["b2"], g1b["b2"]),
        ga_w1=stk(gaa["w1"], gab["w1"], bf),
        ga_d1=stk(_blockdiag_rows(gaa["ad1"]).T, _blockdiag_rows(gab["ad1"]).T),  # [2,HC,H]
        ga_s1=stk(_blockdiag_rows(gaa["as1"]), _blockdiag_rows(gab["as1"])),      # [2,H,HC]
        ga_b1=stk_bias(gaa["b1"], gab["b1"]),
        ga_w2=stk(gaa["w2"], gab["w2"], bf),
        ga_d2=stk(gaa["ad2"].T, gab["ad2"].T),                                    # [2,C,1]
        ga_s2=stk(gaa["as2"], gab["as2"]),                                        # [2,1,C]
        ga_b2=stk_bias(gaa["b2"], gab["b2"]),
        g3_w1=stk(g3a["w1"], g3b["w1"], bf), g3_b1=stk_bias(g3a["b1"], g3b["b1"]),
        g3_w2=stk(g3a["w2"], g3b["w2"], bf), g3_b2=stk_bias(g3a["b2"], g3b["b2"]),
        att_w1=p["ATT"]["w1"], att_b1=p["ATT"]["b1"].reshape(1, -1),
        att_w2t=p["ATT"]["w2t"],
        mlp_w1=p["MLP"]["w1"].astype(bf), mlp_b1=p["MLP"]["b1"].reshape(1, -1),
        mlp_w2=p["MLP"]["w2"].astype(bf), mlp_b2=p["MLP"]["b2"].reshape(1, -1),
    )


# --------------------------- adjacency preprocessing ------------------------

def gcn_normalize(adj):
    # A_hat = D^-1/2 (A + I) D^-1/2   (GCNConv default normalization)
    n = adj.shape[0]
    a_t = adj + jnp.eye(n, dtype=jnp.float32)
    dinv = jax.lax.rsqrt(jnp.sum(a_t, axis=1))
    return a_t * dinv[:, None] * dinv[None, :]


def gat_bias(adj):
    # additive attention mask: 0 where edge j->i (incl. self-loop), -1e30 else
    n = adj.shape[0]
    mask = (adj + jnp.eye(n, dtype=jnp.float32)) > 0
    return jnp.where(mask, 0.0, _NEG_INF).astype(jnp.float32)


if __name__ == "__main__":
    N = 128                                        # number of graph nodes
    nfeat, nclass, nhid1, nhid2 = 128, 8, 128, 256  # nhid2 must be 256 (GAT input)

    root = jax.random.PRNGKey(0)
    k_x, k_s, k_f, k_p = jax.random.split(root, 4)

    x = jax.random.normal(k_x, (N, nfeat), jnp.float32)

    def rand_adj(k):
        r = jax.random.bernoulli(k, 0.05, (N, N))
        sym = jnp.logical_or(r, r.T).astype(jnp.float32)
        return sym * (1.0 - jnp.eye(N, dtype=jnp.float32))

    # dense stand-ins for the sparse sadj/fadj and the GAT edge sets asadj/afadj
    sadj = rand_adj(k_s)
    fadj = rand_adj(k_f)

    # preprocessed graph tensors, stacked over the two views (branch axis)
    ahat_stack = jnp.stack([gcn_normalize(sadj), gcn_normalize(fadj)]).astype(jnp.bfloat16)
    abias_stack = jnp.stack([gat_bias(sadj), gat_bias(fadj)])

    params = pack_params(init_params(k_p, nfeat, nclass, nhid1, nhid2))
    x_bf16 = x.astype(jnp.bfloat16)

    out = jax.jit(higldp_forward)(params, x_bf16, ahat_stack, abias_stack)
    out = jax.block_until_ready(out)
    assert out.shape == (N, nclass) and out.dtype == jnp.float32
    print("KERNEL_OK")
</pallas_src>

<mosaic_0001>
module attributes {stable_mosaic.version = 11 : i64} {
  func.func @_branch_kernel(%arg0: i32, %arg1: memref<128x128xbf16, #tpu.memory_space<vmem>>, %arg2: memref<1x128x128xbf16, #tpu.memory_space<vmem>>, %arg3: memref<1x128x128xf32, #tpu.memory_space<vmem>>, %arg4: memref<1x128x128xbf16, #tpu.memory_space<vmem>>, %arg5: memref<1x1x128xf32, #tpu.memory_space<vmem>>, %arg6: memref<1x128x256xbf16, #tpu.memory_space<vmem>>, %arg7: memref<1x1x256xf32, #tpu.memory_space<vmem>>, %arg8: memref<1x256x512xbf16, #tpu.memory_space<vmem>>, %arg9: memref<1x512x4xf32, #tpu.memory_space<vmem>>, %arg10: memref<1x4x512xf32, #tpu.memory_space<vmem>>, %arg11: memref<1x1x512xf32, #tpu.memory_space<vmem>>, %arg12: memref<1x512x256xbf16, #tpu.memory_space<vmem>>, %arg13: memref<1x256x1xf32, #tpu.memory_space<vmem>>, %arg14: memref<1x1x256xf32, #tpu.memory_space<vmem>>, %arg15: memref<1x1x256xf32, #tpu.memory_space<vmem>>, %arg16: memref<1x256x128xbf16, #tpu.memory_space<vmem>>, %arg17: memref<1x1x128xf32, #tpu.memory_space<vmem>>, %arg18: memref<1x128x256xbf16, #tpu.memory_space<vmem>>, %arg19: memref<1x1x256xf32, #tpu.memory_space<vmem>>, %arg20: memref<1x128x512xf32, #tpu.memory_space<vmem>>) attributes {dimension_semantics = [#tpu.dimension_semantics<parallel>], iteration_bounds = array<i64: 2>, scalar_prefetch = 0 : i64, scratch_operands = 0 : i64, tpu.core_type = #tpu.core_type<tc>, window_params = [{pipeline_mode = #tpu.pipeline_mode<synchronous>, transform_indices = @transform_0, window_bounds = array<i64: 128, 128>}, {transform_indices = @transform_1, window_bounds = array<i64: 1, 128, 128>}, {transform_indices = @transform_2, window_bounds = array<i64: 1, 128, 128>}, {transform_indices = @transform_3, window_bounds = array<i64: 1, 128, 128>}, {transform_indices = @transform_4, window_bounds = array<i64: 1, 1, 128>}, {transform_indices = @transform_5, window_bounds = array<i64: 1, 128, 256>}, {transform_indices = @transform_6, window_bounds = array<i64: 1, 1, 256>}, {transform_indices = @transform_7, window_bounds = array<i64: 1, 256, 512>}, {transform_indices = @transform_8, window_bounds = array<i64: 1, 512, 4>}, {transform_indices = @transform_9, window_bounds = array<i64: 1, 4, 512>}, {transform_indices = @transform_10, window_bounds = array<i64: 1, 1, 512>}, {transform_indices = @transform_11, window_bounds = array<i64: 1, 512, 256>}, {transform_indices = @transform_12, window_bounds = array<i64: 1, 256, 1>}, {transform_indices = @transform_13, window_bounds = array<i64: 1, 1, 256>}, {transform_indices = @transform_14, window_bounds = array<i64: 1, 1, 256>}, {transform_indices = @transform_15, window_bounds = array<i64: 1, 256, 128>}, {transform_indices = @transform_16, window_bounds = array<i64: 1, 1, 128>}, {transform_indices = @transform_17, window_bounds = array<i64: 1, 128, 256>}, {transform_indices = @transform_18, window_bounds = array<i64: 1, 1, 256>}, {transform_indices = @transform_19, window_bounds = array<i64: 1, 128, 512>}]} {
    %c0 = arith.constant 0 : index
    %c0_0 = arith.constant 0 : index
    %c0_1 = arith.constant 0 : index
    %0 = vector.load %arg2[%c0, %c0_0, %c0_1] : memref<1x128x128xbf16, #tpu.memory_space<vmem>>, vector<1x128x128xbf16>
    %1 = vector.shape_cast %0 : vector<1x128x128xbf16> to vector<128x128xbf16>
    %c0_2 = arith.constant 0 : index
    %c0_3 = arith.constant 0 : index
    %c0_4 = arith.constant 0 : index
    %2 = vector.load %arg3[%c0_2, %c0_3, %c0_4] : memref<1x128x128xf32, #tpu.memory_space<vmem>>, vector<1x128x128xf32>
    %3 = vector.shape_cast %2 : vector<1x128x128xf32> to vector<128x128xf32>
    %c0_5 = arith.constant 0 : index
    %c0_6 = arith.constant 0 : index
    %4 = vector.load %arg1[%c0_5, %c0_6] : memref<128x128xbf16, #tpu.memory_space<vmem>>, vector<128x128xbf16>
    %c0_7 = arith.constant 0 : index
    %c0_8 = arith.constant 0 : index
    %c0_9 = arith.constant 0 : index
    %5 = vector.load %arg4[%c0_7, %c0_8, %c0_9] : memref<1x128x128xbf16, #tpu.memory_space<vmem>>, vector<1x128x128xbf16>
    %6 = vector.shape_cast %5 : vector<1x128x128xbf16> to vector<128x128xbf16>
    %cst = arith.constant dense<0.000000e+00> : vector<128x128xf32>
    %7 = tpu.matmul %4, %6, %cst {dimension_numbers = #tpu.dot_dimension_numbers<[1], [0], [0], [1], [0, 0, 1, 1], [], []>} : vector<128x128xbf16>, vector<128x128xbf16>, vector<128x128xf32> -> vector<128x128xf32>
    %8 = arith.truncf %7 : vector<128x128xf32> to vector<128x128xbf16>
    %cst_10 = arith.constant dense<0.000000e+00> : vector<128x128xf32>
    %9 = tpu.matmul %1, %8, %cst_10 {dimension_numbers = #tpu.dot_dimension_numbers<[1], [0], [0], [1], [0, 0, 1, 1], [], []>} : vector<128x128xbf16>, vector<128x128xbf16>, vector<128x128xf32> -> vector<128x128xf32>
    %c0_11 = arith.constant 0 : index
    %c0_12 = arith.constant 0 : index
    %c0_13 = arith.constant 0 : index
    %10 = vector.load %arg5[%c0_11, %c0_12, %c0_13] : memref<1x1x128xf32, #tpu.memory_space<vmem>>, vector<1x1x128xf32>
    %11 = vector.shape_cast %10 : vector<1x1x128xf32> to vector<1x128xf32>
    %12 = vector.broadcast %11 : vector<1x128xf32> to vector<128x128xf32>
    %13 = arith.addf %9, %12 : vector<128x128xf32>
    %cst_14 = arith.constant 0.000000e+00 : f32
    %14 = vector.broadcast %cst_14 : f32 to vector<128x128xf32>
    %15 = arith.maximumf %13, %14 : vector<128x128xf32>
    %16 = arith.truncf %15 : vector<128x128xf32> to vector<128x128xbf16>
    %c0_15 = arith.constant 0 : index
    %c0_16 = arith.constant 0 : index
    %c0_17 = arith.constant 0 : index
    %17 = vector.load %arg6[%c0_15, %c0_16, %c0_17] : memref<1x128x256xbf16, #tpu.memory_space<vmem>>, vector<1x128x256xbf16>
    %18 = vector.shape_cast %17 : vector<1x128x256xbf16> to vector<128x256xbf16>
    %cst_18 = arith.constant dense<0.000000e+00> : vector<128x256xf32>
    %19 = tpu.matmul %16, %18, %cst_18 {dimension_numbers = #tpu.dot_dimension_numbers<[1], [0], [0], [1], [0, 0, 1, 1], [], []>} : vector<128x128xbf16>, vector<128x256xbf16>, vector<128x256xf32> -> vector<128x256xf32>
    %20 = arith.truncf %19 : vector<128x256xf32> to vector<128x256xbf16>
    %cst_19 = arith.constant dense<0.000000e+00> : vector<128x256xf32>
    %21 = tpu.matmul %1, %20, %cst_19 {dimension_numbers = #tpu.dot_dimension_numbers<[1], [0], [0], [1], [0, 0, 1, 1], [], []>} : vector<128x128xbf16>, vector<128x256xbf16>, vector<128x256xf32> -> vector<128x256xf32>
    %c0_20 = arith.constant 0 : index
    %c0_21 = arith.constant 0 : index
    %c0_22 = arith.constant 0 : index
    %22 = vector.load %arg7[%c0_20, %c0_21, %c0_22] : memref<1x1x256xf32, #tpu.memory_space<vmem>>, vector<1x1x256xf32>
    %23 = vector.shape_cast %22 : vector<1x1x256xf32> to vector<1x256xf32>
    %24 = vector.broadcast %23 : vector<1x256xf32> to vector<128x256xf32>
    %25 = arith.addf %21, %24 : vector<128x256xf32>
    %cst_23 = arith.constant 0.000000e+00 : f32
    %26 = vector.broadcast %cst_23 : f32 to vector<128x256xf32>
    %27 = arith.maximumf %25, %26 : vector<128x256xf32>
    %28 = arith.truncf %27 : vector<128x256xf32> to vector<128x256xbf16>
    %c0_24 = arith.constant 0 : index
    %c0_25 = arith.constant 0 : index
    %c0_26 = arith.constant 0 : index
    %29 = vector.load %arg8[%c0_24, %c0_25, %c0_26] : memref<1x256x512xbf16, #tpu.memory_space<vmem>>, vector<1x256x512xbf16>
    %30 = vector.shape_cast %29 : vector<1x256x512xbf16> to vector<256x512xbf16>
    %cst_27 = arith.constant dense<0.000000e+00> : vector<128x512xf32>
    %31 = tpu.matmul %28, %30, %cst_27 {dimension_numbers = #tpu.dot_dimension_numbers<[1], [0], [0], [1], [0, 0, 1, 1], [], []>} : vector<128x256xbf16>, vector<256x512xbf16>, vector<128x512xf32> -> vector<128x512xf32>
    %c0_28 = arith.constant 0 : index
    %c0_29 = arith.constant 0 : index
    %c0_30 = arith.constant 0 : index
    %32 = vector.load %arg9[%c0_28, %c0_29, %c0_30] : memref<1x512x4xf32, #tpu.memory_space<vmem>>, vector<1x512x4xf32>
    %33 = vector.shape_cast %32 : vector<1x512x4xf32> to vector<512x4xf32>
    %cst_31 = arith.constant dense<0.000000e+00> : vector<128x4xf32>
    %34 = tpu.matmul %31, %33, %cst_31 {dimension_numbers = #tpu.dot_dimension_numbers<[1], [0], [0], [1], [0, 0, 1, 1], [], []>} : vector<128x512xf32>, vector<512x4xf32>, vector<128x4xf32> -> vector<128x4xf32>
    %c0_32 = arith.constant 0 : index
    %c0_33 = arith.constant 0 : index
    %c0_34 = arith.constant 0 : index
    %35 = vector.load %arg10[%c0_32, %c0_33, %c0_34] : memref<1x4x512xf32, #tpu.memory_space<vmem>>, vector<1x4x512xf32>
    %36 = vector.shape_cast %35 : vector<1x4x512xf32> to vector<4x512xf32>
    %cst_35 = arith.constant dense<0.000000e+00> : vector<4x128xf32>
    %37 = tpu.matmul %36, %31, %cst_35 {dimension_numbers = #tpu.dot_dimension_numbers<[1], [1], [0], [0], [0, 0, 1, 0], [], []>} : vector<4x512xf32>, vector<128x512xf32>, vector<4x128xf32> -> vector<4x128xf32>
    %38 = arith.truncf %31 : vector<128x512xf32> to vector<128x512xbf16>
    %39 = vector.extract_strided_slice %34 {offsets = [0, 0], sizes = [128, 1], strides = [1, 1]} : vector<128x4xf32> to vector<128x1xf32>
    %40 = vector.extract_strided_slice %37 {offsets = [0, 0], sizes = [1, 128], strides = [1, 1]} : vector<4x128xf32> to vector<1x128xf32>
    %41 = vector.broadcast %39 : vector<128x1xf32> to vector<128x128xf32>
    %42 = vector.broadcast %40 : vector<1x128xf32> to vector<128x128xf32>
    %43 = arith.addf %41, %42 : vector<128x128xf32>
    %cst_36 = arith.constant 0.000000e+00 : f32
    %44 = vector.broadcast %cst_36 : f32 to vector<128x128xf32>
    %45 = arith.cmpf ogt, %43, %44 : vector<128x128xf32>
    %cst_37 = arith.constant 2.000000e-01 : f32
    %46 = vector.broadcast %cst_37 : f32 to vector<128x128xf32>
    %47 = arith.mulf %46, %43 : vector<128x128xf32>
    %48 = arith.select %45, %43, %47 : vector<128x128xi1>, vector<128x128xf32>
    %49 = arith.addf %48, %3 : vector<128x128xf32>
    %cst_38 = arith.constant dense<0xFF800000> : vector<128xf32>
    %50 = vector.multi_reduction <maximumf>, %49, %cst_38 [1] : vector<128x128xf32> to vector<128xf32>
    %51 = vector.shape_cast %50 : vector<128xf32> to vector<128x1xf32>
    %52 = vector.broadcast %51 : vector<128x1xf32> to vector<128x128xf32>
    %53 = arith.subf %49, %52 : vector<128x128xf32>
    %54 = math.exp %53 : vector<128x128xf32>
    %cst_39 = arith.constant dense<0.000000e+00> : vector<128xf32>
    %55 = vector.multi_reduction <add>, %54, %cst_39 [1] : vector<128x128xf32> to vector<128xf32>
    %56 = vector.shape_cast %55 : vector<128xf32> to vector<128x1xf32>
    %57 = tpu.reciprocal %56 {approx = true} : vector<128x1xf32> -> vector<128x1xf32>
    %58 = vector.broadcast %57 : vector<128x1xf32> to vector<128x128xf32>
    %59 = arith.mulf %54, %58 : vector<128x128xf32>
    %60 = arith.truncf %59 : vector<128x128xf32> to vector<128x128xbf16>
    %61 = vector.extract_strided_slice %38 {offsets = [0, 0], sizes = [128, 128], strides = [1, 1]} : vector<128x512xbf16> to vector<128x128xbf16>
    %cst_40 = arith.constant dense<0.000000e+00> : vector<128x128xf32>
    %62 = tpu.matmul %60, %61, %cst_40 {dimension_numbers = #tpu.dot_dimension_numbers<[1], [0], [0], [1], [0, 0, 1, 1], [], []>} : vector<128x128xbf16>, vector<128x128xbf16>, vector<128x128xf32> -> vector<128x128xf32>
    %63 = vector.extract_strided_slice %34 {offsets = [0, 1], sizes = [128, 1], strides = [1, 1]} : vector<128x4xf32> to vector<128x1xf32>
    %64 = vector.extract_strided_slice %37 {offsets = [1, 0], sizes = [1, 128], strides = [1, 1]} : vector<4x128xf32> to vector<1x128xf32>
    %65 = vector.broadcast %63 : vector<128x1xf32> to vector<128x128xf32>
    %66 = vector.broadcast %64 : vector<1x128xf32> to vector<128x128xf32>
    %67 = arith.addf %65, %66 : vector<128x128xf32>
    %cst_41 = arith.constant 0.000000e+00 : f32
    %68 = vector.broadcast %cst_41 : f32 to vector<128x128xf32>
    %69 = arith.cmpf ogt, %67, %68 : vector<128x128xf32>
    %cst_42 = arith.constant 2.000000e-01 : f32
    %70 = vector.broadcast %cst_42 : f32 to vector<128x128xf32>
    %71 = arith.mulf %70, %67 : vector<128x128xf32>
    %72 = arith.select %69, %67, %71 : vector<128x128xi1>, vector<128x128xf32>
    %73 = arith.addf %72, %3 : vector<128x128xf32>
    %cst_43 = arith.constant dense<0xFF800000> : vector<128xf32>
    %74 = vector.multi_reduction <maximumf>, %73, %cst_43 [1] : vector<128x128xf32> to vector<128xf32>
    %75 = vector.shape_cast %74 : vector<128xf32> to vector<128x1xf32>
    %76 = vector.broadcast %75 : vector<128x1xf32> to vector<128x128xf32>
    %77 = arith.subf %73, %76 : vector<128x128xf32>
    %78 = math.exp %77 : vector<128x128xf32>
    %cst_44 = arith.constant dense<0.000000e+00> : vector<128xf32>
    %79 = vector.multi_reduction <add>, %78, %cst_44 [1] : vector<128x128xf32> to vector<128xf32>
    %80 = vector.shape_cast %79 : vector<128xf32> to vector<128x1xf32>
    %81 = tpu.reciprocal %80 {approx = true} : vector<128x1xf32> -> vector<128x1xf32>
    %82 = vector.broadcast %81 : vector<128x1xf32> to vector<128x128xf32>
    %83 = arith.mulf %78, %82 : vector<128x128xf32>
    %84 = arith.truncf %83 : vector<128x128xf32> to vector<128x128xbf16>
    %85 = vector.extract_strided_slice %38 {offsets = [0, 128], sizes = [128, 128], strides = [1, 1]} : vector<128x512xbf16> to vector<128x128xbf16>
    %cst_45 = arith.constant dense<0.000000e+00> : vector<128x128xf32>
    %86 = tpu.matmul %84, %85, %cst_45 {dimension_numbers = #tpu.dot_dimension_numbers<[1], [0], [0], [1], [0, 0, 1, 1], [], []>} : vector<128x128xbf16>, vector<128x128xbf16>, vector<128x128xf32> -> vector<128x128xf32>
    %87 = vector.extract_strided_slice %34 {offsets = [0, 2], sizes = [128, 1], strides = [1, 1]} : vector<128x4xf32> to vector<128x1xf32>
    %88 = vector.extract_strided_slice %37 {offsets = [2, 0], sizes = [1, 128], strides = [1, 1]} : vector<4x128xf32> to vector<1x128xf32>
    %89 = vector.broadcast %87 : vector<128x1xf32> to vector<128x128xf32>
    %90 = vector.broadcast %88 : vector<1x128xf32> to vector<128x128xf32>
    %91 = arith.addf %89, %90 : vector<128x128xf32>
    %cst_46 = arith.constant 0.000000e+00 : f32
    %92 = vector.broadcast %cst_46 : f32 to vector<128x128xf32>
    %93 = arith.cmpf ogt, %91, %92 : vector<128x128xf32>
    %cst_47 = arith.constant 2.000000e-01 : f32
    %94 = vector.broadcast %cst_47 : f32 to vector<128x128xf32>
    %95 = arith.mulf %94, %91 : vector<128x128xf32>
    %96 = arith.select %93, %91, %95 : vector<128x128xi1>, vector<128x128xf32>
    %97 = arith.addf %96, %3 : vector<128x128xf32>
    %cst_48 = arith.constant dense<0xFF800000> : vector<128xf32>
    %98 = vector.multi_reduction <maximumf>, %97, %cst_48 [1] : vector<128x128xf32> to vector<128xf32>
    %99 = vector.shape_cast %98 : vector<128xf32> to vector<128x1xf32>
    %100 = vector.broadcast %99 : vector<128x1xf32> to vector<128x128xf32>
    %101 = arith.subf %97, %100 : vector<128x128xf32>
    %102 = math.exp %101 : vector<128x128xf32>
    %cst_49 = arith.constant dense<0.000000e+00> : vector<128xf32>
    %103 = vector.multi_reduction <add>, %102, %cst_49 [1] : vector<128x128xf32> to vector<128xf32>
    %104 = vector.shape_cast %103 : vector<128xf32> to vector<128x1xf32>
    %105 = tpu.reciprocal %104 {approx = true} : vector<128x1xf32> -> vector<128x1xf32>
    %106 = vector.broadcast %105 : vector<128x1xf32> to vector<128x128xf32>
    %107 = arith.mulf %102, %106 : vector<128x128xf32>
    %108 = arith.truncf %107 : vector<128x128xf32> to vector<128x128xbf16>
    %109 = vector.extract_strided_slice %38 {offsets = [0, 256], sizes = [128, 128], strides = [1, 1]} : vector<128x512xbf16> to vector<128x128xbf16>
    %cst_50 = arith.constant dense<0.000000e+00> : vector<128x128xf32>
    %110 = tpu.matmul %108, %109, %cst_50 {dimension_numbers = #tpu.dot_dimension_numbers<[1], [0], [0], [1], [0, 0, 1, 1], [], []>} : vector<128x128xbf16>, vector<128x128xbf16>, vector<128x128xf32> -> vector<128x128xf32>
    %111 = vector.extract_strided_slice %34 {offsets = [0, 3], sizes = [128, 1], strides = [1, 1]} : vector<128x4xf32> to vector<128x1xf32>
    %112 = vector.extract_strided_slice %37 {offsets = [3, 0], sizes = [1, 128], strides = [1, 1]} : vector<4x128xf32> to vector<1x128xf32>
    %113 = vector.broadcast %111 : vector<128x1xf32> to vector<128x128xf32>
    %114 = vector.broadcast %112 : vector<1x128xf32> to vector<128x128xf32>
    %115 = arith.addf %113, %114 : vector<128x128xf32>
    %cst_51 = arith.constant 0.000000e+00 : f32
    %116 = vector.broadcast %cst_51 : f32 to vector<128x128xf32>
    %117 = arith.cmpf ogt, %115, %116 : vector<128x128xf32>
    %cst_52 = arith.constant 2.000000e-01 : f32
    %118 = vector.broadcast %cst_52 : f32 to vector<128x128xf32>
    %119 = arith.mulf %118, %115 : vector<128x128xf32>
    %120 = arith.select %117, %115, %119 : vector<128x128xi1>, vector<128x128xf32>
    %121 = arith.addf %120, %3 : vector<128x128xf32>
    %cst_53 = arith.constant dense<0xFF800000> : vector<128xf32>
    %122 = vector.multi_reduction <maximumf>, %121, %cst_53 [1] : vector<128x128xf32> to vector<128xf32>
    %123 = vector.shape_cast %122 : vector<128xf32> to vector<128x1xf32>
    %124 = vector.broadcast %123 : vector<128x1xf32> to vector<128x128xf32>
    %125 = arith.subf %121, %124 : vector<128x128xf32>
    %126 = math.exp %125 : vector<128x128xf32>
    %cst_54 = arith.constant dense<0.000000e+00> : vector<128xf32>
    %127 = vector.multi_reduction <add>, %126, %cst_54 [1] : vector<128x128xf32> to vector<128xf32>
    %128 = vector.shape_cast %127 : vector<128xf32> to vector<128x1xf32>
    %129 = tpu.reciprocal %128 {approx = true} : vector<128x1xf32> -> vector<128x1xf32>
    %130 = vector.broadcast %129 : vector<128x1xf32> to vector<128x128xf32>
    %131 = arith.mulf %126, %130 : vector<128x128xf32>
    %132 = arith.truncf %131 : vector<128x128xf32> to vector<128x128xbf16>
    %133 = vector.extract_strided_slice %38 {offsets = [0, 384], sizes = [128, 128], strides = [1, 1]} : vector<128x512xbf16> to vector<128x128xbf16>
    %cst_55 = arith.constant dense<0.000000e+00> : vector<128x128xf32>
    %134 = tpu.matmul %132, %133, %cst_55 {dimension_numbers = #tpu.dot_dimension_numbers<[1], [0], [0], [1], [0, 0, 1, 1], [], []>} : vector<128x128xbf16>, vector<128x128xbf16>, vector<128x128xf32> -> vector<128x128xf32>
    %135 = tpu.concatenate %62, %86, %110, %134 in 1 : vector<128x128xf32>, vector<128x128xf32>, vector<128x128xf32>, vector<128x128xf32> -> vector<128x512xf32>
    %c0_56 = arith.constant 0 : index
    %c0_57 = arith.constant 0 : index
    %c0_58 = arith.constant 0 : index
    %136 = vector.load %arg11[%c0_56, %c0_57, %c0_58] : memref<1x1x512xf32, #tpu.memory_space<vmem>>, vector<1x1x512xf32>
    %137 = vector.shape_cast %136 : vector<1x1x512xf32> to vector<1x512xf32>
    %138 = vector.broadcast %137 : vector<1x512xf32> to vector<128x512xf32>
    %139 = arith.addf %135, %138 : vector<128x512xf32>
    %cst_59 = arith.constant 0.000000e+00 : f32
    %140 = vector.broadcast %cst_59 : f32 to vector<128x512xf32>
    %141 = arith.cmpf ogt, %139, %140 : vector<128x512xf32>
    %142 = math.exp %139 : vector<128x512xf32>
    %cst_60 = arith.constant 1.000000e+00 : f32
    %143 = vector.broadcast %cst_60 : f32 to vector<128x512xf32>
    %144 = arith.subf %142, %143 : vector<128x512xf32>
    %145 = arith.select %141, %139, %144 : vector<128x512xi1>, vector<128x512xf32>
    %146 = arith.truncf %145 : vector<128x512xf32> to vector<128x512xbf16>
    %c0_61 = arith.constant 0 : index
    %c0_62 = arith.constant 0 : index
    %c0_63 = arith.constant 0 : index
    %147 = vector.load %arg12[%c0_61, %c0_62, %c0_63] : memref<1x512x256xbf16, #tpu.memory_space<vmem>>, vector<1x512x256xbf16>
    %148 = vector.shape_cast %147 : vector<1x512x256xbf16> to vector<512x256xbf16>
    %cst_64 = arith.constant dense<0.000000e+00> : vector<128x256xf32>
    %149 = tpu.matmul %146, %148, %cst_64 {dimension_numbers = #tpu.dot_dimension_numbers<[1], [0], [0], [1], [0, 0, 1, 1], [], []>} : vector<128x512xbf16>, vector<512x256xbf16>, vector<128x256xf32> -> vector<128x256xf32>
    %c0_65 = arith.constant 0 : index
    %c0_66 = arith.constant 0 : index
    %c0_67 = arith.constant 0 : index
    %150 = vector.load %arg13[%c0_65, %c0_66, %c0_67] : memref<1x256x1xf32, #tpu.memory_space<vmem>>, vector<1x256x1xf32>
    %151 = vector.shape_cast %150 : vector<1x256x1xf32> to vector<256x1xf32>
    %cst_68 = arith.constant dense<0.000000e+00> : vector<128x1xf32>
    %152 = tpu.matmul %149, %151, %cst_68 {dimension_numbers = #tpu.dot_dimension_numbers<[1], [0], [0], [1], [0, 0, 1, 1], [], []>} : vector<128x256xf32>, vector<256x1xf32>, vector<128x1xf32> -> vector<128x1xf32>
    %c0_69 = arith.constant 0 : index
    %c0_70 = arith.constant 0 : index
    %c0_71 = arith.constant 0 : index
    %153 = vector.load %arg14[%c0_69, %c0_70, %c0_71] : memref<1x1x256xf32, #tpu.memory_space<vmem>>, vector<1x1x256xf32>
    %154 = vector.shape_cast %153 : vector<1x1x256xf32> to vector<1x256xf32>
    %cst_72 = arith.constant dense<0.000000e+00> : vector<1x128xf32>
    %155 = tpu.matmul %154, %149, %cst_72 {dimension_numbers = #tpu.dot_dimension_numbers<[1], [1], [0], [0], [0, 0, 1, 0], [], []>} : vector<1x256xf32>, vector<128x256xf32>, vector<1x128xf32> -> vector<1x128xf32>
    %156 = arith.truncf %149 : vector<128x256xf32> to vector<128x256xbf16>
    %157 = vector.broadcast %152 : vector<128x1xf32> to vector<128x128xf32>
    %158 = vector.broadcast %155 : vector<1x128xf32> to vector<128x128xf32>
    %159 = arith.addf %157, %158 : vector<128x128xf32>
    %cst_73 = arith.constant 0.000000e+00 : f32
    %160 = vector.broadcast %cst_73 : f32 to vector<128x128xf32>
    %161 = arith.cmpf ogt, %159, %160 : vector<128x128xf32>
    %cst_74 = arith.constant 2.000000e-01 : f32
    %162 = vector.broadcast %cst_74 : f32 to vector<128x128xf32>
    %163 = arith.mulf %162, %159 : vector<128x128xf32>
    %164 = arith.select %161, %159, %163 : vector<128x128xi1>, vector<128x128xf32>
    %165 = arith.addf %164, %3 : vector<128x128xf32>
    %cst_75 = arith.constant dense<0xFF800000> : vector<128xf32>
    %166 = vector.multi_reduction <maximumf>, %165, %cst_75 [1] : vector<128x128xf32> to vector<128xf32>
    %167 = vector.shape_cast %166 : vector<128xf32> to vector<128x1xf32>
    %168 = vector.broadcast %167 : vector<128x1xf32> to vector<128x128xf32>
    %169 = arith.subf %165, %168 : vector<128x128xf32>
    %170 = math.exp %169 : vector<128x128xf32>
    %cst_76 = arith.constant dense<0.000000e+00> : vector<128xf32>
    %171 = vector.multi_reduction <add>, %170, %cst_76 [1] : vector<128x128xf32> to vector<128xf32>
    %172 = vector.shape_cast %171 : vector<128xf32> to vector<128x1xf32>
    %173 = tpu.reciprocal %172 {approx = true} : vector<128x1xf32> -> vector<128x1xf32>
    %174 = vector.broadcast %173 : vector<128x1xf32> to vector<128x128xf32>
    %175 = arith.mulf %170, %174 : vector<128x128xf32>
    %176 = arith.truncf %175 : vector<128x128xf32> to vector<128x128xbf16>
    %cst_77 = arith.constant dense<0.000000e+00> : vector<128x256xf32>
    %177 = tpu.matmul %176, %156, %cst_77 {dimension_numbers = #tpu.dot_dimension_numbers<[1], [0], [0], [1], [0, 0, 1, 1], [], []>} : vector<128x128xbf16>, vector<128x256xbf16>, vector<128x256xf32> -> vector<128x256xf32>
    %cst_78 = arith.constant 1.000000e+00 : f32
    %178 = vector.broadcast %cst_78 : f32 to vector<128x256xf32>
    %179 = arith.mulf %177, %178 : vector<128x256xf32>
    %c0_79 = arith.constant 0 : index
    %c0_80 = arith.constant 0 : index
    %c0_81 = arith.constant 0 : index
    %180 = vector.load %arg15[%c0_79, %c0_80, %c0_81] : memref<1x1x256xf32, #tpu.memory_space<vmem>>, vector<1x1x256xf32>
    %181 = vector.shape_cast %180 : vector<1x1x256xf32> to vector<1x256xf32>
    %182 = vector.broadcast %181 : vector<1x256xf32> to vector<128x256xf32>
    %183 = arith.addf %179, %182 : vector<128x256xf32>
    %cst_82 = arith.constant dense<0xFF800000> : vector<128xf32>
    %184 = vector.multi_reduction <maximumf>, %183, %cst_82 [1] : vector<128x256xf32> to vector<128xf32>
    %185 = vector.shape_cast %184 : vector<128xf32> to vector<128x1xf32>
    %186 = vector.broadcast %185 : vector<128x1xf32> to vector<128x256xf32>
    %187 = arith.subf %183, %186 : vector<128x256xf32>
    %188 = math.exp %187 : vector<128x256xf32>
    %cst_83 = arith.constant dense<0.000000e+00> : vector<128xf32>
    %189 = vector.multi_reduction <add>, %188, %cst_83 [1] : vector<128x256xf32> to vector<128xf32>
    %190 = vector.shape_cast %189 : vector<128xf32> to vector<128x1xf32>
    %191 = math.log %190 : vector<128x1xf32>
    %192 = vector.broadcast %191 : vector<128x1xf32> to vector<128x256xf32>
    %193 = arith.subf %187, %192 : vector<128x256xf32>
    %cst_84 = arith.constant 0.000000e+00 : f32
    %194 = vector.broadcast %cst_84 : f32 to vector<128x256xf32>
    %195 = arith.maximumf %193, %194 : vector<128x256xf32>
    %196 = arith.truncf %195 : vector<128x256xf32> to vector<128x256xbf16>
    %c0_85 = arith.constant 0 : index
    %c0_86 = arith.constant 0 : index
    %c0_87 = arith.constant 0 : index
    %197 = vector.load %arg16[%c0_85, %c0_86, %c0_87] : memref<1x256x128xbf16, #tpu.memory_space<vmem>>, vector<1x256x128xbf16>
    %198 = vector.shape_cast %197 : vector<1x256x128xbf16> to vector<256x128xbf16>
    %cst_88 = arith.constant dense<0.000000e+00> : vector<128x128xf32>
    %199 = tpu.matmul %196, %198, %cst_88 {dimension_numbers = #tpu.dot_dimension_numbers<[1], [0], [0], [1], [0, 0, 1, 1], [], []>} : vector<128x256xbf16>, vector<256x128xbf16>, vector<128x128xf32> -> vector<128x128xf32>
    %200 = arith.truncf %199 : vector<128x128xf32> to vector<128x128xbf16>
    %cst_89 = arith.constant dense<0.000000e+00> : vector<128x128xf32>
    %201 = tpu.matmul %1, %200, %cst_89 {dimension_numbers = #tpu.dot_dimension_numbers<[1], [0], [0], [1], [0, 0, 1, 1], [], []>} : vector<128x128xbf16>, vector<128x128xbf16>, vector<128x128xf32> -> vector<128x128xf32>
    %c0_90 = arith.constant 0 : index
    %c0_91 = arith.constant 0 : index
    %c0_92 = arith.constant 0 : index
    %202 = vector.load %arg17[%c0_90, %c0_91, %c0_92] : memref<1x1x128xf32, #tpu.memory_space<vmem>>, vector<1x1x128xf32>
    %203 = vector.shape_cast %202 : vector<1x1x128xf32> to vector<1x128xf32>
    %204 = vector.broadcast %203 : vector<1x128xf32> to vector<128x128xf32>
    %205 = arith.addf %201, %204 : vector<128x128xf32>
    %cst_93 = arith.constant 0.000000e+00 : f32
    %206 = vector.broadcast %cst_93 : f32 to vector<128x128xf32>
    %207 = arith.maximumf %205, %206 : vector<128x128xf32>
    %208 = arith.truncf %207 : vector<128x128xf32> to vector<128x128xbf16>
    %c0_94 = arith.constant 0 : index
    %c0_95 = arith.constant 0 : index
    %c0_96 = arith.constant 0 : index
    %209 = vector.load %arg18[%c0_94, %c0_95, %c0_96] : memref<1x128x256xbf16, #tpu.memory_space<vmem>>, vector<1x128x256xbf16>
    %210 = vector.shape_cast %209 : vector<1x128x256xbf16> to vector<128x256xbf16>
    %cst_97 = arith.constant dense<0.000000e+00> : vector<128x256xf32>
    %211 = tpu.matmul %208, %210, %cst_97 {dimension_numbers = #tpu.dot_dimension_numbers<[1], [0], [0], [1], [0, 0, 1, 1], [], []>} : vector<128x128xbf16>, vector<128x256xbf16>, vector<128x256xf32> -> vector<128x256xf32>
    %212 = arith.truncf %211 : vector<128x256xf32> to vector<128x256xbf16>
    %cst_98 = arith.constant dense<0.000000e+00> : vector<128x256xf32>
    %213 = tpu.matmul %1, %212, %cst_98 {dimension_numbers = #tpu.dot_dimension_numbers<[1], [0], [0], [1], [0, 0, 1, 1], [], []>} : vector<128x128xbf16>, vector<128x256xbf16>, vector<128x256xf32> -> vector<128x256xf32>
    %c0_99 = arith.constant 0 : index
    %c0_100 = arith.constant 0 : index
    %c0_101 = arith.constant 0 : index
    %214 = vector.load %arg19[%c0_99, %c0_100, %c0_101] : memref<1x1x256xf32, #tpu.memory_space<vmem>>, vector<1x1x256xf32>
    %215 = vector.shape_cast %214 : vector<1x1x256xf32> to vector<1x256xf32>
    %216 = vector.broadcast %215 : vector<1x256xf32> to vector<128x256xf32>
    %217 = arith.addf %213, %216 : vector<128x256xf32>
    %cst_102 = arith.constant 0.000000e+00 : f32
    %218 = vector.broadcast %cst_102 : f32 to vector<128x256xf32>
    %219 = arith.maximumf %217, %218 : vector<128x256xf32>
    %220 = tpu.concatenate %27, %219 in 1 : vector<128x256xf32>, vector<128x256xf32> -> vector<128x512xf32>
    %c0_103 = arith.constant 0 : index
    %c0_104 = arith.constant 0 : index
    %c0_105 = arith.constant 0 : index
    %221 = vector.load %arg20[%c0_103, %c0_104, %c0_105] : memref<1x128x512xf32, #tpu.memory_space<vmem>>, vector<1x128x512xf32>
    %222 = vector.shape_cast %221 : vector<1x128x512xf32> to vector<128x512xf32>
    %223 = vector.shape_cast %220 : vector<128x512xf32> to vector<1x128x512xf32>
    tpu.vector_store %arg20[%c0_103, %c0_104, %c0_105], %223 {strides = array<i32>} : memref<1x128x512xf32, #tpu.memory_space<vmem>>, vector<1x128x512xf32>,
    return
  }
  func.func @transform_0(%arg0: i32) -> (i32, i32) {
    %c0_i32 = arith.constant 0 : i32
    %c0_i32_0 = arith.constant 0 : i32
    %c0_i32_1 = arith.constant 0 : i32
    return %c0_i32, %c0_i32_0 : i32, i32
  }
  func.func @transform_1(%arg0: i32) -> (i32, i32, i32) {
    %c0_i32 = arith.constant 0 : i32
    %c0_i32_0 = arith.constant 0 : i32
    %c0_i32_1 = arith.constant 0 : i32
    return %arg0, %c0_i32, %c0_i32_0 : i32, i32, i32
  }
  func.func @transform_2(%arg0: i32) -> (i32, i32, i32) {
    %c0_i32 = arith.constant 0 : i32
    %c0_i32_0 = arith.constant 0 : i32
    %c0_i32_1 = arith.constant 0 : i32
    return %arg0, %c0_i32, %c0_i32_0 : i32, i32, i32
  }
  func.func @transform_3(%arg0: i32) -> (i32, i32, i32) {
    %c0_i32 = arith.constant 0 : i32
    %c0_i32_0 = arith.constant 0 : i32
    %c0_i32_1 = arith.constant 0 : i32
    return %arg0, %c0_i32, %c0_i32_0 : i32, i32, i32
  }
  func.func @transform_4(%arg0: i32) -> (i32, i32, i32) {
    %c0_i32 = arith.constant 0 : i32
    %c0_i32_0 = arith.constant 0 : i32
    %c0_i32_1 = arith.constant 0 : i32
    return %arg0, %c0_i32, %c0_i32_0 : i32, i32, i32
  }
  func.func @transform_5(%arg0: i32) -> (i32, i32, i32) {
    %c0_i32 = arith.constant 0 : i32
    %c0_i32_0 = arith.constant 0 : i32
    %c0_i32_1 = arith.constant 0 : i32
    return %arg0, %c0_i32, %c0_i32_0 : i32, i32, i32
  }
  func.func @transform_6(%arg0: i32) -> (i32, i32, i32) {
    %c0_i32 = arith.constant 0 : i32
    %c0_i32_0 = arith.constant 0 : i32
    %c0_i32_1 = arith.constant 0 : i32
    return %arg0, %c0_i32, %c0_i32_0 : i32, i32, i32
  }
  func.func @transform_7(%arg0: i32) -> (i32, i32, i32) {
    %c0_i32 = arith.constant 0 : i32
    %c0_i32_0 = arith.constant 0 : i32
    %c0_i32_1 = arith.constant 0 : i32
    return %arg0, %c0_i32, %c0_i32_0 : i32, i32, i32
  }
  func.func @transform_8(%arg0: i32) -> (i32, i32, i32) {
    %c0_i32 = arith.constant 0 : i32
    %c0_i32_0 = arith.constant 0 : i32
    %c0_i32_1 = arith.constant 0 : i32
    return %arg0, %c0_i32, %c0_i32_0 : i32, i32, i32
  }
  func.func @transform_9(%arg0: i32) -> (i32, i32, i32) {
    %c0_i32 = arith.constant 0 : i32
    %c0_i32_0 = arith.constant 0 : i32
    %c0_i32_1 = arith.constant 0 : i32
    return %arg0, %c0_i32, %c0_i32_0 : i32, i32, i32
  }
  func.func @transform_10(%arg0: i32) -> (i32, i32, i32) {
    %c0_i32 = arith.constant 0 : i32
    %c0_i32_0 = arith.constant 0 : i32
    %c0_i32_1 = arith.constant 0 : i32
    return %arg0, %c0_i32, %c0_i32_0 : i32, i32, i32
  }
  func.func @transform_11(%arg0: i32) -> (i32, i32, i32) {
    %c0_i32 = arith.constant 0 : i32
    %c0_i32_0 = arith.constant 0 : i32
    %c0_i32_1 = arith.constant 0 : i32
    return %arg0, %c0_i32, %c0_i32_0 : i32, i32, i32
  }
  func.func @transform_12(%arg0: i32) -> (i32, i32, i32) {
    %c0_i32 = arith.constant 0 : i32
    %c0_i32_0 = arith.constant 0 : i32
    %c0_i32_1 = arith.constant 0 : i32
    return %arg0, %c0_i32, %c0_i32_0 : i32, i32, i32
  }
  func.func @transform_13(%arg0: i32) -> (i32, i32, i32) {
    %c0_i32 = arith.constant 0 : i32
    %c0_i32_0 = arith.constant 0 : i32
    %c0_i32_1 = arith.constant 0 : i32
    return %arg0, %c0_i32, %c0_i32_0 : i32, i32, i32
  }
  func.func @transform_14(%arg0: i32) -> (i32, i32, i32) {
    %c0_i32 = arith.constant 0 : i32
    %c0_i32_0 = arith.constant 0 : i32
    %c0_i32_1 = arith.constant 0 : i32
    return %arg0, %c0_i32, %c0_i32_0 : i32, i32, i32
  }
  func.func @transform_15(%arg0: i32) -> (i32, i32, i32) {
    %c0_i32 = arith.constant 0 : i32
    %c0_i32_0 = arith.constant 0 : i32
    %c0_i32_1 = arith.constant 0 : i32
    return %arg0, %c0_i32, %c0_i32_0 : i32, i32, i32
  }
  func.func @transform_16(%arg0: i32) -> (i32, i32, i32) {
    %c0_i32 = arith.constant 0 : i32
    %c0_i32_0 = arith.constant 0 : i32
    %c0_i32_1 = arith.constant 0 : i32
    return %arg0, %c0_i32, %c0_i32_0 : i32, i32, i32
  }
  func.func @transform_17(%arg0: i32) -> (i32, i32, i32) {
    %c0_i32 = arith.constant 0 : i32
    %c0_i32_0 = arith.constant 0 : i32
    %c0_i32_1 = arith.constant 0 : i32
    return %arg0, %c0_i32, %c0_i32_0 : i32, i32, i32
  }
  func.func @transform_18(%arg0: i32) -> (i32, i32, i32) {
    %c0_i32 = arith.constant 0 : i32
    %c0_i32_0 = arith.constant 0 : i32
    %c0_i32_1 = arith.constant 0 : i32
    return %arg0, %c0_i32, %c0_i32_0 : i32, i32, i32
  }
  func.func @transform_19(%arg0: i32) -> (i32, i32, i32) {
    %c0_i32 = arith.constant 0 : i32
    %c0_i32_0 = arith.constant 0 : i32
    %c0_i32_1 = arith.constant 0 : i32
    return %arg0, %c0_i32, %c0_i32_0 : i32, i32, i32
  }
}

module attributes {stable_mosaic.version = 11 : i64} {
  func.func @_head_kernel(%arg0: memref<2x128x512xf32, #tpu.memory_space<vmem>>, %arg1: memref<512x16xf32, #tpu.memory_space<vmem>>, %arg2: memref<1x16xf32, #tpu.memory_space<vmem>>, %arg3: memref<1x16xf32, #tpu.memory_space<vmem>>, %arg4: memref<512x64xbf16, #tpu.memory_space<vmem>>, %arg5: memref<1x64xf32, #tpu.memory_space<vmem>>, %arg6: memref<64x8xbf16, #tpu.memory_space<vmem>>, %arg7: memref<1x8xf32, #tpu.memory_space<vmem>>, %arg8: memref<128x8xf32, #tpu.memory_space<vmem>>) attributes {dimension_semantics = [], scalar_prefetch = 0 : i64, scratch_operands = 0 : i64, tpu.core_type = #tpu.core_type<tc>} {
    %c0 = arith.constant 0 : index
    %c0_0 = arith.constant 0 : index
    %c0_1 = arith.constant 0 : index
    %0 = vector.load %arg0[%c0, %c0_0, %c0_1] : memref<2x128x512xf32, #tpu.memory_space<vmem>>, vector<1x128x512xf32>
    %1 = vector.shape_cast %0 : vector<1x128x512xf32> to vector<128x512xf32>
    %c1 = arith.constant 1 : index
    %c0_2 = arith.constant 0 : index
    %c0_3 = arith.constant 0 : index
    %2 = vector.load %arg0[%c1, %c0_2, %c0_3] : memref<2x128x512xf32, #tpu.memory_space<vmem>>, vector<1x128x512xf32>
    %3 = vector.shape_cast %2 : vector<1x128x512xf32> to vector<128x512xf32>
    %c0_4 = arith.constant 0 : index
    %c0_5 = arith.constant 0 : index
    %4 = vector.load %arg1[%c0_4, %c0_5] : memref<512x16xf32, #tpu.memory_space<vmem>>, vector<512x16xf32>
    %c0_6 = arith.constant 0 : index
    %c0_7 = arith.constant 0 : index
    %5 = vector.load %arg2[%c0_6, %c0_7] : memref<1x16xf32, #tpu.memory_space<vmem>>, vector<1x16xf32>
    %c0_8 = arith.constant 0 : index
    %c0_9 = arith.constant 0 : index
    %6 = vector.load %arg3[%c0_8, %c0_9] : memref<1x16xf32, #tpu.memory_space<vmem>>, vector<1x16xf32>
    %cst = arith.constant dense<0.000000e+00> : vector<128x16xf32>
    %7 = tpu.matmul %1, %4, %cst {dimension_numbers = #tpu.dot_dimension_numbers<[1], [0], [0], [1], [0, 0, 1, 1], [], []>} : vector<128x512xf32>, vector<512x16xf32>, vector<128x16xf32> -> vector<128x16xf32>
    %8 = vector.broadcast %5 : vector<1x16xf32> to vector<128x16xf32>
    %9 = arith.addf %7, %8 : vector<128x16xf32>
    %10 = math.tanh %9 : vector<128x16xf32>
    %cst_10 = arith.constant dense<0.000000e+00> : vector<128x16xf32>
    %11 = tpu.matmul %3, %4, %cst_10 {dimension_numbers = #tpu.dot_dimension_numbers<[1], [0], [0], [1], [0, 0, 1, 1], [], []>} : vector<128x512xf32>, vector<512x16xf32>, vector<128x16xf32> -> vector<128x16xf32>
    %12 = vector.broadcast %5 : vector<1x16xf32> to vector<128x16xf32>
    %13 = arith.addf %11, %12 : vector<128x16xf32>
    %14 = math.tanh %13 : vector<128x16xf32>
    %15 = vector.broadcast %6 : vector<1x16xf32> to vector<128x16xf32>
    %16 = arith.mulf %10, %15 : vector<128x16xf32>
    %cst_11 = arith.constant dense<0.000000e+00> : vector<128xf32>
    %17 = vector.multi_reduction <add>, %16, %cst_11 [1] : vector<128x16xf32> to vector<128xf32>
    %18 = vector.shape_cast %17 : vector<128xf32> to vector<128x1xf32>
    %19 = vector.broadcast %6 : vector<1x16xf32> to vector<128x16xf32>
    %20 = arith.mulf %14, %19 : vector<128x16xf32>
    %cst_12 = arith.constant dense<0.000000e+00> : vector<128xf32>
    %21 = vector.multi_reduction <add>, %20, %cst_12 [1] : vector<128x16xf32> to vector<128xf32>
    %22 = vector.shape_cast %21 : vector<128xf32> to vector<128x1xf32>
    %23 = arith.maximumf %18, %22 : vector<128x1xf32>
    %24 = arith.subf %18, %23 : vector<128x1xf32>
    %25 = math.exp %24 : vector<128x1xf32>
    %26 = arith.subf %22, %23 : vector<128x1xf32>
    %27 = math.exp %26 : vector<128x1xf32>
    %28 = arith.addf %25, %27 : vector<128x1xf32>
    %29 = tpu.reciprocal %28 {approx = true} : vector<128x1xf32> -> vector<128x1xf32>
    %30 = arith.mulf %25, %29 : vector<128x1xf32>
    %31 = vector.broadcast %30 : vector<128x1xf32> to vector<128x512xf32>
    %32 = arith.mulf %31, %1 : vector<128x512xf32>
    %33 = arith.mulf %27, %29 : vector<128x1xf32>
    %34 = vector.broadcast %33 : vector<128x1xf32> to vector<128x512xf32>
    %35 = arith.mulf %34, %3 : vector<128x512xf32>
    %36 = arith.addf %32, %35 : vector<128x512xf32>
    %37 = arith.truncf %36 : vector<128x512xf32> to vector<128x512xbf16>
    %c0_13 = arith.constant 0 : index
    %c0_14 = arith.constant 0 : index
    %38 = vector.load %arg4[%c0_13, %c0_14] : memref<512x64xbf16, #tpu.memory_space<vmem>>, vector<512x64xbf16>
    %cst_15 = arith.constant dense<0.000000e+00> : vector<128x64xf32>
    %39 = tpu.matmul %37, %38, %cst_15 {dimension_numbers = #tpu.dot_dimension_numbers<[1], [0], [0], [1], [0, 0, 1, 1], [], []>} : vector<128x512xbf16>, vector<512x64xbf16>, vector<128x64xf32> -> vector<128x64xf32>
    %c0_16 = arith.constant 0 : index
    %c0_17 = arith.constant 0 : index
    %40 = vector.load %arg5[%c0_16, %c0_17] : memref<1x64xf32, #tpu.memory_space<vmem>>, vector<1x64xf32>
    %41 = vector.broadcast %40 : vector<1x64xf32> to vector<128x64xf32>
    %42 = arith.addf %39, %41 : vector<128x64xf32>
    %43 = math.tanh %42 : vector<128x64xf32>
    %44 = arith.truncf %43 : vector<128x64xf32> to vector<128x64xbf16>
    %c0_18 = arith.constant 0 : index
    %c0_19 = arith.constant 0 : index
    %45 = vector.load %arg6[%c0_18, %c0_19] : memref<64x8xbf16, #tpu.memory_space<vmem>>, vector<64x8xbf16>
    %cst_20 = arith.constant dense<0.000000e+00> : vector<128x8xf32>
    %46 = tpu.matmul %44, %45, %cst_20 {dimension_numbers = #tpu.dot_dimension_numbers<[1], [0], [0], [1], [0, 0, 1, 1], [], []>} : vector<128x64xbf16>, vector<64x8xbf16>, vector<128x8xf32> -> vector<128x8xf32>
    %c0_21 = arith.constant 0 : index
    %c0_22 = arith.constant 0 : index
    %47 = vector.load %arg7[%c0_21, %c0_22] : memref<1x8xf32, #tpu.memory_space<vmem>>, vector<1x8xf32>
    %48 = vector.broadcast %47 : vector<1x8xf32> to vector<128x8xf32>
    %49 = arith.addf %46, %48 : vector<128x8xf32>
    %cst_23 = arith.constant dense<0xFF800000> : vector<128xf32>
    %50 = vector.multi_reduction <maximumf>, %49, %cst_23 [1] : vector<128x8xf32> to vector<128xf32>
    %51 = vector.shape_cast %50 : vector<128xf32> to vector<128x1xf32>
    %52 = vector.broadcast %51 : vector<128x1xf32> to vector<128x8xf32>
    %53 = arith.subf %49, %52 : vector<128x8xf32>
    %54 = math.exp %53 : vector<128x8xf32>
    %cst_24 = arith.constant dense<0.000000e+00> : vector<128xf32>
    %55 = vector.multi_reduction <add>, %54, %cst_24 [1] : vector<128x8xf32> to vector<128xf32>
    %56 = vector.shape_cast %55 : vector<128xf32> to vector<128x1xf32>
    %57 = math.log %56 : vector<128x1xf32>
    %58 = vector.broadcast %57 : vector<128x1xf32> to vector<128x8xf32>
    %59 = arith.subf %53, %58 : vector<128x8xf32>
    %c0_25 = arith.constant 0 : index
    %c0_26 = arith.constant 0 : index
    %60 = vector.load %arg8[%c0_25, %c0_26] : memref<128x8xf32, #tpu.memory_space<vmem>>, vector<128x8xf32>
    tpu.vector_store %arg8[%c0_25, %c0_26], %59 {strides = array<i32>} : memref<128x8xf32, #tpu.memory_space<vmem>>, vector<128x8xf32>,
    return
  }
}

</mosaic_0001>

<llo_original>
// kernel: higldp_forward.3
$region0: #{higldp_forward.3}
  #allocation0 [shape = 'u32[]', space=smem, size = 0x4, offset = 0x4, fixed_abs, tag = 'smem constant byte address 0x4 - core index']
  #allocation1 [shape = 'u32[72,128]{1,0:T(1,128)}', space=vmem, size = 0x9000, scoped, tag = 'internal scratch']
  %s0 = inlined_call_operand.vmem [shape: f32[2,128,512], index: 0, kind: input, shape index: {}]
  %s1 = inlined_call_operand.vmem [shape: f32[512,16], index: 1, kind: input, shape index: {}]
  %s2 = inlined_call_operand.vmem [shape: f32[1,16], index: 2, kind: input, shape index: {}]
  %s3 = inlined_call_operand.vmem [shape: f32[1,16], index: 3, kind: input, shape index: {}]
  %s4 = inlined_call_operand.vmem [shape: bf16[512,64], index: 4, kind: input, shape index: {}]
  %s5 = inlined_call_operand.vmem [shape: f32[1,64], index: 5, kind: input, shape index: {}]
  %s6 = inlined_call_operand.vmem [shape: bf16[64,8], index: 6, kind: input, shape index: {}]
  %s7 = inlined_call_operand.vmem [shape: f32[1,8], index: 7, kind: input, shape index: {}]
  %s8 = inlined_call_operand.vmem [shape: f32[128,8], index: 8, kind: output, shape index: {}]
  %s9 = sld [smem:[#allocation0]]
  $region42: #{higldp_forward.3} parent=0
    _
  %s11 = ssub.s32 1, %s9
  %s12 = scalar_select 0, %s11, %s9
  // Predicated region
  $region2: #{higldp_forward.3} parent=0 // pred_check
    _
  $region3: #{higldp_forward.3} parent=0 // pred_check_branch
    %14 = sbr.rel (0) target = $region5
  $region4: #{higldp_forward.3} parent=0 // pred_region
    _
  $region5: #{higldp_forward.3} parent=0 // pred_fallthru
    _
  // Predicated region
  $region6: #{higldp_forward.3} parent=0 // pred_check
    _
  $region7: #{higldp_forward.3} parent=0 // pred_check_branch
    %16 = sbr.rel (0) target = $region9
  $region8: #{higldp_forward.3} parent=0 // pred_region
    _
  $region9: #{higldp_forward.3} parent=0 // pred_fallthru
    _
  // Predicated region
  $region10: #{higldp_forward.3} parent=0 // pred_check
    _
  $region11: #{higldp_forward.3} parent=0 // pred_check_branch
    %18 = sbr.rel (0) target = $region13
  $region12: #{higldp_forward.3} parent=0 // pred_region
    _
  $region13: #{higldp_forward.3} parent=0 // pred_fallthru
    _
  // Predicated region
  $region14: #{higldp_forward.3} parent=0 // pred_check
    _
  $region15: #{higldp_forward.3} parent=0 // pred_check_branch
    %20 = sbr.rel (0) target = $region17
  $region16: #{higldp_forward.3} parent=0 // pred_region
    _
  $region17: #{higldp_forward.3} parent=0 // pred_fallthru
    _
  // Predicated region
  $region18: #{higldp_forward.3} parent=0 // pred_check
    _
  $region19: #{higldp_forward.3} parent=0 // pred_check_branch
    %22 = sbr.rel (0) target = $region21
  $region20: #{higldp_forward.3} parent=0 // pred_region
    _
  $region21: #{higldp_forward.3} parent=0 // pred_fallthru
    _
  // Predicated region
  $region22: #{higldp_forward.3} parent=0 // pred_check
    _
  $region23: #{higldp_forward.3} parent=0 // pred_check_branch
    %24 = sbr.rel (0) target = $region25
  $region24: #{higldp_forward.3} parent=0 // pred_region
    _
  $region25: #{higldp_forward.3} parent=0 // pred_fallthru
    _
  // Predicated region
  $region26: #{higldp_forward.3} parent=0 // pred_check
    _
  $region27: #{higldp_forward.3} parent=0 // pred_check_branch
    %26 = sbr.rel (0) target = $region29
  $region28: #{higldp_forward.3} parent=0 // pred_region
    _
  $region29: #{higldp_forward.3} parent=0 // pred_fallthru
    _
  // Predicated region
  $region30: #{higldp_forward.3} parent=0 // pred_check
    _
  $region31: #{higldp_forward.3} parent=0 // pred_check_branch
    %28 = sbr.rel (0) target = $region33
  $region32: #{higldp_forward.3} parent=0 // pred_region
    _
  $region33: #{higldp_forward.3} parent=0 // pred_fallthru
    _
  %v30 = vld [vmem:[%s0] sm:$0xff]
  %v31 = vld [vmem:[%s0 + $0x8] sm:$0xff]
  %v32 = vld [vmem:[%s0 + $0x10] sm:$0xff]
  %v33 = vld [vmem:[%s0 + $0x18] sm:$0xff]
  %v34 = vld [vmem:[%s0 + $0x20] sm:$0xff]
  %v35 = vld [vmem:[%s0 + $0x28] sm:$0xff]
  %v36 = vld [vmem:[%s0 + $0x30] sm:$0xff]
  %v37 = vld [vmem:[%s0 + $0x38] sm:$0xff]
  %v38 = vld [vmem:[%s0 + $0x40] sm:$0xff]
  %v39 = vld [vmem:[%s0 + $0x48] sm:$0xff]
  %v40 = vld [vmem:[%s0 + $0x50] sm:$0xff]
  %v41 = vld [vmem:[%s0 + $0x58] sm:$0xff]
  %v42 = vld [vmem:[%s0 + $0x60] sm:$0xff]
  %v43 = vld [vmem:[%s0 + $0x68] sm:$0xff]
  %v44 = vld [vmem:[%s0 + $0x70] sm:$0xff]
  %v45 = vld [vmem:[%s0 + $0x78] sm:$0xff]
  %v46 = vld [vmem:[%s0 + $0x80] sm:$0xff]
  %v47 = vld [vmem:[%s0 + $0x88] sm:$0xff]
  %v48 = vld [vmem:[%s0 + $0x90] sm:$0xff]
  %v49 = vld [vmem:[%s0 + $0x98] sm:$0xff]
  %v50 = vld [vmem:[%s0 + $0xa0] sm:$0xff]
  %v51 = vld [vmem:[%s0 + $0xa8] sm:$0xff]
  %v52 = vld [vmem:[%s0 + $0xb0] sm:$0xff]
  %v53 = vld [vmem:[%s0 + $0xb8] sm:$0xff]
  %v54 = vld [vmem:[%s0 + $0xc0] sm:$0xff]
  %v55 = vld [vmem:[%s0 + $0xc8] sm:$0xff]
  %v56 = vld [vmem:[%s0 + $0xd0] sm:$0xff]
  %v57 = vld [vmem:[%s0 + $0xd8] sm:$0xff]
  %v58 = vld [vmem:[%s0 + $0xe0] sm:$0xff]
  %v59 = vld [vmem:[%s0 + $0xe8] sm:$0xff]
  %v60 = vld [vmem:[%s0 + $0xf0] sm:$0xff]
  %v61 = vld [vmem:[%s0 + $0xf8] sm:$0xff]
  %v62 = vld [vmem:[%s0 + $0x100] sm:$0xff]
  %v63 = vld [vmem:[%s0 + $0x108] sm:$0xff]
  %v64 = vld [vmem:[%s0 + $0x110] sm:$0xff]
  %v65 = vld [vmem:[%s0 + $0x118] sm:$0xff]
  %v66 = vld [vmem:[%s0 + $0x120] sm:$0xff]
  %v67 = vld [vmem:[%s0 + $0x128] sm:$0xff]
  %v68 = vld [vmem:[%s0 + $0x130] sm:$0xff]
  %v69 = vld [vmem:[%s0 + $0x138] sm:$0xff]
  %v70 = vld [vmem:[%s0 + $0x140] sm:$0xff]
  %v71 = vld [vmem:[%s0 + $0x148] sm:$0xff]
  %v72 = vld [vmem:[%s0 + $0x150] sm:$0xff]
  %v73 = vld [vmem:[%s0 + $0x158] sm:$0xff]
  %v74 = vld [vmem:[%s0 + $0x160] sm:$0xff]
  %v75 = vld [vmem:[%s0 + $0x168] sm:$0xff]
  %v76 = vld [vmem:[%s0 + $0x170] sm:$0xff]
  %v77 = vld [vmem:[%s0 + $0x178] sm:$0xff]
  %v78 = vld [vmem:[%s0 + $0x180] sm:$0xff]
  %v79 = vld [vmem:[%s0 + $0x188] sm:$0xff]
  %v80 = vld [vmem:[%s0 + $0x190] sm:$0xff]
  %v81 = vld [vmem:[%s0 + $0x198] sm:$0xff]
  %v82 = vld [vmem:[%s0 + $0x1a0] sm:$0xff]
  %v83 = vld [vmem:[%s0 + $0x1a8] sm:$0xff]
  %v84 = vld [vmem:[%s0 + $0x1b0] sm:$0xff]
  %v85 = vld [vmem:[%s0 + $0x1b8] sm:$0xff]
  %v86 = vld [vmem:[%s0 + $0x1c0] sm:$0xff]
  %v87 = vld [vmem:[%s0 + $0x1c8] sm:$0xff]
  %v88 = vld [vmem:[%s0 + $0x1d0] sm:$0xff]
  %v89 = vld [vmem:[%s0 + $0x1d8] sm:$0xff]
  %v90 = vld [vmem:[%s0 + $0x1e0] sm:$0xff]
  %v91 = vld [vmem:[%s0 + $0x1e8] sm:$0xff]
  %v92 = vld [vmem:[%s0 + $0x1f0] sm:$0xff]
  %v93 = vld [vmem:[%s0 + $0x1f8] sm:$0xff]
  %s94 = scalar_lea.vmem %s0, 512
  %v95 = vld [vmem:[%s94] sm:$0xff]
  %v96 = vld [vmem:[%s94 + $0x8] sm:$0xff]
  %v97 = vld [vmem:[%s94 + $0x10] sm:$0xff]
  %v98 = vld [vmem:[%s94 + $0x18] sm:$0xff]
  %v99 = vld [vmem:[%s94 + $0x20] sm:$0xff]
  %v100 = vld [vmem:[%s94 + $0x28] sm:$0xff]
  %v101 = vld [vmem:[%s94 + $0x30] sm:$0xff]
  %v102 = vld [vmem:[%s94 + $0x38] sm:$0xff]
  %v103 = vld [vmem:[%s94 + $0x40] sm:$0xff]
  %v104 = vld [vmem:[%s94 + $0x48] sm:$0xff]
  %v105 = vld [vmem:[%s94 + $0x50] sm:$0xff]
  %v106 = vld [vmem:[%s94 + $0x58] sm:$0xff]
  %v107 = vld [vmem:[%s94 + $0x60] sm:$0xff]
  %v108 = vld [vmem:[%s94 + $0x68] sm:$0xff]
  %v109 = vld [vmem:[%s94 + $0x70] sm:$0xff]
  %v110 = vld [vmem:[%s94 + $0x78] sm:$0xff]
  %v111 = vld [vmem:[%s94 + $0x80] sm:$0xff]
  %v112 = vld [vmem:[%s94 + $0x88] sm:$0xff]
  %v113 = vld [vmem:[%s94 + $0x90] sm:$0xff]
  %v114 = vld [vmem:[%s94 + $0x98] sm:$0xff]
  %v115 = vld [vmem:[%s94 + $0xa0] sm:$0xff]
  %v116 = vld [vmem:[%s94 + $0xa8] sm:$0xff]
  %v117 = vld [vmem:[%s94 + $0xb0] sm:$0xff]
  %v118 = vld [vmem:[%s94 + $0xb8] sm:$0xff]
  %v119 = vld [vmem:[%s94 + $0xc0] sm:$0xff]
  %v120 = vld [vmem:[%s94 + $0xc8] sm:$0xff]
  %v121 = vld [vmem:[%s94 + $0xd0] sm:$0xff]
  %v122 = vld [vmem:[%s94 + $0xd8] sm:$0xff]
  %v123 = vld [vmem:[%s94 + $0xe0] sm:$0xff]
  %v124 = vld [vmem:[%s94 + $0xe8] sm:$0xff]
  %v125 = vld [vmem:[%s94 + $0xf0] sm:$0xff]
  %v126 = vld [vmem:[%s94 + $0xf8] sm:$0xff]
  %v127 = vld [vmem:[%s94 + $0x100] sm:$0xff]
  %v128 = vld [vmem:[%s94 + $0x108] sm:$0xff]
  %v129 = vld [vmem:[%s94 + $0x110] sm:$0xff]
  %v130 = vld [vmem:[%s94 + $0x118] sm:$0xff]
  %v131 = vld [vmem:[%s94 + $0x120] sm:$0xff]
  %v132 = vld [vmem:[%s94 + $0x128] sm:$0xff]
  %v133 = vld [vmem:[%s94 + $0x130] sm:$0xff]
  %v134 = vld [vmem:[%s94 + $0x138] sm:$0xff]
  %v135 = vld [vmem:[%s94 + $0x140] sm:$0xff]
  %v136 = vld [vmem:[%s94 + $0x148] sm:$0xff]
  %v137 = vld [vmem:[%s94 + $0x150] sm:$0xff]
  %v138 = vld [vmem:[%s94 + $0x158] sm:$0xff]
  %v139 = vld [vmem:[%s94 + $0x160] sm:$0xff]
  %v140 = vld [vmem:[%s94 + $0x168] sm:$0xff]
  %v141 = vld [vmem:[%s94 + $0x170] sm:$0xff]
  %v142 = vld [vmem:[%s94 + $0x178] sm:$0xff]
  %v143 = vld [vmem:[%s94 + $0x180] sm:$0xff]
  %v144 = vld [vmem:[%s94 + $0x188] sm:$0xff]
  %v145 = vld [vmem:[%s94 + $0x190] sm:$0xff]
  %v146 = vld [vmem:[%s94 + $0x198] sm:$0xff]
  %v147 = vld [vmem:[%s94 + $0x1a0] sm:$0xff]
  %v148 = vld [vmem:[%s94 + $0x1a8] sm:$0xff]
  %v149 = vld [vmem:[%s94 + $0x1b0] sm:$0xff]
  %v150 = vld [vmem:[%s94 + $0x1b8] sm:$0xff]
  %v151 = vld [vmem:[%s94 + $0x1c0] sm:$0xff]
  %v152 = vld [vmem:[%s94 + $0x1c8] sm:$0xff]
  %v153 = vld [vmem:[%s94 + $0x1d0] sm:$0xff]
  %v154 = vld [vmem:[%s94 + $0x1d8] sm:$0xff]
  %v155 = vld [vmem:[%s94 + $0x1e0] sm:$0xff]
  %v156 = vld [vmem:[%s94 + $0x1e8] sm:$0xff]
  %v157 = vld [vmem:[%s94 + $0x1f0] sm:$0xff]
  %v158 = vld [vmem:[%s94 + $0x1f8] sm:$0xff]
  %v159 = vld [vmem:[%s1] sm:$0xff]
  %v160 = vld [vmem:[%s1 + $0x8] sm:$0xff]
  %v161 = vld [vmem:[%s1 + $0x10] sm:$0xff]
  %v162 = vld [vmem:[%s1 + $0x18] sm:$0xff]
  %v163 = vld [vmem:[%s1 + $0x20] sm:$0xff]
  %v164 = vld [vmem:[%s1 + $0x28] sm:$0xff]
  %v165 = vld [vmem:[%s1 + $0x30] sm:$0xff]
  %v166 = vld [vmem:[%s1 + $0x38] sm:$0xff]
  %v167 = vld [vmem:[%s1 + $0x40] sm:$0xff]
  %v168 = vld [vmem:[%s1 + $0x48] sm:$0xff]
  %v169 = vld [vmem:[%s1 + $0x50] sm:$0xff]
  %v170 = vld [vmem:[%s1 + $0x58] sm:$0xff]
  %v171 = vld [vmem:[%s1 + $0x60] sm:$0xff]
  %v172 = vld [vmem:[%s1 + $0x68] sm:$0xff]
  %v173 = vld [vmem:[%s1 + $0x70] sm:$0xff]
  %v174 = vld [vmem:[%s1 + $0x78] sm:$0xff]
  %v175 = vld [vmem:[%s1 + $0x80] sm:$0xff]
  %v176 = vld [vmem:[%s1 + $0x88] sm:$0xff]
  %v177 = vld [vmem:[%s1 + $0x90] sm:$0xff]
  %v178 = vld [vmem:[%s1 + $0x98] sm:$0xff]
  %v179 = vld [vmem:[%s1 + $0xa0] sm:$0xff]
  %v180 = vld [vmem:[%s1 + $0xa8] sm:$0xff]
  %v181 = vld [vmem:[%s1 + $0xb0] sm:$0xff]
  %v182 = vld [vmem:[%s1 + $0xb8] sm:$0xff]
  %v183 = vld [vmem:[%s1 + $0xc0] sm:$0xff]
  %v184 = vld [vmem:[%s1 + $0xc8] sm:$0xff]
  %v185 = vld [vmem:[%s1 + $0xd0] sm:$0xff]
  %v186 = vld [vmem:[%s1 + $0xd8] sm:$0xff]
  %v187 = vld [vmem:[%s1 + $0xe0] sm:$0xff]
  %v188 = vld [vmem:[%s1 + $0xe8] sm:$0xff]
  %v189 = vld [vmem:[%s1 + $0xf0] sm:$0xff]
  %v190 = vld [vmem:[%s1 + $0xf8] sm:$0xff]
  %v191 = vld [vmem:[%s1 + $0x100] sm:$0xff]
  %v192 = vld [vmem:[%s1 + $0x108] sm:$0xff]
  %v193 = vld [vmem:[%s1 + $0x110] sm:$0xff]
  %v194 = vld [vmem:[%s1 + $0x118] sm:$0xff]
  %v195 = vld [vmem:[%s1 + $0x120] sm:$0xff]
  %v196 = vld [vmem:[%s1 + $0x128] sm:$0xff]
  %v197 = vld [vmem:[%s1 + $0x130] sm:$0xff]
  %v198 = vld [vmem:[%s1 + $0x138] sm:$0xff]
  %v199 = vld [vmem:[%s1 + $0x140] sm:$0xff]
  %v200 = vld [vmem:[%s1 + $0x148] sm:$0xff]
  %v201 = vld [vmem:[%s1 + $0x150] sm:$0xff]
  %v202 = vld [vmem:[%s1 + $0x158] sm:$0xff]
  %v203 = vld [vmem:[%s1 + $0x160] sm:$0xff]
  %v204 = vld [vmem:[%s1 + $0x168] sm:$0xff]
  %v205 = vld [vmem:[%s1 + $0x170] sm:$0xff]
  %v206 = vld [vmem:[%s1 + $0x178] sm:$0xff]
  %v207 = vld [vmem:[%s1 + $0x180] sm:$0xff]
  %v208 = vld [vmem:[%s1 + $0x188] sm:$0xff]
  %v209 = vld [vmem:[%s1 + $0x190] sm:$0xff]
  %v210 = vld [vmem:[%s1 + $0x198] sm:$0xff]
  %v211 = vld [vmem:[%s1 + $0x1a0] sm:$0xff]
  %v212 = vld [vmem:[%s1 + $0x1a8] sm:$0xff]
  %v213 = vld [vmem:[%s1 + $0x1b0] sm:$0xff]
  %v214 = vld [vmem:[%s1 + $0x1b8] sm:$0xff]
  %v215 = vld [vmem:[%s1 + $0x1c0] sm:$0xff]
  %v216 = vld [vmem:[%s1 + $0x1c8] sm:$0xff]
  %v217 = vld [vmem:[%s1 + $0x1d0] sm:$0xff]
  %v218 = vld [vmem:[%s1 + $0x1d8] sm:$0xff]
  %v219 = vld [vmem:[%s1 + $0x1e0] sm:$0xff]
  %v220 = vld [vmem:[%s1 + $0x1e8] sm:$0xff]
  %v221 = vld [vmem:[%s1 + $0x1f0] sm:$0xff]
  %v222 = vld [vmem:[%s1 + $0x1f8] sm:$0xff]
  %v223 = vld [vmem:[%s2] sm:$0x1]
  %v224 = vld [vmem:[%s3] sm:$0x1]
  %v226 = vperm.slane %v223, 0
  %228 = vmatpush.msra.mxu0 %v174
  %229 = vmatpush.msra.mxu0 %v173
  %230 = vmatpush.msra.mxu0 %v172
  %231 = vmatpush.msra.mxu0 %v171
  %232 = vmatpush.msra.mxu0 %v170
  %233 = vmatpush.msra.mxu0 %v169
  %234 = vmatpush.msra.mxu0 %v168
  %235 = vmatpush.msra.mxu0 %v167
  %236 = vmatpush.msra.mxu0 %v166
  %237 = vmatpush.msra.mxu0 %v165
  %238 = vmatpush.msra.mxu0 %v164
  %239 = vmatpush.msra.mxu0 %v163
  %240 = vmatpush.msra.mxu0 %v162
  %241 = vmatpush.msra.mxu0 %v161
  %242 = vmatpush.msra.mxu0 %v160
  %243 = vmatpush.msra.mxu0 %v159
  %244 = vmatmul.f32.gmra.mxu0 %v30
  %v245 = vpop.f32.mrf.mxu0
  %v246 = vadd.f32 %v226, %v245
  %247 = vmatmul.f32.gmra.mxu0 %v34
  %v248 = vpop.f32.mrf.mxu0
  %v249 = vadd.f32 %v226, %v248
  %250 = vmatmul.f32.gmra.mxu0 %v38
  %v251 = vpop.f32.mrf.mxu0
  %v252 = vadd.f32 %v226, %v251
  %253 = vmatmul.f32.gmra.mxu0 %v42
  %v254 = vpop.f32.mrf.mxu0
  %v255 = vadd.f32 %v226, %v254
  %256 = vmatmul.f32.gmra.mxu0 %v46
  %v257 = vpop.f32.mrf.mxu0
  %v258 = vadd.f32 %v226, %v257
  %259 = vmatmul.f32.gmra.mxu0 %v50
  %v260 = vpop.f32.mrf.mxu0
  %v261 = vadd.f32 %v226, %v260
  %262 = vmatmul.f32.gmra.mxu0 %v54
  %v263 = vpop.f32.mrf.mxu0
  %v264 = vadd.f32 %v226, %v263
  %265 = vmatmul.f32.gmra.mxu0 %v58
  %v266 = vpop.f32.mrf.mxu0
  %v267 = vadd.f32 %v226, %v266
  %268 = vmatmul.f32.gmra.mxu0 %v62
  %v269 = vpop.f32.mrf.mxu0
  %v270 = vadd.f32 %v226, %v269
  %271 = vmatmul.f32.gmra.mxu0 %v66
  %v272 = vpop.f32.mrf.mxu0
  %v273 = vadd.f32 %v226, %v272
  %274 = vmatmul.f32.gmra.mxu0 %v70
  %v275 = vpop.f32.mrf.mxu0
  %v276 = vadd.f32 %v226, %v275
  %277 = vmatmul.f32.gmra.mxu0 %v74
  %v278 = vpop.f32.mrf.mxu0
  %v279 = vadd.f32 %v226, %v278
  %280 = vmatmul.f32.gmra.mxu0 %v78
  %v281 = vpop.f32.mrf.mxu0
  %v282 = vadd.f32 %v226, %v281
  %283 = vmatmul.f32.gmra.mxu0 %v82
  %v284 = vpop.f32.mrf.mxu0
  %v285 = vadd.f32 %v226, %v284
  %286 = vmatmul.f32.gmra.mxu0 %v86
  %v287 = vpop.f32.mrf.mxu0
  %v288 = vadd.f32 %v226, %v287
  %289 = vmatmul.f32.gmra.mxu0 %v90
  %v290 = vpop.f32.mrf.mxu0
  %v291 = vadd.f32 %v226, %v290
  %292 = vdwg.mxu0
  %293 = vmatpush.msra.mxu0 %v190
  %294 = vmatpush.msra.mxu0 %v189
  %295 = vmatpush.msra.mxu0 %v188
  %296 = vmatpush.msra.mxu0 %v187
  %297 = vmatpush.msra.mxu0 %v186
  %298 = vmatpush.msra.mxu0 %v185
  %299 = vmatpush.msra.mxu0 %v184
  %300 = vmatpush.msra.mxu0 %v183
  %301 = vmatpush.msra.mxu0 %v182
  %302 = vmatpush.msra.mxu0 %v181
  %303 = vmatpush.msra.mxu0 %v180
  %304 = vmatpush.msra.mxu0 %v179
  %305 = vmatpush.msra.mxu0 %v178
  %306 = vmatpush.msra.mxu0 %v177
  %307 = vmatpush.msra.mxu0 %v176
  %308 = vmatpush.msra.mxu0 %v175
  %309 = vmatmul.f32.gmra.mxu0 %v31
  %v310 = vpop.f32.mrf.mxu0
  %v311 = vadd.f32 %v246, %v310
  %312 = vmatmul.f32.gmra.mxu0 %v35
  %v313 = vpop.f32.mrf.mxu0
  %v314 = vadd.f32 %v249, %v313
  %315 = vmatmul.f32.gmra.mxu0 %v39
  %v316 = vpop.f32.mrf.mxu0
  %v317 = vadd.f32 %v252, %v316
  %318 = vmatmul.f32.gmra.mxu0 %v43
  %v319 = vpop.f32.mrf.mxu0
  %v320 = vadd.f32 %v255, %v319
  %321 = vmatmul.f32.gmra.mxu0 %v47
  %v322 = vpop.f32.mrf.mxu0
  %v323 = vadd.f32 %v258, %v322
  %324 = vmatmul.f32.gmra.mxu0 %v51
  %v325 = vpop.f32.mrf.mxu0
  %v326 = vadd.f32 %v261, %v325
  %327 = vmatmul.f32.gmra.mxu0 %v55
  %v328 = vpop.f32.mrf.mxu0
  %v329 = vadd.f32 %v264, %v328
  %330 = vmatmul.f32.gmra.mxu0 %v59
  %v331 = vpop.f32.mrf.mxu0
  %v332 = vadd.f32 %v267, %v331
  %333 = vmatmul.f32.gmra.mxu0 %v63
  %v334 = vpop.f32.mrf.mxu0
  %v335 = vadd.f32 %v270, %v334
  %336 = vmatmul.f32.gmra.mxu0 %v67
  %v337 = vpop.f32.mrf.mxu0
  %v338 = vadd.f32 %v273, %v337
  %339 = vmatmul.f32.gmra.mxu0 %v71
  %v340 = vpop.f32.mrf.mxu0
  %v341 = vadd.f32 %v276, %v340
  %342 = vmatmul.f32.gmra.mxu0 %v75
  %v343 = vpop.f32.mrf.mxu0
  %v344 = vadd.f32 %v279, %v343
  %345 = vmatmul.f32.gmra.mxu0 %v79
  %v346 = vpop.f32.mrf.mxu0
  %v347 = vadd.f32 %v282, %v346
  %348 = vmatmul.f32.gmra.mxu0 %v83
  %v349 = vpop.f32.mrf.mxu0
  %v350 = vadd.f32 %v285, %v349
  %351 = vmatmul.f32.gmra.mxu0 %v87
  %v352 = vpop.f32.mrf.mxu0
  %v353 = vadd.f32 %v288, %v352
  %354 = vmatmul.f32.gmra.mxu0 %v91
  %v355 = vpop.f32.mrf.mxu0
  %v356 = vadd.f32 %v291, %v355
  %357 = vdwg.mxu0
  %358 = vmatpush.msra.mxu0 %v206
  %359 = vmatpush.msra.mxu0 %v205
  %360 = vmatpush.msra.mxu0 %v204
  %361 = vmatpush.msra.mxu0 %v203
  %362 = vmatpush.msra.mxu0 %v202
  %363 = vmatpush.msra.mxu0 %v201
  %364 = vmatpush.msra.mxu0 %v200
  %365 = vmatpush.msra.mxu0 %v199
  %366 = vmatpush.msra.mxu0 %v198
  %367 = vmatpush.msra.mxu0 %v197
  %368 = vmatpush.msra.mxu0 %v196
  %369 = vmatpush.msra.mxu0 %v195
  %370 = vmatpush.msra.mxu0 %v194
  %371 = vmatpush.msra.mxu0 %v193
  %372 = vmatpush.msra.mxu0 %v192
  %373 = vmatpush.msra.mxu0 %v191
  %374 = vmatmul.f32.gmra.mxu0 %v32
  %v375 = vpop.f32.mrf.mxu0
  %v376 = vadd.f32 %v311, %v375
  %377 = vmatmul.f32.gmra.mxu0 %v36
  %v378 = vpop.f32.mrf.mxu0
  %v379 = vadd.f32 %v314, %v378
  %380 = vmatmul.f32.gmra.mxu0 %v40
  %v381 = vpop.f32.mrf.mxu0
  %v382 = vadd.f32 %v317, %v381
  %383 = vmatmul.f32.gmra.mxu0 %v44
  %v384 = vpop.f32.mrf.mxu0
  %v385 = vadd.f32 %v320, %v384
  %386 = vmatmul.f32.gmra.mxu0 %v48
  %v387 = vpop.f32.mrf.mxu0
  %v388 = vadd.f32 %v323, %v387
  %389 = vmatmul.f32.gmra.mxu0 %v52
  %v390 = vpop.f32.mrf.mxu0
  %v391 = vadd.f32 %v326, %v390
  %392 = vmatmul.f32.gmra.mxu0 %v56
  %v393 = vpop.f32.mrf.mxu0
  %v394 = vadd.f32 %v329, %v393
  %395 = vmatmul.f32.gmra.mxu0 %v60
  %v396 = vpop.f32.mrf.mxu0
  %v397 = vadd.f32 %v332, %v396
  %398 = vmatmul.f32.gmra.mxu0 %v64
  %v399 = vpop.f32.mrf.mxu0
  %v400 = vadd.f32 %v335, %v399
  %401 = vmatmul.f32.gmra.mxu0 %v68
  %v402 = vpop.f32.mrf.mxu0
  %v403 = vadd.f32 %v338, %v402
  %404 = vmatmul.f32.gmra.mxu0 %v72
  %v405 = vpop.f32.mrf.mxu0
  %v406 = vadd.f32 %v341, %v405
  %407 = vmatmul.f32.gmra.mxu0 %v76
  %v408 = vpop.f32.mrf.mxu0
  %v409 = vadd.f32 %v344, %v408
  %410 = vmatmul.f32.gmra.mxu0 %v80
  %v411 = vpop.f32.mrf.mxu0
  %v412 = vadd.f32 %v347, %v411
  %413 = vmatmul.f32.gmra.mxu0 %v84
  %v414 = vpop.f32.mrf.mxu0
  %v415 = vadd.f32 %v350, %v414
  %416 = vmatmul.f32.gmra.mxu0 %v88
  %v417 = vpop.f32.mrf.mxu0
  %v418 = vadd.f32 %v353, %v417
  %419 = vmatmul.f32.gmra.mxu0 %v92
  %v420 = vpop.f32.mrf.mxu0
  %v421 = vadd.f32 %v356, %v420
  %422 = vdwg.mxu0
  %423 = vmatpush.msra.mxu0 %v222
  %424 = vmatpush.msra.mxu0 %v221
  %425 = vmatpush.msra.mxu0 %v220
  %426 = vmatpush.msra.mxu0 %v219
  %427 = vmatpush.msra.mxu0 %v218
  %428 = vmatpush.msra.mxu0 %v217
  %429 = vmatpush.msra.mxu0 %v216
  %430 = vmatpush.msra.mxu0 %v215
  %431 = vmatpush.msra.mxu0 %v214
  %432 = vmatpush.msra.mxu0 %v213
  %433 = vmatpush.msra.mxu0 %v212
  %434 = vmatpush.msra.mxu0 %v211
  %435 = vmatpush.msra.mxu0 %v210
  %436 = vmatpush.msra.mxu0 %v209
  %437 = vmatpush.msra.mxu0 %v208
  %438 = vmatpush.msra.mxu0 %v207
  %439 = vmatmul.f32.gmra.mxu0 %v33
  %v440 = vpop.f32.mrf.mxu0
  %v441 = vadd.f32 %v376, %v440
  %442 = vmatmul.f32.gmra.mxu0 %v37
  %v443 = vpop.f32.mrf.mxu0
  %v444 = vadd.f32 %v379, %v443
  %445 = vmatmul.f32.gmra.mxu0 %v41
  %v446 = vpop.f32.mrf.mxu0
  %v447 = vadd.f32 %v382, %v446
  %448 = vmatmul.f32.gmra.mxu0 %v45
  %v449 = vpop.f32.mrf.mxu0
  %v450 = vadd.f32 %v385, %v449
  %451 = vmatmul.f32.gmra.mxu0 %v49
  %v452 = vpop.f32.mrf.mxu0
  %v453 = vadd.f32 %v388, %v452
  %454 = vmatmul.f32.gmra.mxu0 %v53
  %v455 = vpop.f32.mrf.mxu0
  %v456 = vadd.f32 %v391, %v455
  %457 = vmatmul.f32.gmra.mxu0 %v57
  %v458 = vpop.f32.mrf.mxu0
  %v459 = vadd.f32 %v394, %v458
  %460 = vmatmul.f32.gmra.mxu0 %v61
  %v461 = vpop.f32.mrf.mxu0
  %v462 = vadd.f32 %v397, %v461
  %463 = vmatmul.f32.gmra.mxu0 %v65
  %v464 = vpop.f32.mrf.mxu0
  %v465 = vadd.f32 %v400, %v464
  %466 = vmatmul.f32.gmra.mxu0 %v69
  %v467 = vpop.f32.mrf.mxu0
  %v468 = vadd.f32 %v403, %v467
  %469 = vmatmul.f32.gmra.mxu0 %v73
  %v470 = vpop.f32.mrf.mxu0
  %v471 = vadd.f32 %v406, %v470
  %472 = vmatmul.f32.gmra.mxu0 %v77
  %v473 = vpop.f32.mrf.mxu0
  %v474 = vadd.f32 %v409, %v473
  %475 = vmatmul.f32.gmra.mxu0 %v81
  %v476 = vpop.f32.mrf.mxu0
  %v477 = vadd.f32 %v412, %v476
  %478 = vmatmul.f32.gmra.mxu0 %v85
  %v479 = vpop.f32.mrf.mxu0
  %v480 = vadd.f32 %v415, %v479
  %481 = vmatmul.f32.gmra.mxu0 %v89
  %v482 = vpop.f32.mrf.mxu0
  %v483 = vadd.f32 %v418, %v482
  %484 = vmatmul.f32.gmra.mxu0 %v93
  %v485 = vpop.f32.mrf.mxu0
  %v486 = vadd.f32 %v421, %v485
  %487 = vdwg.mxu0
  %v488 = vtanh.pop %v441
  %v489 = vtanh.pop %v444
  %v490 = vtanh.pop %v447
  %v491 = vtanh.pop %v450
  %v492 = vtanh.pop %v453
  %v493 = vtanh.pop %v456
  %v494 = vtanh.pop %v459
  %v495 = vtanh.pop %v462
  %v496 = vtanh.pop %v465
  %v497 = vtanh.pop %v468
  %v498 = vtanh.pop %v471
  %v499 = vtanh.pop %v474
  %v500 = vtanh.pop %v477
  %v501 = vtanh.pop %v480
  %v502 = vtanh.pop %v483
  %v503 = vtanh.pop %v486
  %504 = vmatpush.msra.mxu0 %v174
  %505 = vmatpush.msra.mxu0 %v173
  %506 = vmatpush.msra.mxu0 %v172
  %507 = vmatpush.msra.mxu0 %v171
  %508 = vmatpush.msra.mxu0 %v170
  %509 = vmatpush.msra.mxu0 %v169
  %510 = vmatpush.msra.mxu0 %v168
  %511 = vmatpush.msra.mxu0 %v167
  %512 = vmatpush.msra.mxu0 %v166
  %513 = vmatpush.msra.mxu0 %v165
  %514 = vmatpush.msra.mxu0 %v164
  %515 = vmatpush.msra.mxu0 %v163
  %516 = vmatpush.msra.mxu0 %v162
  %517 = vmatpush.msra.mxu0 %v161
  %518 = vmatpush.msra.mxu0 %v160
  %519 = vmatpush.msra.mxu0 %v159
  %520 = vmatmul.f32.gmra.mxu0 %v95
  %v521 = vpop.f32.mrf.mxu0
  %v522 = vadd.f32 %v226, %v521
  %523 = vmatmul.f32.gmra.mxu0 %v99
  %v524 = vpop.f32.mrf.mxu0
  %v525 = vadd.f32 %v226, %v524
  %526 = vmatmul.f32.gmra.mxu0 %v103
  %v527 = vpop.f32.mrf.mxu0
  %v528 = vadd.f32 %v226, %v527
  %529 = vmatmul.f32.gmra.mxu0 %v107
  %v530 = vpop.f32.mrf.mxu0
  %v531 = vadd.f32 %v226, %v530
  %532 = vmatmul.f32.gmra.mxu0 %v111
  %v533 = vpop.f32.mrf.mxu0
  %v534 = vadd.f32 %v226, %v533
  %535 = vmatmul.f32.gmra.mxu0 %v115
  %v536 = vpop.f32.mrf.mxu0
  %v537 = vadd.f32 %v226, %v536
  %538 = vmatmul.f32.gmra.mxu0 %v119
  %v539 = vpop.f32.mrf.mxu0
  %v540 = vadd.f32 %v226, %v539
  %541 = vmatmul.f32.gmra.mxu0 %v123
  %v542 = vpop.f32.mrf.mxu0
  %v543 = vadd.f32 %v226, %v542
  %544 = vmatmul.f32.gmra.mxu0 %v127
  %v545 = vpop.f32.mrf.mxu0
  %v546 = vadd.f32 %v226, %v545
  %547 = vmatmul.f32.gmra.mxu0 %v131
  %v548 = vpop.f32.mrf.mxu0
  %v549 = vadd.f32 %v226, %v548
  %550 = vmatmul.f32.gmra.mxu0 %v135
  %v551 = vpop.f32.mrf.mxu0
  %v552 = vadd.f32 %v226, %v551
  %553 = vmatmul.f32.gmra.mxu0 %v139
  %v554 = vpop.f32.mrf.mxu0
  %v555 = vadd.f32 %v226, %v554
  %556 = vmatmul.f32.gmra.mxu0 %v143
  %v557 = vpop.f32.mrf.mxu0
  %v558 = vadd.f32 %v226, %v557
  %559 = vmatmul.f32.gmra.mxu0 %v147
  %v560 = vpop.f32.mrf.mxu0
  %v561 = vadd.f32 %v226, %v560
  %562 = vmatmul.f32.gmra.mxu0 %v151
  %v563 = vpop.f32.mrf.mxu0
  %v564 = vadd.f32 %v226, %v563
  %565 = vmatmul.f32.gmra.mxu0 %v155
  %v566 = vpop.f32.mrf.mxu0
  %v567 = vadd.f32 %v226, %v566
  %568 = vdwg.mxu0
  %569 = vmatpush.msra.mxu0 %v190
  %570 = vmatpush.msra.mxu0 %v189
  %571 = vmatpush.msra.mxu0 %v188
  %572 = vmatpush.msra.mxu0 %v187
  %573 = vmatpush.msra.mxu0 %v186
  %574 = vmatpush.msra.mxu0 %v185
  %575 = vmatpush.msra.mxu0 %v184
  %576 = vmatpush.msra.mxu0 %v183
  %577 = vmatpush.msra.mxu0 %v182
  %578 = vmatpush.msra.mxu0 %v181
  %579 = vmatpush.msra.mxu0 %v180
  %580 = vmatpush.msra.mxu0 %v179
  %581 = vmatpush.msra.mxu0 %v178
  %582 = vmatpush.msra.mxu0 %v177
  %583 = vmatpush.msra.mxu0 %v176
  %584 = vmatpush.msra.mxu0 %v175
  %585 = vmatmul.f32.gmra.mxu0 %v96
  %v586 = vpop.f32.mrf.mxu0
  %v587 = vadd.f32 %v522, %v586
  %588 = vmatmul.f32.gmra.mxu0 %v100
  %v589 = vpop.f32.mrf.mxu0
  %v590 = vadd.f32 %v525, %v589
  %591 = vmatmul.f32.gmra.mxu0 %v104
  %v592 = vpop.f32.mrf.mxu0
  %v593 = vadd.f32 %v528, %v592
  %594 = vmatmul.f32.gmra.mxu0 %v108
  %v595 = vpop.f32.mrf.mxu0
  %v596 = vadd.f32 %v531, %v595
  %597 = vmatmul.f32.gmra.mxu0 %v112
  %v598 = vpop.f32.mrf.mxu0
  %v599 = vadd.f32 %v534, %v598
  %600 = vmatmul.f32.gmra.mxu0 %v116
  %v601 = vpop.f32.mrf.mxu0
  %v602 = vadd.f32 %v537, %v601
  %603 = vmatmul.f32.gmra.mxu0 %v120
  %v604 = vpop.f32.mrf.mxu0
  %v605 = vadd.f32 %v540, %v604
  %606 = vmatmul.f32.gmra.mxu0 %v124
  %v607 = vpop.f32.mrf.mxu0
  %v608 = vadd.f32 %v543, %v607
  %609 = vmatmul.f32.gmra.mxu0 %v128
  %v610 = vpop.f32.mrf.mxu0
  %v611 = vadd.f32 %v546, %v610
  %612 = vmatmul.f32.gmra.mxu0 %v132
  %v613 = vpop.f32.mrf.mxu0
  %v614 = vadd.f32 %v549, %v613
  %615 = vmatmul.f32.gmra.mxu0 %v136
  %v616 = vpop.f32.mrf.mxu0
  %v617 = vadd.f32 %v552, %v616
  %618 = vmatmul.f32.gmra.mxu0 %v140
  %v619 = vpop.f32.mrf.mxu0
  %v620 = vadd.f32 %v555, %v619
  %621 = vmatmul.f32.gmra.mxu0 %v144
  %v622 = vpop.f32.mrf.mxu0
  %v623 = vadd.f32 %v558, %v622
  %624 = vmatmul.f32.gmra.mxu0 %v148
  %v625 = vpop.f32.mrf.mxu0
  %v626 = vadd.f32 %v561, %v625
  %627 = vmatmul.f32.gmra.mxu0 %v152
  %v628 = vpop.f32.mrf.mxu0
  %v629 = vadd.f32 %v564, %v628
  %630 = vmatmul.f32.gmra.mxu0 %v156
  %v631 = vpop.f32.mrf.mxu0
  %v632 = vadd.f32 %v567, %v631
  %633 = vdwg.mxu0
  %634 = vmatpush.msra.mxu0 %v206
  %635 = vmatpush.msra.mxu0 %v205
  %636 = vmatpush.msra.mxu0 %v204
  %637 = vmatpush.msra.mxu0 %v203
  %638 = vmatpush.msra.mxu0 %v202
  %639 = vmatpush.msra.mxu0 %v201
  %640 = vmatpush.msra.mxu0 %v200
  %641 = vmatpush.msra.mxu0 %v199
  %642 = vmatpush.msra.mxu0 %v198
  %643 = vmatpush.msra.mxu0 %v197
  %644 = vmatpush.msra.mxu0 %v196
  %645 = vmatpush.msra.mxu0 %v195
  %646 = vmatpush.msra.mxu0 %v194
  %647 = vmatpush.msra.mxu0 %v193
  %648 = vmatpush.msra.mxu0 %v192
  %649 = vmatpush.msra.mxu0 %v191
  %650 = vmatmul.f32.gmra.mxu0 %v97
  %v651 = vpop.f32.mrf.mxu0
  %v652 = vadd.f32 %v587, %v651
  %653 = vmatmul.f32.gmra.mxu0 %v101
  %v654 = vpop.f32.mrf.mxu0
  %v655 = vadd.f32 %v590, %v654
  %656 = vmatmul.f32.gmra.mxu0 %v105
  %v657 = vpop.f32.mrf.mxu0
  %v658 = vadd.f32 %v593, %v657
  %659 = vmatmul.f32.gmra.mxu0 %v109
  %v660 = vpop.f32.mrf.mxu0
  %v661 = vadd.f32 %v596, %v660
  %662 = vmatmul.f32.gmra.mxu0 %v113
  %v663 = vpop.f32.mrf.mxu0
  %v664 = vadd.f32 %v599, %v663
  %665 = vmatmul.f32.gmra.mxu0 %v117
  %v666 = vpop.f32.mrf.mxu0
  %v667 = vadd.f32 %v602, %v666
  %668 = vmatmul.f32.gmra.mxu0 %v121
  %v669 = vpop.f32.mrf.mxu0
  %v670 = vadd.f32 %v605, %v669
  %671 = vmatmul.f32.gmra.mxu0 %v125
  %v672 = vpop.f32.mrf.mxu0
  %v673 = vadd.f32 %v608, %v672
  %674 = vmatmul.f32.gmra.mxu0 %v129
  %v675 = vpop.f32.mrf.mxu0
  %v676 = vadd.f32 %v611, %v675
  %677 = vmatmul.f32.gmra.mxu0 %v133
  %v678 = vpop.f32.mrf.mxu0
  %v679 = vadd.f32 %v614, %v678
  %680 = vmatmul.f32.gmra.mxu0 %v137
  %v681 = vpop.f32.mrf.mxu0
  %v682 = vadd.f32 %v617, %v681
  %683 = vmatmul.f32.gmra.mxu0 %v141
  %v684 = vpop.f32.mrf.mxu0
  %v685 = vadd.f32 %v620, %v684
  %686 = vmatmul.f32.gmra.mxu0 %v145
  %v687 = vpop.f32.mrf.mxu0
  %v688 = vadd.f32 %v623, %v687
  %689 = vmatmul.f32.gmra.mxu0 %v149
  %v690 = vpop.f32.mrf.mxu0
  %v691 = vadd.f32 %v626, %v690
  %692 = vmatmul.f32.gmra.mxu0 %v153
  %v693 = vpop.f32.mrf.mxu0
  %v694 = vadd.f32 %v629, %v693
  %695 = vmatmul.f32.gmra.mxu0 %v157
  %v696 = vpop.f32.mrf.mxu0
  %v697 = vadd.f32 %v632, %v696
  %698 = vdwg.mxu0
  %699 = vmatpush.msra.mxu0 %v222
  %700 = vmatpush.msra.mxu0 %v221
  %701 = vmatpush.msra.mxu0 %v220
  %702 = vmatpush.msra.mxu0 %v219
  %703 = vmatpush.msra.mxu0 %v218
  %704 = vmatpush.msra.mxu0 %v217
  %705 = vmatpush.msra.mxu0 %v216
  %706 = vmatpush.msra.mxu0 %v215
  %707 = vmatpush.msra.mxu0 %v214
  %708 = vmatpush.msra.mxu0 %v213
  %709 = vmatpush.msra.mxu0 %v212
  %710 = vmatpush.msra.mxu0 %v211
  %711 = vmatpush.msra.mxu0 %v210
  %712 = vmatpush.msra.mxu0 %v209
  %713 = vmatpush.msra.mxu0 %v208
  %714 = vmatpush.msra.mxu0 %v207
  %715 = vmatmul.f32.gmra.mxu0 %v98
  %v716 = vpop.f32.mrf.mxu0
  %v717 = vadd.f32 %v652, %v716
  %718 = vmatmul.f32.gmra.mxu0 %v102
  %v719 = vpop.f32.mrf.mxu0
  %v720 = vadd.f32 %v655, %v719
  %721 = vmatmul.f32.gmra.mxu0 %v106
  %v722 = vpop.f32.mrf.mxu0
  %v723 = vadd.f32 %v658, %v722
  %724 = vmatmul.f32.gmra.mxu0 %v110
  %v725 = vpop.f32.mrf.mxu0
  %v726 = vadd.f32 %v661, %v725
  %727 = vmatmul.f32.gmra.mxu0 %v114
  %v728 = vpop.f32.mrf.mxu0
  %v729 = vadd.f32 %v664, %v728
  %730 = vmatmul.f32.gmra.mxu0 %v118
  %v731 = vpop.f32.mrf.mxu0
  %v732 = vadd.f32 %v667, %v731
  %733 = vmatmul.f32.gmra.mxu0 %v122
  %v734 = vpop.f32.mrf.mxu0
  %v735 = vadd.f32 %v670, %v734
  %736 = vmatmul.f32.gmra.mxu0 %v126
  %v737 = vpop.f32.mrf.mxu0
  %v738 = vadd.f32 %v673, %v737
  %739 = vmatmul.f32.gmra.mxu0 %v130
  %v740 = vpop.f32.mrf.mxu0
  %v741 = vadd.f32 %v676, %v740
  %742 = vmatmul.f32.gmra.mxu0 %v134
  %v743 = vpop.f32.mrf.mxu0
  %v744 = vadd.f32 %v679, %v743
  %745 = vmatmul.f32.gmra.mxu0 %v138
  %v746 = vpop.f32.mrf.mxu0
  %v747 = vadd.f32 %v682, %v746
  %748 = vmatmul.f32.gmra.mxu0 %v142
  %v749 = vpop.f32.mrf.mxu0
  %v750 = vadd.f32 %v685, %v749
  %751 = vmatmul.f32.gmra.mxu0 %v146
  %v752 = vpop.f32.mrf.mxu0
  %v753 = vadd.f32 %v688, %v752
  %754 = vmatmul.f32.gmra.mxu0 %v150
  %v755 = vpop.f32.mrf.mxu0
  %v756 = vadd.f32 %v691, %v755
  %757 = vmatmul.f32.gmra.mxu0 %v154
  %v758 = vpop.f32.mrf.mxu0
  %v759 = vadd.f32 %v694, %v758
  %760 = vmatmul.f32.gmra.mxu0 %v158
  %v761 = vpop.f32.mrf.mxu0
  %v762 = vadd.f32 %v697, %v761
  %763 = vdwg.mxu0
  %v764 = vtanh.pop %v717
  %v765 = vtanh.pop %v720
  %v766 = vtanh.pop %v723
  %v767 = vtanh.pop %v726
  %v768 = vtanh.pop %v729
  %v769 = vtanh.pop %v732
  %v770 = vtanh.pop %v735
  %v771 = vtanh.pop %v738
  %v772 = vtanh.pop %v741
  %v773 = vtanh.pop %v744
  %v774 = vtanh.pop %v747
  %v775 = vtanh.pop %v750
  %v776 = vtanh.pop %v753
  %v777 = vtanh.pop %v756
  %v778 = vtanh.pop %v759
  %v779 = vtanh.pop %v762
  %v781 = vperm.slane %v224, 0
  %v783 = vmul.f32 %v488, %v781
  %v784 = vmul.f32 %v489, %v781
  %v785 = vmul.f32 %v490, %v781
  %v786 = vmul.f32 %v491, %v781
  %v787 = vmul.f32 %v492, %v781
  %v788 = vmul.f32 %v493, %v781
  %v789 = vmul.f32 %v494, %v781
  %v790 = vmul.f32 %v495, %v781
  %v791 = vmul.f32 %v496, %v781
  %v792 = vmul.f32 %v497, %v781
  %v793 = vmul.f32 %v498, %v781
  %v794 = vmul.f32 %v499, %v781
  %v795 = vmul.f32 %v500, %v781
  %v796 = vmul.f32 %v501, %v781
  %v797 = vmul.f32 %v502, %v781
  %v798 = vmul.f32 %v503, %v781
  %vm799 = vcmask 130048
  %v800 = vsel %vm799, %v783, 0.0
  %801 = vadd.xlane.f32.xlu0 %v800
  %v802 = vpop.xlane.xlu0 %801
  %v803 = vsel %vm799, %v784, 0.0
  %804 = vadd.xlane.f32.xlu0 %v803
  %v805 = vpop.xlane.xlu0 %804
  %v806 = vsel %vm799, %v785, 0.0
  %807 = vadd.xlane.f32.xlu0 %v806
  %v808 = vpop.xlane.xlu0 %807
  %v809 = vsel %vm799, %v786, 0.0
  %810 = vadd.xlane.f32.xlu0 %v809
  %v811 = vpop.xlane.xlu0 %810
  %v812 = vsel %vm799, %v787, 0.0
  %813 = vadd.xlane.f32.xlu0 %v812
  %v814 = vpop.xlane.xlu0 %813
  %v815 = vsel %vm799, %v788, 0.0
  %816 = vadd.xlane.f32.xlu0 %v815
  %v817 = vpop.xlane.xlu0 %816
  %v818 = vsel %vm799, %v789, 0.0
  %819 = vadd.xlane.f32.xlu0 %v818
  %v820 = vpop.xlane.xlu0 %819
  %v821 = vsel %vm799, %v790, 0.0
  %822 = vadd.xlane.f32.xlu0 %v821
  %v823 = vpop.xlane.xlu0 %822
  %v824 = vsel %vm799, %v791, 0.0
  %825 = vadd.xlane.f32.xlu0 %v824
  %v826 = vpop.xlane.xlu0 %825
  %v827 = vsel %vm799, %v792, 0.0
  %828 = vadd.xlane.f32.xlu0 %v827
  %v829 = vpop.xlane.xlu0 %828
  %v830 = vsel %vm799, %v793, 0.0
  %831 = vadd.xlane.f32.xlu0 %v830
  %v832 = vpop.xlane.xlu0 %831
  %v833 = vsel %vm799, %v794, 0.0
  %834 = vadd.xlane.f32.xlu0 %v833
  %v835 = vpop.xlane.xlu0 %834
  %v836 = vsel %vm799, %v795, 0.0
  %837 = vadd.xlane.f32.xlu0 %v836
  %v838 = vpop.xlane.xlu0 %837
  %v839 = vsel %vm799, %v796, 0.0
  %840 = vadd.xlane.f32.xlu0 %v839
  %v841 = vpop.xlane.xlu0 %840
  %v842 = vsel %vm799, %v797, 0.0
  %843 = vadd.xlane.f32.xlu0 %v842
  %v844 = vpop.xlane.xlu0 %843
  %v845 = vsel %vm799, %v798, 0.0
  %846 = vadd.xlane.f32.xlu0 %v845
  %v847 = vpop.xlane.xlu0 %846
  %v848 = vmul.f32 %v764, %v781
  %v849 = vmul.f32 %v765, %v781
  %v850 = vmul.f32 %v766, %v781
  %v851 = vmul.f32 %v767, %v781
  %v852 = vmul.f32 %v768, %v781
  %v853 = vmul.f32 %v769, %v781
  %v854 = vmul.f32 %v770, %v781
  %v855 = vmul.f32 %v771, %v781
  %v856 = vmul.f32 %v772, %v781
  %v857 = vmul.f32 %v773, %v781
  %v858 = vmul.f32 %v774, %v781
  %v859 = vmul.f32 %v775, %v781
  %v860 = vmul.f32 %v776, %v781
  %v861 = vmul.f32 %v777, %v781
  %v862 = vmul.f32 %v778, %v781
  %v863 = vmul.f32 %v779, %v781
  %v864 = vsel %vm799, %v848, 0.0
  %865 = vadd.xlane.f32.xlu0 %v864
  %v866 = vpop.xlane.xlu0 %865
  %v867 = vsel %vm799, %v849, 0.0
  %868 = vadd.xlane.f32.xlu0 %v867
  %v869 = vpop.xlane.xlu0 %868
  %v870 = vsel %vm799, %v850, 0.0
  %871 = vadd.xlane.f32.xlu0 %v870
  %v872 = vpop.xlane.xlu0 %871
  %v873 = vsel %vm799, %v851, 0.0
  %874 = vadd.xlane.f32.xlu0 %v873
  %v875 = vpop.xlane.xlu0 %874
  %v876 = vsel %vm799, %v852, 0.0
  %877 = vadd.xlane.f32.xlu0 %v876
  %v878 = vpop.xlane.xlu0 %877
  %v879 = vsel %vm799, %v853, 0.0
  %880 = vadd.xlane.f32.xlu0 %v879
  %v881 = vpop.xlane.xlu0 %880
  %v882 = vsel %vm799, %v854, 0.0
  %883 = vadd.xlane.f32.xlu0 %v882
  %v884 = vpop.xlane.xlu0 %883
  %v885 = vsel %vm799, %v855, 0.0
  %886 = vadd.xlane.f32.xlu0 %v885
  %v887 = vpop.xlane.xlu0 %886
  %v888 = vsel %vm799, %v856, 0.0
  %889 = vadd.xlane.f32.xlu0 %v888
  %v890 = vpop.xlane.xlu0 %889
  %v891 = vsel %vm799, %v857, 0.0
  %892 = vadd.xlane.f32.xlu0 %v891
  %v893 = vpop.xlane.xlu0 %892
  %v894 = vsel %vm799, %v858, 0.0
  %895 = vadd.xlane.f32.xlu0 %v894
  %v896 = vpop.xlane.xlu0 %895
  %v897 = vsel %vm799, %v859, 0.0
  %898 = vadd.xlane.f32.xlu0 %v897
  %v899 = vpop.xlane.xlu0 %898
  %v900 = vsel %vm799, %v860, 0.0
  %901 = vadd.xlane.f32.xlu0 %v900
  %v902 = vpop.xlane.xlu0 %901
  %v903 = vsel %vm799, %v861, 0.0
  %904 = vadd.xlane.f32.xlu0 %v903
  %v905 = vpop.xlane.xlu0 %904
  %v906 = vsel %vm799, %v862, 0.0
  %907 = vadd.xlane.f32.xlu0 %v906
  %v908 = vpop.xlane.xlu0 %907
  %v909 = vsel %vm799, %v863, 0.0
  %910 = vadd.xlane.f32.xlu0 %v909
  %v911 = vpop.xlane.xlu0 %910
  %v912 = vmax.f32 %v802, %v866
  %v913 = vmax.f32 %v805, %v869
  %v914 = vmax.f32 %v808, %v872
  %v915 = vmax.f32 %v811, %v875
  %v916 = vmax.f32 %v814, %v878
  %v917 = vmax.f32 %v817, %v881
  %v918 = vmax.f32 %v820, %v884
  %v919 = vmax.f32 %v823, %v887
  %v920 = vmax.f32 %v826, %v890
  %v921 = vmax.f32 %v829, %v893
  %v922 = vmax.f32 %v832, %v896
  %v923 = vmax.f32 %v835, %v899
  %v924 = vmax.f32 %v838, %v902
  %v925 = vmax.f32 %v841, %v905
  %v926 = vmax.f32 %v844, %v908
  %v927 = vmax.f32 %v847, %v911
  %v928 = vsub.f32 %v802, %v912
  %v929 = vsub.f32 %v805, %v913
  %v930 = vsub.f32 %v808, %v914
  %v931 = vsub.f32 %v811, %v915
  %v932 = vsub.f32 %v814, %v916
  %v933 = vsub.f32 %v817, %v917
  %v934 = vsub.f32 %v820, %v918
  %v935 = vsub.f32 %v823, %v919
  %v936 = vsub.f32 %v826, %v920
  %v937 = vsub.f32 %v829, %v921
  %v938 = vsub.f32 %v832, %v922
  %v939 = vsub.f32 %v835, %v923
  %v940 = vsub.f32 %v838, %v924
  %v941 = vsub.f32 %v841, %v925
  %v942 = vsub.f32 %v844, %v926
  %v943 = vsub.f32 %v847, %v927
  %v944 = vmul.f32 %v928, 1.442695
  %v945 = vpow.pop %v944
  %v946 = vmul.f32 %v929, 1.442695
  %v947 = vpow.pop %v946
  %v948 = vmul.f32 %v930, 1.442695
  %v949 = vpow.pop %v948
  %v950 = vmul.f32 %v931, 1.442695
  %v951 = vpow.pop %v950
  %v952 = vmul.f32 %v932, 1.442695
  %v953 = vpow.pop %v952
  %v954 = vmul.f32 %v933, 1.442695
  %v955 = vpow.pop %v954
  %v956 = vmul.f32 %v934, 1.442695
  %v957 = vpow.pop %v956
  %v958 = vmul.f32 %v935, 1.442695
  %v959 = vpow.pop %v958
  %v960 = vmul.f32 %v936, 1.442695
  %v961 = vpow.pop %v960
  %v962 = vmul.f32 %v937, 1.442695
  %v963 = vpow.pop %v962
  %v964 = vmul.f32 %v938, 1.442695
  %v965 = vpow.pop %v964
  %v966 = vmul.f32 %v939, 1.442695
  %v967 = vpow.pop %v966
  %v968 = vmul.f32 %v940, 1.442695
  %v969 = vpow.pop %v968
  %v970 = vmul.f32 %v941, 1.442695
  %v971 = vpow.pop %v970
  %v972 = vmul.f32 %v942, 1.442695
  %v973 = vpow.pop %v972
  %v974 = vmul.f32 %v943, 1.442695
  %v975 = vpow.pop %v974
  %v976 = vsub.f32 %v866, %v912
  %v977 = vsub.f32 %v869, %v913
  %v978 = vsub.f32 %v872, %v914
  %v979 = vsub.f32 %v875, %v915
  %v980 = vsub.f32 %v878, %v916
  %v981 = vsub.f32 %v881, %v917
  %v982 = vsub.f32 %v884, %v918
  %v983 = vsub.f32 %v887, %v919
  %v984 = vsub.f32 %v890, %v920
  %v985 = vsub.f32 %v893, %v921
  %v986 = vsub.f32 %v896, %v922
  %v987 = vsub.f32 %v899, %v923
  %v988 = vsub.f32 %v902, %v924
  %v989 = vsub.f32 %v905, %v925
  %v990 = vsub.f32 %v908, %v926
  %v991 = vsub.f32 %v911, %v927
  %v992 = vmul.f32 %v976, 1.442695
  %v993 = vpow.pop %v992
  %v994 = vmul.f32 %v977, 1.442695
  %v995 = vpow.pop %v994
  %v996 = vmul.f32 %v978, 1.442695
  %v997 = vpow.pop %v996
  %v998 = vmul.f32 %v979, 1.442695
  %v999 = vpow.pop %v998
  %v1000 = vmul.f32 %v980, 1.442695
  %v1001 = vpow.pop %v1000
  %v1002 = vmul.f32 %v981, 1.442695
  %v1003 = vpow.pop %v1002
  %v1004 = vmul.f32 %v982, 1.442695
  %v1005 = vpow.pop %v1004
  %v1006 = vmul.f32 %v983, 1.442695
  %v1007 = vpow.pop %v1006
  %v1008 = vmul.f32 %v984, 1.442695
  %v1009 = vpow.pop %v1008
  %v1010 = vmul.f32 %v985, 1.442695
  %v1011 = vpow.pop %v1010
  %v1012 = vmul.f32 %v986, 1.442695
  %v1013 = vpow.pop %v1012
  %v1014 = vmul.f32 %v987, 1.442695
  %v1015 = vpow.pop %v1014
  %v1016 = vmul.f32 %v988, 1.442695
  %v1017 = vpow.pop %v1016
  %v1018 = vmul.f32 %v989, 1.442695
  %v1019 = vpow.pop %v1018
  %v1020 = vmul.f32 %v990, 1.442695
  %v1021 = vpow.pop %v1020
  %v1022 = vmul.f32 %v991, 1.442695
  %v1023 = vpow.pop %v1022
  %v1024 = vadd.f32 %v945, %v993
  %v1025 = vadd.f32 %v947, %v995
  %v1026 = vadd.f32 %v949, %v997
  %v1027 = vadd.f32 %v951, %v999
  %v1028 = vadd.f32 %v953, %v1001
  %v1029 = vadd.f32 %v955, %v1003
  %v1030 = vadd.f32 %v957, %v1005
  %v1031 = vadd.f32 %v959, %v1007
  %v1032 = vadd.f32 %v961, %v1009
  %v1033 = vadd.f32 %v963, %v1011
  %v1034 = vadd.f32 %v965, %v1013
  %v1035 = vadd.f32 %v967, %v1015
  %v1036 = vadd.f32 %v969, %v1017
  %v1037 = vadd.f32 %v971, %v1019
  %v1038 = vadd.f32 %v973, %v1021
  %v1039 = vadd.f32 %v975, %v1023
  %v1040 = vrcp.pop %v1024
  %v1041 = vrcp.pop %v1025
  %v1042 = vrcp.pop %v1026
  %v1043 = vrcp.pop %v1027
  %v1044 = vrcp.pop %v1028
  %v1045 = vrcp.pop %v1029
  %v1046 = vrcp.pop %v1030
  %v1047 = vrcp.pop %v1031
  %v1048 = vrcp.pop %v1032
  %v1049 = vrcp.pop %v1033
  %v1050 = vrcp.pop %v1034
  %v1051 = vrcp.pop %v1035
  %v1052 = vrcp.pop %v1036
  %v1053 = vrcp.pop %v1037
  %v1054 = vrcp.pop %v1038
  %v1055 = vrcp.pop %v1039
  %v1056 = vmul.f32 %v945, %v1040
  %v1057 = vmul.f32 %v947, %v1041
  %v1058 = vmul.f32 %v949, %v1042
  %v1059 = vmul.f32 %v951, %v1043
  %v1060 = vmul.f32 %v953, %v1044
  %v1061 = vmul.f32 %v955, %v1045
  %v1062 = vmul.f32 %v957, %v1046
  %v1063 = vmul.f32 %v959, %v1047
  %v1064 = vmul.f32 %v961, %v1048
  %v1065 = vmul.f32 %v963, %v1049
  %v1066 = vmul.f32 %v965, %v1050
  %v1067 = vmul.f32 %v967, %v1051
  %v1068 = vmul.f32 %v969, %v1052
  %v1069 = vmul.f32 %v971, %v1053
  %v1070 = vmul.f32 %v973, %v1054
  %v1071 = vmul.f32 %v975, %v1055
  %v1072 = vmul.f32 %v1056, %v30
  %v1073 = vmul.f32 %v1056, %v31
  %v1074 = vmul.f32 %v1056, %v32
  %v1075 = vmul.f32 %v1056, %v33
  %v1076 = vmul.f32 %v1057, %v34
  %v1077 = vmul.f32 %v1057, %v35
  %v1078 = vmul.f32 %v1057, %v36
  %v1079 = vmul.f32 %v1057, %v37
  %v1080 = vmul.f32 %v1058, %v38
  %v1081 = vmul.f32 %v1058, %v39
  %v1082 = vmul.f32 %v1058, %v40
  %v1083 = vmul.f32 %v1058, %v41
  %v1084 = vmul.f32 %v1059, %v42
  %v1085 = vmul.f32 %v1059, %v43
  %v1086 = vmul.f32 %v1059, %v44
  %v1087 = vmul.f32 %v1059, %v45
  %v1088 = vmul.f32 %v1060, %v46
  %v1089 = vmul.f32 %v1060, %v47
  %v1090 = vmul.f32 %v1060, %v48
  %v1091 = vmul.f32 %v1060, %v49
  %v1092 = vmul.f32 %v1061, %v50
  %v1093 = vmul.f32 %v1061, %v51
  %v1094 = vmul.f32 %v1061, %v52
  %v1095 = vmul.f32 %v1061, %v53
  %v1096 = vmul.f32 %v1062, %v54
  %v1097 = vmul.f32 %v1062, %v55
  %v1098 = vmul.f32 %v1062, %v56
  %v1099 = vmul.f32 %v1062, %v57
  %v1100 = vmul.f32 %v1063, %v58
  %v1101 = vmul.f32 %v1063, %v59
  %v1102 = vmul.f32 %v1063, %v60
  %v1103 = vmul.f32 %v1063, %v61
  %v1104 = vmul.f32 %v1064, %v62
  %v1105 = vmul.f32 %v1064, %v63
  %v1106 = vmul.f32 %v1064, %v64
  %v1107 = vmul.f32 %v1064, %v65
  %v1108 = vmul.f32 %v1065, %v66
  %v1109 = vmul.f32 %v1065, %v67
  %v1110 = vmul.f32 %v1065, %v68
  %v1111 = vmul.f32 %v1065, %v69
  %v1112 = vmul.f32 %v1066, %v70
  %v1113 = vmul.f32 %v1066, %v71
  %v1114 = vmul.f32 %v1066, %v72
  %v1115 = vmul.f32 %v1066, %v73
  %v1116 = vmul.f32 %v1067, %v74
  %v1117 = vmul.f32 %v1067, %v75
  %v1118 = vmul.f32 %v1067, %v76
  %v1119 = vmul.f32 %v1067, %v77
  %v1120 = vmul.f32 %v1068, %v78
  %v1121 = vmul.f32 %v1068, %v79
  %v1122 = vmul.f32 %v1068, %v80
  %v1123 = vmul.f32 %v1068, %v81
  %v1124 = vmul.f32 %v1069, %v82
  %v1125 = vmul.f32 %v1069, %v83
  %v1126 = vmul.f32 %v1069, %v84
  %v1127 = vmul.f32 %v1069, %v85
  %v1128 = vmul.f32 %v1070, %v86
  %v1129 = vmul.f32 %v1070, %v87
  %v1130 = vmul.f32 %v1070, %v88
  %v1131 = vmul.f32 %v1070, %v89
  %v1132 = vmul.f32 %v1071, %v90
  %v1133 = vmul.f32 %v1071, %v91
  %v1134 = vmul.f32 %v1071, %v92
  %v1135 = vmul.f32 %v1071, %v93
  %v1136 = vmul.f32 %v993, %v1040
  %v1137 = vmul.f32 %v995, %v1041
  %v1138 = vmul.f32 %v997, %v1042
  %v1139 = vmul.f32 %v999, %v1043
  %v1140 = vmul.f32 %v1001, %v1044
  %v1141 = vmul.f32 %v1003, %v1045
  %v1142 = vmul.f32 %v1005, %v1046
  %v1143 = vmul.f32 %v1007, %v1047
  %v1144 = vmul.f32 %v1009, %v1048
  %v1145 = vmul.f32 %v1011, %v1049
  %v1146 = vmul.f32 %v1013, %v1050
  %v1147 = vmul.f32 %v1015, %v1051
  %v1148 = vmul.f32 %v1017, %v1052
  %v1149 = vmul.f32 %v1019, %v1053
  %v1150 = vmul.f32 %v1021, %v1054
  %v1151 = vmul.f32 %v1023, %v1055
  %v1152 = vmul.f32 %v1136, %v95
  %v1153 = vmul.f32 %v1136, %v96
  %v1154 = vmul.f32 %v1136, %v97
  %v1155 = vmul.f32 %v1136, %v98
  %v1156 = vmul.f32 %v1137, %v99
  %v1157 = vmul.f32 %v1137, %v100
  %v1158 = vmul.f32 %v1137, %v101
  %v1159 = vmul.f32 %v1137, %v102
  %v1160 = vmul.f32 %v1138, %v103
  %v1161 = vmul.f32 %v1138, %v104
  %v1162 = vmul.f32 %v1138, %v105
  %v1163 = vmul.f32 %v1138, %v106
  %v1164 = vmul.f32 %v1139, %v107
  %v1165 = vmul.f32 %v1139, %v108
  %v1166 = vmul.f32 %v1139, %v109
  %v1167 = vmul.f32 %v1139, %v110
  %v1168 = vmul.f32 %v1140, %v111
  %v1169 = vmul.f32 %v1140, %v112
  %v1170 = vmul.f32 %v1140, %v113
  %v1171 = vmul.f32 %v1140, %v114
  %v1172 = vmul.f32 %v1141, %v115
  %v1173 = vmul.f32 %v1141, %v116
  %v1174 = vmul.f32 %v1141, %v117
  %v1175 = vmul.f32 %v1141, %v118
  %v1176 = vmul.f32 %v1142, %v119
  %v1177 = vmul.f32 %v1142, %v120
  %v1178 = vmul.f32 %v1142, %v121
  %v1179 = vmul.f32 %v1142, %v122
  %v1180 = vmul.f32 %v1143, %v123
  %v1181 = vmul.f32 %v1143, %v124
  %v1182 = vmul.f32 %v1143, %v125
  %v1183 = vmul.f32 %v1143, %v126
  %v1184 = vmul.f32 %v1144, %v127
  %v1185 = vmul.f32 %v1144, %v128
  %v1186 = vmul.f32 %v1144, %v129
  %v1187 = vmul.f32 %v1144, %v130
  %v1188 = vmul.f32 %v1145, %v131
  %v1189 = vmul.f32 %v1145, %v132
  %v1190 = vmul.f32 %v1145, %v133
  %v1191 = vmul.f32 %v1145, %v134
  %v1192 = vmul.f32 %v1146, %v135
  %v1193 = vmul.f32 %v1146, %v136
  %v1194 = vmul.f32 %v1146, %v137
  %v1195 = vmul.f32 %v1146, %v138
  %v1196 = vmul.f32 %v1147, %v139
  %v1197 = vmul.f32 %v1147, %v140
  %v1198 = vmul.f32 %v1147, %v141
  %v1199 = vmul.f32 %v1147, %v142
  %v1200 = vmul.f32 %v1148, %v143
  %v1201 = vmul.f32 %v1148, %v144
  %v1202 = vmul.f32 %v1148, %v145
  %v1203 = vmul.f32 %v1148, %v146
  %v1204 = vmul.f32 %v1149, %v147
  %v1205 = vmul.f32 %v1149, %v148
  %v1206 = vmul.f32 %v1149, %v149
  %v1207 = vmul.f32 %v1149, %v150
  %v1208 = vmul.f32 %v1150, %v151
  %v1209 = vmul.f32 %v1150, %v152
  %v1210 = vmul.f32 %v1150, %v153
  %v1211 = vmul.f32 %v1150, %v154
  %v1212 = vmul.f32 %v1151, %v155
  %v1213 = vmul.f32 %v1151, %v156
  %v1214 = vmul.f32 %v1151, %v157
  %v1215 = vmul.f32 %v1151, %v158
  %v1216 = vadd.f32 %v1072, %v1152
  %v1217 = vadd.f32 %v1073, %v1153
  %v1218 = vadd.f32 %v1074, %v1154
  %v1219 = vadd.f32 %v1075, %v1155
  %v1220 = vadd.f32 %v1076, %v1156
  %v1221 = vadd.f32 %v1077, %v1157
  %v1222 = vadd.f32 %v1078, %v1158
  %v1223 = vadd.f32 %v1079, %v1159
  %v1224 = vadd.f32 %v1080, %v1160
  %v1225 = vadd.f32 %v1081, %v1161
  %v1226 = vadd.f32 %v1082, %v1162
  %v1227 = vadd.f32 %v1083, %v1163
  %v1228 = vadd.f32 %v1084, %v1164
  %v1229 = vadd.f32 %v1085, %v1165
  %v1230 = vadd.f32 %v1086, %v1166
  %v1231 = vadd.f32 %v1087, %v1167
  %v1232 = vadd.f32 %v1088, %v1168
  %v1233 = vadd.f32 %v1089, %v1169
  %v1234 = vadd.f32 %v1090, %v1170
  %v1235 = vadd.f32 %v1091, %v1171
  %v1236 = vadd.f32 %v1092, %v1172
  %v1237 = vadd.f32 %v1093, %v1173
  %v1238 = vadd.f32 %v1094, %v1174
  %v1239 = vadd.f32 %v1095, %v1175
  %v1240 = vadd.f32 %v1096, %v1176
  %v1241 = vadd.f32 %v1097, %v1177
  %v1242 = vadd.f32 %v1098, %v1178
  %v1243 = vadd.f32 %v1099, %v1179
  %v1244 = vadd.f32 %v1100, %v1180
  %v1245 = vadd.f32 %v1101, %v1181
  %v1246 = vadd.f32 %v1102, %v1182
  %v1247 = vadd.f32 %v1103, %v1183
  %v1248 = vadd.f32 %v1104, %v1184
  %v1249 = vadd.f32 %v1105, %v1185
  %v1250 = vadd.f32 %v1106, %v1186
  %v1251 = vadd.f32 %v1107, %v1187
  %v1252 = vadd.f32 %v1108, %v1188
  %v1253 = vadd.f32 %v1109, %v1189
  %v1254 = vadd.f32 %v1110, %v1190
  %v1255 = vadd.f32 %v1111, %v1191
  %v1256 = vadd.f32 %v1112, %v1192
  %v1257 = vadd.f32 %v1113, %v1193
  %v1258 = vadd.f32 %v1114, %v1194
  %v1259 = vadd.f32 %v1115, %v1195
  %v1260 = vadd.f32 %v1116, %v1196
  %v1261 = vadd.f32 %v1117, %v1197
  %v1262 = vadd.f32 %v1118, %v1198
  %v1263 = vadd.f32 %v1119, %v1199
  %v1264 = vadd.f32 %v1120, %v1200
  %v1265 = vadd.f32 %v1121, %v1201
  %v1266 = vadd.f32 %v1122, %v1202
  %v1267 = vadd.f32 %v1123, %v1203
  %v1268 = vadd.f32 %v1124, %v1204
  %v1269 = vadd.f32 %v1125, %v1205
  %v1270 = vadd.f32 %v1126, %v1206
  %v1271 = vadd.f32 %v1127, %v1207
  %v1272 = vadd.f32 %v1128, %v1208
  %v1273 = vadd.f32 %v1129, %v1209
  %v1274 = vadd.f32 %v1130, %v1210
  %v1275 = vadd.f32 %v1131, %v1211
  %v1276 = vadd.f32 %v1132, %v1212
  %v1277 = vadd.f32 %v1133, %v1213
  %v1278 = vadd.f32 %v1134, %v1214
  %v1279 = vadd.f32 %v1135, %v1215
  %v1280 = vpack.c.bf16 %v1220, %v1216
  %v1281 = vpack.c.bf16 %v1221, %v1217
  %v1282 = vpack.c.bf16 %v1222, %v1218
  %v1283 = vpack.c.bf16 %v1223, %v1219
  %v1284 = vpack.c.bf16 %v1228, %v1224
  %v1285 = vpack.c.bf16 %v1229, %v1225
  %v1286 = vpack.c.bf16 %v1230, %v1226
  %v1287 = vpack.c.bf16 %v1231, %v1227
  %v1288 = vpack.c.bf16 %v1236, %v1232
  %v1289 = vpack.c.bf16 %v1237, %v1233
  %v1290 = vpack.c.bf16 %v1238, %v1234
  %v1291 = vpack.c.bf16 %v1239, %v1235
  %v1292 = vpack.c.bf16 %v1244, %v1240
  %v1293 = vpack.c.bf16 %v1245, %v1241
  %v1294 = vpack.c.bf16 %v1246, %v1242
  %v1295 = vpack.c.bf16 %v1247, %v1243
  %v1296 = vpack.c.bf16 %v1252, %v1248
  %v1297 = vpack.c.bf16 %v1253, %v1249
  %v1298 = vpack.c.bf16 %v1254, %v1250
  %v1299 = vpack.c.bf16 %v1255, %v1251
  %v1300 = vpack.c.bf16 %v1260, %v1256
  %v1301 = vpack.c.bf16 %v1261, %v1257
  %v1302 = vpack.c.bf16 %v1262, %v1258
  %v1303 = vpack.c.bf16 %v1263, %v1259
  %v1304 = vpack.c.bf16 %v1268, %v1264
  %v1305 = vpack.c.bf16 %v1269, %v1265
  %v1306 = vpack.c.bf16 %v1270, %v1266
  %v1307 = vpack.c.bf16 %v1271, %v1267
  %v1308 = vpack.c.bf16 %v1276, %v1272
  %v1309 = vpack.c.bf16 %v1277, %v1273
  %v1310 = vpack.c.bf16 %v1278, %v1274
  %v1311 = vpack.c.bf16 %v1279, %v1275
  %v1312 = vld [vmem:[%s4] sm:$0xf]
  %v1313 = vld [vmem:[%s4 + $0x4] sm:$0xf]
  %v1314 = vld [vmem:[%s4 + $0x8] sm:$0xf]
  %v1315 = vld [vmem:[%s4 + $0xc] sm:$0xf]
  %v1316 = vld [vmem:[%s4 + $0x10] sm:$0xf]
  %v1317 = vld [vmem:[%s4 + $0x14] sm:$0xf]
  %v1318 = vld [vmem:[%s4 + $0x18] sm:$0xf]
  %v1319 = vld [vmem:[%s4 + $0x1c] sm:$0xf]
  %v1320 = vld [vmem:[%s4 + $0x20] sm:$0xf]
  %v1321 = vld [vmem:[%s4 + $0x24] sm:$0xf]
  %v1322 = vld [vmem:[%s4 + $0x28] sm:$0xf]
  %v1323 = vld [vmem:[%s4 + $0x2c] sm:$0xf]
  %v1324 = vld [vmem:[%s4 + $0x30] sm:$0xf]
  %v1325 = vld [vmem:[%s4 + $0x34] sm:$0xf]
  %v1326 = vld [vmem:[%s4 + $0x38] sm:$0xf]
  %v1327 = vld [vmem:[%s4 + $0x3c] sm:$0xf]
  %v1328 = vld [vmem:[%s4 + $0x40] sm:$0xf]
  %v1329 = vld [vmem:[%s4 + $0x44] sm:$0xf]
  %v1330 = vld [vmem:[%s4 + $0x48] sm:$0xf]
  %v1331 = vld [vmem:[%s4 + $0x4c] sm:$0xf]
  %v1332 = vld [vmem:[%s4 + $0x50] sm:$0xf]
  %v1333 = vld [vmem:[%s4 + $0x54] sm:$0xf]
  %v1334 = vld [vmem:[%s4 + $0x58] sm:$0xf]
  %v1335 = vld [vmem:[%s4 + $0x5c] sm:$0xf]
  %v1336 = vld [vmem:[%s4 + $0x60] sm:$0xf]
  %v1337 = vld [vmem:[%s4 + $0x64] sm:$0xf]
  %v1338 = vld [vmem:[%s4 + $0x68] sm:$0xf]
  %v1339 = vld [vmem:[%s4 + $0x6c] sm:$0xf]
  %v1340 = vld [vmem:[%s4 + $0x70] sm:$0xf]
  %v1341 = vld [vmem:[%s4 + $0x74] sm:$0xf]
  %v1342 = vld [vmem:[%s4 + $0x78] sm:$0xf]
  %v1343 = vld [vmem:[%s4 + $0x7c] sm:$0xf]
  %v1344 = vld [vmem:[%s4 + $0x80] sm:$0xf]
  %v1345 = vld [vmem:[%s4 + $0x84] sm:$0xf]
  %v1346 = vld [vmem:[%s4 + $0x88] sm:$0xf]
  %v1347 = vld [vmem:[%s4 + $0x8c] sm:$0xf]
  %v1348 = vld [vmem:[%s4 + $0x90] sm:$0xf]
  %v1349 = vld [vmem:[%s4 + $0x94] sm:$0xf]
  %v1350 = vld [vmem:[%s4 + $0x98] sm:$0xf]
  %v1351 = vld [vmem:[%s4 + $0x9c] sm:$0xf]
  %v1352 = vld [vmem:[%s4 + $0xa0] sm:$0xf]
  %v1353 = vld [vmem:[%s4 + $0xa4] sm:$0xf]
  %v1354 = vld [vmem:[%s4 + $0xa8] sm:$0xf]
  %v1355 = vld [vmem:[%s4 + $0xac] sm:$0xf]
  %v1356 = vld [vmem:[%s4 + $0xb0] sm:$0xf]
  %v1357 = vld [vmem:[%s4 + $0xb4] sm:$0xf]
  %v1358 = vld [vmem:[%s4 + $0xb8] sm:$0xf]
  %v1359 = vld [vmem:[%s4 + $0xbc] sm:$0xf]
  %v1360 = vld [vmem:[%s4 + $0xc0] sm:$0xf]
  %v1361 = vld [vmem:[%s4 + $0xc4] sm:$0xf]
  %v1362 = vld [vmem:[%s4 + $0xc8] sm:$0xf]
  %v1363 = vld [vmem:[%s4 + $0xcc] sm:$0xf]
  %v1364 = vld [vmem:[%s4 + $0xd0] sm:$0xf]
  %v1365 = vld [vmem:[%s4 + $0xd4] sm:$0xf]
  %v1366 = vld [vmem:[%s4 + $0xd8] sm:$0xf]
  %v1367 = vld [vmem:[%s4 + $0xdc] sm:$0xf]
  %v1368 = vld [vmem:[%s4 + $0xe0] sm:$0xf]
  %v1369 = vld [vmem:[%s4 + $0xe4] sm:$0xf]
  %v1370 = vld [vmem:[%s4 + $0xe8] sm:$0xf]
  %v1371 = vld [vmem:[%s4 + $0xec] sm:$0xf]
  %v1372 = vld [vmem:[%s4 + $0xf0] sm:$0xf]
  %v1373 = vld [vmem:[%s4 + $0xf4] sm:$0xf]
  %v1374 = vld [vmem:[%s4 + $0xf8] sm:$0xf]
  %v1375 = vld [vmem:[%s4 + $0xfc] sm:$0xf]
  %v1376 = vld [vmem:[%s5] sm:$0x1]
  %v1378 = vperm.slane %v1376, 0
  %v1444 = vunpack.c.l.b16 %v1312
  %v1445 = vunpack.c.l.b16 %v1313
  %v1446 = vunpack.c.l.b16 %v1314
  %v1447 = vunpack.c.l.b16 %v1315
  %v1448 = vunpack.c.l.b16 %v1316
  %v1449 = vunpack.c.l.b16 %v1317
  %v1450 = vunpack.c.l.b16 %v1318
  %v1451 = vunpack.c.l.b16 %v1319
  %v1452 = vunpack.c.l.b16 %v1320
  %v1453 = vunpack.c.l.b16 %v1321
  %v1454 = vunpack.c.l.b16 %v1322
  %v1455 = vunpack.c.l.b16 %v1323
  %v1456 = vunpack.c.l.b16 %v1324
  %v1457 = vunpack.c.l.b16 %v1325
  %v1458 = vunpack.c.l.b16 %v1326
  %v1459 = vunpack.c.l.b16 %v1327
  %v1460 = vunpack.c.l.b16 %v1328
  %v1461 = vunpack.c.l.b16 %v1329
  %v1462 = vunpack.c.l.b16 %v1330
  %v1463 = vunpack.c.l.b16 %v1331
  %v1464 = vunpack.c.l.b16 %v1332
  %v1465 = vunpack.c.l.b16 %v1333
  %v1466 = vunpack.c.l.b16 %v1334
  %v1467 = vunpack.c.l.b16 %v1335
  %v1468 = vunpack.c.l.b16 %v1336
  %v1469 = vunpack.c.l.b16 %v1337
  %v1470 = vunpack.c.l.b16 %v1338
  %v1471 = vunpack.c.l.b16 %v1339
  %v1472 = vunpack.c.l.b16 %v1340
  %v1473 = vunpack.c.l.b16 %v1341
  %v1474 = vunpack.c.l.b16 %v1342
  %v1475 = vunpack.c.l.b16 %v1343
  %v1476 = vunpack.c.l.b16 %v1344
  %v1477 = vunpack.c.l.b16 %v1345
  %v1478 = vunpack.c.l.b16 %v1346
  %v1479 = vunpack.c.l.b16 %v1347
  %v1480 = vunpack.c.l.b16 %v1348
  %v1481 = vunpack.c.l.b16 %v1349
  %v1482 = vunpack.c.l.b16 %v1350
  %v1483 = vunpack.c.l.b16 %v1351
  %v1484 = vunpack.c.l.b16 %v1352
  %v1485 = vunpack.c.l.b16 %v1353
  %v1486 = vunpack.c.l.b16 %v1354
  %v1487 = vunpack.c.l.b16 %v1355
  %v1488 = vunpack.c.l.b16 %v1356
  %v1489 = vunpack.c.l.b16 %v1357
  %v1490 = vunpack.c.l.b16 %v1358
  %v1491 = vunpack.c.l.b16 %v1359
  %v1492 = vunpack.c.l.b16 %v1360
  %v1493 = vunpack.c.l.b16 %v1361
  %v1494 = vunpack.c.l.b16 %v1362
  %v1495 = vunpack.c.l.b16 %v1363
  %v1496 = vunpack.c.l.b16 %v1364
  %v1497 = vunpack.c.l.b16 %v1365
  %v1498 = vunpack.c.l.b16 %v1366
  %v1499 = vunpack.c.l.b16 %v1367
  %v1500 = vunpack.c.l.b16 %v1368
  %v1501 = vunpack.c.l.b16 %v1369
  %v1502 = vunpack.c.l.b16 %v1370
  %v1503 = vunpack.c.l.b16 %v1371
  %v1504 = vunpack.c.l.b16 %v1372
  %v1505 = vunpack.c.l.b16 %v1373
  %v1506 = vunpack.c.l.b16 %v1374
  %v1507 = vunpack.c.l.b16 %v1375
  %v1508 = vpack.c.b16 %v1445, %v1444
  %v1509 = vpack.c.b16 %v1447, %v1446
  %v1510 = vpack.c.b16 %v1449, %v1448
  %v1511 = vpack.c.b16 %v1451, %v1450
  %v1512 = vpack.c.b16 %v1453, %v1452
  %v1513 = vpack.c.b16 %v1455, %v1454
  %v1514 = vpack.c.b16 %v1457, %v1456
  %v1515 = vpack.c.b16 %v1459, %v1458
  %v1516 = vpack.c.b16 %v1461, %v1460
  %v1517 = vpack.c.b16 %v1463, %v1462
  %v1518 = vpack.c.b16 %v1465, %v1464
  %v1519 = vpack.c.b16 %v1467, %v1466
  %v1520 = vpack.c.b16 %v1469, %v1468
  %v1521 = vpack.c.b16 %v1471, %v1470
  %v1522 = vpack.c.b16 %v1473, %v1472
  %v1523 = vpack.c.b16 %v1475, %v1474
  %v1524 = vpack.c.b16 %v1477, %v1476
  %v1525 = vpack.c.b16 %v1479, %v1478
  %v1526 = vpack.c.b16 %v1481, %v1480
  %v1527 = vpack.c.b16 %v1483, %v1482
  %v1528 = vpack.c.b16 %v1485, %v1484
  %v1529 = vpack.c.b16 %v1487, %v1486
  %v1530 = vpack.c.b16 %v1489, %v1488
  %v1531 = vpack.c.b16 %v1491, %v1490
  %v1532 = vpack.c.b16 %v1493, %v1492
  %v1533 = vpack.c.b16 %v1495, %v1494
  %v1534 = vpack.c.b16 %v1497, %v1496
  %v1535 = vpack.c.b16 %v1499, %v1498
  %v1536 = vpack.c.b16 %v1501, %v1500
  %v1537 = vpack.c.b16 %v1503, %v1502
  %v1538 = vpack.c.b16 %v1505, %v1504
  %v1539 = vpack.c.b16 %v1507, %v1506
  %1572 = vmatpush.bf16.msra.mxu0 %v1515
  %1573 = vmatpush.bf16.msra.mxu0 %v1514
  %1574 = vmatpush.bf16.msra.mxu0 %v1513
  %1575 = vmatpush.bf16.msra.mxu0 %v1512
  %1576 = vmatpush.bf16.msra.mxu0 %v1511
  %1577 = vmatpush.bf16.msra.mxu0 %v1510
  %1578 = vmatpush.bf16.msra.mxu0 %v1509
  %1579 = vmatpush.bf16.msra.mxu0 %v1508
  %1580 = vmatmul.bf16.gmra.mxu0 %v1280
  %v1581 = vpop.f32.mrf.mxu0
  %v1582 = vadd.f32 %v1378, %v1581
  %v1583 = vpop.f32.mrf.mxu0
  %v1584 = vadd.f32 %v1378, %v1583
  %1585 = vmatmul.bf16.gmra.mxu0 %v1284
  %v1586 = vpop.f32.mrf.mxu0
  %v1587 = vadd.f32 %v1378, %v1586
  %v1588 = vpop.f32.mrf.mxu0
  %v1589 = vadd.f32 %v1378, %v1588
  %1590 = vmatmul.bf16.gmra.mxu0 %v1288
  %v1591 = vpop.f32.mrf.mxu0
  %v1592 = vadd.f32 %v1378, %v1591
  %v1593 = vpop.f32.mrf.mxu0
  %v1594 = vadd.f32 %v1378, %v1593
  %1595 = vmatmul.bf16.gmra.mxu0 %v1292
  %v1596 = vpop.f32.mrf.mxu0
  %v1597 = vadd.f32 %v1378, %v1596
  %v1598 = vpop.f32.mrf.mxu0
  %v1599 = vadd.f32 %v1378, %v1598
  %1600 = vmatmul.bf16.gmra.mxu0 %v1296
  %v1601 = vpop.f32.mrf.mxu0
  %v1602 = vadd.f32 %v1378, %v1601
  %v1603 = vpop.f32.mrf.mxu0
  %v1604 = vadd.f32 %v1378, %v1603
  %1605 = vmatmul.bf16.gmra.mxu0 %v1300
  %v1606 = vpop.f32.mrf.mxu0
  %v1607 = vadd.f32 %v1378, %v1606
  %v1608 = vpop.f32.mrf.mxu0
  %v1609 = vadd.f32 %v1378, %v1608
  %1610 = vmatmul.bf16.gmra.mxu0 %v1304
  %v1611 = vpop.f32.mrf.mxu0
  %v1612 = vadd.f32 %v1378, %v1611
  %v1613 = vpop.f32.mrf.mxu0
  %v1614 = vadd.f32 %v1378, %v1613
  %1615 = vmatmul.bf16.gmra.mxu0 %v1308
  %v1616 = vpop.f32.mrf.mxu0
  %v1617 = vadd.f32 %v1378, %v1616
  %v1618 = vpop.f32.mrf.mxu0
  %v1619 = vadd.f32 %v1378, %v1618
  %1620 = vdwg.mxu0
  %1621 = vmatpush.bf16.msra.mxu0 %v1523
  %1622 = vmatpush.bf16.msra.mxu0 %v1522
  %1623 = vmatpush.bf16.msra.mxu0 %v1521
  %1624 = vmatpush.bf16.msra.mxu0 %v1520
  %1625 = vmatpush.bf16.msra.mxu0 %v1519
  %1626 = vmatpush.bf16.msra.mxu0 %v1518
  %1627 = vmatpush.bf16.msra.mxu0 %v1517
  %1628 = vmatpush.bf16.msra.mxu0 %v1516
  %1629 = vmatmul.bf16.gmra.mxu0 %v1281
  %v1630 = vpop.f32.mrf.mxu0
  %v1631 = vadd.f32 %v1582, %v1630
  %v1632 = vpop.f32.mrf.mxu0
  %v1633 = vadd.f32 %v1584, %v1632
  %1634 = vmatmul.bf16.gmra.mxu0 %v1285
  %v1635 = vpop.f32.mrf.mxu0
  %v1636 = vadd.f32 %v1587, %v1635
  %v1637 = vpop.f32.mrf.mxu0
  %v1638 = vadd.f32 %v1589, %v1637
  %1639 = vmatmul.bf16.gmra.mxu0 %v1289
  %v1640 = vpop.f32.mrf.mxu0
  %v1641 = vadd.f32 %v1592, %v1640
  %v1642 = vpop.f32.mrf.mxu0
  %v1643 = vadd.f32 %v1594, %v1642
  %1644 = vmatmul.bf16.gmra.mxu0 %v1293
  %v1645 = vpop.f32.mrf.mxu0
  %v1646 = vadd.f32 %v1597, %v1645
  %v1647 = vpop.f32.mrf.mxu0
  %v1648 = vadd.f32 %v1599, %v1647
  %1649 = vmatmul.bf16.gmra.mxu0 %v1297
  %v1650 = vpop.f32.mrf.mxu0
  %v1651 = vadd.f32 %v1602, %v1650
  %v1652 = vpop.f32.mrf.mxu0
  %v1653 = vadd.f32 %v1604, %v1652
  %1654 = vmatmul.bf16.gmra.mxu0 %v1301
  %v1655 = vpop.f32.mrf.mxu0
  %v1656 = vadd.f32 %v1607, %v1655
  %v1657 = vpop.f32.mrf.mxu0
  %v1658 = vadd.f32 %v1609, %v1657
  %1659 = vmatmul.bf16.gmra.mxu0 %v1305
  %v1660 = vpop.f32.mrf.mxu0
  %v1661 = vadd.f32 %v1612, %v1660
  %v1662 = vpop.f32.mrf.mxu0
  %v1663 = vadd.f32 %v1614, %v1662
  %1664 = vmatmul.bf16.gmra.mxu0 %v1309
  %v1665 = vpop.f32.mrf.mxu0
  %v1666 = vadd.f32 %v1617, %v1665
  %v1667 = vpop.f32.mrf.mxu0
  %v1668 = vadd.f32 %v1619, %v1667
  %1669 = vdwg.mxu0
  %1670 = vmatpush.bf16.msra.mxu0 %v1531
  %1671 = vmatpush.bf16.msra.mxu0 %v1530
  %1672 = vmatpush.bf16.msra.mxu0 %v1529
  %1673 = vmatpush.bf16.msra.mxu0 %v1528
  %1674 = vmatpush.bf16.msra.mxu0 %v1527
  %1675 = vmatpush.bf16.msra.mxu0 %v1526
  %1676 = vmatpush.bf16.msra.mxu0 %v1525
  %1677 = vmatpush.bf16.msra.mxu0 %v1524
  %1678 = vmatmul.bf16.gmra.mxu0 %v1282
  %v1679 = vpop.f32.mrf.mxu0
  %v1680 = vadd.f32 %v1631, %v1679
  %v1681 = vpop.f32.mrf.mxu0
  %v1682 = vadd.f32 %v1633, %v1681
  %1683 = vmatmul.bf16.gmra.mxu0 %v1286
  %v1684 = vpop.f32.mrf.mxu0
  %v1685 = vadd.f32 %v1636, %v1684
  %v1686 = vpop.f32.mrf.mxu0
  %v1687 = vadd.f32 %v1638, %v1686
  %1688 = vmatmul.bf16.gmra.mxu0 %v1290
  %v1689 = vpop.f32.mrf.mxu0
  %v1690 = vadd.f32 %v1641, %v1689
  %v1691 = vpop.f32.mrf.mxu0
  %v1692 = vadd.f32 %v1643, %v1691
  %1693 = vmatmul.bf16.gmra.mxu0 %v1294
  %v1694 = vpop.f32.mrf.mxu0
  %v1695 = vadd.f32 %v1646, %v1694
  %v1696 = vpop.f32.mrf.mxu0
  %v1697 = vadd.f32 %v1648, %v1696
  %1698 = vmatmul.bf16.gmra.mxu0 %v1298
  %v1699 = vpop.f32.mrf.mxu0
  %v1700 = vadd.f32 %v1651, %v1699
  %v1701 = vpop.f32.mrf.mxu0
  %v1702 = vadd.f32 %v1653, %v1701
  %1703 = vmatmul.bf16.gmra.mxu0 %v1302
  %v1704 = vpop.f32.mrf.mxu0
  %v1705 = vadd.f32 %v1656, %v1704
  %v1706 = vpop.f32.mrf.mxu0
  %v1707 = vadd.f32 %v1658, %v1706
  %1708 = vmatmul.bf16.gmra.mxu0 %v1306
  %v1709 = vpop.f32.mrf.mxu0
  %v1710 = vadd.f32 %v1661, %v1709
  %v1711 = vpop.f32.mrf.mxu0
  %v1712 = vadd.f32 %v1663, %v1711
  %1713 = vmatmul.bf16.gmra.mxu0 %v1310
  %v1714 = vpop.f32.mrf.mxu0
  %v1715 = vadd.f32 %v1666, %v1714
  %v1716 = vpop.f32.mrf.mxu0
  %v1717 = vadd.f32 %v1668, %v1716
  %1718 = vdwg.mxu0
  %1719 = vmatpush.bf16.msra.mxu0 %v1539
  %1720 = vmatpush.bf16.msra.mxu0 %v1538
  %1721 = vmatpush.bf16.msra.mxu0 %v1537
  %1722 = vmatpush.bf16.msra.mxu0 %v1536
  %1723 = vmatpush.bf16.msra.mxu0 %v1535
  %1724 = vmatpush.bf16.msra.mxu0 %v1534
  %1725 = vmatpush.bf16.msra.mxu0 %v1533
  %1726 = vmatpush.bf16.msra.mxu0 %v1532
  %1727 = vmatmul.bf16.gmra.mxu0 %v1283
  %v1728 = vpop.f32.mrf.mxu0
  %v1729 = vadd.f32 %v1680, %v1728
  %v1730 = vpop.f32.mrf.mxu0
  %v1731 = vadd.f32 %v1682, %v1730
  %1732 = vmatmul.bf16.gmra.mxu0 %v1287
  %v1733 = vpop.f32.mrf.mxu0
  %v1734 = vadd.f32 %v1685, %v1733
  %v1735 = vpop.f32.mrf.mxu0
  %v1736 = vadd.f32 %v1687, %v1735
  %1737 = vmatmul.bf16.gmra.mxu0 %v1291
  %v1738 = vpop.f32.mrf.mxu0
  %v1739 = vadd.f32 %v1690, %v1738
  %v1740 = vpop.f32.mrf.mxu0
  %v1741 = vadd.f32 %v1692, %v1740
  %1742 = vmatmul.bf16.gmra.mxu0 %v1295
  %v1743 = vpop.f32.mrf.mxu0
  %v1744 = vadd.f32 %v1695, %v1743
  %v1745 = vpop.f32.mrf.mxu0
  %v1746 = vadd.f32 %v1697, %v1745
  %1747 = vmatmul.bf16.gmra.mxu0 %v1299
  %v1748 = vpop.f32.mrf.mxu0
  %v1749 = vadd.f32 %v1700, %v1748
  %v1750 = vpop.f32.mrf.mxu0
  %v1751 = vadd.f32 %v1702, %v1750
  %1752 = vmatmul.bf16.gmra.mxu0 %v1303
  %v1753 = vpop.f32.mrf.mxu0
  %v1754 = vadd.f32 %v1705, %v1753
  %v1755 = vpop.f32.mrf.mxu0
  %v1756 = vadd.f32 %v1707, %v1755
  %1757 = vmatmul.bf16.gmra.mxu0 %v1307
  %v1758 = vpop.f32.mrf.mxu0
  %v1759 = vadd.f32 %v1710, %v1758
  %v1760 = vpop.f32.mrf.mxu0
  %v1761 = vadd.f32 %v1712, %v1760
  %1762 = vmatmul.bf16.gmra.mxu0 %v1311
  %v1763 = vpop.f32.mrf.mxu0
  %v1764 = vadd.f32 %v1715, %v1763
  %v1765 = vpop.f32.mrf.mxu0
  %v1766 = vadd.f32 %v1717, %v1765
  %1767 = vdwg.mxu0
  %v1768 = vtanh.pop %v1729
  %v1769 = vtanh.pop %v1731
  %v1770 = vtanh.pop %v1734
  %v1771 = vtanh.pop %v1736
  %v1772 = vtanh.pop %v1739
  %v1773 = vtanh.pop %v1741
  %v1774 = vtanh.pop %v1744
  %v1775 = vtanh.pop %v1746
  %v1776 = vtanh.pop %v1749
  %v1777 = vtanh.pop %v1751
  %v1778 = vtanh.pop %v1754
  %v1779 = vtanh.pop %v1756
  %v1780 = vtanh.pop %v1759
  %v1781 = vtanh.pop %v1761
  %v1782 = vtanh.pop %v1764
  %v1783 = vtanh.pop %v1766
  %v1784 = vpack.c.bf16 %v1769, %v1768
  %v1785 = vpack.c.bf16 %v1771, %v1770
  %v1786 = vpack.c.bf16 %v1773, %v1772
  %v1787 = vpack.c.bf16 %v1775, %v1774
  %v1788 = vpack.c.bf16 %v1777, %v1776
  %v1789 = vpack.c.bf16 %v1779, %v1778
  %v1790 = vpack.c.bf16 %v1781, %v1780
  %v1791 = vpack.c.bf16 %v1783, %v1782
  %v1792 = vld [vmem:[%s6] sm:$0xf]
  %v1793 = vld [vmem:[%s6 + $0x4] sm:$0xf]
  %v1794 = vld [vmem:[%s6 + $0x8] sm:$0xf]
  %v1795 = vld [vmem:[%s6 + $0xc] sm:$0xf]
  %v1796 = vld [vmem:[%s6 + $0x10] sm:$0xf]
  %v1797 = vld [vmem:[%s6 + $0x14] sm:$0xf]
  %v1798 = vld [vmem:[%s6 + $0x18] sm:$0xf]
  %v1799 = vld [vmem:[%s6 + $0x1c] sm:$0xf]
  %v1800 = vld [vmem:[%s7] sm:$0x1]
  %v1802 = vperm.slane %v1800, 0
  %v1812 = vunpack.c.l.b16 %v1792
  %v1813 = vunpack.c.l.b16 %v1793
  %v1814 = vunpack.c.l.b16 %v1794
  %v1815 = vunpack.c.l.b16 %v1795
  %v1816 = vunpack.c.l.b16 %v1796
  %v1817 = vunpack.c.l.b16 %v1797
  %v1818 = vunpack.c.l.b16 %v1798
  %v1819 = vunpack.c.l.b16 %v1799
  %v1820 = vpack.c.b16 %v1813, %v1812
  %v1821 = vpack.c.b16 %v1815, %v1814
  %v1822 = vpack.c.b16 %v1817, %v1816
  %v1823 = vpack.c.b16 %v1819, %v1818
  %vm1828 = vcmask 523264
  %v1830 = vsel %vm1828, %v1784, 0
  %v1833 = vsel %vm1828, %v1785, 0
  %v1836 = vsel %vm1828, %v1786, 0
  %v1839 = vsel %vm1828, %v1787, 0
  %v1842 = vsel %vm1828, %v1788, 0
  %v1845 = vsel %vm1828, %v1789, 0
  %v1848 = vsel %vm1828, %v1790, 0
  %v1851 = vsel %vm1828, %v1791, 0
  %1853 = vmatpush.bf16.msra.mxu0 0
  %1854 = vmatpush.bf16.msra.mxu0 0
  %1855 = vmatpush.bf16.msra.mxu0 0
  %1856 = vmatpush.bf16.msra.mxu0 0
  %1857 = vmatpush.bf16.msra.mxu0 %v1823
  %1858 = vmatpush.bf16.msra.mxu0 %v1822
  %1859 = vmatpush.bf16.msra.mxu0 %v1821
  %1860 = vmatpush.bf16.msra.mxu0 %v1820
  %1861 = vmatmul.bf16.gmra.mxu0 %v1830
  %v1862 = vpop.f32.mrf.mxu0
  %v1863 = vadd.f32 %v1802, %v1862
  %v1864 = vpop.f32.mrf.mxu0
  %v1865 = vadd.f32 %v1802, %v1864
  %1866 = vmatmul.bf16.gmra.mxu0 %v1833
  %v1867 = vpop.f32.mrf.mxu0
  %v1868 = vadd.f32 %v1802, %v1867
  %v1869 = vpop.f32.mrf.mxu0
  %v1870 = vadd.f32 %v1802, %v1869
  %1871 = vmatmul.bf16.gmra.mxu0 %v1836
  %v1872 = vpop.f32.mrf.mxu0
  %v1873 = vadd.f32 %v1802, %v1872
  %v1874 = vpop.f32.mrf.mxu0
  %v1875 = vadd.f32 %v1802, %v1874
  %1876 = vmatmul.bf16.gmra.mxu0 %v1839
  %v1877 = vpop.f32.mrf.mxu0
  %v1878 = vadd.f32 %v1802, %v1877
  %v1879 = vpop.f32.mrf.mxu0
  %v1880 = vadd.f32 %v1802, %v1879
  %1881 = vmatmul.bf16.gmra.mxu0 %v1842
  %v1882 = vpop.f32.mrf.mxu0
  %v1883 = vadd.f32 %v1802, %v1882
  %v1884 = vpop.f32.mrf.mxu0
  %v1885 = vadd.f32 %v1802, %v1884
  %1886 = vmatmul.bf16.gmra.mxu0 %v1845
  %v1887 = vpop.f32.mrf.mxu0
  %v1888 = vadd.f32 %v1802, %v1887
  %v1889 = vpop.f32.mrf.mxu0
  %v1890 = vadd.f32 %v1802, %v1889
  %1891 = vmatmul.bf16.gmra.mxu0 %v1848
  %v1892 = vpop.f32.mrf.mxu0
  %v1893 = vadd.f32 %v1802, %v1892
  %v1894 = vpop.f32.mrf.mxu0
  %v1895 = vadd.f32 %v1802, %v1894
  %1896 = vmatmul.bf16.gmra.mxu0 %v1851
  %v1897 = vpop.f32.mrf.mxu0
  %v1898 = vadd.f32 %v1802, %v1897
  %v1899 = vpop.f32.mrf.mxu0
  %v1900 = vadd.f32 %v1802, %v1899
  %1901 = vdwg.mxu0
  %vm1902 = vcmask 64512
  %v1903 = vsel %vm1902, %v1863, -inf
  %1904 = vmax.xlane.f32.xlu0 %v1903
  %v1905 = vpop.xlane.xlu0 %1904
  %v1906 = vsel %vm1902, %v1865, -inf
  %1907 = vmax.xlane.f32.xlu0 %v1906
  %v1908 = vpop.xlane.xlu0 %1907
  %v1909 = vsel %vm1902, %v1868, -inf
  %1910 = vmax.xlane.f32.xlu0 %v1909
  %v1911 = vpop.xlane.xlu0 %1910
  %v1912 = vsel %vm1902, %v1870, -inf
  %1913 = vmax.xlane.f32.xlu0 %v1912
  %v1914 = vpop.xlane.xlu0 %1913
  %v1915 = vsel %vm1902, %v1873, -inf
  %1916 = vmax.xlane.f32.xlu0 %v1915
  %v1917 = vpop.xlane.xlu0 %1916
  %v1918 = vsel %vm1902, %v1875, -inf
  %1919 = vmax.xlane.f32.xlu0 %v1918
  %v1920 = vpop.xlane.xlu0 %1919
  %v1921 = vsel %vm1902, %v1878, -inf
  %1922 = vmax.xlane.f32.xlu0 %v1921
  %v1923 = vpop.xlane.xlu0 %1922
  %v1924 = vsel %vm1902, %v1880, -inf
  %1925 = vmax.xlane.f32.xlu0 %v1924
  %v1926 = vpop.xlane.xlu0 %1925
  %v1927 = vsel %vm1902, %v1883, -inf
  %1928 = vmax.xlane.f32.xlu0 %v1927
  %v1929 = vpop.xlane.xlu0 %1928
  %v1930 = vsel %vm1902, %v1885, -inf
  %1931 = vmax.xlane.f32.xlu0 %v1930
  %v1932 = vpop.xlane.xlu0 %1931
  %v1933 = vsel %vm1902, %v1888, -inf
  %1934 = vmax.xlane.f32.xlu0 %v1933
  %v1935 = vpop.xlane.xlu0 %1934
  %v1936 = vsel %vm1902, %v1890, -inf
  %1937 = vmax.xlane.f32.xlu0 %v1936
  %v1938 = vpop.xlane.xlu0 %1937
  %v1939 = vsel %vm1902, %v1893, -inf
  %1940 = vmax.xlane.f32.xlu0 %v1939
  %v1941 = vpop.xlane.xlu0 %1940
  %v1942 = vsel %vm1902, %v1895, -inf
  %1943 = vmax.xlane.f32.xlu0 %v1942
  %v1944 = vpop.xlane.xlu0 %1943
  %v1945 = vsel %vm1902, %v1898, -inf
  %1946 = vmax.xlane.f32.xlu0 %v1945
  %v1947 = vpop.xlane.xlu0 %1946
  %v1948 = vsel %vm1902, %v1900, -inf
  %1949 = vmax.xlane.f32.xlu0 %v1948
  %v1950 = vpop.xlane.xlu0 %1949
  %v1951 = vsub.f32 %v1863, %v1905
  %v1952 = vsub.f32 %v1865, %v1908
  %v1953 = vsub.f32 %v1868, %v1911
  %v1954 = vsub.f32 %v1870, %v1914
  %v1955 = vsub.f32 %v1873, %v1917
  %v1956 = vsub.f32 %v1875, %v1920
  %v1957 = vsub.f32 %v1878, %v1923
  %v1958 = vsub.f32 %v1880, %v1926
  %v1959 = vsub.f32 %v1883, %v1929
  %v1960 = vsub.f32 %v1885, %v1932
  %v1961 = vsub.f32 %v1888, %v1935
  %v1962 = vsub.f32 %v1890, %v1938
  %v1963 = vsub.f32 %v1893, %v1941
  %v1964 = vsub.f32 %v1895, %v1944
  %v1965 = vsub.f32 %v1898, %v1947
  %v1966 = vsub.f32 %v1900, %v1950
  %v1967 = vmul.f32 %v1951, 1.442695
  %v1968 = vpow.pop %v1967
  %v1969 = vmul.f32 %v1952, 1.442695
  %v1970 = vpow.pop %v1969
  %v1971 = vmul.f32 %v1953, 1.442695
  %v1972 = vpow.pop %v1971
  %v1973 = vmul.f32 %v1954, 1.442695
  %v1974 = vpow.pop %v1973
  %v1975 = vmul.f32 %v1955, 1.442695
  %v1976 = vpow.pop %v1975
  %v1977 = vmul.f32 %v1956, 1.442695
  %v1978 = vpow.pop %v1977
  %v1979 = vmul.f32 %v1957, 1.442695
  %v1980 = vpow.pop %v1979
  %v1981 = vmul.f32 %v1958, 1.442695
  %v1982 = vpow.pop %v1981
  %v1983 = vmul.f32 %v1959, 1.442695
  %v1984 = vpow.pop %v1983
  %v1985 = vmul.f32 %v1960, 1.442695
  %v1986 = vpow.pop %v1985
  %v1987 = vmul.f32 %v1961, 1.442695
  %v1988 = vpow.pop %v1987
  %v1989 = vmul.f32 %v1962, 1.442695
  %v1990 = vpow.pop %v1989
  %v1991 = vmul.f32 %v1963, 1.442695
  %v1992 = vpow.pop %v1991
  %v1993 = vmul.f32 %v1964, 1.442695
  %v1994 = vpow.pop %v1993
  %v1995 = vmul.f32 %v1965, 1.442695
  %v1996 = vpow.pop %v1995
  %v1997 = vmul.f32 %v1966, 1.442695
  %v1998 = vpow.pop %v1997
  %v1999 = vsel %vm1902, %v1968, 0.0
  %2000 = vadd.xlane.f32.xlu0 %v1999
  %v2001 = vpop.xlane.xlu0 %2000
  %v2002 = vsel %vm1902, %v1970, 0.0
  %2003 = vadd.xlane.f32.xlu0 %v2002
  %v2004 = vpop.xlane.xlu0 %2003
  %v2005 = vsel %vm1902, %v1972, 0.0
  %2006 = vadd.xlane.f32.xlu0 %v2005
  %v2007 = vpop.xlane.xlu0 %2006
  %v2008 = vsel %vm1902, %v1974, 0.0
  %2009 = vadd.xlane.f32.xlu0 %v2008
  %v2010 = vpop.xlane.xlu0 %2009
  %v2011 = vsel %vm1902, %v1976, 0.0
  %2012 = vadd.xlane.f32.xlu0 %v2011
  %v2013 = vpop.xlane.xlu0 %2012
  %v2014 = vsel %vm1902, %v1978, 0.0
  %2015 = vadd.xlane.f32.xlu0 %v2014
  %v2016 = vpop.xlane.xlu0 %2015
  %v2017 = vsel %vm1902, %v1980, 0.0
  %2018 = vadd.xlane.f32.xlu0 %v2017
  %v2019 = vpop.xlane.xlu0 %2018
  %v2020 = vsel %vm1902, %v1982, 0.0
  %2021 = vadd.xlane.f32.xlu0 %v2020
  %v2022 = vpop.xlane.xlu0 %2021
  %v2023 = vsel %vm1902, %v1984, 0.0
  %2024 = vadd.xlane.f32.xlu0 %v2023
  %v2025 = vpop.xlane.xlu0 %2024
  %v2026 = vsel %vm1902, %v1986, 0.0
  %2027 = vadd.xlane.f32.xlu0 %v2026
  %v2028 = vpop.xlane.xlu0 %2027
  %v2029 = vsel %vm1902, %v1988, 0.0
  %2030 = vadd.xlane.f32.xlu0 %v2029
  %v2031 = vpop.xlane.xlu0 %2030
  %v2032 = vsel %vm1902, %v1990, 0.0
  %2033 = vadd.xlane.f32.xlu0 %v2032
  %v2034 = vpop.xlane.xlu0 %2033
  %v2035 = vsel %vm1902, %v1992, 0.0
  %2036 = vadd.xlane.f32.xlu0 %v2035
  %v2037 = vpop.xlane.xlu0 %2036
  %v2038 = vsel %vm1902, %v1994, 0.0
  %2039 = vadd.xlane.f32.xlu0 %v2038
  %v2040 = vpop.xlane.xlu0 %2039
  %v2041 = vsel %vm1902, %v1996, 0.0
  %2042 = vadd.xlane.f32.xlu0 %v2041
  %v2043 = vpop.xlane.xlu0 %2042
  %v2044 = vsel %vm1902, %v1998, 0.0
  %2045 = vadd.xlane.f32.xlu0 %v2044
  %v2046 = vpop.xlane.xlu0 %2045
  %v2047 = vlog2.pop %v2001
  %v2048 = vmul.f32 %v2047, 0.6931472
  %v2049 = vlog2.pop %v2004
  %v2050 = vmul.f32 %v2049, 0.6931472
  %v2051 = vlog2.pop %v2007
  %v2052 = vmul.f32 %v2051, 0.6931472
  %v2053 = vlog2.pop %v2010
  %v2054 = vmul.f32 %v2053, 0.6931472
  %v2055 = vlog2.pop %v2013
  %v2056 = vmul.f32 %v2055, 0.6931472
  %v2057 = vlog2.pop %v2016
  %v2058 = vmul.f32 %v2057, 0.6931472
  %v2059 = vlog2.pop %v2019
  %v2060 = vmul.f32 %v2059, 0.6931472
  %v2061 = vlog2.pop %v2022
  %v2062 = vmul.f32 %v2061, 0.6931472
  %v2063 = vlog2.pop %v2025
  %v2064 = vmul.f32 %v2063, 0.6931472
  %v2065 = vlog2.pop %v2028
  %v2066 = vmul.f32 %v2065, 0.6931472
  %v2067 = vlog2.pop %v2031
  %v2068 = vmul.f32 %v2067, 0.6931472
  %v2069 = vlog2.pop %v2034
  %v2070 = vmul.f32 %v2069, 0.6931472
  %v2071 = vlog2.pop %v2037
  %v2072 = vmul.f32 %v2071, 0.6931472
  %v2073 = vlog2.pop %v2040
  %v2074 = vmul.f32 %v2073, 0.6931472
  %v2075 = vlog2.pop %v2043
  %v2076 = vmul.f32 %v2075, 0.6931472
  %v2077 = vlog2.pop %v2046
  %v2078 = vmul.f32 %v2077, 0.6931472
  %v2079 = vsub.f32 %v1951, %v2048
  %v2080 = vsub.f32 %v1952, %v2050
  %v2081 = vsub.f32 %v1953, %v2052
  %v2082 = vsub.f32 %v1954, %v2054
  %v2083 = vsub.f32 %v1955, %v2056
  %v2084 = vsub.f32 %v1956, %v2058
  %v2085 = vsub.f32 %v1957, %v2060
  %v2086 = vsub.f32 %v1958, %v2062
  %v2087 = vsub.f32 %v1959, %v2064
  %v2088 = vsub.f32 %v1960, %v2066
  %v2089 = vsub.f32 %v1961, %v2068
  %v2090 = vsub.f32 %v1962, %v2070
  %v2091 = vsub.f32 %v1963, %v2072
  %v2092 = vsub.f32 %v1964, %v2074
  %v2093 = vsub.f32 %v1965, %v2076
  %v2094 = vsub.f32 %v1966, %v2078
  %2095 = vst.msk [vmem:[%s8] sm:$0xff] %vm1902, %v2079
  %2096 = vst.msk [vmem:[%s8 + $0x8] sm:$0xff] %vm1902, %v2080
  %2097 = vst.msk [vmem:[%s8 + $0x10] sm:$0xff] %vm1902, %v2081
  %2098 = vst.msk [vmem:[%s8 + $0x18] sm:$0xff] %vm1902, %v2082
  %2099 = vst.msk [vmem:[%s8 + $0x20] sm:$0xff] %vm1902, %v2083
  %2100 = vst.msk [vmem:[%s8 + $0x28] sm:$0xff] %vm1902, %v2084
  %2101 = vst.msk [vmem:[%s8 + $0x30] sm:$0xff] %vm1902, %v2085
  %2102 = vst.msk [vmem:[%s8 + $0x38] sm:$0xff] %vm1902, %v2086
  %2103 = vst.msk [vmem:[%s8 + $0x40] sm:$0xff] %vm1902, %v2087
  %2104 = vst.msk [vmem:[%s8 + $0x48] sm:$0xff] %vm1902, %v2088
  %2105 = vst.msk [vmem:[%s8 + $0x50] sm:$0xff] %vm1902, %v2089
  %2106 = vst.msk [vmem:[%s8 + $0x58] sm:$0xff] %vm1902, %v2090
  %2107 = vst.msk [vmem:[%s8 + $0x60] sm:$0xff] %vm1902, %v2091
  %2108 = vst.msk [vmem:[%s8 + $0x68] sm:$0xff] %vm1902, %v2092
  %2109 = vst.msk [vmem:[%s8 + $0x70] sm:$0xff] %vm1902, %v2093
  %2110 = vst.msk [vmem:[%s8 + $0x78] sm:$0xff] %vm1902, %v2094
  // Predicated region
  $region34: #{higldp_forward.3} parent=0 // pred_check
    _
  $region35: #{higldp_forward.3} parent=0 // pred_check_branch
    %2112 = sbr.rel (0) target = $region37
  $region36: #{higldp_forward.3} parent=0 // pred_region
    _
  $region37: #{higldp_forward.3} parent=0 // pred_fallthru
    _
  // Predicated region
  $region38: #{higldp_forward.3} parent=0 // pred_check
    _
  $region39: #{higldp_forward.3} parent=0 // pred_check_branch
    %2114 = sbr.rel (0) target = $region41
  $region40: #{higldp_forward.3} parent=0 // pred_region
    _
  $region41: #{higldp_forward.3} parent=0 // pred_fallthru
    _

// kernel: higldp_forward.2
$region0: #{higldp_forward.2}
  #allocation0 [shape = 'u32[]', space=smem, size = 0x4, offset = 0x4, fixed_abs, tag = 'smem constant byte address 0x4 - core index']
  #allocation1 [shape = 'u32[72,128]{1,0:T(1,128)}', space=vmem, size = 0x9000, scoped, tag = 'internal scratch']
  %s0 = inlined_call_operand.vmem [shape: bf16[128,128], index: 0, kind: input, shape index: {}]
  %s1 = inlined_call_operand.vmem [shape: bf16[2,128,128], index: 1, kind: input, shape index: {}]
  %s2 = inlined_call_operand.vmem [shape: f32[2,128,128], index: 2, kind: input, shape index: {}]
  %s3 = inlined_call_operand.hbm [shape: bf16[2,128,128], index: 3, kind: input, shape index: {}]
  %s4 = inlined_call_operand.vmem [shape: f32[2,1,128], index: 4, kind: input, shape index: {}]
  %s5 = inlined_call_operand.hbm [shape: bf16[2,128,256], index: 5, kind: input, shape index: {}]
  %s6 = inlined_call_operand.vmem [shape: f32[2,1,256], index: 6, kind: input, shape index: {}]
  %s7 = inlined_call_operand.vmem [shape: bf16[2,256,512], index: 7, kind: input, shape index: {}]
  %s8 = inlined_call_operand.vmem [shape: f32[2,512,4], index: 8, kind: input, shape index: {}]
  %s9 = inlined_call_operand.vmem [shape: f32[2,4,512], index: 9, kind: input, shape index: {}]
  %s10 = inlined_call_operand.vmem [shape: f32[2,1,512], index: 10, kind: input, shape index: {}]
  %s11 = inlined_call_operand.hbm [shape: bf16[2,512,256], index: 11, kind: input, shape index: {}]
  %s12 = inlined_call_operand.vmem [shape: f32[2,256,1], index: 12, kind: input, shape index: {}]
  %s13 = inlined_call_operand.hbm [shape: f32[2,1,256], index: 13, kind: input, shape index: {}]
  %s14 = inlined_call_operand.hbm [shape: f32[2,1,256], index: 14, kind: input, shape index: {}]
  %s15 = inlined_call_operand.hbm [shape: bf16[2,256,128], index: 15, kind: input, shape index: {}]
  %s16 = inlined_call_operand.vmem [shape: f32[2,1,128], index: 16, kind: input, shape index: {}]
  %s17 = inlined_call_operand.hbm [shape: bf16[2,128,256], index: 17, kind: input, shape index: {}]
  %s18 = inlined_call_operand.hbm [shape: f32[2,1,256], index: 18, kind: input, shape index: {}]
  %s19 = inlined_call_operand.vmem [shape: f32[2,128,512], index: 19, kind: output, shape index: {}]
  %s20 = sld [smem:[#allocation0]]
  $region141: #{higldp_forward.2} parent=0
    _
  %s22 = ssub.s32 1, %s20
  %s23 = scalar_select 0, %s22, %s20
  $region1: #{higldp_forward.2} parent=0
    #allocation2 [shape = 'u8[65536]{0}', space=vmem, size = 0x10000, scoped, tag = 'input window, operand 3']
    #allocation3 [shape = 's32[2]{0}', space=sflag, size = 0x8, scoped, tag = 'scoped memory for higldp_forward.2']
    #allocation4 [shape = 'u8[131072]{0}', space=vmem, size = 0x20000, scoped, tag = 'input window, operand 5']
    #allocation5 [shape = 's32[2]{0}', space=sflag, size = 0x8, scoped, tag = 'scoped memory for higldp_forward.2']
    #allocation6 [shape = 'u8[524288]{0}', space=vmem, size = 0x80000, scoped, tag = 'input window, operand 11']
    #allocation7 [shape = 'u8[2048]{0}', space=vmem, size = 0x800, scoped, tag = 'input window, operand 13']
    #allocation8 [shape = 's32[2]{0}', space=sflag, size = 0x8, scoped, tag = 'scoped memory for higldp_forward.2']
    #allocation9 [shape = 'u8[2048]{0}', space=vmem, size = 0x800, scoped, tag = 'input window, operand 14']
    #allocation10 [shape = 'u8[131072]{0}', space=vmem, size = 0x20000, scoped, tag = 'input window, operand 15']
    #allocation11 [shape = 's32[2]{0}', space=sflag, size = 0x8, scoped, tag = 'scoped memory for higldp_forward.2']
    #allocation12 [shape = 'u8[131072]{0}', space=vmem, size = 0x20000, scoped, tag = 'input window, operand 17']
    #allocation13 [shape = 'u8[2048]{0}', space=vmem, size = 0x800, scoped, tag = 'input window, operand 18']
    #allocation14 [shape = 's32[2]{0}', space=sflag, size = 0x8, scoped, tag = 'scoped memory for higldp_forward.2']
    %24 = vsyncpa [#allocation3], 0
    %s25 = scalar_lea.sflag [#allocation3], 1
    %26 = vsyncpa %s25, 0
    %27 = vsyncpa [#allocation5], 0
    %s28 = scalar_lea.sflag [#allocation5], 1
    %29 = vsyncpa %s28, 0
    %30 = vsyncpa [#allocation8], 0
    %s31 = scalar_lea.sflag [#allocation8], 1
    %32 = vsyncpa %s31, 0
    %33 = vsyncpa [#allocation11], 0
    %s34 = scalar_lea.sflag [#allocation11], 1
    %35 = vsyncpa %s34, 0
    %36 = vsyncpa [#allocation14], 0
    %s37 = scalar_lea.sflag [#allocation14], 1
    %38 = vsyncpa %s37, 0
    loop: start=0, step=1, limit=4
    $region2: #{higldp_forward.2} parent=1 // loop_pre_header
      _
    $region3: #{higldp_forward.2} parent=1 // loop_header
      %s40 = sphi 0, %s44
      %p41 = scmp.ge.s32.totalorder %s40, 4
      %s48 = sphi 0, %s48
      %s50 = sphi 0, %s48
      %s51 = sphi 0, %s50
      %s65 = sphi 0, %s51
      %s71 = sphi 0, %s73
      %s74 = sphi 0, %s71
      %s75 = sphi 0, %s74
      %s91 = sphi 0, %s75
      %s97 = sphi 0, %s99
      %s100 = sphi 0, %s97
      %s101 = sphi 0, %s100
      %s117 = sphi 0, %s101
      %s123 = sphi 0, %s125
      %s126 = sphi 0, %s123
      %s127 = sphi 0, %s126
      %s143 = sphi 0, %s127
      %s149 = sphi 0, %s151
      %s152 = sphi 0, %s149
      %s153 = sphi 0, %s152
      %s169 = sphi 0, %s153
      %s175 = sphi 0, %s177
      %s178 = sphi 0, %s175
      %s179 = sphi 0, %s178
      %s195 = sphi 0, %s179
      %s201 = sphi 0, %s203
      %s204 = sphi 0, %s201
      %s205 = sphi 0, %s204
      %s221 = sphi 0, %s205
      %s227 = sphi 0, %s229
      %s230 = sphi 0, %s227
      %s231 = sphi 0, %s230
      %s247 = sphi 0, %s231
      %s253 = sphi 0, %s255
      %s256 = sphi 0, %s253
      %s257 = sphi 0, %s256
      %s273 = sphi 0, %s257
      %s279 = sphi 0, %s281
      %s282 = sphi 0, %s279
      %s283 = sphi 0, %s282
      %s299 = sphi 0, %s283
      %s305 = sphi 0, %s307
      %s308 = sphi 0, %s305
      %s309 = sphi 0, %s308
      %s325 = sphi 0, %s309
      %s331 = sphi 0, %s333
      %s334 = sphi 0, %s331
      %s335 = sphi 0, %s334
      %s351 = sphi 0, %s335
      %s357 = sphi 0, %s359
      %s360 = sphi 0, %s357
      %s361 = sphi 0, %s360
      %s377 = sphi 0, %s361
      %s383 = sphi 0, %s385
      %s386 = sphi 0, %s383
      %s387 = sphi 0, %s386
      %s403 = sphi 0, %s387
      %s409 = sphi 0, %s411
      %s412 = sphi 0, %s409
      %s413 = sphi 0, %s412
      %s429 = sphi 0, %s413
      %s435 = sphi 0, %s437
      %s438 = sphi 0, %s435
      %s439 = sphi 0, %s438
      %s455 = sphi 0, %s439
      %s461 = sphi 0, %s463
      %s464 = sphi 0, %s461
      %s465 = sphi 0, %s464
      %s481 = sphi 0, %s465
      %s487 = sphi 0, %s489
      %s490 = sphi 0, %s487
      %s491 = sphi 0, %s490
      %s507 = sphi 0, %s491
      %s513 = sphi 0, %s515
      %s516 = sphi 0, %s513
      %s517 = sphi 0, %s516
      %s533 = sphi 0, %s517
      %s539 = sphi 0, %s541
      %s542 = sphi 0, %s539
      %s543 = sphi 0, %s542
      %s559 = sphi 0, %s543
    $region4: #{higldp_forward.2} parent=1 // loop_header_branch
      %43 = sbr.rel (%p41) target = $region8
    $region5: #{higldp_forward.2} parent=1 // loop_body
      %s45 = ssub.s32 %s40, 1
      %s46 = ssub.s32 %s40, 2
      %s47 = sadd.s32 %s40, 1
      %s49 = sadd.s32 %s48, 1
      %p52 = scmp.eq.s32.totalorder %s40, 1
      %p53 = scmp.ne.s32.totalorder %s48, %s50
      %p54 = scmp.eq.s32.totalorder %s40, 0
      %p55 = por %p53, %p54
      %p56 = scmp.ne.s32.totalorder %s48, %s50
      %p57 = scmp.eq.s32.totalorder %s45, 1
      %p58 = por %p56, %p57
      %p59 = scmp.ne.s32.totalorder %s50, %s51
      %p60 = scmp.eq.s32.totalorder %s45, 0
      %p61 = por %p59, %p60
      %p62 = scmp.ne.s32.totalorder %s50, %s51
      %p63 = scmp.eq.s32.totalorder %s46, 1
      %p64 = por %p62, %p63
      %p66 = scmp.ne.s32.totalorder %s51, %s65
      %p67 = scmp.eq.s32.totalorder %s46, 0
      %p68 = por %p66, %p67
      %s69 = ssub.s32 %s40, %s47
      %p70 = scmp.eq.s32.totalorder %s69, 0
      %s72 = sadd.s32 %s71, 1
      %s73 = scalar_select %p70, %s71, %s72
      %p76 = pneg %p70
      %p77 = scmp.eq.s32.totalorder %s40, 1
      %p78 = por %p76, %p77
      %p79 = scmp.ne.s32.totalorder %s71, %s74
      %p80 = scmp.eq.s32.totalorder %s40, 0
      %p81 = por %p79, %p80
      %p82 = scmp.ne.s32.totalorder %s71, %s74
      %p83 = scmp.eq.s32.totalorder %s45, 1
      %p84 = por %p82, %p83
      %p85 = scmp.ne.s32.totalorder %s74, %s75
      %p86 = scmp.eq.s32.totalorder %s45, 0
      %p87 = por %p85, %p86
      %p88 = scmp.ne.s32.totalorder %s74, %s75
      %p89 = scmp.eq.s32.totalorder %s46, 1
      %p90 = por %p88, %p89
      %p92 = scmp.ne.s32.totalorder %s75, %s91
      %p93 = scmp.eq.s32.totalorder %s46, 0
      %p94 = por %p92, %p93
      %s95 = ssub.s32 %s40, %s47
      %p96 = scmp.eq.s32.totalorder %s95, 0
      %s98 = sadd.s32 %s97, 1
      %s99 = scalar_select %p96, %s97, %s98
      %p102 = pneg %p96
      %p103 = scmp.eq.s32.totalorder %s40, 1
      %p104 = por %p102, %p103
      %p105 = scmp.ne.s32.totalorder %s97, %s100
      %p106 = scmp.eq.s32.totalorder %s40, 0
      %p107 = por %p105, %p106
      %p108 = scmp.ne.s32.totalorder %s97, %s100
      %p109 = scmp.eq.s32.totalorder %s45, 1
      %p110 = por %p108, %p109
      %p111 = scmp.ne.s32.totalorder %s100, %s101
      %p112 = scmp.eq.s32.totalorder %s45, 0
      %p113 = por %p111, %p112
      %p114 = scmp.ne.s32.totalorder %s100, %s101
      %p115 = scmp.eq.s32.totalorder %s46, 1
      %p116 = por %p114, %p115
      %p118 = scmp.ne.s32.totalorder %s101, %s117
      %p119 = scmp.eq.s32.totalorder %s46, 0
      %p120 = por %p118, %p119
      %s121 = ssub.s32 %s40, %s47
      %p122 = scmp.eq.s32.totalorder %s121, 0
      %s124 = sadd.s32 %s123, 1
      %s125 = scalar_select %p122, %s123, %s124
      %p128 = pneg %p122
      %p129 = scmp.eq.s32.totalorder %s40, 1
      %p130 = por %p128, %p129
      %p131 = scmp.ne.s32.totalorder %s123, %s126
      %p132 = scmp.eq.s32.totalorder %s40, 0
      %p133 = por %p131, %p132
      %p134 = scmp.ne.s32.totalorder %s123, %s126
      %p135 = scmp.eq.s32.totalorder %s45, 1
      %p136 = por %p134, %p135
      %p137 = scmp.ne.s32.totalorder %s126, %s127
      %p138 = scmp.eq.s32.totalorder %s45, 0
      %p139 = por %p137, %p138
      %p140 = scmp.ne.s32.totalorder %s126, %s127
      %p141 = scmp.eq.s32.totalorder %s46, 1
      %p142 = por %p140, %p141
      %p144 = scmp.ne.s32.totalorder %s127, %s143
      %p145 = scmp.eq.s32.totalorder %s46, 0
      %p146 = por %p144, %p145
      %s147 = ssub.s32 %s40, %s47
      %p148 = scmp.eq.s32.totalorder %s147, 0
      %s150 = sadd.s32 %s149, 1
      %s151 = scalar_select %p148, %s149, %s150
      %p154 = pneg %p148
      %p155 = scmp.eq.s32.totalorder %s40, 1
      %p156 = por %p154, %p155
      %p157 = scmp.ne.s32.totalorder %s149, %s152
      %p158 = scmp.eq.s32.totalorder %s40, 0
      %p159 = por %p157, %p158
      %p160 = scmp.ne.s32.totalorder %s149, %s152
      %p161 = scmp.eq.s32.totalorder %s45, 1
      %p162 = por %p160, %p161
      %p163 = scmp.ne.s32.totalorder %s152, %s153
      %p164 = scmp.eq.s32.totalorder %s45, 0
      %p165 = por %p163, %p164
      %p166 = scmp.ne.s32.totalorder %s152, %s153
      %p167 = scmp.eq.s32.totalorder %s46, 1
      %p168 = por %p166, %p167
      %p170 = scmp.ne.s32.totalorder %s153, %s169
      %p171 = scmp.eq.s32.totalorder %s46, 0
      %p172 = por %p170, %p171
      %s173 = ssub.s32 %s40, %s47
      %p174 = scmp.eq.s32.totalorder %s173, 0
      %s176 = sadd.s32 %s175, 1
      %s177 = scalar_select %p174, %s175, %s176
      %p180 = pneg %p174
      %p181 = scmp.eq.s32.totalorder %s40, 1
      %p182 = por %p180, %p181
      %p183 = scmp.ne.s32.totalorder %s175, %s178
      %p184 = scmp.eq.s32.totalorder %s40, 0
      %p185 = por %p183, %p184
      %p186 = scmp.ne.s32.totalorder %s175, %s178
      %p187 = scmp.eq.s32.totalorder %s45, 1
      %p188 = por %p186, %p187
      %p189 = scmp.ne.s32.totalorder %s178, %s179
      %p190 = scmp.eq.s32.totalorder %s45, 0
      %p191 = por %p189, %p190
      %p192 = scmp.ne.s32.totalorder %s178, %s179
      %p193 = scmp.eq.s32.totalorder %s46, 1
      %p194 = por %p192, %p193
      %p196 = scmp.ne.s32.totalorder %s179, %s195
      %p197 = scmp.eq.s32.totalorder %s46, 0
      %p198 = por %p196, %p197
      %s199 = ssub.s32 %s40, %s47
      %p200 = scmp.eq.s32.totalorder %s199, 0
      %s202 = sadd.s32 %s201, 1
      %s203 = scalar_select %p200, %s201, %s202
      %p206 = pneg %p200
      %p207 = scmp.eq.s32.totalorder %s40, 1
      %p208 = por %p206, %p207
      %p209 = scmp.ne.s32.totalorder %s201, %s204
      %p210 = scmp.eq.s32.totalorder %s40, 0
      %p211 = por %p209, %p210
      %p212 = scmp.ne.s32.totalorder %s201, %s204
      %p213 = scmp.eq.s32.totalorder %s45, 1
      %p214 = por %p212, %p213
      %p215 = scmp.ne.s32.totalorder %s204, %s205
      %p216 = scmp.eq.s32.totalorder %s45, 0
      %p217 = por %p215, %p216
      %p218 = scmp.ne.s32.totalorder %s204, %s205
      %p219 = scmp.eq.s32.totalorder %s46, 1
      %p220 = por %p218, %p219
      %p222 = scmp.ne.s32.totalorder %s205, %s221
      %p223 = scmp.eq.s32.totalorder %s46, 0
      %p224 = por %p222, %p223
      %s225 = ssub.s32 %s40, %s47
      %p226 = scmp.eq.s32.totalorder %s225, 0
      %s228 = sadd.s32 %s227, 1
      %s229 = scalar_select %p226, %s227, %s228
      %p232 = pneg %p226
      %p233 = scmp.eq.s32.totalorder %s40, 1
      %p234 = por %p232, %p233
      %p235 = scmp.ne.s32.totalorder %s227, %s230
      %p236 = scmp.eq.s32.totalorder %s40, 0
      %p237 = por %p235, %p236
      %p238 = scmp.ne.s32.totalorder %s227, %s230
      %p239 = scmp.eq.s32.totalorder %s45, 1
      %p240 = por %p238, %p239
      %p241 = scmp.ne.s32.totalorder %s230, %s231
      %p242 = scmp.eq.s32.totalorder %s45, 0
      %p243 = por %p241, %p242
      %p244 = scmp.ne.s32.totalorder %s230, %s231
      %p245 = scmp.eq.s32.totalorder %s46, 1
      %p246 = por %p244, %p245
      %p248 = scmp.ne.s32.totalorder %s231, %s247
      %p249 = scmp.eq.s32.totalorder %s46, 0
      %p250 = por %p248, %p249
      %s251 = ssub.s32 %s40, %s47
      %p252 = scmp.eq.s32.totalorder %s251, 0
      %s254 = sadd.s32 %s253, 1
      %s255 = scalar_select %p252, %s253, %s254
      %p258 = pneg %p252
      %p259 = scmp.eq.s32.totalorder %s40, 1
      %p260 = por %p258, %p259
      %p261 = scmp.ne.s32.totalorder %s253, %s256
      %p262 = scmp.eq.s32.totalorder %s40, 0
      %p263 = por %p261, %p262
      %p264 = scmp.ne.s32.totalorder %s253, %s256
      %p265 = scmp.eq.s32.totalorder %s45, 1
      %p266 = por %p264, %p265
      %p267 = scmp.ne.s32.totalorder %s256, %s257
      %p268 = scmp.eq.s32.totalorder %s45, 0
      %p269 = por %p267, %p268
      %p270 = scmp.ne.s32.totalorder %s256, %s257
      %p271 = scmp.eq.s32.totalorder %s46, 1
      %p272 = por %p270, %p271
      %p274 = scmp.ne.s32.totalorder %s257, %s273
      %p275 = scmp.eq.s32.totalorder %s46, 0
      %p276 = por %p274, %p275
      %s277 = ssub.s32 %s40, %s47
      %p278 = scmp.eq.s32.totalorder %s277, 0
      %s280 = sadd.s32 %s279, 1
      %s281 = scalar_select %p278, %s279, %s280
      %p284 = pneg %p278
      %p285 = scmp.eq.s32.totalorder %s40, 1
      %p286 = por %p284, %p285
      %p287 = scmp.ne.s32.totalorder %s279, %s282
      %p288 = scmp.eq.s32.totalorder %s40, 0
      %p289 = por %p287, %p288
      %p290 = scmp.ne.s32.totalorder %s279, %s282
      %p291 = scmp.eq.s32.totalorder %s45, 1
      %p292 = por %p290, %p291
      %p293 = scmp.ne.s32.totalorder %s282, %s283
      %p294 = scmp.eq.s32.totalorder %s45, 0
      %p295 = por %p293, %p294
      %p296 = scmp.ne.s32.totalorder %s282, %s283
      %p297 = scmp.eq.s32.totalorder %s46, 1
      %p298 = por %p296, %p297
      %p300 = scmp.ne.s32.totalorder %s283, %s299
      %p301 = scmp.eq.s32.totalorder %s46, 0
      %p302 = por %p300, %p301
      %s303 = ssub.s32 %s40, %s47
      %p304 = scmp.eq.s32.totalorder %s303, 0
      %s306 = sadd.s32 %s305, 1
      %s307 = scalar_select %p304, %s305, %s306
      %p310 = pneg %p304
      %p311 = scmp.eq.s32.totalorder %s40, 1
      %p312 = por %p310, %p311
      %p313 = scmp.ne.s32.totalorder %s305, %s308
      %p314 = scmp.eq.s32.totalorder %s40, 0
      %p315 = por %p313, %p314
      %p316 = scmp.ne.s32.totalorder %s305, %s308
      %p317 = scmp.eq.s32.totalorder %s45, 1
      %p318 = por %p316, %p317
      %p319 = scmp.ne.s32.totalorder %s308, %s309
      %p320 = scmp.eq.s32.totalorder %s45, 0
      %p321 = por %p319, %p320
      %p322 = scmp.ne.s32.totalorder %s308, %s309
      %p323 = scmp.eq.s32.totalorder %s46, 1
      %p324 = por %p322, %p323
      %p326 = scmp.ne.s32.totalorder %s309, %s325
      %p327 = scmp.eq.s32.totalorder %s46, 0
      %p328 = por %p326, %p327
      %s329 = ssub.s32 %s40, %s47
      %p330 = scmp.eq.s32.totalorder %s329, 0
      %s332 = sadd.s32 %s331, 1
      %s333 = scalar_select %p330, %s331, %s332
      %p336 = pneg %p330
      %p337 = scmp.eq.s32.totalorder %s40, 1
      %p338 = por %p336, %p337
      %p339 = scmp.ne.s32.totalorder %s331, %s334
      %p340 = scmp.eq.s32.totalorder %s40, 0
      %p341 = por %p339, %p340
      %p342 = scmp.ne.s32.totalorder %s331, %s334
      %p343 = scmp.eq.s32.totalorder %s45, 1
      %p344 = por %p342, %p343
      %p345 = scmp.ne.s32.totalorder %s334, %s335
      %p346 = scmp.eq.s32.totalorder %s45, 0
      %p347 = por %p345, %p346
      %p348 = scmp.ne.s32.totalorder %s334, %s335
      %p349 = scmp.eq.s32.totalorder %s46, 1
      %p350 = por %p348, %p349
      %p352 = scmp.ne.s32.totalorder %s335, %s351
      %p353 = scmp.eq.s32.totalorder %s46, 0
      %p354 = por %p352, %p353
      %s355 = ssub.s32 %s40, %s47
      %p356 = scmp.eq.s32.totalorder %s355, 0
      %s358 = sadd.s32 %s357, 1
      %s359 = scalar_select %p356, %s357, %s358
      %p362 = pneg %p356
      %p363 = scmp.eq.s32.totalorder %s40, 1
      %p364 = por %p362, %p363
      %p365 = scmp.ne.s32.totalorder %s357, %s360
      %p366 = scmp.eq.s32.totalorder %s40, 0
      %p367 = por %p365, %p366
      %p368 = scmp.ne.s32.totalorder %s357, %s360
      %p369 = scmp.eq.s32.totalorder %s45, 1
      %p370 = por %p368, %p369
      %p371 = scmp.ne.s32.totalorder %s360, %s361
      %p372 = scmp.eq.s32.totalorder %s45, 0
      %p373 = por %p371, %p372
      %p374 = scmp.ne.s32.totalorder %s360, %s361
      %p375 = scmp.eq.s32.totalorder %s46, 1
      %p376 = por %p374, %p375
      %p378 = scmp.ne.s32.totalorder %s361, %s377
      %p379 = scmp.eq.s32.totalorder %s46, 0
      %p380 = por %p378, %p379
      %s381 = ssub.s32 %s40, %s47
      %p382 = scmp.eq.s32.totalorder %s381, 0
      %s384 = sadd.s32 %s383, 1
      %s385 = scalar_select %p382, %s383, %s384
      %p388 = pneg %p382
      %p389 = scmp.eq.s32.totalorder %s40, 1
      %p390 = por %p388, %p389
      %p391 = scmp.ne.s32.totalorder %s383, %s386
      %p392 = scmp.eq.s32.totalorder %s40, 0
      %p393 = por %p391, %p392
      %p394 = scmp.ne.s32.totalorder %s383, %s386
      %p395 = scmp.eq.s32.totalorder %s45, 1
      %p396 = por %p394, %p395
      %p397 = scmp.ne.s32.totalorder %s386, %s387
      %p398 = scmp.eq.s32.totalorder %s45, 0
      %p399 = por %p397, %p398
      %p400 = scmp.ne.s32.totalorder %s386, %s387
      %p401 = scmp.eq.s32.totalorder %s46, 1
      %p402 = por %p400, %p401
      %p404 = scmp.ne.s32.totalorder %s387, %s403
      %p405 = scmp.eq.s32.totalorder %s46, 0
      %p406 = por %p404, %p405
      %s407 = ssub.s32 %s40, %s47
      %p408 = scmp.eq.s32.totalorder %s407, 0
      %s410 = sadd.s32 %s409, 1
      %s411 = scalar_select %p408, %s409, %s410
      %p414 = pneg %p408
      %p415 = scmp.eq.s32.totalorder %s40, 1
      %p416 = por %p414, %p415
      %p417 = scmp.ne.s32.totalorder %s409, %s412
      %p418 = scmp.eq.s32.totalorder %s40, 0
      %p419 = por %p417, %p418
      %p420 = scmp.ne.s32.totalorder %s409, %s412
      %p421 = scmp.eq.s32.totalorder %s45, 1
      %p422 = por %p420, %p421
      %p423 = scmp.ne.s32.totalorder %s412, %s413
      %p424 = scmp.eq.s32.totalorder %s45, 0
      %p425 = por %p423, %p424
      %p426 = scmp.ne.s32.totalorder %s412, %s413
      %p427 = scmp.eq.s32.totalorder %s46, 1
      %p428 = por %p426, %p427
      %p430 = scmp.ne.s32.totalorder %s413, %s429
      %p431 = scmp.eq.s32.totalorder %s46, 0
      %p432 = por %p430, %p431
      %s433 = ssub.s32 %s40, %s47
      %p434 = scmp.eq.s32.totalorder %s433, 0
      %s436 = sadd.s32 %s435, 1
      %s437 = scalar_select %p434, %s435, %s436
      %p440 = pneg %p434
      %p441 = scmp.eq.s32.totalorder %s40, 1
      %p442 = por %p440, %p441
      %p443 = scmp.ne.s32.totalorder %s435, %s438
      %p444 = scmp.eq.s32.totalorder %s40, 0
      %p445 = por %p443, %p444
      %p446 = scmp.ne.s32.totalorder %s435, %s438
      %p447 = scmp.eq.s32.totalorder %s45, 1
      %p448 = por %p446, %p447
      %p449 = scmp.ne.s32.totalorder %s438, %s439
      %p450 = scmp.eq.s32.totalorder %s45, 0
      %p451 = por %p449, %p450
      %p452 = scmp.ne.s32.totalorder %s438, %s439
      %p453 = scmp.eq.s32.totalorder %s46, 1
      %p454 = por %p452, %p453
      %p456 = scmp.ne.s32.totalorder %s439, %s455
      %p457 = scmp.eq.s32.totalorder %s46, 0
      %p458 = por %p456, %p457
      %s459 = ssub.s32 %s40, %s47
      %p460 = scmp.eq.s32.totalorder %s459, 0
      %s462 = sadd.s32 %s461, 1
      %s463 = scalar_select %p460, %s461, %s462
      %p466 = pneg %p460
      %p467 = scmp.eq.s32.totalorder %s40, 1
      %p468 = por %p466, %p467
      %p469 = scmp.ne.s32.totalorder %s461, %s464
      %p470 = scmp.eq.s32.totalorder %s40, 0
      %p471 = por %p469, %p470
      %p472 = scmp.ne.s32.totalorder %s461, %s464
      %p473 = scmp.eq.s32.totalorder %s45, 1
      %p474 = por %p472, %p473
      %p475 = scmp.ne.s32.totalorder %s464, %s465
      %p476 = scmp.eq.s32.totalorder %s45, 0
      %p477 = por %p475, %p476
      %p478 = scmp.ne.s32.totalorder %s464, %s465
      %p479 = scmp.eq.s32.totalorder %s46, 1
      %p480 = por %p478, %p479
      %p482 = scmp.ne.s32.totalorder %s465, %s481
      %p483 = scmp.eq.s32.totalorder %s46, 0
      %p484 = por %p482, %p483
      %s485 = ssub.s32 %s40, %s47
      %p486 = scmp.eq.s32.totalorder %s485, 0
      %s488 = sadd.s32 %s487, 1
      %s489 = scalar_select %p486, %s487, %s488
      %p492 = pneg %p486
      %p493 = scmp.eq.s32.totalorder %s40, 1
      %p494 = por %p492, %p493
      %p495 = scmp.ne.s32.totalorder %s487, %s490
      %p496 = scmp.eq.s32.totalorder %s40, 0
      %p497 = por %p495, %p496
      %p498 = scmp.ne.s32.totalorder %s487, %s490
      %p499 = scmp.eq.s32.totalorder %s45, 1
      %p500 = por %p498, %p499
      %p501 = scmp.ne.s32.totalorder %s490, %s491
      %p502 = scmp.eq.s32.totalorder %s45, 0
      %p503 = por %p501, %p502
      %p504 = scmp.ne.s32.totalorder %s490, %s491
      %p505 = scmp.eq.s32.totalorder %s46, 1
      %p506 = por %p504, %p505
      %p508 = scmp.ne.s32.totalorder %s491, %s507
      %p509 = scmp.eq.s32.totalorder %s46, 0
      %p510 = por %p508, %p509
      %s511 = ssub.s32 %s40, %s47
      %p512 = scmp.eq.s32.totalorder %s511, 0
      %s514 = sadd.s32 %s513, 1
      %s515 = scalar_select %p512, %s513, %s514
      %p518 = pneg %p512
      %p519 = scmp.eq.s32.totalorder %s40, 1
      %p520 = por %p518, %p519
      %p521 = scmp.ne.s32.totalorder %s513, %s516
      %p522 = scmp.eq.s32.totalorder %s40, 0
      %p523 = por %p521, %p522
      %p524 = scmp.ne.s32.totalorder %s513, %s516
      %p525 = scmp.eq.s32.totalorder %s45, 1
      %p526 = por %p524, %p525
      %p527 = scmp.ne.s32.totalorder %s516, %s517
      %p528 = scmp.eq.s32.totalorder %s45, 0
      %p529 = por %p527, %p528
      %p530 = scmp.ne.s32.totalorder %s516, %s517
      %p531 = scmp.eq.s32.totalorder %s46, 1
      %p532 = por %p530, %p531
      %p534 = scmp.ne.s32.totalorder %s517, %s533
      %p535 = scmp.eq.s32.totalorder %s46, 0
      %p536 = por %p534, %p535
      %s537 = ssub.s32 %s40, %s47
      %p538 = scmp.eq.s32.totalorder %s537, 0
      %s540 = sadd.s32 %s539, 1
      %s541 = scalar_select %p538, %s539, %s540
      %p544 = pneg %p538
      %p545 = scmp.eq.s32.totalorder %s40, 1
      %p546 = por %p544, %p545
      %p547 = scmp.ne.s32.totalorder %s539, %s542
      %p548 = scmp.eq.s32.totalorder %s40, 0
      %p549 = por %p547, %p548
      %p550 = scmp.ne.s32.totalorder %s539, %s542
      %p551 = scmp.eq.s32.totalorder %s45, 1
      %p552 = por %p550, %p551
      %p553 = scmp.ne.s32.totalorder %s542, %s543
      %p554 = scmp.eq.s32.totalorder %s45, 0
      %p555 = por %p553, %p554
      %p556 = scmp.ne.s32.totalorder %s542, %s543
      %p557 = scmp.eq.s32.totalorder %s46, 1
      %p558 = por %p556, %p557
      %p560 = scmp.ne.s32.totalorder %s543, %s559
      %p561 = scmp.eq.s32.totalorder %s46, 0
      %p562 = por %p560, %p561
      %p563 = scmp.le.s32.totalorder 1, %s40
      %p564 = scmp.lt.s32.totalorder %s40, 3
      %p565 = pnand %p563, %p564
      %p566 = pneg %p565
      // Predicated region
      $region9: #{higldp_forward.2} parent=5 // pred_check
        _
      $region10: #{higldp_forward.2} parent=5 // pred_check_branch
        %568 = sbr.rel (%p565) target = $region12
      $region11: #{higldp_forward.2} parent=5 // pred_region
        %s569 = ssub.s32 %s40, 1
        // Predicated region
        $region13: #{higldp_forward.2} parent=11 // pred_check
          %p570 = pneg %p61
        $region14: #{higldp_forward.2} parent=11 // pred_check_branch
          %572 = sbr.rel (%p570) target = $region16
        $region15: #{higldp_forward.2} parent=11 // pred_region
          _
        $region16: #{higldp_forward.2} parent=11 // pred_fallthru
          _
      $region12: #{higldp_forward.2} parent=5 // pred_fallthru
        _
      %p573 = scmp.lt.s32.totalorder %s40, 2
      // Predicated region
      $region17: #{higldp_forward.2} parent=5 // pred_check
        %p574 = pneg %p573
      $region18: #{higldp_forward.2} parent=5 // pred_check_branch
        %576 = sbr.rel (%p574) target = $region20
      $region19: #{higldp_forward.2} parent=5 // pred_region
        // Predicated region
        $region21: #{higldp_forward.2} parent=19 // pred_check
          %p577 = pneg %p81
        $region22: #{higldp_forward.2} parent=19 // pred_check_branch
          %579 = sbr.rel (%p577) target = $region24
        $region23: #{higldp_forward.2} parent=19 // pred_region
          %p580 = scmp.lt.s32.totalorder %s40, 1
          %s581 = scalar_select %p580, %s40, 1
          %s582 = smul.addr %s581, 16
          %s583 = smul.addr %s582, 4
          %s584 = scalar_lea.vmem %s1, %s583
        $region24: #{higldp_forward.2} parent=19 // pred_fallthru
          _
        // Predicated region
        $region25: #{higldp_forward.2} parent=19 // pred_check
          %p585 = pneg %p107
        $region26: #{higldp_forward.2} parent=19 // pred_check_branch
          %587 = sbr.rel (%p585) target = $region28
        $region27: #{higldp_forward.2} parent=19 // pred_region
          %p588 = scmp.lt.s32.totalorder %s40, 1
          %s589 = scalar_select %p588, %s40, 1
          %s590 = smul.addr %s589, 16
          %s591 = smul.addr %s590, 8
          %s592 = scalar_lea.vmem %s2, %s591
        $region28: #{higldp_forward.2} parent=19 // pred_fallthru
          _
        // Predicated region
        $region29: #{higldp_forward.2} parent=19 // pred_check
          %p593 = pneg %p133
        $region30: #{higldp_forward.2} parent=19 // pred_check_branch
          %595 = sbr.rel (%p593) target = $region32
        $region31: #{higldp_forward.2} parent=19 // pred_region
          %s596 = sand.u32 %s123, 1
          %s597 = scalar_lea.sflag [#allocation3], %s596
          %s598 = sand.u32 %s123, 1
          %s599 = smul.addr %s598, 64
          %s600 = scalar_lea.vmem [#allocation2], %s599
          %602 = vsyncadd %s597, 0
          %s603 = smul.addr %s40, 16
          %s604 = smul.addr %s603, 4
          %s605 = scalar_lea.hbm %s3, %s604
          %s606 = sshll.u32 %s605, 4
          %s607 = int_to_ptr.hbm [resolvable:$true] %s606
          %s608 = sshll.u32 %s600, 4
          %s609 = int_to_ptr.vmem [resolvable:$true] %s608
          %614 = dma.hbm_to_vmem [thread:$0]  %s607, 1024, %s609, %s597, 64, 64, 4
        $region32: #{higldp_forward.2} parent=19 // pred_fallthru
          _
        // Predicated region
        $region33: #{higldp_forward.2} parent=19 // pred_check
          %p615 = pneg %p159
        $region34: #{higldp_forward.2} parent=19 // pred_check_branch
          %617 = sbr.rel (%p615) target = $region36
        $region35: #{higldp_forward.2} parent=19 // pred_region
          %p618 = scmp.lt.s32.totalorder %s40, 1
          %s619 = scalar_select %p618, %s40, 1
          %s620 = scalar_lea.vmem %s4, %s619
        $region36: #{higldp_forward.2} parent=19 // pred_fallthru
          _
        // Predicated region
        $region37: #{higldp_forward.2} parent=19 // pred_check
          %p621 = pneg %p185
        $region38: #{higldp_forward.2} parent=19 // pred_check_branch
          %623 = sbr.rel (%p621) target = $region40
        $region39: #{higldp_forward.2} parent=19 // pred_region
          %s624 = sand.u32 %s40, 1
          %s625 = scalar_lea.sflag [#allocation5], %s624
          %s626 = sand.u32 %s175, 1
          %s627 = smul.addr %s626, 128
          %s628 = scalar_lea.vmem [#allocation4], %s627
          %630 = vsyncadd %s625, 0
          %s631 = smul.addr %s40, 32
          %s632 = smul.addr %s631, 4
          %s633 = scalar_lea.hbm %s5, %s632
          %s634 = sshll.u32 %s633, 4
          %s635 = int_to_ptr.hbm [resolvable:$true] %s634
          %s636 = sshll.u32 %s628, 4
          %s637 = int_to_ptr.vmem [resolvable:$true] %s636
          %642 = dma.hbm_to_vmem [thread:$0]  %s635, 2048, %s637, %s625, 128, 128, 8
        $region40: #{higldp_forward.2} parent=19 // pred_fallthru
          _
        // Predicated region
        $region41: #{higldp_forward.2} parent=19 // pred_check
          %p643 = pneg %p211
        $region42: #{higldp_forward.2} parent=19 // pred_check_branch
          %645 = sbr.rel (%p643) target = $region44
        $region43: #{higldp_forward.2} parent=19 // pred_region
          %p646 = scmp.lt.s32.totalorder %s40, 1
          %s647 = scalar_select %p646, %s40, 1
          %s648 = smul.addr %s647, 2
          %s649 = scalar_lea.vmem %s6, %s648
        $region44: #{higldp_forward.2} parent=19 // pred_fallthru
          _
        // Predicated region
        $region45: #{higldp_forward.2} parent=19 // pred_check
          %p650 = pneg %p237
        $region46: #{higldp_forward.2} parent=19 // pred_check_branch
          %652 = sbr.rel (%p650) target = $region48
        $region47: #{higldp_forward.2} parent=19 // pred_region
          %p653 = scmp.lt.s32.totalorder %s40, 1
          %s654 = scalar_select %p653, %s40, 1
          %s655 = smul.addr %s654, 128
          %s656 = smul.addr %s655, 4
          %s657 = scalar_lea.vmem %s7, %s656
        $region48: #{higldp_forward.2} parent=19 // pred_fallthru
          _
        // Predicated region
        $region49: #{higldp_forward.2} parent=19 // pred_check
          %p658 = pneg %p263
        $region50: #{higldp_forward.2} parent=19 // pred_check_branch
          %660 = sbr.rel (%p658) target = $region52
        $region51: #{higldp_forward.2} parent=19 // pred_region
          %p661 = scmp.lt.s32.totalorder %s40, 1
          %s662 = scalar_select %p661, %s40, 1
          %s663 = smul.addr %s662, 64
          %s664 = smul.addr %s663, 8
          %s665 = scalar_lea.vmem %s8, %s664
        $region52: #{higldp_forward.2} parent=19 // pred_fallthru
          _
        // Predicated region
        $region53: #{higldp_forward.2} parent=19 // pred_check
          %p666 = pneg %p289
        $region54: #{higldp_forward.2} parent=19 // pred_check_branch
          %668 = sbr.rel (%p666) target = $region56
        $region55: #{higldp_forward.2} parent=19 // pred_region
          %p669 = scmp.lt.s32.totalorder %s40, 1
          %s670 = scalar_select %p669, %s40, 1
          %s671 = smul.addr %s670, 4
          %s672 = smul.addr %s671, 4
          %s673 = scalar_lea.vmem %s9, %s672
        $region56: #{higldp_forward.2} parent=19 // pred_fallthru
          _
        // Predicated region
        $region57: #{higldp_forward.2} parent=19 // pred_check
          %p674 = pneg %p315
        $region58: #{higldp_forward.2} parent=19 // pred_check_branch
          %676 = sbr.rel (%p674) target = $region60
        $region59: #{higldp_forward.2} parent=19 // pred_region
          %p677 = scmp.lt.s32.totalorder %s40, 1
          %s678 = scalar_select %p677, %s40, 1
          %s679 = smul.addr %s678, 4
          %s680 = scalar_lea.vmem %s10, %s679
        $region60: #{higldp_forward.2} parent=19 // pred_fallthru
          _
        // Predicated region
        $region61: #{higldp_forward.2} parent=19 // pred_check
          %p681 = pneg %p341
        $region62: #{higldp_forward.2} parent=19 // pred_check_branch
          %683 = sbr.rel (%p681) target = $region64
        $region63: #{higldp_forward.2} parent=19 // pred_region
          %s684 = sand.u32 %s40, 1
          %s685 = scalar_lea.sflag [#allocation5], %s684
          %s686 = sand.u32 %s331, 1
          %s687 = smul.addr %s686, 512
          %s688 = scalar_lea.vmem [#allocation6], %s687
          %690 = vsyncadd %s685, 0
          %s691 = smul.addr %s40, 128
          %s692 = smul.addr %s691, 4
          %s693 = scalar_lea.hbm %s11, %s692
          %s694 = sshll.u32 %s693, 4
          %s695 = int_to_ptr.hbm [resolvable:$true] %s694
          %s696 = sshll.u32 %s688, 4
          %s697 = int_to_ptr.vmem [resolvable:$true] %s696
          %702 = dma.hbm_to_vmem [thread:$0]  %s695, 8192, %s697, %s685, 128, 128, 8
        $region64: #{higldp_forward.2} parent=19 // pred_fallthru
          _
        // Predicated region
        $region65: #{higldp_forward.2} parent=19 // pred_check
          %p703 = pneg %p367
        $region66: #{higldp_forward.2} parent=19 // pred_check_branch
          %705 = sbr.rel (%p703) target = $region68
        $region67: #{higldp_forward.2} parent=19 // pred_region
          %p706 = scmp.lt.s32.totalorder %s40, 1
          %s707 = scalar_select %p706, %s40, 1
          %s708 = smul.addr %s707, 32
          %s709 = smul.addr %s708, 8
          %s710 = scalar_lea.vmem %s12, %s709
        $region68: #{higldp_forward.2} parent=19 // pred_fallthru
          _
        // Predicated region
        $region69: #{higldp_forward.2} parent=19 // pred_check
          %p711 = pneg %p393
        $region70: #{higldp_forward.2} parent=19 // pred_check_branch
          %713 = sbr.rel (%p711) target = $region72
        $region71: #{higldp_forward.2} parent=19 // pred_region
          %s714 = sand.u32 %s40, 1
          %s715 = scalar_lea.sflag [#allocation8], %s714
          %s716 = sand.u32 %s383, 1
          %s717 = smul.addr %s716, 2
          %s718 = scalar_lea.vmem [#allocation7], %s717
          %720 = vsyncadd %s715, 0
          %s721 = smul.addr %s40, 2
          %s722 = scalar_lea.hbm %s13, %s721
          %s724 = sshll.u32 %s722, 4
          %s725 = int_to_ptr.hbm [resolvable:$true] %s724
          %s726 = sshll.u32 %s718, 4
          %s727 = int_to_ptr.vmem [resolvable:$true] %s726
          %729 = dma.hbm_to_vmem [thread:$0]  %s725, 32, %s727, %s715
        $region72: #{higldp_forward.2} parent=19 // pred_fallthru
          _
        // Predicated region
        $region73: #{higldp_forward.2} parent=19 // pred_check
          %p730 = pneg %p419
        $region74: #{higldp_forward.2} parent=19 // pred_check_branch
          %732 = sbr.rel (%p730) target = $region76
        $region75: #{higldp_forward.2} parent=19 // pred_region
          %s733 = sand.u32 %s40, 1
          %s734 = scalar_lea.sflag [#allocation8], %s733
          %s735 = sand.u32 %s409, 1
          %s736 = smul.addr %s735, 2
          %s737 = scalar_lea.vmem [#allocation9], %s736
          %739 = vsyncadd %s734, 0
          %s740 = smul.addr %s40, 2
          %s741 = scalar_lea.hbm %s14, %s740
          %s743 = sshll.u32 %s741, 4
          %s744 = int_to_ptr.hbm [resolvable:$true] %s743
          %s745 = sshll.u32 %s737, 4
          %s746 = int_to_ptr.vmem [resolvable:$true] %s745
          %748 = dma.hbm_to_vmem [thread:$0]  %s744, 32, %s746, %s734
        $region76: #{higldp_forward.2} parent=19 // pred_fallthru
          _
        // Predicated region
        $region77: #{higldp_forward.2} parent=19 // pred_check
          %p749 = pneg %p445
        $region78: #{higldp_forward.2} parent=19 // pred_check_branch
          %751 = sbr.rel (%p749) target = $region80
        $region79: #{higldp_forward.2} parent=19 // pred_region
          %s752 = sand.u32 %s40, 1
          %s753 = scalar_lea.sflag [#allocation11], %s752
          %s754 = sand.u32 %s435, 1
          %s755 = smul.addr %s754, 128
          %s756 = scalar_lea.vmem [#allocation10], %s755
          %758 = vsyncadd %s753, 0
          %s759 = smul.addr %s40, 32
          %s760 = smul.addr %s759, 4
          %s761 = scalar_lea.hbm %s15, %s760
          %s762 = sshll.u32 %s761, 4
          %s763 = int_to_ptr.hbm [resolvable:$true] %s762
          %s764 = sshll.u32 %s756, 4
          %s765 = int_to_ptr.vmem [resolvable:$true] %s764
          %770 = dma.hbm_to_vmem [thread:$0]  %s763, 2048, %s765, %s753, 64, 64, 4
        $region80: #{higldp_forward.2} parent=19 // pred_fallthru
          _
        // Predicated region
        $region81: #{higldp_forward.2} parent=19 // pred_check
          %p771 = pneg %p471
        $region82: #{higldp_forward.2} parent=19 // pred_check_branch
          %773 = sbr.rel (%p771) target = $region84
        $region83: #{higldp_forward.2} parent=19 // pred_region
          %p774 = scmp.lt.s32.totalorder %s40, 1
          %s775 = scalar_select %p774, %s40, 1
          %s776 = scalar_lea.vmem %s16, %s775
        $region84: #{higldp_forward.2} parent=19 // pred_fallthru
          _
        // Predicated region
        $region85: #{higldp_forward.2} parent=19 // pred_check
          %p777 = pneg %p497
        $region86: #{higldp_forward.2} parent=19 // pred_check_branch
          %779 = sbr.rel (%p777) target = $region88
        $region87: #{higldp_forward.2} parent=19 // pred_region
          %s780 = sand.u32 %s40, 1
          %s781 = scalar_lea.sflag [#allocation11], %s780
          %s782 = sand.u32 %s487, 1
          %s783 = smul.addr %s782, 128
          %s784 = scalar_lea.vmem [#allocation12], %s783
          %786 = vsyncadd %s781, 0
          %s787 = smul.addr %s40, 32
          %s788 = smul.addr %s787, 4
          %s789 = scalar_lea.hbm %s17, %s788
          %s790 = sshll.u32 %s789, 4
          %s791 = int_to_ptr.hbm [resolvable:$true] %s790
          %s792 = sshll.u32 %s784, 4
          %s793 = int_to_ptr.vmem [resolvable:$true] %s792
          %798 = dma.hbm_to_vmem [thread:$0]  %s791, 2048, %s793, %s781, 128, 128, 8
        $region88: #{higldp_forward.2} parent=19 // pred_fallthru
          _
        // Predicated region
        $region89: #{higldp_forward.2} parent=19 // pred_check
          %p799 = pneg %p523
        $region90: #{higldp_forward.2} parent=19 // pred_check_branch
          %801 = sbr.rel (%p799) target = $region92
        $region91: #{higldp_forward.2} parent=19 // pred_region
          %s802 = sand.u32 %s513, 1
          %s803 = scalar_lea.sflag [#allocation14], %s802
          %s804 = sand.u32 %s513, 1
          %s805 = smul.addr %s804, 2
          %s806 = scalar_lea.vmem [#allocation13], %s805
          %808 = vsyncadd %s803, 0
          %s809 = smul.addr %s40, 2
          %s810 = scalar_lea.hbm %s18, %s809
          %s812 = sshll.u32 %s810, 4
          %s813 = int_to_ptr.hbm [resolvable:$true] %s812
          %s814 = sshll.u32 %s806, 4
          %s815 = int_to_ptr.vmem [resolvable:$true] %s814
          %817 = dma.hbm_to_vmem [thread:$0]  %s813, 32, %s815, %s803
        $region92: #{higldp_forward.2} parent=19 // pred_fallthru
          _
      $region20: #{higldp_forward.2} parent=5 // pred_fallthru
        _
      %p818 = scmp.le.s32.totalorder 1, %s40
      %p819 = scmp.lt.s32.totalorder %s40, 3
      %p820 = pnand %p818, %p819
      %p821 = pneg %p820
      // Predicated region
      $region93: #{higldp_forward.2} parent=5 // pred_check
        _
      $region94: #{higldp_forward.2} parent=5 // pred_check_branch
        %823 = sbr.rel (%p820) target = $region96
      $region95: #{higldp_forward.2} parent=5 // pred_region
        %s824 = ssub.s32 %s40, 1
        %s825 = sand.u32 %s126, 1
        %s826 = scalar_lea.sflag [#allocation3], %s825
        %s827 = sand.u32 %s126, 1
        %s828 = smul.addr %s827, 64
        %s829 = scalar_lea.vmem [#allocation2], %s828
        // Predicated region
        $region97: #{higldp_forward.2} parent=95 // pred_check
          %p830 = pneg %p139
        $region98: #{higldp_forward.2} parent=95 // pred_check_branch
          %832 = sbr.rel (%p830) target = $region100
        $region99: #{higldp_forward.2} parent=95 // pred_region
          %834 = dma.done %s826, 1024
        $region100: #{higldp_forward.2} parent=95 // pred_fallthru
          _
        %s835 = sand.u32 %s45, 1
        %s836 = scalar_lea.sflag [#allocation5], %s835
        %s837 = sand.u32 %s178, 1
        %s838 = smul.addr %s837, 128
        %s839 = scalar_lea.vmem [#allocation4], %s838
        // Predicated region
        $region101: #{higldp_forward.2} parent=95 // pred_check
          %p840 = pneg %p191
        $region102: #{higldp_forward.2} parent=95 // pred_check_branch
          %842 = sbr.rel (%p840) target = $region104
        $region103: #{higldp_forward.2} parent=95 // pred_region
          %844 = dma.done %s836, 2048
        $region104: #{higldp_forward.2} parent=95 // pred_fallthru
          _
        %s845 = sand.u32 %s45, 1
        %s846 = scalar_lea.sflag [#allocation5], %s845
        %s847 = sand.u32 %s334, 1
        %s848 = smul.addr %s847, 512
        %s849 = scalar_lea.vmem [#allocation6], %s848
        // Predicated region
        $region105: #{higldp_forward.2} parent=95 // pred_check
          %p850 = pneg %p347
        $region106: #{higldp_forward.2} parent=95 // pred_check_branch
          %852 = sbr.rel (%p850) target = $region108
        $region107: #{higldp_forward.2} parent=95 // pred_region
          %854 = dma.done %s846, 8192
        $region108: #{higldp_forward.2} parent=95 // pred_fallthru
          _
        %s855 = sand.u32 %s45, 1
        %s856 = scalar_lea.sflag [#allocation8], %s855
        %s857 = sand.u32 %s386, 1
        %s858 = smul.addr %s857, 2
        %s859 = scalar_lea.vmem [#allocation7], %s858
        // Predicated region
        $region109: #{higldp_forward.2} parent=95 // pred_check
          %p860 = pneg %p399
        $region110: #{higldp_forward.2} parent=95 // pred_check_branch
          %862 = sbr.rel (%p860) target = $region112
        $region111: #{higldp_forward.2} parent=95 // pred_region
          %864 = dma.done %s856, 32
        $region112: #{higldp_forward.2} parent=95 // pred_fallthru
          _
        %s865 = sand.u32 %s45, 1
        %s866 = scalar_lea.sflag [#allocation8], %s865
        %s867 = sand.u32 %s412, 1
        %s868 = smul.addr %s867, 2
        %s869 = scalar_lea.vmem [#allocation9], %s868
        // Predicated region
        $region113: #{higldp_forward.2} parent=95 // pred_check
          %p870 = pneg %p425
        $region114: #{higldp_forward.2} parent=95 // pred_check_branch
          %872 = sbr.rel (%p870) target = $region116
        $region115: #{higldp_forward.2} parent=95 // pred_region
          %874 = dma.done %s866, 32
        $region116: #{higldp_forward.2} parent=95 // pred_fallthru
          _
        %s875 = sand.u32 %s45, 1
        %s876 = scalar_lea.sflag [#allocation11], %s875
        %s877 = sand.u32 %s438, 1
        %s878 = smul.addr %s877, 128
        %s879 = scalar_lea.vmem [#allocation10], %s878
        // Predicated region
        $region117: #{higldp_forward.2} parent=95 // pred_check
          %p880 = pneg %p451
        $region118: #{higldp_forward.2} parent=95 // pred_check_branch
          %882 = sbr.rel (%p880) target = $region120
        $region119: #{higldp_forward.2} parent=95 // pred_region
          %884 = dma.done %s876, 2048
        $region120: #{higldp_forward.2} parent=95 // pred_fallthru
          _
        %s885 = sand.u32 %s45, 1
        %s886 = scalar_lea.sflag [#allocation11], %s885
        %s887 = sand.u32 %s490, 1
        %s888 = smul.addr %s887, 128
        %s889 = scalar_lea.vmem [#allocation12], %s888
        // Predicated region
        $region121: #{higldp_forward.2} parent=95 // pred_check
          %p890 = pneg %p503
        $region122: #{higldp_forward.2} parent=95 // pred_check_branch
          %892 = sbr.rel (%p890) target = $region124
        $region123: #{higldp_forward.2} parent=95 // pred_region
          %894 = dma.done %s886, 2048
        $region124: #{higldp_forward.2} parent=95 // pred_fallthru
          _
        %s895 = sand.u32 %s516, 1
        %s896 = scalar_lea.sflag [#allocation14], %s895
        %s897 = sand.u32 %s516, 1
        %s898 = smul.addr %s897, 2
        %s899 = scalar_lea.vmem [#allocation13], %s898
        // Predicated region
        $region125: #{higldp_forward.2} parent=95 // pred_check
          %p900 = pneg %p529
        $region126: #{higldp_forward.2} parent=95 // pred_check_branch
          %902 = sbr.rel (%p900) target = $region128
        $region127: #{higldp_forward.2} parent=95 // pred_region
          %904 = dma.done %s896, 32
        $region128: #{higldp_forward.2} parent=95 // pred_fallthru
          _
        %p905 = pneg %p61
        %p906 = pneg %p58
        %p907 = scmp.lt.s32.totalorder %s45, 1
        %s908 = scalar_select %p907, %s45, 1
        %s909 = smul.addr %s908, 16
        %s910 = smul.addr %s909, 4
        %s911 = scalar_lea.vmem %s1, %s910
        %p912 = pneg %p87
        %p913 = pneg %p84
        %p914 = scmp.lt.s32.totalorder %s45, 1
        %s915 = scalar_select %p914, %s45, 1
        %s916 = smul.addr %s915, 16
        %s917 = smul.addr %s916, 8
        %s918 = scalar_lea.vmem %s2, %s917
        %p919 = pneg %p113
        %p920 = pneg %p110
        %s921 = sand.u32 %s126, 1
        %s922 = scalar_lea.sflag [#allocation3], %s921
        %s923 = sand.u32 %s126, 1
        %s924 = smul.addr %s923, 64
        %s925 = scalar_lea.vmem [#allocation2], %s924
        %p926 = pneg %p139
        %p927 = pneg %p136
        %p928 = scmp.lt.s32.totalorder %s45, 1
        %s929 = scalar_select %p928, %s45, 1
        %s930 = scalar_lea.vmem %s4, %s929
        %p931 = pneg %p165
        %p932 = pneg %p162
        %s933 = sand.u32 %s45, 1
        %s934 = scalar_lea.sflag [#allocation5], %s933
        %s935 = sand.u32 %s178, 1
        %s936 = smul.addr %s935, 128
        %s937 = scalar_lea.vmem [#allocation4], %s936
        %p938 = pneg %p191
        %p939 = pneg %p188
        %p940 = scmp.lt.s32.totalorder %s45, 1
        %s941 = scalar_select %p940, %s45, 1
        %s942 = smul.addr %s941, 2
        %s943 = scalar_lea.vmem %s6, %s942
        %p944 = pneg %p217
        %p945 = pneg %p214
        %p946 = scmp.lt.s32.totalorder %s45, 1
        %s947 = scalar_select %p946, %s45, 1
        %s948 = smul.addr %s947, 128
        %s949 = smul.addr %s948, 4
        %s950 = scalar_lea.vmem %s7, %s949
        %p951 = pneg %p243
        %p952 = pneg %p240
        %p953 = scmp.lt.s32.totalorder %s45, 1
        %s954 = scalar_select %p953, %s45, 1
        %s955 = smul.addr %s954, 64
        %s956 = smul.addr %s955, 8
        %s957 = scalar_lea.vmem %s8, %s956
        %p958 = pneg %p269
        %p959 = pneg %p266
        %p960 = scmp.lt.s32.totalorder %s45, 1
        %s961 = scalar_select %p960, %s45, 1
        %s962 = smul.addr %s961, 4
        %s963 = smul.addr %s962, 4
        %s964 = scalar_lea.vmem %s9, %s963
        %p965 = pneg %p295
        %p966 = pneg %p292
        %p967 = scmp.lt.s32.totalorder %s45, 1
        %s968 = scalar_select %p967, %s45, 1
        %s969 = smul.addr %s968, 4
        %s970 = scalar_lea.vmem %s10, %s969
        %p971 = pneg %p321
        %p972 = pneg %p318
        %s973 = sand.u32 %s45, 1
        %s974 = scalar_lea.sflag [#allocation5], %s973
        %s975 = sand.u32 %s334, 1
        %s976 = smul.addr %s975, 512
        %s977 = scalar_lea.vmem [#allocation6], %s976
        %p978 = pneg %p347
        %p979 = pneg %p344
        %p980 = scmp.lt.s32.totalorder %s45, 1
        %s981 = scalar_select %p980, %s45, 1
        %s982 = smul.addr %s981, 32
        %s983 = smul.addr %s982, 8
        %s984 = scalar_lea.vmem %s12, %s983
        %p985 = pneg %p373
        %p986 = pneg %p370
        %s987 = sand.u32 %s45, 1
        %s988 = scalar_lea.sflag [#allocation8], %s987
        %s989 = sand.u32 %s386, 1
        %s990 = smul.addr %s989, 2
        %s991 = scalar_lea.vmem [#allocation7], %s990
        %p992 = pneg %p399
        %p993 = pneg %p396
        %s994 = sand.u32 %s45, 1
        %s995 = scalar_lea.sflag [#allocation8], %s994
        %s996 = sand.u32 %s412, 1
        %s997 = smul.addr %s996, 2
        %s998 = scalar_lea.vmem [#allocation9], %s997
        %p999 = pneg %p425
        %p1000 = pneg %p422
        %s1001 = sand.u32 %s45, 1
        %s1002 = scalar_lea.sflag [#allocation11], %s1001
        %s1003 = sand.u32 %s438, 1
        %s1004 = smul.addr %s1003, 128
        %s1005 = scalar_lea.vmem [#allocation10], %s1004
        %p1006 = pneg %p451
        %p1007 = pneg %p448
        %p1008 = scmp.lt.s32.totalorder %s45, 1
        %s1009 = scalar_select %p1008, %s45, 1
        %s1010 = scalar_lea.vmem %s16, %s1009
        %p1011 = pneg %p477
        %p1012 = pneg %p474
        %s1013 = sand.u32 %s45, 1
        %s1014 = scalar_lea.sflag [#allocation11], %s1013
        %s1015 = sand.u32 %s490, 1
        %s1016 = smul.addr %s1015, 128
        %s1017 = scalar_lea.vmem [#allocation12], %s1016
        %p1018 = pneg %p503
        %p1019 = pneg %p500
        %s1020 = sand.u32 %s516, 1
        %s1021 = scalar_lea.sflag [#allocation14], %s1020
        %s1022 = sand.u32 %s516, 1
        %s1023 = smul.addr %s1022, 2
        %s1024 = scalar_lea.vmem [#allocation13], %s1023
        %p1025 = pneg %p529
        %p1026 = pneg %p526
        %p1027 = pneg %p555
        %p1028 = pneg %p552
        %p1029 = scmp.lt.s32.totalorder %s45, 1
        %s1030 = scalar_select %p1029, %s45, 1
        %s1031 = smul.addr %s1030, 64
        %s1032 = smul.addr %s1031, 8
        %s1033 = scalar_lea.vmem %s19, %s1032
        %p1034 = scmp.lt.s32.totalorder %s45, 1
        %s1035 = scalar_select %p1034, %s45, 1
        %s1036 = smul.addr %s1035, 16
        %s1037 = smul.addr %s1036, 4
        %s1038 = scalar_lea.vmem %s1, %s1037
        %p1039 = scmp.lt.s32.totalorder %s45, 1
        %s1040 = scalar_select %p1039, %s45, 1
        %s1041 = smul.addr %s1040, 16
        %s1042 = smul.addr %s1041, 8
        %s1043 = scalar_lea.vmem %s2, %s1042
        %p1044 = scmp.lt.s32.totalorder %s45, 1
        %s1045 = scalar_select %p1044, %s45, 1
        %s1046 = scalar_lea.vmem %s4, %s1045
        %p1047 = scmp.lt.s32.totalorder %s45, 1
        %s1048 = scalar_select %p1047, %s45, 1
        %s1049 = smul.addr %s1048, 2
        %s1050 = scalar_lea.vmem %s6, %s1049
        %p1051 = scmp.lt.s32.totalorder %s45, 1
        %s1052 = scalar_select %p1051, %s45, 1
        %s1053 = smul.addr %s1052, 128
        %s1054 = smul.addr %s1053, 4
        %s1055 = scalar_lea.vmem %s7, %s1054
        %p1056 = scmp.lt.s32.totalorder %s45, 1
        %s1057 = scalar_select %p1056, %s45, 1
        %s1058 = smul.addr %s1057, 64
        %s1059 = smul.addr %s1058, 8
        %s1060 = scalar_lea.vmem %s8, %s1059
        %p1061 = scmp.lt.s32.totalorder %s45, 1
        %s1062 = scalar_select %p1061, %s45, 1
        %s1063 = smul.addr %s1062, 4
        %s1064 = smul.addr %s1063, 4
        %s1065 = scalar_lea.vmem %s9, %s1064
        %p1066 = scmp.lt.s32.totalorder %s45, 1
        %s1067 = scalar_select %p1066, %s45, 1
        %s1068 = smul.addr %s1067, 4
        %s1069 = scalar_lea.vmem %s10, %s1068
        %p1070 = scmp.lt.s32.totalorder %s45, 1
        %s1071 = scalar_select %p1070, %s45, 1
        %s1072 = smul.addr %s1071, 32
        %s1073 = smul.addr %s1072, 8
        %s1074 = scalar_lea.vmem %s12, %s1073
        %p1075 = scmp.lt.s32.totalorder %s45, 1
        %s1076 = scalar_select %p1075, %s45, 1
        %s1077 = scalar_lea.vmem %s16, %s1076
        %p1078 = scmp.lt.s32.totalorder %s45, 1
        %s1079 = scalar_select %p1078, %s45, 1
        %s1080 = smul.addr %s1079, 64
        %s1081 = smul.addr %s1080, 8
        %s1082 = scalar_lea.vmem %s19, %s1081
        %v1083 = vld [vmem:[%s1038] sm:$0xf]
        %v1084 = vld [vmem:[%s1038 + $0x4] sm:$0xf]
        %v1085 = vld [vmem:[%s1038 + $0x8] sm:$0xf]
        %v1086 = vld [vmem:[%s1038 + $0xc] sm:$0xf]
        %v1087 = vld [vmem:[%s1038 + $0x10] sm:$0xf]
        %v1088 = vld [vmem:[%s1038 + $0x14] sm:$0xf]
        %v1089 = vld [vmem:[%s1038 + $0x18] sm:$0xf]
        %v1090 = vld [vmem:[%s1038 + $0x1c] sm:$0xf]
        %v1091 = vld [vmem:[%s1038 + $0x20] sm:$0xf]
        %v1092 = vld [vmem:[%s1038 + $0x24] sm:$0xf]
        %v1093 = vld [vmem:[%s1038 + $0x28] sm:$0xf]
        %v1094 = vld [vmem:[%s1038 + $0x2c] sm:$0xf]
        %v1095 = vld [vmem:[%s1038 + $0x30] sm:$0xf]
        %v1096 = vld [vmem:[%s1038 + $0x34] sm:$0xf]
        %v1097 = vld [vmem:[%s1038 + $0x38] sm:$0xf]
        %v1098 = vld [vmem:[%s1038 + $0x3c] sm:$0xf]
        %v1099 = vld [vmem:[%s1043] sm:$0xff]
        %v1100 = vld [vmem:[%s1043 + $0x8] sm:$0xff]
        %v1101 = vld [vmem:[%s1043 + $0x10] sm:$0xff]
        %v1102 = vld [vmem:[%s1043 + $0x18] sm:$0xff]
        %v1103 = vld [vmem:[%s1043 + $0x20] sm:$0xff]
        %v1104 = vld [vmem:[%s1043 + $0x28] sm:$0xff]
        %v1105 = vld [vmem:[%s1043 + $0x30] sm:$0xff]
        %v1106 = vld [vmem:[%s1043 + $0x38] sm:$0xff]
        %v1107 = vld [vmem:[%s1043 + $0x40] sm:$0xff]
        %v1108 = vld [vmem:[%s1043 + $0x48] sm:$0xff]
        %v1109 = vld [vmem:[%s1043 + $0x50] sm:$0xff]
        %v1110 = vld [vmem:[%s1043 + $0x58] sm:$0xff]
        %v1111 = vld [vmem:[%s1043 + $0x60] sm:$0xff]
        %v1112 = vld [vmem:[%s1043 + $0x68] sm:$0xff]
        %v1113 = vld [vmem:[%s1043 + $0x70] sm:$0xff]
        %v1114 = vld [vmem:[%s1043 + $0x78] sm:$0xff]
        %v1115 = vld [vmem:[%s0] sm:$0xf]
        %v1116 = vld [vmem:[%s0 + $0x4] sm:$0xf]
        %v1117 = vld [vmem:[%s0 + $0x8] sm:$0xf]
        %v1118 = vld [vmem:[%s0 + $0xc] sm:$0xf]
        %v1119 = vld [vmem:[%s0 + $0x10] sm:$0xf]
        %v1120 = vld [vmem:[%s0 + $0x14] sm:$0xf]
        %v1121 = vld [vmem:[%s0 + $0x18] sm:$0xf]
        %v1122 = vld [vmem:[%s0 + $0x1c] sm:$0xf]
        %v1123 = vld [vmem:[%s0 + $0x20] sm:$0xf]
        %v1124 = vld [vmem:[%s0 + $0x24] sm:$0xf]
        %v1125 = vld [vmem:[%s0 + $0x28] sm:$0xf]
        %v1126 = vld [vmem:[%s0 + $0x2c] sm:$0xf]
        %v1127 = vld [vmem:[%s0 + $0x30] sm:$0xf]
        %v1128 = vld [vmem:[%s0 + $0x34] sm:$0xf]
        %v1129 = vld [vmem:[%s0 + $0x38] sm:$0xf]
        %v1130 = vld [vmem:[%s0 + $0x3c] sm:$0xf]
        %v1131 = vld [vmem:[%s829] sm:$0xf]
        %v1132 = vld [vmem:[%s829 + $0x4] sm:$0xf]
        %v1133 = vld [vmem:[%s829 + $0x8] sm:$0xf]
        %v1134 = vld [vmem:[%s829 + $0xc] sm:$0xf]
        %v1135 = vld [vmem:[%s829 + $0x10] sm:$0xf]
        %v1136 = vld [vmem:[%s829 + $0x14] sm:$0xf]
        %v1137 = vld [vmem:[%s829 + $0x18] sm:$0xf]
        %v1138 = vld [vmem:[%s829 + $0x1c] sm:$0xf]
        %v1139 = vld [vmem:[%s829 + $0x20] sm:$0xf]
        %v1140 = vld [vmem:[%s829 + $0x24] sm:$0xf]
        %v1141 = vld [vmem:[%s829 + $0x28] sm:$0xf]
        %v1142 = vld [vmem:[%s829 + $0x2c] sm:$0xf]
        %v1143 = vld [vmem:[%s829 + $0x30] sm:$0xf]
        %v1144 = vld [vmem:[%s829 + $0x34] sm:$0xf]
        %v1145 = vld [vmem:[%s829 + $0x38] sm:$0xf]
        %v1146 = vld [vmem:[%s829 + $0x3c] sm:$0xf]
        %v1163 = vunpack.c.l.b16 %v1115
        %v1164 = vunpack.c.l.b16 %v1116
        %v1165 = vunpack.c.l.b16 %v1117
        %v1166 = vunpack.c.l.b16 %v1118
        %v1167 = vunpack.c.l.b16 %v1119
        %v1168 = vunpack.c.l.b16 %v1120
        %v1169 = vunpack.c.l.b16 %v1121
        %v1170 = vunpack.c.l.b16 %v1122
        %v1171 = vunpack.c.l.b16 %v1123
        %v1172 = vunpack.c.l.b16 %v1124
        %v1173 = vunpack.c.l.b16 %v1125
        %v1174 = vunpack.c.l.b16 %v1126
        %v1175 = vunpack.c.l.b16 %v1127
        %v1176 = vunpack.c.l.b16 %v1128
        %v1177 = vunpack.c.l.b16 %v1129
        %v1178 = vunpack.c.l.b16 %v1130
        %v1179 = vpack.c.b16 %v1164, %v1163
        %v1180 = vpack.c.b16 %v1166, %v1165
        %v1181 = vpack.c.b16 %v1168, %v1167
        %v1182 = vpack.c.b16 %v1170, %v1169
        %v1183 = vpack.c.b16 %v1172, %v1171
        %v1184 = vpack.c.b16 %v1174, %v1173
        %v1185 = vpack.c.b16 %v1176, %v1175
        %v1186 = vpack.c.b16 %v1178, %v1177
        %v1211 = vunpack.c.l.b16 %v1131
        %v1212 = vunpack.c.l.b16 %v1132
        %v1213 = vunpack.c.l.b16 %v1133
        %v1214 = vunpack.c.l.b16 %v1134
        %v1215 = vunpack.c.l.b16 %v1135
        %v1216 = vunpack.c.l.b16 %v1136
        %v1217 = vunpack.c.l.b16 %v1137
        %v1218 = vunpack.c.l.b16 %v1138
        %v1219 = vunpack.c.l.b16 %v1139
        %v1220 = vunpack.c.l.b16 %v1140
        %v1221 = vunpack.c.l.b16 %v1141
        %v1222 = vunpack.c.l.b16 %v1142
        %v1223 = vunpack.c.l.b16 %v1143
        %v1224 = vunpack.c.l.b16 %v1144
        %v1225 = vunpack.c.l.b16 %v1145
        %v1226 = vunpack.c.l.b16 %v1146
        %v1227 = vpack.c.b16 %v1212, %v1211
        %v1228 = vpack.c.b16 %v1214, %v1213
        %v1229 = vpack.c.b16 %v1216, %v1215
        %v1230 = vpack.c.b16 %v1218, %v1217
        %v1231 = vpack.c.b16 %v1220, %v1219
        %v1232 = vpack.c.b16 %v1222, %v1221
        %v1233 = vpack.c.b16 %v1224, %v1223
        %v1234 = vpack.c.b16 %v1226, %v1225
        %1243 = vmatpush.bf16.msra.mxu0 %v1234
        %1244 = vmatpush.bf16.msra.mxu0 %v1233
        %1245 = vmatpush.bf16.msra.mxu0 %v1232
        %1246 = vmatpush.bf16.msra.mxu0 %v1231
        %1247 = vmatpush.bf16.msra.mxu0 %v1230
        %1248 = vmatpush.bf16.msra.mxu0 %v1229
        %1249 = vmatpush.bf16.msra.mxu0 %v1228
        %1250 = vmatpush.bf16.msra.mxu0 %v1227
        %1251 = vmatmul.bf16.gmra.mxu0 %v1179
        %v1252 = vpop.f32.mrf.mxu0
        %v1253 = vadd.f32 0.0, %v1252
        %v1254 = vpop.f32.mrf.mxu0
        %v1255 = vadd.f32 0.0, %v1254
        %1256 = vmatmul.bf16.gmra.mxu0 %v1180
        %v1257 = vpop.f32.mrf.mxu0
        %v1258 = vadd.f32 0.0, %v1257
        %v1259 = vpop.f32.mrf.mxu0
        %v1260 = vadd.f32 0.0, %v1259
        %1261 = vmatmul.bf16.gmra.mxu0 %v1181
        %v1262 = vpop.f32.mrf.mxu0
        %v1263 = vadd.f32 0.0, %v1262
        %v1264 = vpop.f32.mrf.mxu0
        %v1265 = vadd.f32 0.0, %v1264
        %1266 = vmatmul.bf16.gmra.mxu0 %v1182
        %v1267 = vpop.f32.mrf.mxu0
        %v1268 = vadd.f32 0.0, %v1267
        %v1269 = vpop.f32.mrf.mxu0
        %v1270 = vadd.f32 0.0, %v1269
        %1271 = vmatmul.bf16.gmra.mxu0 %v1183
        %v1272 = vpop.f32.mrf.mxu0
        %v1273 = vadd.f32 0.0, %v1272
        %v1274 = vpop.f32.mrf.mxu0
        %v1275 = vadd.f32 0.0, %v1274
        %1276 = vmatmul.bf16.gmra.mxu0 %v1184
        %v1277 = vpop.f32.mrf.mxu0
        %v1278 = vadd.f32 0.0, %v1277
        %v1279 = vpop.f32.mrf.mxu0
        %v1280 = vadd.f32 0.0, %v1279
        %1281 = vmatmul.bf16.gmra.mxu0 %v1185
        %v1282 = vpop.f32.mrf.mxu0
        %v1283 = vadd.f32 0.0, %v1282
        %v1284 = vpop.f32.mrf.mxu0
        %v1285 = vadd.f32 0.0, %v1284
        %1286 = vmatmul.bf16.gmra.mxu0 %v1186
        %v1287 = vpop.f32.mrf.mxu0
        %v1288 = vadd.f32 0.0, %v1287
        %v1289 = vpop.f32.mrf.mxu0
        %v1290 = vadd.f32 0.0, %v1289
        %1291 = vdwg.mxu0
        %v1292 = vpack.c.bf16 %v1255, %v1253
        %v1293 = vpack.c.bf16 %v1260, %v1258
        %v1294 = vpack.c.bf16 %v1265, %v1263
        %v1295 = vpack.c.bf16 %v1270, %v1268
        %v1296 = vpack.c.bf16 %v1275, %v1273
        %v1297 = vpack.c.bf16 %v1280, %v1278
        %v1298 = vpack.c.bf16 %v1285, %v1283
        %v1299 = vpack.c.bf16 %v1290, %v1288
        %v1300 = vld [vmem:[%s1046] sm:$0x1]
        %v1302 = vperm.slane %v1300, 0
        %v1320 = vunpack.c.l.b16 %v1083
        %v1321 = vunpack.c.l.b16 %v1084
        %v1322 = vunpack.c.l.b16 %v1085
        %v1323 = vunpack.c.l.b16 %v1086
        %v1324 = vunpack.c.l.b16 %v1087
        %v1325 = vunpack.c.l.b16 %v1088
        %v1326 = vunpack.c.l.b16 %v1089
        %v1327 = vunpack.c.l.b16 %v1090
        %v1328 = vunpack.c.l.b16 %v1091
        %v1329 = vunpack.c.l.b16 %v1092
        %v1330 = vunpack.c.l.b16 %v1093
        %v1331 = vunpack.c.l.b16 %v1094
        %v1332 = vunpack.c.l.b16 %v1095
        %v1333 = vunpack.c.l.b16 %v1096
        %v1334 = vunpack.c.l.b16 %v1097
        %v1335 = vunpack.c.l.b16 %v1098
        %v1336 = vpack.c.b16 %v1321, %v1320
        %v1337 = vpack.c.b16 %v1323, %v1322
        %v1338 = vpack.c.b16 %v1325, %v1324
        %v1339 = vpack.c.b16 %v1327, %v1326
        %v1340 = vpack.c.b16 %v1329, %v1328
        %v1341 = vpack.c.b16 %v1331, %v1330
        %v1342 = vpack.c.b16 %v1333, %v1332
        %v1343 = vpack.c.b16 %v1335, %v1334
        %1352 = vmatpush.bf16.msra.mxu0 %v1299
        %1353 = vmatpush.bf16.msra.mxu0 %v1298
        %1354 = vmatpush.bf16.msra.mxu0 %v1297
        %1355 = vmatpush.bf16.msra.mxu0 %v1296
        %1356 = vmatpush.bf16.msra.mxu0 %v1295
        %1357 = vmatpush.bf16.msra.mxu0 %v1294
        %1358 = vmatpush.bf16.msra.mxu0 %v1293
        %1359 = vmatpush.bf16.msra.mxu0 %v1292
        %1360 = vmatmul.bf16.gmra.mxu0 %v1336
        %v1361 = vpop.f32.mrf.mxu0
        %v1362 = vadd.f32 %v1302, %v1361
        %v1363 = vpop.f32.mrf.mxu0
        %v1364 = vadd.f32 %v1302, %v1363
        %1365 = vmatmul.bf16.gmra.mxu0 %v1337
        %v1366 = vpop.f32.mrf.mxu0
        %v1367 = vadd.f32 %v1302, %v1366
        %v1368 = vpop.f32.mrf.mxu0
        %v1369 = vadd.f32 %v1302, %v1368
        %1370 = vmatmul.bf16.gmra.mxu0 %v1338
        %v1371 = vpop.f32.mrf.mxu0
        %v1372 = vadd.f32 %v1302, %v1371
        %v1373 = vpop.f32.mrf.mxu0
        %v1374 = vadd.f32 %v1302, %v1373
        %1375 = vmatmul.bf16.gmra.mxu0 %v1339
        %v1376 = vpop.f32.mrf.mxu0
        %v1377 = vadd.f32 %v1302, %v1376
        %v1378 = vpop.f32.mrf.mxu0
        %v1379 = vadd.f32 %v1302, %v1378
        %1380 = vmatmul.bf16.gmra.mxu0 %v1340
        %v1381 = vpop.f32.mrf.mxu0
        %v1382 = vadd.f32 %v1302, %v1381
        %v1383 = vpop.f32.mrf.mxu0
        %v1384 = vadd.f32 %v1302, %v1383
        %1385 = vmatmul.bf16.gmra.mxu0 %v1341
        %v1386 = vpop.f32.mrf.mxu0
        %v1387 = vadd.f32 %v1302, %v1386
        %v1388 = vpop.f32.mrf.mxu0
        %v1389 = vadd.f32 %v1302, %v1388
        %1390 = vmatmul.bf16.gmra.mxu0 %v1342
        %v1391 = vpop.f32.mrf.mxu0
        %v1392 = vadd.f32 %v1302, %v1391
        %v1393 = vpop.f32.mrf.mxu0
        %v1394 = vadd.f32 %v1302, %v1393
        %1395 = vmatmul.bf16.gmra.mxu0 %v1343
        %v1396 = vpop.f32.mrf.mxu0
        %v1397 = vadd.f32 %v1302, %v1396
        %v1398 = vpop.f32.mrf.mxu0
        %v1399 = vadd.f32 %v1302, %v1398
        %1400 = vdwg.mxu0
        %v1401 = vmax.f32 %v1362, 0.0
        %v1402 = vmax.f32 %v1364, 0.0
        %v1403 = vmax.f32 %v1367, 0.0
        %v1404 = vmax.f32 %v1369, 0.0
        %v1405 = vmax.f32 %v1372, 0.0
        %v1406 = vmax.f32 %v1374, 0.0
        %v1407 = vmax.f32 %v1377, 0.0
        %v1408 = vmax.f32 %v1379, 0.0
        %v1409 = vmax.f32 %v1382, 0.0
        %v1410 = vmax.f32 %v1384, 0.0
        %v1411 = vmax.f32 %v1387, 0.0
        %v1412 = vmax.f32 %v1389, 0.0
        %v1413 = vmax.f32 %v1392, 0.0
        %v1414 = vmax.f32 %v1394, 0.0
        %v1415 = vmax.f32 %v1397, 0.0
        %v1416 = vmax.f32 %v1399, 0.0
        %v1417 = vpack.c.bf16 %v1402, %v1401
        %v1418 = vpack.c.bf16 %v1404, %v1403
        %v1419 = vpack.c.bf16 %v1406, %v1405
        %v1420 = vpack.c.bf16 %v1408, %v1407
        %v1421 = vpack.c.bf16 %v1410, %v1409
        %v1422 = vpack.c.bf16 %v1412, %v1411
        %v1423 = vpack.c.bf16 %v1414, %v1413
        %v1424 = vpack.c.bf16 %v1416, %v1415
        %v1425 = vld [vmem:[%s839] sm:$0xff]
        %v1426 = vld [vmem:[%s839 + $0x8] sm:$0xff]
        %v1427 = vld [vmem:[%s839 + $0x10] sm:$0xff]
        %v1428 = vld [vmem:[%s839 + $0x18] sm:$0xff]
        %v1429 = vld [vmem:[%s839 + $0x20] sm:$0xff]
        %v1430 = vld [vmem:[%s839 + $0x28] sm:$0xff]
        %v1431 = vld [vmem:[%s839 + $0x30] sm:$0xff]
        %v1432 = vld [vmem:[%s839 + $0x38] sm:$0xff]
        %v1433 = vld [vmem:[%s839 + $0x40] sm:$0xff]
        %v1434 = vld [vmem:[%s839 + $0x48] sm:$0xff]
        %v1435 = vld [vmem:[%s839 + $0x50] sm:$0xff]
        %v1436 = vld [vmem:[%s839 + $0x58] sm:$0xff]
        %v1437 = vld [vmem:[%s839 + $0x60] sm:$0xff]
        %v1438 = vld [vmem:[%s839 + $0x68] sm:$0xff]
        %v1439 = vld [vmem:[%s839 + $0x70] sm:$0xff]
        %v1440 = vld [vmem:[%s839 + $0x78] sm:$0xff]
        %v1457 = vunpack.c.l.b16 %v1425
        %v1458 = vunpack.c.h.b16 %v1425
        %v1459 = vunpack.c.l.b16 %v1426
        %v1460 = vunpack.c.h.b16 %v1426
        %v1461 = vunpack.c.l.b16 %v1427
        %v1462 = vunpack.c.h.b16 %v1427
        %v1463 = vunpack.c.l.b16 %v1428
        %v1464 = vunpack.c.h.b16 %v1428
        %v1465 = vunpack.c.l.b16 %v1429
        %v1466 = vunpack.c.h.b16 %v1429
        %v1467 = vunpack.c.l.b16 %v1430
        %v1468 = vunpack.c.h.b16 %v1430
        %v1469 = vunpack.c.l.b16 %v1431
        %v1470 = vunpack.c.h.b16 %v1431
        %v1471 = vunpack.c.l.b16 %v1432
        %v1472 = vunpack.c.h.b16 %v1432
        %v1473 = vunpack.c.l.b16 %v1433
        %v1474 = vunpack.c.h.b16 %v1433
        %v1475 = vunpack.c.l.b16 %v1434
        %v1476 = vunpack.c.h.b16 %v1434
        %v1477 = vunpack.c.l.b16 %v1435
        %v1478 = vunpack.c.h.b16 %v1435
        %v1479 = vunpack.c.l.b16 %v1436
        %v1480 = vunpack.c.h.b16 %v1436
        %v1481 = vunpack.c.l.b16 %v1437
        %v1482 = vunpack.c.h.b16 %v1437
        %v1483 = vunpack.c.l.b16 %v1438
        %v1484 = vunpack.c.h.b16 %v1438
        %v1485 = vunpack.c.l.b16 %v1439
        %v1486 = vunpack.c.h.b16 %v1439
        %v1487 = vunpack.c.l.b16 %v1440
        %v1488 = vunpack.c.h.b16 %v1440
        %v1489 = vpack.c.b16 %v1459, %v1457
        %v1490 = vpack.c.b16 %v1460, %v1458
        %v1491 = vpack.c.b16 %v1463, %v1461
        %v1492 = vpack.c.b16 %v1464, %v1462
        %v1493 = vpack.c.b16 %v1467, %v1465
        %v1494 = vpack.c.b16 %v1468, %v1466
        %v1495 = vpack.c.b16 %v1471, %v1469
        %v1496 = vpack.c.b16 %v1472, %v1470
        %v1497 = vpack.c.b16 %v1475, %v1473
        %v1498 = vpack.c.b16 %v1476, %v1474
        %v1499 = vpack.c.b16 %v1479, %v1477
        %v1500 = vpack.c.b16 %v1480, %v1478
        %v1501 = vpack.c.b16 %v1483, %v1481
        %v1502 = vpack.c.b16 %v1484, %v1482
        %v1503 = vpack.c.b16 %v1487, %v1485
        %v1504 = vpack.c.b16 %v1488, %v1486
        %1521 = vmatpush.bf16.msra.mxu0 %v1503
        %1522 = vmatpush.bf16.msra.mxu0 %v1501
        %1523 = vmatpush.bf16.msra.mxu0 %v1499
        %1524 = vmatpush.bf16.msra.mxu0 %v1497
        %1525 = vmatpush.bf16.msra.mxu0 %v1495
        %1526 = vmatpush.bf16.msra.mxu0 %v1493
        %1527 = vmatpush.bf16.msra.mxu0 %v1491
        %1528 = vmatpush.bf16.msra.mxu0 %v1489
        %1529 = vmatmul.bf16.gmra.mxu0 %v1417
        %v1530 = vpop.f32.mrf.mxu0
        %v1531 = vadd.f32 0.0, %v1530
        %v1532 = vpop.f32.mrf.mxu0
        %v1533 = vadd.f32 0.0, %v1532
        %1534 = vmatmul.bf16.gmra.mxu0 %v1418
        %v1535 = vpop.f32.mrf.mxu0
        %v1536 = vadd.f32 0.0, %v1535
        %v1537 = vpop.f32.mrf.mxu0
        %v1538 = vadd.f32 0.0, %v1537
        %1539 = vmatmul.bf16.gmra.mxu0 %v1419
        %v1540 = vpop.f32.mrf.mxu0
        %v1541 = vadd.f32 0.0, %v1540
        %v1542 = vpop.f32.mrf.mxu0
        %v1543 = vadd.f32 0.0, %v1542
        %1544 = vmatmul.bf16.gmra.mxu0 %v1420
        %v1545 = vpop.f32.mrf.mxu0
        %v1546 = vadd.f32 0.0, %v1545
        %v1547 = vpop.f32.mrf.mxu0
        %v1548 = vadd.f32 0.0, %v1547
        %1549 = vmatmul.bf16.gmra.mxu0 %v1421
        %v1550 = vpop.f32.mrf.mxu0
        %v1551 = vadd.f32 0.0, %v1550
        %v1552 = vpop.f32.mrf.mxu0
        %v1553 = vadd.f32 0.0, %v1552
        %1554 = vmatmul.bf16.gmra.mxu0 %v1422
        %v1555 = vpop.f32.mrf.mxu0
        %v1556 = vadd.f32 0.0, %v1555
        %v1557 = vpop.f32.mrf.mxu0
        %v1558 = vadd.f32 0.0, %v1557
        %1559 = vmatmul.bf16.gmra.mxu0 %v1423
        %v1560 = vpop.f32.mrf.mxu0
        %v1561 = vadd.f32 0.0, %v1560
        %v1562 = vpop.f32.mrf.mxu0
        %v1563 = vadd.f32 0.0, %v1562
        %1564 = vmatmul.bf16.gmra.mxu0 %v1424
        %v1565 = vpop.f32.mrf.mxu0
        %v1566 = vadd.f32 0.0, %v1565
        %v1567 = vpop.f32.mrf.mxu0
        %v1568 = vadd.f32 0.0, %v1567
        %1569 = vdwg.mxu0
        %1570 = vmatpush.bf16.msra.mxu0 %v1504
        %1571 = vmatpush.bf16.msra.mxu0 %v1502
        %1572 = vmatpush.bf16.msra.mxu0 %v1500
        %1573 = vmatpush.bf16.msra.mxu0 %v1498
        %1574 = vmatpush.bf16.msra.mxu0 %v1496
        %1575 = vmatpush.bf16.msra.mxu0 %v1494
        %1576 = vmatpush.bf16.msra.mxu0 %v1492
        %1577 = vmatpush.bf16.msra.mxu0 %v1490
        %1578 = vmatmul.bf16.gmra.mxu0 %v1417
        %v1579 = vpop.f32.mrf.mxu0
        %v1580 = vadd.f32 0.0, %v1579
        %v1581 = vpop.f32.mrf.mxu0
        %v1582 = vadd.f32 0.0, %v1581
        %1583 = vmatmul.bf16.gmra.mxu0 %v1418
        %v1584 = vpop.f32.mrf.mxu0
        %v1585 = vadd.f32 0.0, %v1584
        %v1586 = vpop.f32.mrf.mxu0
        %v1587 = vadd.f32 0.0, %v1586
        %1588 = vmatmul.bf16.gmra.mxu0 %v1419
        %v1589 = vpop.f32.mrf.mxu0
        %v1590 = vadd.f32 0.0, %v1589
        %v1591 = vpop.f32.mrf.mxu0
        %v1592 = vadd.f32 0.0, %v1591
        %1593 = vmatmul.bf16.gmra.mxu0 %v1420
        %v1594 = vpop.f32.mrf.mxu0
        %v1595 = vadd.f32 0.0, %v1594
        %v1596 = vpop.f32.mrf.mxu0
        %v1597 = vadd.f32 0.0, %v1596
        %1598 = vmatmul.bf16.gmra.mxu0 %v1421
        %v1599 = vpop.f32.mrf.mxu0
        %v1600 = vadd.f32 0.0, %v1599
        %v1601 = vpop.f32.mrf.mxu0
        %v1602 = vadd.f32 0.0, %v1601
        %1603 = vmatmul.bf16.gmra.mxu0 %v1422
        %v1604 = vpop.f32.mrf.mxu0
        %v1605 = vadd.f32 0.0, %v1604
        %v1606 = vpop.f32.mrf.mxu0
        %v1607 = vadd.f32 0.0, %v1606
        %1608 = vmatmul.bf16.gmra.mxu0 %v1423
        %v1609 = vpop.f32.mrf.mxu0
        %v1610 = vadd.f32 0.0, %v1609
        %v1611 = vpop.f32.mrf.mxu0
        %v1612 = vadd.f32 0.0, %v1611
        %1613 = vmatmul.bf16.gmra.mxu0 %v1424
        %v1614 = vpop.f32.mrf.mxu0
        %v1615 = vadd.f32 0.0, %v1614
        %v1616 = vpop.f32.mrf.mxu0
        %v1617 = vadd.f32 0.0, %v1616
        %1618 = vdwg.mxu0
        %v1619 = vpack.c.bf16 %v1533, %v1531
        %v1620 = vpack.c.bf16 %v1582, %v1580
        %v1621 = vpack.c.bf16 %v1538, %v1536
        %v1622 = vpack.c.bf16 %v1587, %v1585
        %v1623 = vpack.c.bf16 %v1543, %v1541
        %v1624 = vpack.c.bf16 %v1592, %v1590
        %v1625 = vpack.c.bf16 %v1548, %v1546
        %v1626 = vpack.c.bf16 %v1597, %v1595
        %v1627 = vpack.c.bf16 %v1553, %v1551
        %v1628 = vpack.c.bf16 %v1602, %v1600
        %v1629 = vpack.c.bf16 %v1558, %v1556
        %v1630 = vpack.c.bf16 %v1607, %v1605
        %v1631 = vpack.c.bf16 %v1563, %v1561
        %v1632 = vpack.c.bf16 %v1612, %v1610
        %v1633 = vpack.c.bf16 %v1568, %v1566
        %v1634 = vpack.c.bf16 %v1617, %v1615
        %v1635 = vld [vmem:[%s1050] sm:$0x3]
        %v1637 = vperm.slane %v1635, 0
        %v1638 = vperm.slane %v1635, 1
        %1641 = vmatpush.bf16.msra.mxu0 %v1633
        %1642 = vmatpush.bf16.msra.mxu0 %v1631
        %1643 = vmatpush.bf16.msra.mxu0 %v1629
        %1644 = vmatpush.bf16.msra.mxu0 %v1627
        %1645 = vmatpush.bf16.msra.mxu0 %v1625
        %1646 = vmatpush.bf16.msra.mxu0 %v1623
        %1647 = vmatpush.bf16.msra.mxu0 %v1621
        %1648 = vmatpush.bf16.msra.mxu0 %v1619
        %1649 = vmatmul.bf16.gmra.mxu0 %v1336
        %v1650 = vpop.f32.mrf.mxu0
        %v1651 = vadd.f32 %v1637, %v1650
        %v1652 = vpop.f32.mrf.mxu0
        %v1653 = vadd.f32 %v1637, %v1652
        %1654 = vmatmul.bf16.gmra.mxu0 %v1337
        %v1655 = vpop.f32.mrf.mxu0
        %v1656 = vadd.f32 %v1637, %v1655
        %v1657 = vpop.f32.mrf.mxu0
        %v1658 = vadd.f32 %v1637, %v1657
        %1659 = vmatmul.bf16.gmra.mxu0 %v1338
        %v1660 = vpop.f32.mrf.mxu0
        %v1661 = vadd.f32 %v1637, %v1660
        %v1662 = vpop.f32.mrf.mxu0
        %v1663 = vadd.f32 %v1637, %v1662
        %1664 = vmatmul.bf16.gmra.mxu0 %v1339
        %v1665 = vpop.f32.mrf.mxu0
        %v1666 = vadd.f32 %v1637, %v1665
        %v1667 = vpop.f32.mrf.mxu0
        %v1668 = vadd.f32 %v1637, %v1667
        %1669 = vmatmul.bf16.gmra.mxu0 %v1340
        %v1670 = vpop.f32.mrf.mxu0
        %v1671 = vadd.f32 %v1637, %v1670
        %v1672 = vpop.f32.mrf.mxu0
        %v1673 = vadd.f32 %v1637, %v1672
        %1674 = vmatmul.bf16.gmra.mxu0 %v1341
        %v1675 = vpop.f32.mrf.mxu0
        %v1676 = vadd.f32 %v1637, %v1675
        %v1677 = vpop.f32.mrf.mxu0
        %v1678 = vadd.f32 %v1637, %v1677
        %1679 = vmatmul.bf16.gmra.mxu0 %v1342
        %v1680 = vpop.f32.mrf.mxu0
        %v1681 = vadd.f32 %v1637, %v1680
        %v1682 = vpop.f32.mrf.mxu0
        %v1683 = vadd.f32 %v1637, %v1682
        %1684 = vmatmul.bf16.gmra.mxu0 %v1343
        %v1685 = vpop.f32.mrf.mxu0
        %v1686 = vadd.f32 %v1637, %v1685
        %v1687 = vpop.f32.mrf.mxu0
        %v1688 = vadd.f32 %v1637, %v1687
        %1689 = vdwg.mxu0
        %1690 = vmatpush.bf16.msra.mxu0 %v1634
        %1691 = vmatpush.bf16.msra.mxu0 %v1632
        %1692 = vmatpush.bf16.msra.mxu0 %v1630
        %1693 = vmatpush.bf16.msra.mxu0 %v1628
        %1694 = vmatpush.bf16.msra.mxu0 %v1626
        %1695 = vmatpush.bf16.msra.mxu0 %v1624
        %1696 = vmatpush.bf16.msra.mxu0 %v1622
        %1697 = vmatpush.bf16.msra.mxu0 %v1620
        %1698 = vmatmul.bf16.gmra.mxu0 %v1336
        %v1699 = vpop.f32.mrf.mxu0
        %v1700 = vadd.f32 %v1638, %v1699
        %v1701 = vpop.f32.mrf.mxu0
        %v1702 = vadd.f32 %v1638, %v1701
        %1703 = vmatmul.bf16.gmra.mxu0 %v1337
        %v1704 = vpop.f32.mrf.mxu0
        %v1705 = vadd.f32 %v1638, %v1704
        %v1706 = vpop.f32.mrf.mxu0
        %v1707 = vadd.f32 %v1638, %v1706
        %1708 = vmatmul.bf16.gmra.mxu0 %v1338
        %v1709 = vpop.f32.mrf.mxu0
        %v1710 = vadd.f32 %v1638, %v1709
        %v1711 = vpop.f32.mrf.mxu0
        %v1712 = vadd.f32 %v1638, %v1711
        %1713 = vmatmul.bf16.gmra.mxu0 %v1339
        %v1714 = vpop.f32.mrf.mxu0
        %v1715 = vadd.f32 %v1638, %v1714
        %v1716 = vpop.f32.mrf.mxu0
        %v1717 = vadd.f32 %v1638, %v1716
        %1718 = vmatmul.bf16.gmra.mxu0 %v1340
        %v1719 = vpop.f32.mrf.mxu0
        %v1720 = vadd.f32 %v1638, %v1719
        %v1721 = vpop.f32.mrf.mxu0
        %v1722 = vadd.f32 %v1638, %v1721
        %1723 = vmatmul.bf16.gmra.mxu0 %v1341
        %v1724 = vpop.f32.mrf.mxu0
        %v1725 = vadd.f32 %v1638, %v1724
        %v1726 = vpop.f32.mrf.mxu0
        %v1727 = vadd.f32 %v1638, %v1726
        %1728 = vmatmul.bf16.gmra.mxu0 %v1342
        %v1729 = vpop.f32.mrf.mxu0
        %v1730 = vadd.f32 %v1638, %v1729
        %v1731 = vpop.f32.mrf.mxu0
        %v1732 = vadd.f32 %v1638, %v1731
        %1733 = vmatmul.bf16.gmra.mxu0 %v1343
        %v1734 = vpop.f32.mrf.mxu0
        %v1735 = vadd.f32 %v1638, %v1734
        %v1736 = vpop.f32.mrf.mxu0
        %v1737 = vadd.f32 %v1638, %v1736
        %1738 = vdwg.mxu0
        %v1739 = vmax.f32 %v1651, 0.0
        %v1740 = vmax.f32 %v1700, 0.0
        %v1741 = vmax.f32 %v1653, 0.0
        %v1742 = vmax.f32 %v1702, 0.0
        %v1743 = vmax.f32 %v1656, 0.0
        %v1744 = vmax.f32 %v1705, 0.0
        %v1745 = vmax.f32 %v1658, 0.0
        %v1746 = vmax.f32 %v1707, 0.0
        %v1747 = vmax.f32 %v1661, 0.0
        %v1748 = vmax.f32 %v1710, 0.0
        %v1749 = vmax.f32 %v1663, 0.0
        %v1750 = vmax.f32 %v1712, 0.0
        %v1751 = vmax.f32 %v1666, 0.0
        %v1752 = vmax.f32 %v1715, 0.0
        %v1753 = vmax.f32 %v1668, 0.0
        %v1754 = vmax.f32 %v1717, 0.0
        %v1755 = vmax.f32 %v1671, 0.0
        %v1756 = vmax.f32 %v1720, 0.0
        %v1757 = vmax.f32 %v1673, 0.0
        %v1758 = vmax.f32 %v1722, 0.0
        %v1759 = vmax.f32 %v1676, 0.0
        %v1760 = vmax.f32 %v1725, 0.0
        %v1761 = vmax.f32 %v1678, 0.0
        %v1762 = vmax.f32 %v1727, 0.0
        %v1763 = vmax.f32 %v1681, 0.0
        %v1764 = vmax.f32 %v1730, 0.0
        %v1765 = vmax.f32 %v1683, 0.0
        %v1766 = vmax.f32 %v1732, 0.0
        %v1767 = vmax.f32 %v1686, 0.0
        %v1768 = vmax.f32 %v1735, 0.0
        %v1769 = vmax.f32 %v1688, 0.0
        %v1770 = vmax.f32 %v1737, 0.0
        %v1771 = vpack.c.bf16 %v1741, %v1739
        %v1772 = vpack.c.bf16 %v1742, %v1740
        %v1773 = vpack.c.bf16 %v1745, %v1743
        %v1774 = vpack.c.bf16 %v1746, %v1744
        %v1775 = vpack.c.bf16 %v1749, %v1747
        %v1776 = vpack.c.bf16 %v1750, %v1748
        %v1777 = vpack.c.bf16 %v1753, %v1751
        %v1778 = vpack.c.bf16 %v1754, %v1752
        %v1779 = vpack.c.bf16 %v1757, %v1755
        %v1780 = vpack.c.bf16 %v1758, %v1756
        %v1781 = vpack.c.bf16 %v1761, %v1759
        %v1782 = vpack.c.bf16 %v1762, %v1760
        %v1783 = vpack.c.bf16 %v1765, %v1763
        %v1784 = vpack.c.bf16 %v1766, %v1764
        %v1785 = vpack.c.bf16 %v1769, %v1767
        %v1786 = vpack.c.bf16 %v1770, %v1768
        %v1787 = vld [vmem:[%s1055] sm:$0xff]
        %v1788 = vld [vmem:[%s1055 + $0x8] sm:$0xff]
        %v1789 = vld [vmem:[%s1055 + $0x10] sm:$0xff]
        %v1790 = vld [vmem:[%s1055 + $0x18] sm:$0xff]
        %v1791 = vld [vmem:[%s1055 + $0x20] sm:$0xff]
        %v1792 = vld [vmem:[%s1055 + $0x28] sm:$0xff]
        %v1793 = vld [vmem:[%s1055 + $0x30] sm:$0xff]
        %v1794 = vld [vmem:[%s1055 + $0x38] sm:$0xff]
        %v1795 = vld [vmem:[%s1055 + $0x40] sm:$0xff]
        %v1796 = vld [vmem:[%s1055 + $0x48] sm:$0xff]
        %v1797 = vld [vmem:[%s1055 + $0x50] sm:$0xff]
        %v1798 = vld [vmem:[%s1055 + $0x58] sm:$0xff]
        %v1799 = vld [vmem:[%s1055 + $0x60] sm:$0xff]
        %v1800 = vld [vmem:[%s1055 + $0x68] sm:$0xff]
        %v1801 = vld [vmem:[%s1055 + $0x70] sm:$0xff]
        %v1802 = vld [vmem:[%s1055 + $0x78] sm:$0xff]
        %v1803 = vld [vmem:[%s1055 + $0x80] sm:$0xff]
        %v1804 = vld [vmem:[%s1055 + $0x88] sm:$0xff]
        %v1805 = vld [vmem:[%s1055 + $0x90] sm:$0xff]
        %v1806 = vld [vmem:[%s1055 + $0x98] sm:$0xff]
        %v1807 = vld [vmem:[%s1055 + $0xa0] sm:$0xff]
        %v1808 = vld [vmem:[%s1055 + $0xa8] sm:$0xff]
        %v1809 = vld [vmem:[%s1055 + $0xb0] sm:$0xff]
        %v1810 = vld [vmem:[%s1055 + $0xb8] sm:$0xff]
        %v1811 = vld [vmem:[%s1055 + $0xc0] sm:$0xff]
        %v1812 = vld [vmem:[%s1055 + $0xc8] sm:$0xff]
        %v1813 = vld [vmem:[%s1055 + $0xd0] sm:$0xff]
        %v1814 = vld [vmem:[%s1055 + $0xd8] sm:$0xff]
        %v1815 = vld [vmem:[%s1055 + $0xe0] sm:$0xff]
        %v1816 = vld [vmem:[%s1055 + $0xe8] sm:$0xff]
        %v1817 = vld [vmem:[%s1055 + $0xf0] sm:$0xff]
        %v1818 = vld [vmem:[%s1055 + $0xf8] sm:$0xff]
        %v1819 = vld [vmem:[%s1055 + $0x100] sm:$0xff]
        %v1820 = vld [vmem:[%s1055 + $0x108] sm:$0xff]
        %v1821 = vld [vmem:[%s1055 + $0x110] sm:$0xff]
        %v1822 = vld [vmem:[%s1055 + $0x118] sm:$0xff]
        %v1823 = vld [vmem:[%s1055 + $0x120] sm:$0xff]
        %v1824 = vld [vmem:[%s1055 + $0x128] sm:$0xff]
        %v1825 = vld [vmem:[%s1055 + $0x130] sm:$0xff]
        %v1826 = vld [vmem:[%s1055 + $0x138] sm:$0xff]
        %v1827 = vld [vmem:[%s1055 + $0x140] sm:$0xff]
        %v1828 = vld [vmem:[%s1055 + $0x148] sm:$0xff]
        %v1829 = vld [vmem:[%s1055 + $0x150] sm:$0xff]
        %v1830 = vld [vmem:[%s1055 + $0x158] sm:$0xff]
        %v1831 = vld [vmem:[%s1055 + $0x160] sm:$0xff]
        %v1832 = vld [vmem:[%s1055 + $0x168] sm:$0xff]
        %v1833 = vld [vmem:[%s1055 + $0x170] sm:$0xff]
        %v1834 = vld [vmem:[%s1055 + $0x178] sm:$0xff]
        %v1835 = vld [vmem:[%s1055 + $0x180] sm:$0xff]
        %v1836 = vld [vmem:[%s1055 + $0x188] sm:$0xff]
        %v1837 = vld [vmem:[%s1055 + $0x190] sm:$0xff]
        %v1838 = vld [vmem:[%s1055 + $0x198] sm:$0xff]
        %v1839 = vld [vmem:[%s1055 + $0x1a0] sm:$0xff]
        %v1840 = vld [vmem:[%s1055 + $0x1a8] sm:$0xff]
        %v1841 = vld [vmem:[%s1055 + $0x1b0] sm:$0xff]
        %v1842 = vld [vmem:[%s1055 + $0x1b8] sm:$0xff]
        %v1843 = vld [vmem:[%s1055 + $0x1c0] sm:$0xff]
        %v1844 = vld [vmem:[%s1055 + $0x1c8] sm:$0xff]
        %v1845 = vld [vmem:[%s1055 + $0x1d0] sm:$0xff]
        %v1846 = vld [vmem:[%s1055 + $0x1d8] sm:$0xff]
        %v1847 = vld [vmem:[%s1055 + $0x1e0] sm:$0xff]
        %v1848 = vld [vmem:[%s1055 + $0x1e8] sm:$0xff]
        %v1849 = vld [vmem:[%s1055 + $0x1f0] sm:$0xff]
        %v1850 = vld [vmem:[%s1055 + $0x1f8] sm:$0xff]
        %v1915 = vunpack.c.l.b16 %v1787
        %v1916 = vunpack.c.h.b16 %v1787
        %v1917 = vunpack.c.l.b16 %v1788
        %v1918 = vunpack.c.h.b16 %v1788
        %v1919 = vunpack.c.l.b16 %v1789
        %v1920 = vunpack.c.h.b16 %v1789
        %v1921 = vunpack.c.l.b16 %v1790
        %v1922 = vunpack.c.h.b16 %v1790
        %v1923 = vunpack.c.l.b16 %v1791
        %v1924 = vunpack.c.h.b16 %v1791
        %v1925 = vunpack.c.l.b16 %v1792
        %v1926 = vunpack.c.h.b16 %v1792
        %v1927 = vunpack.c.l.b16 %v1793
        %v1928 = vunpack.c.h.b16 %v1793
        %v1929 = vunpack.c.l.b16 %v1794
        %v1930 = vunpack.c.h.b16 %v1794
        %v1931 = vunpack.c.l.b16 %v1795
        %v1932 = vunpack.c.h.b16 %v1795
        %v1933 = vunpack.c.l.b16 %v1796
        %v1934 = vunpack.c.h.b16 %v1796
        %v1935 = vunpack.c.l.b16 %v1797
        %v1936 = vunpack.c.h.b16 %v1797
        %v1937 = vunpack.c.l.b16 %v1798
        %v1938 = vunpack.c.h.b16 %v1798
        %v1939 = vunpack.c.l.b16 %v1799
        %v1940 = vunpack.c.h.b16 %v1799
        %v1941 = vunpack.c.l.b16 %v1800
        %v1942 = vunpack.c.h.b16 %v1800
        %v1943 = vunpack.c.l.b16 %v1801
        %v1944 = vunpack.c.h.b16 %v1801
        %v1945 = vunpack.c.l.b16 %v1802
        %v1946 = vunpack.c.h.b16 %v1802
        %v1947 = vunpack.c.l.b16 %v1803
        %v1948 = vunpack.c.h.b16 %v1803
        %v1949 = vunpack.c.l.b16 %v1804
        %v1950 = vunpack.c.h.b16 %v1804
        %v1951 = vunpack.c.l.b16 %v1805
        %v1952 = vunpack.c.h.b16 %v1805
        %v1953 = vunpack.c.l.b16 %v1806
        %v1954 = vunpack.c.h.b16 %v1806
        %v1955 = vunpack.c.l.b16 %v1807
        %v1956 = vunpack.c.h.b16 %v1807
        %v1957 = vunpack.c.l.b16 %v1808
        %v1958 = vunpack.c.h.b16 %v1808
        %v1959 = vunpack.c.l.b16 %v1809
        %v1960 = vunpack.c.h.b16 %v1809
        %v1961 = vunpack.c.l.b16 %v1810
        %v1962 = vunpack.c.h.b16 %v1810
        %v1963 = vunpack.c.l.b16 %v1811
        %v1964 = vunpack.c.h.b16 %v1811
        %v1965 = vunpack.c.l.b16 %v1812
        %v1966 = vunpack.c.h.b16 %v1812
        %v1967 = vunpack.c.l.b16 %v1813
        %v1968 = vunpack.c.h.b16 %v1813
        %v1969 = vunpack.c.l.b16 %v1814
        %v1970 = vunpack.c.h.b16 %v1814
        %v1971 = vunpack.c.l.b16 %v1815
        %v1972 = vunpack.c.h.b16 %v1815
        %v1973 = vunpack.c.l.b16 %v1816
        %v1974 = vunpack.c.h.b16 %v1816
        %v1975 = vunpack.c.l.b16 %v1817
        %v1976 = vunpack.c.h.b16 %v1817
        %v1977 = vunpack.c.l.b16 %v1818
        %v1978 = vunpack.c.h.b16 %v1818
        %v1979 = vunpack.c.l.b16 %v1819
        %v1980 = vunpack.c.h.b16 %v1819
        %v1981 = vunpack.c.l.b16 %v1820
        %v1982 = vunpack.c.h.b16 %v1820
        %v1983 = vunpack.c.l.b16 %v1821
        %v1984 = vunpack.c.h.b16 %v1821
        %v1985 = vunpack.c.l.b16 %v1822
        %v1986 = vunpack.c.h.b16 %v1822
        %v1987 = vunpack.c.l.b16 %v1823
        %v1988 = vunpack.c.h.b16 %v1823
        %v1989 = vunpack.c.l.b16 %v1824
        %v1990 = vunpack.c.h.b16 %v1824
        %v1991 = vunpack.c.l.b16 %v1825
        %v1992 = vunpack.c.h.b16 %v1825
        %v1993 = vunpack.c.l.b16 %v1826
        %v1994 = vunpack.c.h.b16 %v1826
        %v1995 = vunpack.c.l.b16 %v1827
        %v1996 = vunpack.c.h.b16 %v1827
        %v1997 = vunpack.c.l.b16 %v1828
        %v1998 = vunpack.c.h.b16 %v1828
        %v1999 = vunpack.c.l.b16 %v1829
        %v2000 = vunpack.c.h.b16 %v1829
        %v2001 = vunpack.c.l.b16 %v1830
        %v2002 = vunpack.c.h.b16 %v1830
        %v2003 = vunpack.c.l.b16 %v1831
        %v2004 = vunpack.c.h.b16 %v1831
        %v2005 = vunpack.c.l.b16 %v1832
        %v2006 = vunpack.c.h.b16 %v1832
        %v2007 = vunpack.c.l.b16 %v1833
        %v2008 = vunpack.c.h.b16 %v1833
        %v2009 = vunpack.c.l.b16 %v1834
        %v2010 = vunpack.c.h.b16 %v1834
        %v2011 = vunpack.c.l.b16 %v1835
        %v2012 = vunpack.c.h.b16 %v1835
        %v2013 = vunpack.c.l.b16 %v1836
        %v2014 = vunpack.c.h.b16 %v1836
        %v2015 = vunpack.c.l.b16 %v1837
        %v2016 = vunpack.c.h.b16 %v1837
        %v2017 = vunpack.c.l.b16 %v1838
        %v2018 = vunpack.c.h.b16 %v1838
        %v2019 = vunpack.c.l.b16 %v1839
        %v2020 = vunpack.c.h.b16 %v1839
        %v2021 = vunpack.c.l.b16 %v1840
        %v2022 = vunpack.c.h.b16 %v1840
        %v2023 = vunpack.c.l.b16 %v1841
        %v2024 = vunpack.c.h.b16 %v1841
        %v2025 = vunpack.c.l.b16 %v1842
        %v2026 = vunpack.c.h.b16 %v1842
        %v2027 = vunpack.c.l.b16 %v1843
        %v2028 = vunpack.c.h.b16 %v1843
        %v2029 = vunpack.c.l.b16 %v1844
        %v2030 = vunpack.c.h.b16 %v1844
        %v2031 = vunpack.c.l.b16 %v1845
        %v2032 = vunpack.c.h.b16 %v1845
        %v2033 = vunpack.c.l.b16 %v1846
        %v2034 = vunpack.c.h.b16 %v1846
        %v2035 = vunpack.c.l.b16 %v1847
        %v2036 = vunpack.c.h.b16 %v1847
        %v2037 = vunpack.c.l.b16 %v1848
        %v2038 = vunpack.c.h.b16 %v1848
        %v2039 = vunpack.c.l.b16 %v1849
        %v2040 = vunpack.c.h.b16 %v1849
        %v2041 = vunpack.c.l.b16 %v1850
        %v2042 = vunpack.c.h.b16 %v1850
        %v2043 = vpack.c.b16 %v1919, %v1915
        %v2044 = vpack.c.b16 %v1920, %v1916
        %v2045 = vpack.c.b16 %v1921, %v1917
        %v2046 = vpack.c.b16 %v1922, %v1918
        %v2047 = vpack.c.b16 %v1927, %v1923
        %v2048 = vpack.c.b16 %v1928, %v1924
        %v2049 = vpack.c.b16 %v1929, %v1925
        %v2050 = vpack.c.b16 %v1930, %v1926
        %v2051 = vpack.c.b16 %v1935, %v1931
        %v2052 = vpack.c.b16 %v1936, %v1932
        %v2053 = vpack.c.b16 %v1937, %v1933
        %v2054 = vpack.c.b16 %v1938, %v1934
        %v2055 = vpack.c.b16 %v1943, %v1939
        %v2056 = vpack.c.b16 %v1944, %v1940
        %v2057 = vpack.c.b16 %v1945, %v1941
        %v2058 = vpack.c.b16 %v1946, %v1942
        %v2059 = vpack.c.b16 %v1951, %v1947
        %v2060 = vpack.c.b16 %v1952, %v1948
        %v2061 = vpack.c.b16 %v1953, %v1949
        %v2062 = vpack.c.b16 %v1954, %v1950
        %v2063 = vpack.c.b16 %v1959, %v1955
        %v2064 = vpack.c.b16 %v1960, %v1956
        %v2065 = vpack.c.b16 %v1961, %v1957
        %v2066 = vpack.c.b16 %v1962, %v1958
        %v2067 = vpack.c.b16 %v1967, %v1963
        %v2068 = vpack.c.b16 %v1968, %v1964
        %v2069 = vpack.c.b16 %v1969, %v1965
        %v2070 = vpack.c.b16 %v1970, %v1966
        %v2071 = vpack.c.b16 %v1975, %v1971
        %v2072 = vpack.c.b16 %v1976, %v1972
        %v2073 = vpack.c.b16 %v1977, %v1973
        %v2074 = vpack.c.b16 %v1978, %v1974
        %v2075 = vpack.c.b16 %v1983, %v1979
        %v2076 = vpack.c.b16 %v1984, %v1980
        %v2077 = vpack.c.b16 %v1985, %v1981
        %v2078 = vpack.c.b16 %v1986, %v1982
        %v2079 = vpack.c.b16 %v1991, %v1987
        %v2080 = vpack.c.b16 %v1992, %v1988
        %v2081 = vpack.c.b16 %v1993, %v1989
        %v2082 = vpack.c.b16 %v1994, %v1990
        %v2083 = vpack.c.b16 %v1999, %v1995
        %v2084 = vpack.c.b16 %v2000, %v1996
        %v2085 = vpack.c.b16 %v2001, %v1997
        %v2086 = vpack.c.b16 %v2002, %v1998
        %v2087 = vpack.c.b16 %v2007, %v2003
        %v2088 = vpack.c.b16 %v2008, %v2004
        %v2089 = vpack.c.b16 %v2009, %v2005
        %v2090 = vpack.c.b16 %v2010, %v2006
        %v2091 = vpack.c.b16 %v2015, %v2011
        %v2092 = vpack.c.b16 %v2016, %v2012
        %v2093 = vpack.c.b16 %v2017, %v2013
        %v2094 = vpack.c.b16 %v2018, %v2014
        %v2095 = vpack.c.b16 %v2023, %v2019
        %v2096 = vpack.c.b16 %v2024, %v2020
        %v2097 = vpack.c.b16 %v2025, %v2021
        %v2098 = vpack.c.b16 %v2026, %v2022
        %v2099 = vpack.c.b16 %v2031, %v2027
        %v2100 = vpack.c.b16 %v2032, %v2028
        %v2101 = vpack.c.b16 %v2033, %v2029
        %v2102 = vpack.c.b16 %v2034, %v2030
        %v2103 = vpack.c.b16 %v2039, %v2035
        %v2104 = vpack.c.b16 %v2040, %v2036
        %v2105 = vpack.c.b16 %v2041, %v2037
        %v2106 = vpack.c.b16 %v2042, %v2038
        %2171 = vmatpush.bf16.msra.mxu0 %v2071
        %2172 = vmatpush.bf16.msra.mxu0 %v2067
        %2173 = vmatpush.bf16.msra.mxu0 %v2063
        %2174 = vmatpush.bf16.msra.mxu0 %v2059
        %2175 = vmatpush.bf16.msra.mxu0 %v2055
        %2176 = vmatpush.bf16.msra.mxu0 %v2051
        %2177 = vmatpush.bf16.msra.mxu0 %v2047
        %2178 = vmatpush.bf16.msra.mxu0 %v2043
        %2179 = vmatmul.bf16.gmra.mxu0 %v1771
        %v2180 = vpop.f32.mrf.mxu0
        %v2181 = vadd.f32 0.0, %v2180
        %v2182 = vpop.f32.mrf.mxu0
        %v2183 = vadd.f32 0.0, %v2182
        %2184 = vmatmul.bf16.gmra.mxu0 %v1773
        %v2185 = vpop.f32.mrf.mxu0
        %v2186 = vadd.f32 0.0, %v2185
        %v2187 = vpop.f32.mrf.mxu0
        %v2188 = vadd.f32 0.0, %v2187
        %2189 = vmatmul.bf16.gmra.mxu0 %v1775
        %v2190 = vpop.f32.mrf.mxu0
        %v2191 = vadd.f32 0.0, %v2190
        %v2192 = vpop.f32.mrf.mxu0
        %v2193 = vadd.f32 0.0, %v2192
        %2194 = vmatmul.bf16.gmra.mxu0 %v1777
        %v2195 = vpop.f32.mrf.mxu0
        %v2196 = vadd.f32 0.0, %v2195
        %v2197 = vpop.f32.mrf.mxu0
        %v2198 = vadd.f32 0.0, %v2197
        %2199 = vmatmul.bf16.gmra.mxu0 %v1779
        %v2200 = vpop.f32.mrf.mxu0
        %v2201 = vadd.f32 0.0, %v2200
        %v2202 = vpop.f32.mrf.mxu0
        %v2203 = vadd.f32 0.0, %v2202
        %2204 = vmatmul.bf16.gmra.mxu0 %v1781
        %v2205 = vpop.f32.mrf.mxu0
        %v2206 = vadd.f32 0.0, %v2205
        %v2207 = vpop.f32.mrf.mxu0
        %v2208 = vadd.f32 0.0, %v2207
        %2209 = vmatmul.bf16.gmra.mxu0 %v1783
        %v2210 = vpop.f32.mrf.mxu0
        %v2211 = vadd.f32 0.0, %v2210
        %v2212 = vpop.f32.mrf.mxu0
        %v2213 = vadd.f32 0.0, %v2212
        %2214 = vmatmul.bf16.gmra.mxu0 %v1785
        %v2215 = vpop.f32.mrf.mxu0
        %v2216 = vadd.f32 0.0, %v2215
        %v2217 = vpop.f32.mrf.mxu0
        %v2218 = vadd.f32 0.0, %v2217
        %2219 = vdwg.mxu0
        %2220 = vmatpush.bf16.msra.mxu0 %v2103
        %2221 = vmatpush.bf16.msra.mxu0 %v2099
        %2222 = vmatpush.bf16.msra.mxu0 %v2095
        %2223 = vmatpush.bf16.msra.mxu0 %v2091
        %2224 = vmatpush.bf16.msra.mxu0 %v2087
        %2225 = vmatpush.bf16.msra.mxu0 %v2083
        %2226 = vmatpush.bf16.msra.mxu0 %v2079
        %2227 = vmatpush.bf16.msra.mxu0 %v2075
        %2228 = vmatmul.bf16.gmra.mxu0 %v1772
        %v2229 = vpop.f32.mrf.mxu0
        %v2230 = vadd.f32 %v2181, %v2229
        %v2231 = vpop.f32.mrf.mxu0
        %v2232 = vadd.f32 %v2183, %v2231
        %2233 = vmatmul.bf16.gmra.mxu0 %v1774
        %v2234 = vpop.f32.mrf.mxu0
        %v2235 = vadd.f32 %v2186, %v2234
        %v2236 = vpop.f32.mrf.mxu0
        %v2237 = vadd.f32 %v2188, %v2236
        %2238 = vmatmul.bf16.gmra.mxu0 %v1776
        %v2239 = vpop.f32.mrf.mxu0
        %v2240 = vadd.f32 %v2191, %v2239
        %v2241 = vpop.f32.mrf.mxu0
        %v2242 = vadd.f32 %v2193, %v2241
        %2243 = vmatmul.bf16.gmra.mxu0 %v1778
        %v2244 = vpop.f32.mrf.mxu0
        %v2245 = vadd.f32 %v2196, %v2244
        %v2246 = vpop.f32.mrf.mxu0
        %v2247 = vadd.f32 %v2198, %v2246
        %2248 = vmatmul.bf16.gmra.mxu0 %v1780
        %v2249 = vpop.f32.mrf.mxu0
        %v2250 = vadd.f32 %v2201, %v2249
        %v2251 = vpop.f32.mrf.mxu0
        %v2252 = vadd.f32 %v2203, %v2251
        %2253 = vmatmul.bf16.gmra.mxu0 %v1782
        %v2254 = vpop.f32.mrf.mxu0
        %v2255 = vadd.f32 %v2206, %v2254
        %v2256 = vpop.f32.mrf.mxu0
        %v2257 = vadd.f32 %v2208, %v2256
        %2258 = vmatmul.bf16.gmra.mxu0 %v1784
        %v2259 = vpop.f32.mrf.mxu0
        %v2260 = vadd.f32 %v2211, %v2259
        %v2261 = vpop.f32.mrf.mxu0
        %v2262 = vadd.f32 %v2213, %v2261
        %2263 = vmatmul.bf16.gmra.mxu0 %v1786
        %v2264 = vpop.f32.mrf.mxu0
        %v2265 = vadd.f32 %v2216, %v2264
        %v2266 = vpop.f32.mrf.mxu0
        %v2267 = vadd.f32 %v2218, %v2266
        %2268 = vdwg.mxu0
        %2269 = vmatpush.bf16.msra.mxu0 %v2072
        %2270 = vmatpush.bf16.msra.mxu0 %v2068
        %2271 = vmatpush.bf16.msra.mxu0 %v2064
        %2272 = vmatpush.bf16.msra.mxu0 %v2060
        %2273 = vmatpush.bf16.msra.mxu0 %v2056
        %2274 = vmatpush.bf16.msra.mxu0 %v2052
        %2275 = vmatpush.bf16.msra.mxu0 %v2048
        %2276 = vmatpush.bf16.msra.mxu0 %v2044
        %2277 = vmatmul.bf16.gmra.mxu0 %v1771
        %v2278 = vpop.f32.mrf.mxu0
        %v2279 = vadd.f32 0.0, %v2278
        %v2280 = vpop.f32.mrf.mxu0
        %v2281 = vadd.f32 0.0, %v2280
        %2282 = vmatmul.bf16.gmra.mxu0 %v1773
        %v2283 = vpop.f32.mrf.mxu0
        %v2284 = vadd.f32 0.0, %v2283
        %v2285 = vpop.f32.mrf.mxu0
        %v2286 = vadd.f32 0.0, %v2285
        %2287 = vmatmul.bf16.gmra.mxu0 %v1775
        %v2288 = vpop.f32.mrf.mxu0
        %v2289 = vadd.f32 0.0, %v2288
        %v2290 = vpop.f32.mrf.mxu0
        %v2291 = vadd.f32 0.0, %v2290
        %2292 = vmatmul.bf16.gmra.mxu0 %v1777
        %v2293 = vpop.f32.mrf.mxu0
        %v2294 = vadd.f32 0.0, %v2293
        %v2295 = vpop.f32.mrf.mxu0
        %v2296 = vadd.f32 0.0, %v2295
        %2297 = vmatmul.bf16.gmra.mxu0 %v1779
        %v2298 = vpop.f32.mrf.mxu0
        %v2299 = vadd.f32 0.0, %v2298
        %v2300 = vpop.f32.mrf.mxu0
        %v2301 = vadd.f32 0.0, %v2300
        %2302 = vmatmul.bf16.gmra.mxu0 %v1781
        %v2303 = vpop.f32.mrf.mxu0
        %v2304 = vadd.f32 0.0, %v2303
        %v2305 = vpop.f32.mrf.mxu0
        %v2306 = vadd.f32 0.0, %v2305
        %2307 = vmatmul.bf16.gmra.mxu0 %v1783
        %v2308 = vpop.f32.mrf.mxu0
        %v2309 = vadd.f32 0.0, %v2308
        %v2310 = vpop.f32.mrf.mxu0
        %v2311 = vadd.f32 0.0, %v2310
        %2312 = vmatmul.bf16.gmra.mxu0 %v1785
        %v2313 = vpop.f32.mrf.mxu0
        %v2314 = vadd.f32 0.0, %v2313
        %v2315 = vpop.f32.mrf.mxu0
        %v2316 = vadd.f32 0.0, %v2315
        %2317 = vdwg.mxu0
        %2318 = vmatpush.bf16.msra.mxu0 %v2104
        %2319 = vmatpush.bf16.msra.mxu0 %v2100
        %2320 = vmatpush.bf16.msra.mxu0 %v2096
        %2321 = vmatpush.bf16.msra.mxu0 %v2092
        %2322 = vmatpush.bf16.msra.mxu0 %v2088
        %2323 = vmatpush.bf16.msra.mxu0 %v2084
        %2324 = vmatpush.bf16.msra.mxu0 %v2080
        %2325 = vmatpush.bf16.msra.mxu0 %v2076
        %2326 = vmatmul.bf16.gmra.mxu0 %v1772
        %v2327 = vpop.f32.mrf.mxu0
        %v2328 = vadd.f32 %v2279, %v2327
        %v2329 = vpop.f32.mrf.mxu0
        %v2330 = vadd.f32 %v2281, %v2329
        %2331 = vmatmul.bf16.gmra.mxu0 %v1774
        %v2332 = vpop.f32.mrf.mxu0
        %v2333 = vadd.f32 %v2284, %v2332
        %v2334 = vpop.f32.mrf.mxu0
        %v2335 = vadd.f32 %v2286, %v2334
        %2336 = vmatmul.bf16.gmra.mxu0 %v1776
        %v2337 = vpop.f32.mrf.mxu0
        %v2338 = vadd.f32 %v2289, %v2337
        %v2339 = vpop.f32.mrf.mxu0
        %v2340 = vadd.f32 %v2291, %v2339
        %2341 = vmatmul.bf16.gmra.mxu0 %v1778
        %v2342 = vpop.f32.mrf.mxu0
        %v2343 = vadd.f32 %v2294, %v2342
        %v2344 = vpop.f32.mrf.mxu0
        %v2345 = vadd.f32 %v2296, %v2344
        %2346 = vmatmul.bf16.gmra.mxu0 %v1780
        %v2347 = vpop.f32.mrf.mxu0
        %v2348 = vadd.f32 %v2299, %v2347
        %v2349 = vpop.f32.mrf.mxu0
        %v2350 = vadd.f32 %v2301, %v2349
        %2351 = vmatmul.bf16.gmra.mxu0 %v1782
        %v2352 = vpop.f32.mrf.mxu0
        %v2353 = vadd.f32 %v2304, %v2352
        %v2354 = vpop.f32.mrf.mxu0
        %v2355 = vadd.f32 %v2306, %v2354
        %2356 = vmatmul.bf16.gmra.mxu0 %v1784
        %v2357 = vpop.f32.mrf.mxu0
        %v2358 = vadd.f32 %v2309, %v2357
        %v2359 = vpop.f32.mrf.mxu0
        %v2360 = vadd.f32 %v2311, %v2359
        %2361 = vmatmul.bf16.gmra.mxu0 %v1786
        %v2362 = vpop.f32.mrf.mxu0
        %v2363 = vadd.f32 %v2314, %v2362
        %v2364 = vpop.f32.mrf.mxu0
        %v2365 = vadd.f32 %v2316, %v2364
        %2366 = vdwg.mxu0
        %2367 = vmatpush.bf16.msra.mxu0 %v2073
        %2368 = vmatpush.bf16.msra.mxu0 %v2069
        %2369 = vmatpush.bf16.msra.mxu0 %v2065
        %2370 = vmatpush.bf16.msra.mxu0 %v2061
        %2371 = vmatpush.bf16.msra.mxu0 %v2057
        %2372 = vmatpush.bf16.msra.mxu0 %v2053
        %2373 = vmatpush.bf16.msra.mxu0 %v2049
        %2374 = vmatpush.bf16.msra.mxu0 %v2045
        %2375 = vmatmul.bf16.gmra.mxu0 %v1771
        %v2376 = vpop.f32.mrf.mxu0
        %v2377 = vadd.f32 0.0, %v2376
        %v2378 = vpop.f32.mrf.mxu0
        %v2379 = vadd.f32 0.0, %v2378
        %2380 = vmatmul.bf16.gmra.mxu0 %v1773
        %v2381 = vpop.f32.mrf.mxu0
        %v2382 = vadd.f32 0.0, %v2381
        %v2383 = vpop.f32.mrf.mxu0
        %v2384 = vadd.f32 0.0, %v2383
        %2385 = vmatmul.bf16.gmra.mxu0 %v1775
        %v2386 = vpop.f32.mrf.mxu0
        %v2387 = vadd.f32 0.0, %v2386
        %v2388 = vpop.f32.mrf.mxu0
        %v2389 = vadd.f32 0.0, %v2388
        %2390 = vmatmul.bf16.gmra.mxu0 %v1777
        %v2391 = vpop.f32.mrf.mxu0
        %v2392 = vadd.f32 0.0, %v2391
        %v2393 = vpop.f32.mrf.mxu0
        %v2394 = vadd.f32 0.0, %v2393
        %2395 = vmatmul.bf16.gmra.mxu0 %v1779
        %v2396 = vpop.f32.mrf.mxu0
        %v2397 = vadd.f32 0.0, %v2396
        %v2398 = vpop.f32.mrf.mxu0
        %v2399 = vadd.f32 0.0, %v2398
        %2400 = vmatmul.bf16.gmra.mxu0 %v1781
        %v2401 = vpop.f32.mrf.mxu0
        %v2402 = vadd.f32 0.0, %v2401
        %v2403 = vpop.f32.mrf.mxu0
        %v2404 = vadd.f32 0.0, %v2403
        %2405 = vmatmul.bf16.gmra.mxu0 %v1783
        %v2406 = vpop.f32.mrf.mxu0
        %v2407 = vadd.f32 0.0, %v2406
        %v2408 = vpop.f32.mrf.mxu0
        %v2409 = vadd.f32 0.0, %v2408
        %2410 = vmatmul.bf16.gmra.mxu0 %v1785
        %v2411 = vpop.f32.mrf.mxu0
        %v2412 = vadd.f32 0.0, %v2411
        %v2413 = vpop.f32.mrf.mxu0
        %v2414 = vadd.f32 0.0, %v2413
        %2415 = vdwg.mxu0
        %2416 = vmatpush.bf16.msra.mxu0 %v2105
        %2417 = vmatpush.bf16.msra.mxu0 %v2101
        %2418 = vmatpush.bf16.msra.mxu0 %v2097
        %2419 = vmatpush.bf16.msra.mxu0 %v2093
        %2420 = vmatpush.bf16.msra.mxu0 %v2089
        %2421 = vmatpush.bf16.msra.mxu0 %v2085
        %2422 = vmatpush.bf16.msra.mxu0 %v2081
        %2423 = vmatpush.bf16.msra.mxu0 %v2077
        %2424 = vmatmul.bf16.gmra.mxu0 %v1772
        %v2425 = vpop.f32.mrf.mxu0
        %v2426 = vadd.f32 %v2377, %v2425
        %v2427 = vpop.f32.mrf.mxu0
        %v2428 = vadd.f32 %v2379, %v2427
        %2429 = vmatmul.bf16.gmra.mxu0 %v1774
        %v2430 = vpop.f32.mrf.mxu0
        %v2431 = vadd.f32 %v2382, %v2430
        %v2432 = vpop.f32.mrf.mxu0
        %v2433 = vadd.f32 %v2384, %v2432
        %2434 = vmatmul.bf16.gmra.mxu0 %v1776
        %v2435 = vpop.f32.mrf.mxu0
        %v2436 = vadd.f32 %v2387, %v2435
        %v2437 = vpop.f32.mrf.mxu0
        %v2438 = vadd.f32 %v2389, %v2437
        %2439 = vmatmul.bf16.gmra.mxu0 %v1778
        %v2440 = vpop.f32.mrf.mxu0
        %v2441 = vadd.f32 %v2392, %v2440
        %v2442 = vpop.f32.mrf.mxu0
        %v2443 = vadd.f32 %v2394, %v2442
        %2444 = vmatmul.bf16.gmra.mxu0 %v1780
        %v2445 = vpop.f32.mrf.mxu0
        %v2446 = vadd.f32 %v2397, %v2445
        %v2447 = vpop.f32.mrf.mxu0
        %v2448 = vadd.f32 %v2399, %v2447
        %2449 = vmatmul.bf16.gmra.mxu0 %v1782
        %v2450 = vpop.f32.mrf.mxu0
        %v2451 = vadd.f32 %v2402, %v2450
        %v2452 = vpop.f32.mrf.mxu0
        %v2453 = vadd.f32 %v2404, %v2452
        %2454 = vmatmul.bf16.gmra.mxu0 %v1784
        %v2455 = vpop.f32.mrf.mxu0
        %v2456 = vadd.f32 %v2407, %v2455
        %v2457 = vpop.f32.mrf.mxu0
        %v2458 = vadd.f32 %v2409, %v2457
        %2459 = vmatmul.bf16.gmra.mxu0 %v1786
        %v2460 = vpop.f32.mrf.mxu0
        %v2461 = vadd.f32 %v2412, %v2460
        %v2462 = vpop.f32.mrf.mxu0
        %v2463 = vadd.f32 %v2414, %v2462
        %2464 = vdwg.mxu0
        %2465 = vmatpush.bf16.msra.mxu0 %v2074
        %2466 = vmatpush.bf16.msra.mxu0 %v2070
        %2467 = vmatpush.bf16.msra.mxu0 %v2066
        %2468 = vmatpush.bf16.msra.mxu0 %v2062
        %2469 = vmatpush.bf16.msra.mxu0 %v2058
        %2470 = vmatpush.bf16.msra.mxu0 %v2054
        %2471 = vmatpush.bf16.msra.mxu0 %v2050
        %2472 = vmatpush.bf16.msra.mxu0 %v2046
        %2473 = vmatmul.bf16.gmra.mxu0 %v1771
        %v2474 = vpop.f32.mrf.mxu0
        %v2475 = vadd.f32 0.0, %v2474
        %v2476 = vpop.f32.mrf.mxu0
        %v2477 = vadd.f32 0.0, %v2476
        %2478 = vmatmul.bf16.gmra.mxu0 %v1773
        %v2479 = vpop.f32.mrf.mxu0
        %v2480 = vadd.f32 0.0, %v2479
        %v2481 = vpop.f32.mrf.mxu0
        %v2482 = vadd.f32 0.0, %v2481
        %2483 = vmatmul.bf16.gmra.mxu0 %v1775
        %v2484 = vpop.f32.mrf.mxu0
        %v2485 = vadd.f32 0.0, %v2484
        %v2486 = vpop.f32.mrf.mxu0
        %v2487 = vadd.f32 0.0, %v2486
        %2488 = vmatmul.bf16.gmra.mxu0 %v1777
        %v2489 = vpop.f32.mrf.mxu0
        %v2490 = vadd.f32 0.0, %v2489
        %v2491 = vpop.f32.mrf.mxu0
        %v2492 = vadd.f32 0.0, %v2491
        %2493 = vmatmul.bf16.gmra.mxu0 %v1779
        %v2494 = vpop.f32.mrf.mxu0
        %v2495 = vadd.f32 0.0, %v2494
        %v2496 = vpop.f32.mrf.mxu0
        %v2497 = vadd.f32 0.0, %v2496
        %2498 = vmatmul.bf16.gmra.mxu0 %v1781
        %v2499 = vpop.f32.mrf.mxu0
        %v2500 = vadd.f32 0.0, %v2499
        %v2501 = vpop.f32.mrf.mxu0
        %v2502 = vadd.f32 0.0, %v2501
        %2503 = vmatmul.bf16.gmra.mxu0 %v1783
        %v2504 = vpop.f32.mrf.mxu0
        %v2505 = vadd.f32 0.0, %v2504
        %v2506 = vpop.f32.mrf.mxu0
        %v2507 = vadd.f32 0.0, %v2506
        %2508 = vmatmul.bf16.gmra.mxu0 %v1785
        %v2509 = vpop.f32.mrf.mxu0
        %v2510 = vadd.f32 0.0, %v2509
        %v2511 = vpop.f32.mrf.mxu0
        %v2512 = vadd.f32 0.0, %v2511
        %2513 = vdwg.mxu0
        %2514 = vmatpush.bf16.msra.mxu0 %v2106
        %2515 = vmatpush.bf16.msra.mxu0 %v2102
        %2516 = vmatpush.bf16.msra.mxu0 %v2098
        %2517 = vmatpush.bf16.msra.mxu0 %v2094
        %2518 = vmatpush.bf16.msra.mxu0 %v2090
        %2519 = vmatpush.bf16.msra.mxu0 %v2086
        %2520 = vmatpush.bf16.msra.mxu0 %v2082
        %2521 = vmatpush.bf16.msra.mxu0 %v2078
        %2522 = vmatmul.bf16.gmra.mxu0 %v1772
        %v2523 = vpop.f32.mrf.mxu0
        %v2524 = vadd.f32 %v2475, %v2523
        %v2525 = vpop.f32.mrf.mxu0
        %v2526 = vadd.f32 %v2477, %v2525
        %2527 = vmatmul.bf16.gmra.mxu0 %v1774
        %v2528 = vpop.f32.mrf.mxu0
        %v2529 = vadd.f32 %v2480, %v2528
        %v2530 = vpop.f32.mrf.mxu0
        %v2531 = vadd.f32 %v2482, %v2530
        %2532 = vmatmul.bf16.gmra.mxu0 %v1776
        %v2533 = vpop.f32.mrf.mxu0
        %v2534 = vadd.f32 %v2485, %v2533
        %v2535 = vpop.f32.mrf.mxu0
        %v2536 = vadd.f32 %v2487, %v2535
        %2537 = vmatmul.bf16.gmra.mxu0 %v1778
        %v2538 = vpop.f32.mrf.mxu0
        %v2539 = vadd.f32 %v2490, %v2538
        %v2540 = vpop.f32.mrf.mxu0
        %v2541 = vadd.f32 %v2492, %v2540
        %2542 = vmatmul.bf16.gmra.mxu0 %v1780
        %v2543 = vpop.f32.mrf.mxu0
        %v2544 = vadd.f32 %v2495, %v2543
        %v2545 = vpop.f32.mrf.mxu0
        %v2546 = vadd.f32 %v2497, %v2545
        %2547 = vmatmul.bf16.gmra.mxu0 %v1782
        %v2548 = vpop.f32.mrf.mxu0
        %v2549 = vadd.f32 %v2500, %v2548
        %v2550 = vpop.f32.mrf.mxu0
        %v2551 = vadd.f32 %v2502, %v2550
        %2552 = vmatmul.bf16.gmra.mxu0 %v1784
        %v2553 = vpop.f32.mrf.mxu0
        %v2554 = vadd.f32 %v2505, %v2553
        %v2555 = vpop.f32.mrf.mxu0
        %v2556 = vadd.f32 %v2507, %v2555
        %2557 = vmatmul.bf16.gmra.mxu0 %v1786
        %v2558 = vpop.f32.mrf.mxu0
        %v2559 = vadd.f32 %v2510, %v2558
        %v2560 = vpop.f32.mrf.mxu0
        %v2561 = vadd.f32 %v2512, %v2560
        %2562 = vdwg.mxu0
        %v2563 = vld [vmem:[%s1060] sm:$0xff]
        %v2564 = vld [vmem:[%s1060 + $0x8] sm:$0xff]
        %v2565 = vld [vmem:[%s1060 + $0x10] sm:$0xff]
        %v2566 = vld [vmem:[%s1060 + $0x18] sm:$0xff]
        %v2567 = vld [vmem:[%s1060 + $0x20] sm:$0xff]
        %v2568 = vld [vmem:[%s1060 + $0x28] sm:$0xff]
        %v2569 = vld [vmem:[%s1060 + $0x30] sm:$0xff]
        %v2570 = vld [vmem:[%s1060 + $0x38] sm:$0xff]
        %v2571 = vld [vmem:[%s1060 + $0x40] sm:$0xff]
        %v2572 = vld [vmem:[%s1060 + $0x48] sm:$0xff]
        %v2573 = vld [vmem:[%s1060 + $0x50] sm:$0xff]
        %v2574 = vld [vmem:[%s1060 + $0x58] sm:$0xff]
        %v2575 = vld [vmem:[%s1060 + $0x60] sm:$0xff]
        %v2576 = vld [vmem:[%s1060 + $0x68] sm:$0xff]
        %v2577 = vld [vmem:[%s1060 + $0x70] sm:$0xff]
        %v2578 = vld [vmem:[%s1060 + $0x78] sm:$0xff]
        %v2579 = vld [vmem:[%s1060 + $0x80] sm:$0xff]
        %v2580 = vld [vmem:[%s1060 + $0x88] sm:$0xff]
        %v2581 = vld [vmem:[%s1060 + $0x90] sm:$0xff]
        %v2582 = vld [vmem:[%s1060 + $0x98] sm:$0xff]
        %v2583 = vld [vmem:[%s1060 + $0xa0] sm:$0xff]
        %v2584 = vld [vmem:[%s1060 + $0xa8] sm:$0xff]
        %v2585 = vld [vmem:[%s1060 + $0xb0] sm:$0xff]
        %v2586 = vld [vmem:[%s1060 + $0xb8] sm:$0xff]
        %v2587 = vld [vmem:[%s1060 + $0xc0] sm:$0xff]
        %v2588 = vld [vmem:[%s1060 + $0xc8] sm:$0xff]
        %v2589 = vld [vmem:[%s1060 + $0xd0] sm:$0xff]
        %v2590 = vld [vmem:[%s1060 + $0xd8] sm:$0xff]
        %v2591 = vld [vmem:[%s1060 + $0xe0] sm:$0xff]
        %v2592 = vld [vmem:[%s1060 + $0xe8] sm:$0xff]
        %v2593 = vld [vmem:[%s1060 + $0xf0] sm:$0xff]
        %v2594 = vld [vmem:[%s1060 + $0xf8] sm:$0xff]
        %v2595 = vld [vmem:[%s1060 + $0x100] sm:$0xff]
        %v2596 = vld [vmem:[%s1060 + $0x108] sm:$0xff]
        %v2597 = vld [vmem:[%s1060 + $0x110] sm:$0xff]
        %v2598 = vld [vmem:[%s1060 + $0x118] sm:$0xff]
        %v2599 = vld [vmem:[%s1060 + $0x120] sm:$0xff]
        %v2600 = vld [vmem:[%s1060 + $0x128] sm:$0xff]
        %v2601 = vld [vmem:[%s1060 + $0x130] sm:$0xff]
        %v2602 = vld [vmem:[%s1060 + $0x138] sm:$0xff]
        %v2603 = vld [vmem:[%s1060 + $0x140] sm:$0xff]
        %v2604 = vld [vmem:[%s1060 + $0x148] sm:$0xff]
        %v2605 = vld [vmem:[%s1060 + $0x150] sm:$0xff]
        %v2606 = vld [vmem:[%s1060 + $0x158] sm:$0xff]
        %v2607 = vld [vmem:[%s1060 + $0x160] sm:$0xff]
        %v2608 = vld [vmem:[%s1060 + $0x168] sm:$0xff]
        %v2609 = vld [vmem:[%s1060 + $0x170] sm:$0xff]
        %v2610 = vld [vmem:[%s1060 + $0x178] sm:$0xff]
        %v2611 = vld [vmem:[%s1060 + $0x180] sm:$0xff]
        %v2612 = vld [vmem:[%s1060 + $0x188] sm:$0xff]
        %v2613 = vld [vmem:[%s1060 + $0x190] sm:$0xff]
        %v2614 = vld [vmem:[%s1060 + $0x198] sm:$0xff]
        %v2615 = vld [vmem:[%s1060 + $0x1a0] sm:$0xff]
        %v2616 = vld [vmem:[%s1060 + $0x1a8] sm:$0xff]
        %v2617 = vld [vmem:[%s1060 + $0x1b0] sm:$0xff]
        %v2618 = vld [vmem:[%s1060 + $0x1b8] sm:$0xff]
        %v2619 = vld [vmem:[%s1060 + $0x1c0] sm:$0xff]
        %v2620 = vld [vmem:[%s1060 + $0x1c8] sm:$0xff]
        %v2621 = vld [vmem:[%s1060 + $0x1d0] sm:$0xff]
        %v2622 = vld [vmem:[%s1060 + $0x1d8] sm:$0xff]
        %v2623 = vld [vmem:[%s1060 + $0x1e0] sm:$0xff]
        %v2624 = vld [vmem:[%s1060 + $0x1e8] sm:$0xff]
        %v2625 = vld [vmem:[%s1060 + $0x1f0] sm:$0xff]
        %v2626 = vld [vmem:[%s1060 + $0x1f8] sm:$0xff]
        %2627 = vmatpush.msra.mxu0 %v2578
        %2628 = vmatpush.msra.mxu0 %v2577
        %2629 = vmatpush.msra.mxu0 %v2576
        %2630 = vmatpush.msra.mxu0 %v2575
        %2631 = vmatpush.msra.mxu0 %v2574
        %2632 = vmatpush.msra.mxu0 %v2573
        %2633 = vmatpush.msra.mxu0 %v2572
        %2634 = vmatpush.msra.mxu0 %v2571
        %2635 = vmatpush.msra.mxu0 %v2570
        %2636 = vmatpush.msra.mxu0 %v2569
        %2637 = vmatpush.msra.mxu0 %v2568
        %2638 = vmatpush.msra.mxu0 %v2567
        %2639 = vmatpush.msra.mxu0 %v2566
        %2640 = vmatpush.msra.mxu0 %v2565
        %2641 = vmatpush.msra.mxu0 %v2564
        %2642 = vmatpush.msra.mxu0 %v2563
        %2643 = vmatmul.f32.gmra.mxu0 %v2230
        %v2644 = vpop.f32.mrf.mxu0
        %v2645 = vadd.f32 0.0, %v2644
        %2646 = vmatmul.f32.gmra.mxu0 %v2232
        %v2647 = vpop.f32.mrf.mxu0
        %v2648 = vadd.f32 0.0, %v2647
        %2649 = vmatmul.f32.gmra.mxu0 %v2235
        %v2650 = vpop.f32.mrf.mxu0
        %v2651 = vadd.f32 0.0, %v2650
        %2652 = vmatmul.f32.gmra.mxu0 %v2237
        %v2653 = vpop.f32.mrf.mxu0
        %v2654 = vadd.f32 0.0, %v2653
        %2655 = vmatmul.f32.gmra.mxu0 %v2240
        %v2656 = vpop.f32.mrf.mxu0
        %v2657 = vadd.f32 0.0, %v2656
        %2658 = vmatmul.f32.gmra.mxu0 %v2242
        %v2659 = vpop.f32.mrf.mxu0
        %v2660 = vadd.f32 0.0, %v2659
        %2661 = vmatmul.f32.gmra.mxu0 %v2245
        %v2662 = vpop.f32.mrf.mxu0
        %v2663 = vadd.f32 0.0, %v2662
        %2664 = vmatmul.f32.gmra.mxu0 %v2247
        %v2665 = vpop.f32.mrf.mxu0
        %v2666 = vadd.f32 0.0, %v2665
        %2667 = vmatmul.f32.gmra.mxu0 %v2250
        %v2668 = vpop.f32.mrf.mxu0
        %v2669 = vadd.f32 0.0, %v2668
        %2670 = vmatmul.f32.gmra.mxu0 %v2252
        %v2671 = vpop.f32.mrf.mxu0
        %v2672 = vadd.f32 0.0, %v2671
        %2673 = vmatmul.f32.gmra.mxu0 %v2255
        %v2674 = vpop.f32.mrf.mxu0
        %v2675 = vadd.f32 0.0, %v2674
        %2676 = vmatmul.f32.gmra.mxu0 %v2257
        %v2677 = vpop.f32.mrf.mxu0
        %v2678 = vadd.f32 0.0, %v2677
        %2679 = vmatmul.f32.gmra.mxu0 %v2260
        %v2680 = vpop.f32.mrf.mxu0
        %v2681 = vadd.f32 0.0, %v2680
        %2682 = vmatmul.f32.gmra.mxu0 %v2262
        %v2683 = vpop.f32.mrf.mxu0
        %v2684 = vadd.f32 0.0, %v2683
        %2685 = vmatmul.f32.gmra.mxu0 %v2265
        %v2686 = vpop.f32.mrf.mxu0
        %v2687 = vadd.f32 0.0, %v2686
        %2688 = vmatmul.f32.gmra.mxu0 %v2267
        %v2689 = vpop.f32.mrf.mxu0
        %v2690 = vadd.f32 0.0, %v2689
        %2691 = vdwg.mxu0
        %2692 = vmatpush.msra.mxu0 %v2594
        %2693 = vmatpush.msra.mxu0 %v2593
        %2694 = vmatpush.msra.mxu0 %v2592
        %2695 = vmatpush.msra.mxu0 %v2591
        %2696 = vmatpush.msra.mxu0 %v2590
        %2697 = vmatpush.msra.mxu0 %v2589
        %2698 = vmatpush.msra.mxu0 %v2588
        %2699 = vmatpush.msra.mxu0 %v2587
        %2700 = vmatpush.msra.mxu0 %v2586
        %2701 = vmatpush.msra.mxu0 %v2585
        %2702 = vmatpush.msra.mxu0 %v2584
        %2703 = vmatpush.msra.mxu0 %v2583
        %2704 = vmatpush.msra.mxu0 %v2582
        %2705 = vmatpush.msra.mxu0 %v2581
        %2706 = vmatpush.msra.mxu0 %v2580
        %2707 = vmatpush.msra.mxu0 %v2579
        %2708 = vmatmul.f32.gmra.mxu0 %v2328
        %v2709 = vpop.f32.mrf.mxu0
        %v2710 = vadd.f32 %v2645, %v2709
        %2711 = vmatmul.f32.gmra.mxu0 %v2330
        %v2712 = vpop.f32.mrf.mxu0
        %v2713 = vadd.f32 %v2648, %v2712
        %2714 = vmatmul.f32.gmra.mxu0 %v2333
        %v2715 = vpop.f32.mrf.mxu0
        %v2716 = vadd.f32 %v2651, %v2715
        %2717 = vmatmul.f32.gmra.mxu0 %v2335
        %v2718 = vpop.f32.mrf.mxu0
        %v2719 = vadd.f32 %v2654, %v2718
        %2720 = vmatmul.f32.gmra.mxu0 %v2338
        %v2721 = vpop.f32.mrf.mxu0
        %v2722 = vadd.f32 %v2657, %v2721
        %2723 = vmatmul.f32.gmra.mxu0 %v2340
        %v2724 = vpop.f32.mrf.mxu0
        %v2725 = vadd.f32 %v2660, %v2724
        %2726 = vmatmul.f32.gmra.mxu0 %v2343
        %v2727 = vpop.f32.mrf.mxu0
        %v2728 = vadd.f32 %v2663, %v2727
        %2729 = vmatmul.f32.gmra.mxu0 %v2345
        %v2730 = vpop.f32.mrf.mxu0
        %v2731 = vadd.f32 %v2666, %v2730
        %2732 = vmatmul.f32.gmra.mxu0 %v2348
        %v2733 = vpop.f32.mrf.mxu0
        %v2734 = vadd.f32 %v2669, %v2733
        %2735 = vmatmul.f32.gmra.mxu0 %v2350
        %v2736 = vpop.f32.mrf.mxu0
        %v2737 = vadd.f32 %v2672, %v2736
        %2738 = vmatmul.f32.gmra.mxu0 %v2353
        %v2739 = vpop.f32.mrf.mxu0
        %v2740 = vadd.f32 %v2675, %v2739
        %2741 = vmatmul.f32.gmra.mxu0 %v2355
        %v2742 = vpop.f32.mrf.mxu0
        %v2743 = vadd.f32 %v2678, %v2742
        %2744 = vmatmul.f32.gmra.mxu0 %v2358
        %v2745 = vpop.f32.mrf.mxu0
        %v2746 = vadd.f32 %v2681, %v2745
        %2747 = vmatmul.f32.gmra.mxu0 %v2360
        %v2748 = vpop.f32.mrf.mxu0
        %v2749 = vadd.f32 %v2684, %v2748
        %2750 = vmatmul.f32.gmra.mxu0 %v2363
        %v2751 = vpop.f32.mrf.mxu0
        %v2752 = vadd.f32 %v2687, %v2751
        %2753 = vmatmul.f32.gmra.mxu0 %v2365
        %v2754 = vpop.f32.mrf.mxu0
        %v2755 = vadd.f32 %v2690, %v2754
        %2756 = vdwg.mxu0
        %2757 = vmatpush.msra.mxu0 %v2610
        %2758 = vmatpush.msra.mxu0 %v2609
        %2759 = vmatpush.msra.mxu0 %v2608
        %2760 = vmatpush.msra.mxu0 %v2607
        %2761 = vmatpush.msra.mxu0 %v2606
        %2762 = vmatpush.msra.mxu0 %v2605
        %2763 = vmatpush.msra.mxu0 %v2604
        %2764 = vmatpush.msra.mxu0 %v2603
        %2765 = vmatpush.msra.mxu0 %v2602
        %2766 = vmatpush.msra.mxu0 %v2601
        %2767 = vmatpush.msra.mxu0 %v2600
        %2768 = vmatpush.msra.mxu0 %v2599
        %2769 = vmatpush.msra.mxu0 %v2598
        %2770 = vmatpush.msra.mxu0 %v2597
        %2771 = vmatpush.msra.mxu0 %v2596
        %2772 = vmatpush.msra.mxu0 %v2595
        %2773 = vmatmul.f32.gmra.mxu0 %v2426
        %v2774 = vpop.f32.mrf.mxu0
        %v2775 = vadd.f32 %v2710, %v2774
        %2776 = vmatmul.f32.gmra.mxu0 %v2428
        %v2777 = vpop.f32.mrf.mxu0
        %v2778 = vadd.f32 %v2713, %v2777
        %2779 = vmatmul.f32.gmra.mxu0 %v2431
        %v2780 = vpop.f32.mrf.mxu0
        %v2781 = vadd.f32 %v2716, %v2780
        %2782 = vmatmul.f32.gmra.mxu0 %v2433
        %v2783 = vpop.f32.mrf.mxu0
        %v2784 = vadd.f32 %v2719, %v2783
        %2785 = vmatmul.f32.gmra.mxu0 %v2436
        %v2786 = vpop.f32.mrf.mxu0
        %v2787 = vadd.f32 %v2722, %v2786
        %2788 = vmatmul.f32.gmra.mxu0 %v2438
        %v2789 = vpop.f32.mrf.mxu0
        %v2790 = vadd.f32 %v2725, %v2789
        %2791 = vmatmul.f32.gmra.mxu0 %v2441
        %v2792 = vpop.f32.mrf.mxu0
        %v2793 = vadd.f32 %v2728, %v2792
        %2794 = vmatmul.f32.gmra.mxu0 %v2443
        %v2795 = vpop.f32.mrf.mxu0
        %v2796 = vadd.f32 %v2731, %v2795
        %2797 = vmatmul.f32.gmra.mxu0 %v2446
        %v2798 = vpop.f32.mrf.mxu0
        %v2799 = vadd.f32 %v2734, %v2798
        %2800 = vmatmul.f32.gmra.mxu0 %v2448
        %v2801 = vpop.f32.mrf.mxu0
        %v2802 = vadd.f32 %v2737, %v2801
        %2803 = vmatmul.f32.gmra.mxu0 %v2451
        %v2804 = vpop.f32.mrf.mxu0
        %v2805 = vadd.f32 %v2740, %v2804
        %2806 = vmatmul.f32.gmra.mxu0 %v2453
        %v2807 = vpop.f32.mrf.mxu0
        %v2808 = vadd.f32 %v2743, %v2807
        %2809 = vmatmul.f32.gmra.mxu0 %v2456
        %v2810 = vpop.f32.mrf.mxu0
        %v2811 = vadd.f32 %v2746, %v2810
        %2812 = vmatmul.f32.gmra.mxu0 %v2458
        %v2813 = vpop.f32.mrf.mxu0
        %v2814 = vadd.f32 %v2749, %v2813
        %2815 = vmatmul.f32.gmra.mxu0 %v2461
        %v2816 = vpop.f32.mrf.mxu0
        %v2817 = vadd.f32 %v2752, %v2816
        %2818 = vmatmul.f32.gmra.mxu0 %v2463
        %v2819 = vpop.f32.mrf.mxu0
        %v2820 = vadd.f32 %v2755, %v2819
        %2821 = vdwg.mxu0
        %2822 = vmatpush.msra.mxu0 %v2626
        %2823 = vmatpush.msra.mxu0 %v2625
        %2824 = vmatpush.msra.mxu0 %v2624
        %2825 = vmatpush.msra.mxu0 %v2623
        %2826 = vmatpush.msra.mxu0 %v2622
        %2827 = vmatpush.msra.mxu0 %v2621
        %2828 = vmatpush.msra.mxu0 %v2620
        %2829 = vmatpush.msra.mxu0 %v2619
        %2830 = vmatpush.msra.mxu0 %v2618
        %2831 = vmatpush.msra.mxu0 %v2617
        %2832 = vmatpush.msra.mxu0 %v2616
        %2833 = vmatpush.msra.mxu0 %v2615
        %2834 = vmatpush.msra.mxu0 %v2614
        %2835 = vmatpush.msra.mxu0 %v2613
        %2836 = vmatpush.msra.mxu0 %v2612
        %2837 = vmatpush.msra.mxu0 %v2611
        %2838 = vmatmul.f32.gmra.mxu0 %v2524
        %v2839 = vpop.f32.mrf.mxu0
        %v2840 = vadd.f32 %v2775, %v2839
        %2841 = vmatmul.f32.gmra.mxu0 %v2526
        %v2842 = vpop.f32.mrf.mxu0
        %v2843 = vadd.f32 %v2778, %v2842
        %2844 = vmatmul.f32.gmra.mxu0 %v2529
        %v2845 = vpop.f32.mrf.mxu0
        %v2846 = vadd.f32 %v2781, %v2845
        %2847 = vmatmul.f32.gmra.mxu0 %v2531
        %v2848 = vpop.f32.mrf.mxu0
        %v2849 = vadd.f32 %v2784, %v2848
        %2850 = vmatmul.f32.gmra.mxu0 %v2534
        %v2851 = vpop.f32.mrf.mxu0
        %v2852 = vadd.f32 %v2787, %v2851
        %2853 = vmatmul.f32.gmra.mxu0 %v2536
        %v2854 = vpop.f32.mrf.mxu0
        %v2855 = vadd.f32 %v2790, %v2854
        %2856 = vmatmul.f32.gmra.mxu0 %v2539
        %v2857 = vpop.f32.mrf.mxu0
        %v2858 = vadd.f32 %v2793, %v2857
        %2859 = vmatmul.f32.gmra.mxu0 %v2541
        %v2860 = vpop.f32.mrf.mxu0
        %v2861 = vadd.f32 %v2796, %v2860
        %2862 = vmatmul.f32.gmra.mxu0 %v2544
        %v2863 = vpop.f32.mrf.mxu0
        %v2864 = vadd.f32 %v2799, %v2863
        %2865 = vmatmul.f32.gmra.mxu0 %v2546
        %v2866 = vpop.f32.mrf.mxu0
        %v2867 = vadd.f32 %v2802, %v2866
        %2868 = vmatmul.f32.gmra.mxu0 %v2549
        %v2869 = vpop.f32.mrf.mxu0
        %v2870 = vadd.f32 %v2805, %v2869
        %2871 = vmatmul.f32.gmra.mxu0 %v2551
        %v2872 = vpop.f32.mrf.mxu0
        %v2873 = vadd.f32 %v2808, %v2872
        %2874 = vmatmul.f32.gmra.mxu0 %v2554
        %v2875 = vpop.f32.mrf.mxu0
        %v2876 = vadd.f32 %v2811, %v2875
        %2877 = vmatmul.f32.gmra.mxu0 %v2556
        %v2878 = vpop.f32.mrf.mxu0
        %v2879 = vadd.f32 %v2814, %v2878
        %2880 = vmatmul.f32.gmra.mxu0 %v2559
        %v2881 = vpop.f32.mrf.mxu0
        %v2882 = vadd.f32 %v2817, %v2881
        %2883 = vmatmul.f32.gmra.mxu0 %v2561
        %v2884 = vpop.f32.mrf.mxu0
        %v2885 = vadd.f32 %v2820, %v2884
        %2886 = vdwg.mxu0
        %v2887 = vld [vmem:[%s1065] sm:$0xff]
        %v2888 = vld [vmem:[%s1065 + $0x8] sm:$0xff]
        %2891 = vst [vmem:[#allocation1] ss:$2 sm:$0xff] %v2887
        %s2892 = scalar_lea.vmem [#allocation1], 16
        %2893 = vst [vmem:[%s2892] ss:$2 sm:$0xff] %v2888
        %v2894 = vld.sshfl [vmem:[#allocation1] sm:$0xff pattern:$0x75316420]
        %v2895 = vld.sshfl [vmem:[#allocation1 + $0x8] sm:$0xff pattern:$0x75316420]
        %v2896 = vld.sshfl [vmem:[#allocation1 + $0x10] sm:$0xff pattern:$0x75316420]
        %v2897 = vld.sshfl [vmem:[#allocation1 + $0x18] sm:$0xff pattern:$0x75316420]
        %2902 = vmatpush.xpose.msra.mxu0 %v2267
        %2903 = vmatpush.xpose.msra.mxu0 %v2265
        %2904 = vmatpush.xpose.msra.mxu0 %v2262
        %2905 = vmatpush.xpose.msra.mxu0 %v2260
        %2906 = vmatpush.xpose.msra.mxu0 %v2257
        %2907 = vmatpush.xpose.msra.mxu0 %v2255
        %2908 = vmatpush.xpose.msra.mxu0 %v2252
        %2909 = vmatpush.xpose.msra.mxu0 %v2250
        %2910 = vmatpush.xpose.msra.mxu0 %v2247
        %2911 = vmatpush.xpose.msra.mxu0 %v2245
        %2912 = vmatpush.xpose.msra.mxu0 %v2242
        %2913 = vmatpush.xpose.msra.mxu0 %v2240
        %2914 = vmatpush.xpose.msra.mxu0 %v2237
        %2915 = vmatpush.xpose.msra.mxu0 %v2235
        %2916 = vmatpush.xpose.msra.mxu0 %v2232
        %2917 = vmatpush.xpose.msra.mxu0 %v2230
        %2918 = vmatmul.f32.gmra.mxu0 %v2894
        %v2919 = vpop.f32.mrf.mxu0
        %v2920 = vadd.f32 0.0, %v2919
        %2921 = vdwg.mxu0
        %2922 = vmatpush.xpose.msra.mxu0 %v2365
        %2923 = vmatpush.xpose.msra.mxu0 %v2363
        %2924 = vmatpush.xpose.msra.mxu0 %v2360
        %2925 = vmatpush.xpose.msra.mxu0 %v2358
        %2926 = vmatpush.xpose.msra.mxu0 %v2355
        %2927 = vmatpush.xpose.msra.mxu0 %v2353
        %2928 = vmatpush.xpose.msra.mxu0 %v2350
        %2929 = vmatpush.xpose.msra.mxu0 %v2348
        %2930 = vmatpush.xpose.msra.mxu0 %v2345
        %2931 = vmatpush.xpose.msra.mxu0 %v2343
        %2932 = vmatpush.xpose.msra.mxu0 %v2340
        %2933 = vmatpush.xpose.msra.mxu0 %v2338
        %2934 = vmatpush.xpose.msra.mxu0 %v2335
        %2935 = vmatpush.xpose.msra.mxu0 %v2333
        %2936 = vmatpush.xpose.msra.mxu0 %v2330
        %2937 = vmatpush.xpose.msra.mxu0 %v2328
        %2938 = vmatmul.f32.gmra.mxu0 %v2895
        %v2939 = vpop.f32.mrf.mxu0
        %v2940 = vadd.f32 %v2920, %v2939
        %2941 = vdwg.mxu0
        %2942 = vmatpush.xpose.msra.mxu0 %v2463
        %2943 = vmatpush.xpose.msra.mxu0 %v2461
        %2944 = vmatpush.xpose.msra.mxu0 %v2458
        %2945 = vmatpush.xpose.msra.mxu0 %v2456
        %2946 = vmatpush.xpose.msra.mxu0 %v2453
        %2947 = vmatpush.xpose.msra.mxu0 %v2451
        %2948 = vmatpush.xpose.msra.mxu0 %v2448
        %2949 = vmatpush.xpose.msra.mxu0 %v2446
        %2950 = vmatpush.xpose.msra.mxu0 %v2443
        %2951 = vmatpush.xpose.msra.mxu0 %v2441
        %2952 = vmatpush.xpose.msra.mxu0 %v2438
        %2953 = vmatpush.xpose.msra.mxu0 %v2436
        %2954 = vmatpush.xpose.msra.mxu0 %v2433
        %2955 = vmatpush.xpose.msra.mxu0 %v2431
        %2956 = vmatpush.xpose.msra.mxu0 %v2428
        %2957 = vmatpush.xpose.msra.mxu0 %v2426
        %2958 = vmatmul.f32.gmra.mxu0 %v2896
        %v2959 = vpop.f32.mrf.mxu0
        %v2960 = vadd.f32 %v2940, %v2959
        %2961 = vdwg.mxu0
        %2962 = vmatpush.xpose.msra.mxu0 %v2561
        %2963 = vmatpush.xpose.msra.mxu0 %v2559
        %2964 = vmatpush.xpose.msra.mxu0 %v2556
        %2965 = vmatpush.xpose.msra.mxu0 %v2554
        %2966 = vmatpush.xpose.msra.mxu0 %v2551
        %2967 = vmatpush.xpose.msra.mxu0 %v2549
        %2968 = vmatpush.xpose.msra.mxu0 %v2546
        %2969 = vmatpush.xpose.msra.mxu0 %v2544
        %2970 = vmatpush.xpose.msra.mxu0 %v2541
        %2971 = vmatpush.xpose.msra.mxu0 %v2539
        %2972 = vmatpush.xpose.msra.mxu0 %v2536
        %2973 = vmatpush.xpose.msra.mxu0 %v2534
        %2974 = vmatpush.xpose.msra.mxu0 %v2531
        %2975 = vmatpush.xpose.msra.mxu0 %v2529
        %2976 = vmatpush.xpose.msra.mxu0 %v2526
        %2977 = vmatpush.xpose.msra.mxu0 %v2524
        %2978 = vmatmul.f32.gmra.mxu0 %v2897
        %v2979 = vpop.f32.mrf.mxu0
        %v2980 = vadd.f32 %v2960, %v2979
        %2981 = vdwg.mxu0
        %v2982 = vpack.c.bf16 %v2328, %v2230
        %v2983 = vpack.c.bf16 %v2524, %v2426
        %v2984 = vpack.c.bf16 %v2330, %v2232
        %v2985 = vpack.c.bf16 %v2526, %v2428
        %v2986 = vpack.c.bf16 %v2333, %v2235
        %v2987 = vpack.c.bf16 %v2529, %v2431
        %v2988 = vpack.c.bf16 %v2335, %v2237
        %v2989 = vpack.c.bf16 %v2531, %v2433
        %v2990 = vpack.c.bf16 %v2338, %v2240
        %v2991 = vpack.c.bf16 %v2534, %v2436
        %v2992 = vpack.c.bf16 %v2340, %v2242
        %v2993 = vpack.c.bf16 %v2536, %v2438
        %v2994 = vpack.c.bf16 %v2343, %v2245
        %v2995 = vpack.c.bf16 %v2539, %v2441
        %v2996 = vpack.c.bf16 %v2345, %v2247
        %v2997 = vpack.c.bf16 %v2541, %v2443
        %v2998 = vpack.c.bf16 %v2348, %v2250
        %v2999 = vpack.c.bf16 %v2544, %v2446
        %v3000 = vpack.c.bf16 %v2350, %v2252
        %v3001 = vpack.c.bf16 %v2546, %v2448
        %v3002 = vpack.c.bf16 %v2353, %v2255
        %v3003 = vpack.c.bf16 %v2549, %v2451
        %v3004 = vpack.c.bf16 %v2355, %v2257
        %v3005 = vpack.c.bf16 %v2551, %v2453
        %v3006 = vpack.c.bf16 %v2358, %v2260
        %v3007 = vpack.c.bf16 %v2554, %v2456
        %v3008 = vpack.c.bf16 %v2360, %v2262
        %v3009 = vpack.c.bf16 %v2556, %v2458
        %v3010 = vpack.c.bf16 %v2363, %v2265
        %v3011 = vpack.c.bf16 %v2559, %v2461
        %v3012 = vpack.c.bf16 %v2365, %v2267
        %v3013 = vpack.c.bf16 %v2561, %v2463
        %3015 = vset.pattern.permute.xlu0 0
        %3016 = vperm.xlu0 %3015, %v2840
        %v3017 = vpop.permute.xlu0 %3016
        %3020 = vset.pattern.permute.xlu0 0
        %3021 = vperm.xlu0 %3020, %v2843
        %v3022 = vpop.permute.xlu0 %3021
        %3025 = vset.pattern.permute.xlu0 0
        %3026 = vperm.xlu0 %3025, %v2846
        %v3027 = vpop.permute.xlu0 %3026
        %3030 = vset.pattern.permute.xlu0 0
        %3031 = vperm.xlu0 %3030, %v2849
        %v3032 = vpop.permute.xlu0 %3031
        %3035 = vset.pattern.permute.xlu0 0
        %3036 = vperm.xlu0 %3035, %v2852
        %v3037 = vpop.permute.xlu0 %3036
        %3040 = vset.pattern.permute.xlu0 0
        %3041 = vperm.xlu0 %3040, %v2855
        %v3042 = vpop.permute.xlu0 %3041
        %3045 = vset.pattern.permute.xlu0 0
        %3046 = vperm.xlu0 %3045, %v2858
        %v3047 = vpop.permute.xlu0 %3046
        %3050 = vset.pattern.permute.xlu0 0
        %3051 = vperm.xlu0 %3050, %v2861
        %v3052 = vpop.permute.xlu0 %3051
        %3055 = vset.pattern.permute.xlu0 0
        %3056 = vperm.xlu0 %3055, %v2864
        %v3057 = vpop.permute.xlu0 %3056
        %3060 = vset.pattern.permute.xlu0 0
        %3061 = vperm.xlu0 %3060, %v2867
        %v3062 = vpop.permute.xlu0 %3061
        %3065 = vset.pattern.permute.xlu0 0
        %3066 = vperm.xlu0 %3065, %v2870
        %v3067 = vpop.permute.xlu0 %3066
        %3070 = vset.pattern.permute.xlu0 0
        %3071 = vperm.xlu0 %3070, %v2873
        %v3072 = vpop.permute.xlu0 %3071
        %3075 = vset.pattern.permute.xlu0 0
        %3076 = vperm.xlu0 %3075, %v2876
        %v3077 = vpop.permute.xlu0 %3076
        %3080 = vset.pattern.permute.xlu0 0
        %3081 = vperm.xlu0 %3080, %v2879
        %v3082 = vpop.permute.xlu0 %3081
        %3085 = vset.pattern.permute.xlu0 0
        %3086 = vperm.xlu0 %3085, %v2882
        %v3087 = vpop.permute.xlu0 %3086
        %3090 = vset.pattern.permute.xlu0 0
        %3091 = vperm.xlu0 %3090, %v2885
        %v3092 = vpop.permute.xlu0 %3091
        %v3094 = vperm.slane %v2980, 0
        %v3095 = vadd.f32 %v3017, %v3094
        %v3096 = vadd.f32 %v3022, %v3094
        %v3097 = vadd.f32 %v3027, %v3094
        %v3098 = vadd.f32 %v3032, %v3094
        %v3099 = vadd.f32 %v3037, %v3094
        %v3100 = vadd.f32 %v3042, %v3094
        %v3101 = vadd.f32 %v3047, %v3094
        %v3102 = vadd.f32 %v3052, %v3094
        %v3103 = vadd.f32 %v3057, %v3094
        %v3104 = vadd.f32 %v3062, %v3094
        %v3105 = vadd.f32 %v3067, %v3094
        %v3106 = vadd.f32 %v3072, %v3094
        %v3107 = vadd.f32 %v3077, %v3094
        %v3108 = vadd.f32 %v3082, %v3094
        %v3109 = vadd.f32 %v3087, %v3094
        %v3110 = vadd.f32 %v3092, %v3094
        %vm3111 = vcmp.gt.f32.partialorder %v3095, 0.0
        %vm3112 = vcmp.gt.f32.partialorder %v3096, 0.0
        %vm3113 = vcmp.gt.f32.partialorder %v3097, 0.0
        %vm3114 = vcmp.gt.f32.partialorder %v3098, 0.0
        %vm3115 = vcmp.gt.f32.partialorder %v3099, 0.0
        %vm3116 = vcmp.gt.f32.partialorder %v3100, 0.0
        %vm3117 = vcmp.gt.f32.partialorder %v3101, 0.0
        %vm3118 = vcmp.gt.f32.partialorder %v3102, 0.0
        %vm3119 = vcmp.gt.f32.partialorder %v3103, 0.0
        %vm3120 = vcmp.gt.f32.partialorder %v3104, 0.0
        %vm3121 = vcmp.gt.f32.partialorder %v3105, 0.0
        %vm3122 = vcmp.gt.f32.partialorder %v3106, 0.0
        %vm3123 = vcmp.gt.f32.partialorder %v3107, 0.0
        %vm3124 = vcmp.gt.f32.partialorder %v3108, 0.0
        %vm3125 = vcmp.gt.f32.partialorder %v3109, 0.0
        %vm3126 = vcmp.gt.f32.partialorder %v3110, 0.0
        %v3127 = vmul.f32 %v3095, 0.2
        %v3128 = vmul.f32 %v3096, 0.2
        %v3129 = vmul.f32 %v3097, 0.2
        %v3130 = vmul.f32 %v3098, 0.2
        %v3131 = vmul.f32 %v3099, 0.2
        %v3132 = vmul.f32 %v3100, 0.2
        %v3133 = vmul.f32 %v3101, 0.2
        %v3134 = vmul.f32 %v3102, 0.2
        %v3135 = vmul.f32 %v3103, 0.2
        %v3136 = vmul.f32 %v3104, 0.2
        %v3137 = vmul.f32 %v3105, 0.2
        %v3138 = vmul.f32 %v3106, 0.2
        %v3139 = vmul.f32 %v3107, 0.2
        %v3140 = vmul.f32 %v3108, 0.2
        %v3141 = vmul.f32 %v3109, 0.2
        %v3142 = vmul.f32 %v3110, 0.2
        %v3143 = vsel %vm3111, %v3095, %v3127
        %v3144 = vsel %vm3112, %v3096, %v3128
        %v3145 = vsel %vm3113, %v3097, %v3129
        %v3146 = vsel %vm3114, %v3098, %v3130
        %v3147 = vsel %vm3115, %v3099, %v3131
        %v3148 = vsel %vm3116, %v3100, %v3132
        %v3149 = vsel %vm3117, %v3101, %v3133
        %v3150 = vsel %vm3118, %v3102, %v3134
        %v3151 = vsel %vm3119, %v3103, %v3135
        %v3152 = vsel %vm3120, %v3104, %v3136
        %v3153 = vsel %vm3121, %v3105, %v3137
        %v3154 = vsel %vm3122, %v3106, %v3138
        %v3155 = vsel %vm3123, %v3107, %v3139
        %v3156 = vsel %vm3124, %v3108, %v3140
        %v3157 = vsel %vm3125, %v3109, %v3141
        %v3158 = vsel %vm3126, %v3110, %v3142
        %v3159 = vadd.f32 %v3143, %v1099
        %v3160 = vadd.f32 %v3144, %v1100
        %v3161 = vadd.f32 %v3145, %v1101
        %v3162 = vadd.f32 %v3146, %v1102
        %v3163 = vadd.f32 %v3147, %v1103
        %v3164 = vadd.f32 %v3148, %v1104
        %v3165 = vadd.f32 %v3149, %v1105
        %v3166 = vadd.f32 %v3150, %v1106
        %v3167 = vadd.f32 %v3151, %v1107
        %v3168 = vadd.f32 %v3152, %v1108
        %v3169 = vadd.f32 %v3153, %v1109
        %v3170 = vadd.f32 %v3154, %v1110
        %v3171 = vadd.f32 %v3155, %v1111
        %v3172 = vadd.f32 %v3156, %v1112
        %v3173 = vadd.f32 %v3157, %v1113
        %v3174 = vadd.f32 %v3158, %v1114
        %3175 = vmax.xlane.f32.xlu0 %v3159
        %v3176 = vpop.xlane.xlu0 %3175
        %3177 = vmax.xlane.f32.xlu0 %v3160
        %v3178 = vpop.xlane.xlu0 %3177
        %3179 = vmax.xlane.f32.xlu0 %v3161
        %v3180 = vpop.xlane.xlu0 %3179
        %3181 = vmax.xlane.f32.xlu0 %v3162
        %v3182 = vpop.xlane.xlu0 %3181
        %3183 = vmax.xlane.f32.xlu0 %v3163
        %v3184 = vpop.xlane.xlu0 %3183
        %3185 = vmax.xlane.f32.xlu0 %v3164
        %v3186 = vpop.xlane.xlu0 %3185
        %3187 = vmax.xlane.f32.xlu0 %v3165
        %v3188 = vpop.xlane.xlu0 %3187
        %3189 = vmax.xlane.f32.xlu0 %v3166
        %v3190 = vpop.xlane.xlu0 %3189
        %3191 = vmax.xlane.f32.xlu0 %v3167
        %v3192 = vpop.xlane.xlu0 %3191
        %3193 = vmax.xlane.f32.xlu0 %v3168
        %v3194 = vpop.xlane.xlu0 %3193
        %3195 = vmax.xlane.f32.xlu0 %v3169
        %v3196 = vpop.xlane.xlu0 %3195
        %3197 = vmax.xlane.f32.xlu0 %v3170
        %v3198 = vpop.xlane.xlu0 %3197
        %3199 = vmax.xlane.f32.xlu0 %v3171
        %v3200 = vpop.xlane.xlu0 %3199
        %3201 = vmax.xlane.f32.xlu0 %v3172
        %v3202 = vpop.xlane.xlu0 %3201
        %3203 = vmax.xlane.f32.xlu0 %v3173
        %v3204 = vpop.xlane.xlu0 %3203
        %3205 = vmax.xlane.f32.xlu0 %v3174
        %v3206 = vpop.xlane.xlu0 %3205
        %v3207 = vsub.f32 %v3159, %v3176
        %v3208 = vsub.f32 %v3160, %v3178
        %v3209 = vsub.f32 %v3161, %v3180
        %v3210 = vsub.f32 %v3162, %v3182
        %v3211 = vsub.f32 %v3163, %v3184
        %v3212 = vsub.f32 %v3164, %v3186
        %v3213 = vsub.f32 %v3165, %v3188
        %v3214 = vsub.f32 %v3166, %v3190
        %v3215 = vsub.f32 %v3167, %v3192
        %v3216 = vsub.f32 %v3168, %v3194
        %v3217 = vsub.f32 %v3169, %v3196
        %v3218 = vsub.f32 %v3170, %v3198
        %v3219 = vsub.f32 %v3171, %v3200
        %v3220 = vsub.f32 %v3172, %v3202
        %v3221 = vsub.f32 %v3173, %v3204
        %v3222 = vsub.f32 %v3174, %v3206
        %v3223 = vmul.f32 %v3207, 1.442695
        %v3224 = vpow.pop %v3223
        %v3225 = vmul.f32 %v3208, 1.442695
        %v3226 = vpow.pop %v3225
        %v3227 = vmul.f32 %v3209, 1.442695
        %v3228 = vpow.pop %v3227
        %v3229 = vmul.f32 %v3210, 1.442695
        %v3230 = vpow.pop %v3229
        %v3231 = vmul.f32 %v3211, 1.442695
        %v3232 = vpow.pop %v3231
        %v3233 = vmul.f32 %v3212, 1.442695
        %v3234 = vpow.pop %v3233
        %v3235 = vmul.f32 %v3213, 1.442695
        %v3236 = vpow.pop %v3235
        %v3237 = vmul.f32 %v3214, 1.442695
        %v3238 = vpow.pop %v3237
        %v3239 = vmul.f32 %v3215, 1.442695
        %v3240 = vpow.pop %v3239
        %v3241 = vmul.f32 %v3216, 1.442695
        %v3242 = vpow.pop %v3241
        %v3243 = vmul.f32 %v3217, 1.442695
        %v3244 = vpow.pop %v3243
        %v3245 = vmul.f32 %v3218, 1.442695
        %v3246 = vpow.pop %v3245
        %v3247 = vmul.f32 %v3219, 1.442695
        %v3248 = vpow.pop %v3247
        %v3249 = vmul.f32 %v3220, 1.442695
        %v3250 = vpow.pop %v3249
        %v3251 = vmul.f32 %v3221, 1.442695
        %v3252 = vpow.pop %v3251
        %v3253 = vmul.f32 %v3222, 1.442695
        %v3254 = vpow.pop %v3253
        %3255 = vadd.xlane.f32.xlu0 %v3224
        %v3256 = vpop.xlane.xlu0 %3255
        %3257 = vadd.xlane.f32.xlu0 %v3226
        %v3258 = vpop.xlane.xlu0 %3257
        %3259 = vadd.xlane.f32.xlu0 %v3228
        %v3260 = vpop.xlane.xlu0 %3259
        %3261 = vadd.xlane.f32.xlu0 %v3230
        %v3262 = vpop.xlane.xlu0 %3261
        %3263 = vadd.xlane.f32.xlu0 %v3232
        %v3264 = vpop.xlane.xlu0 %3263
        %3265 = vadd.xlane.f32.xlu0 %v3234
        %v3266 = vpop.xlane.xlu0 %3265
        %3267 = vadd.xlane.f32.xlu0 %v3236
        %v3268 = vpop.xlane.xlu0 %3267
        %3269 = vadd.xlane.f32.xlu0 %v3238
        %v3270 = vpop.xlane.xlu0 %3269
        %3271 = vadd.xlane.f32.xlu0 %v3240
        %v3272 = vpop.xlane.xlu0 %3271
        %3273 = vadd.xlane.f32.xlu0 %v3242
        %v3274 = vpop.xlane.xlu0 %3273
        %3275 = vadd.xlane.f32.xlu0 %v3244
        %v3276 = vpop.xlane.xlu0 %3275
        %3277 = vadd.xlane.f32.xlu0 %v3246
        %v3278 = vpop.xlane.xlu0 %3277
        %3279 = vadd.xlane.f32.xlu0 %v3248
        %v3280 = vpop.xlane.xlu0 %3279
        %3281 = vadd.xlane.f32.xlu0 %v3250
        %v3282 = vpop.xlane.xlu0 %3281
        %3283 = vadd.xlane.f32.xlu0 %v3252
        %v3284 = vpop.xlane.xlu0 %3283
        %3285 = vadd.xlane.f32.xlu0 %v3254
        %v3286 = vpop.xlane.xlu0 %3285
        %v3287 = vrcp.pop %v3256
        %v3288 = vrcp.pop %v3258
        %v3289 = vrcp.pop %v3260
        %v3290 = vrcp.pop %v3262
        %v3291 = vrcp.pop %v3264
        %v3292 = vrcp.pop %v3266
        %v3293 = vrcp.pop %v3268
        %v3294 = vrcp.pop %v3270
        %v3295 = vrcp.pop %v3272
        %v3296 = vrcp.pop %v3274
        %v3297 = vrcp.pop %v3276
        %v3298 = vrcp.pop %v3278
        %v3299 = vrcp.pop %v3280
        %v3300 = vrcp.pop %v3282
        %v3301 = vrcp.pop %v3284
        %v3302 = vrcp.pop %v3286
        %v3303 = vmul.f32 %v3224, %v3287
        %v3304 = vmul.f32 %v3226, %v3288
        %v3305 = vmul.f32 %v3228, %v3289
        %v3306 = vmul.f32 %v3230, %v3290
        %v3307 = vmul.f32 %v3232, %v3291
        %v3308 = vmul.f32 %v3234, %v3292
        %v3309 = vmul.f32 %v3236, %v3293
        %v3310 = vmul.f32 %v3238, %v3294
        %v3311 = vmul.f32 %v3240, %v3295
        %v3312 = vmul.f32 %v3242, %v3296
        %v3313 = vmul.f32 %v3244, %v3297
        %v3314 = vmul.f32 %v3246, %v3298
        %v3315 = vmul.f32 %v3248, %v3299
        %v3316 = vmul.f32 %v3250, %v3300
        %v3317 = vmul.f32 %v3252, %v3301
        %v3318 = vmul.f32 %v3254, %v3302
        %v3319 = vpack.c.bf16 %v3304, %v3303
        %v3320 = vpack.c.bf16 %v3306, %v3305
        %v3321 = vpack.c.bf16 %v3308, %v3307
        %v3322 = vpack.c.bf16 %v3310, %v3309
        %v3323 = vpack.c.bf16 %v3312, %v3311
        %v3324 = vpack.c.bf16 %v3314, %v3313
        %v3325 = vpack.c.bf16 %v3316, %v3315
        %v3326 = vpack.c.bf16 %v3318, %v3317
        %v3343 = vunpack.c.l.b16 %v2982
        %v3344 = vunpack.c.l.b16 %v2984
        %v3345 = vunpack.c.l.b16 %v2986
        %v3346 = vunpack.c.l.b16 %v2988
        %v3347 = vunpack.c.l.b16 %v2990
        %v3348 = vunpack.c.l.b16 %v2992
        %v3349 = vunpack.c.l.b16 %v2994
        %v3350 = vunpack.c.l.b16 %v2996
        %v3351 = vunpack.c.l.b16 %v2998
        %v3352 = vunpack.c.l.b16 %v3000
        %v3353 = vunpack.c.l.b16 %v3002
        %v3354 = vunpack.c.l.b16 %v3004
        %v3355 = vunpack.c.l.b16 %v3006
        %v3356 = vunpack.c.l.b16 %v3008
        %v3357 = vunpack.c.l.b16 %v3010
        %v3358 = vunpack.c.l.b16 %v3012
        %v3359 = vpack.c.b16 %v3344, %v3343
        %v3360 = vpack.c.b16 %v3346, %v3345
        %v3361 = vpack.c.b16 %v3348, %v3347
        %v3362 = vpack.c.b16 %v3350, %v3349
        %v3363 = vpack.c.b16 %v3352, %v3351
        %v3364 = vpack.c.b16 %v3354, %v3353
        %v3365 = vpack.c.b16 %v3356, %v3355
        %v3366 = vpack.c.b16 %v3358, %v3357
        %3375 = vmatpush.bf16.msra.mxu0 %v3366
        %3376 = vmatpush.bf16.msra.mxu0 %v3365
        %3377 = vmatpush.bf16.msra.mxu0 %v3364
        %3378 = vmatpush.bf16.msra.mxu0 %v3363
        %3379 = vmatpush.bf16.msra.mxu0 %v3362
        %3380 = vmatpush.bf16.msra.mxu0 %v3361
        %3381 = vmatpush.bf16.msra.mxu0 %v3360
        %3382 = vmatpush.bf16.msra.mxu0 %v3359
        %3383 = vmatmul.bf16.gmra.mxu0 %v3319
        %v3384 = vpop.f32.mrf.mxu0
        %v3385 = vadd.f32 0.0, %v3384
        %v3386 = vpop.f32.mrf.mxu0
        %v3387 = vadd.f32 0.0, %v3386
        %3388 = vmatmul.bf16.gmra.mxu0 %v3320
        %v3389 = vpop.f32.mrf.mxu0
        %v3390 = vadd.f32 0.0, %v3389
        %v3391 = vpop.f32.mrf.mxu0
        %v3392 = vadd.f32 0.0, %v3391
        %3393 = vmatmul.bf16.gmra.mxu0 %v3321
        %v3394 = vpop.f32.mrf.mxu0
        %v3395 = vadd.f32 0.0, %v3394
        %v3396 = vpop.f32.mrf.mxu0
        %v3397 = vadd.f32 0.0, %v3396
        %3398 = vmatmul.bf16.gmra.mxu0 %v3322
        %v3399 = vpop.f32.mrf.mxu0
        %v3400 = vadd.f32 0.0, %v3399
        %v3401 = vpop.f32.mrf.mxu0
        %v3402 = vadd.f32 0.0, %v3401
        %3403 = vmatmul.bf16.gmra.mxu0 %v3323
        %v3404 = vpop.f32.mrf.mxu0
        %v3405 = vadd.f32 0.0, %v3404
        %v3406 = vpop.f32.mrf.mxu0
        %v3407 = vadd.f32 0.0, %v3406
        %3408 = vmatmul.bf16.gmra.mxu0 %v3324
        %v3409 = vpop.f32.mrf.mxu0
        %v3410 = vadd.f32 0.0, %v3409
        %v3411 = vpop.f32.mrf.mxu0
        %v3412 = vadd.f32 0.0, %v3411
        %3413 = vmatmul.bf16.gmra.mxu0 %v3325
        %v3414 = vpop.f32.mrf.mxu0
        %v3415 = vadd.f32 0.0, %v3414
        %v3416 = vpop.f32.mrf.mxu0
        %v3417 = vadd.f32 0.0, %v3416
        %3418 = vmatmul.bf16.gmra.mxu0 %v3326
        %v3419 = vpop.f32.mrf.mxu0
        %v3420 = vadd.f32 0.0, %v3419
        %v3421 = vpop.f32.mrf.mxu0
        %v3422 = vadd.f32 0.0, %v3421
        %3423 = vdwg.mxu0
        %3424 = vset.pattern.permute.xlu0 1
        %3425 = vperm.xlu0 %3424, %v2840
        %v3426 = vpop.permute.xlu0 %3425
        %3428 = vset.pattern.permute.xlu0 1
        %3429 = vperm.xlu0 %3428, %v2843
        %v3430 = vpop.permute.xlu0 %3429
        %3432 = vset.pattern.permute.xlu0 1
        %3433 = vperm.xlu0 %3432, %v2846
        %v3434 = vpop.permute.xlu0 %3433
        %3436 = vset.pattern.permute.xlu0 1
        %3437 = vperm.xlu0 %3436, %v2849
        %v3438 = vpop.permute.xlu0 %3437
        %3440 = vset.pattern.permute.xlu0 1
        %3441 = vperm.xlu0 %3440, %v2852
        %v3442 = vpop.permute.xlu0 %3441
        %3444 = vset.pattern.permute.xlu0 1
        %3445 = vperm.xlu0 %3444, %v2855
        %v3446 = vpop.permute.xlu0 %3445
        %3448 = vset.pattern.permute.xlu0 1
        %3449 = vperm.xlu0 %3448, %v2858
        %v3450 = vpop.permute.xlu0 %3449
        %3452 = vset.pattern.permute.xlu0 1
        %3453 = vperm.xlu0 %3452, %v2861
        %v3454 = vpop.permute.xlu0 %3453
        %3456 = vset.pattern.permute.xlu0 1
        %3457 = vperm.xlu0 %3456, %v2864
        %v3458 = vpop.permute.xlu0 %3457
        %3460 = vset.pattern.permute.xlu0 1
        %3461 = vperm.xlu0 %3460, %v2867
        %v3462 = vpop.permute.xlu0 %3461
        %3464 = vset.pattern.permute.xlu0 1
        %3465 = vperm.xlu0 %3464, %v2870
        %v3466 = vpop.permute.xlu0 %3465
        %3468 = vset.pattern.permute.xlu0 1
        %3469 = vperm.xlu0 %3468, %v2873
        %v3470 = vpop.permute.xlu0 %3469
        %3472 = vset.pattern.permute.xlu0 1
        %3473 = vperm.xlu0 %3472, %v2876
        %v3474 = vpop.permute.xlu0 %3473
        %3476 = vset.pattern.permute.xlu0 1
        %3477 = vperm.xlu0 %3476, %v2879
        %v3478 = vpop.permute.xlu0 %3477
        %3480 = vset.pattern.permute.xlu0 1
        %3481 = vperm.xlu0 %3480, %v2882
        %v3482 = vpop.permute.xlu0 %3481
        %3484 = vset.pattern.permute.xlu0 1
        %3485 = vperm.xlu0 %3484, %v2885
        %v3486 = vpop.permute.xlu0 %3485
        %v3488 = vperm.slane %v2980, 1
        %v3489 = vadd.f32 %v3426, %v3488
        %v3490 = vadd.f32 %v3430, %v3488
        %v3491 = vadd.f32 %v3434, %v3488
        %v3492 = vadd.f32 %v3438, %v3488
        %v3493 = vadd.f32 %v3442, %v3488
        %v3494 = vadd.f32 %v3446, %v3488
        %v3495 = vadd.f32 %v3450, %v3488
        %v3496 = vadd.f32 %v3454, %v3488
        %v3497 = vadd.f32 %v3458, %v3488
        %v3498 = vadd.f32 %v3462, %v3488
        %v3499 = vadd.f32 %v3466, %v3488
        %v3500 = vadd.f32 %v3470, %v3488
        %v3501 = vadd.f32 %v3474, %v3488
        %v3502 = vadd.f32 %v3478, %v3488
        %v3503 = vadd.f32 %v3482, %v3488
        %v3504 = vadd.f32 %v3486, %v3488
        %vm3505 = vcmp.gt.f32.partialorder %v3489, 0.0
        %vm3506 = vcmp.gt.f32.partialorder %v3490, 0.0
        %vm3507 = vcmp.gt.f32.partialorder %v3491, 0.0
        %vm3508 = vcmp.gt.f32.partialorder %v3492, 0.0
        %vm3509 = vcmp.gt.f32.partialorder %v3493, 0.0
        %vm3510 = vcmp.gt.f32.partialorder %v3494, 0.0
        %vm3511 = vcmp.gt.f32.partialorder %v3495, 0.0
        %vm3512 = vcmp.gt.f32.partialorder %v3496, 0.0
        %vm3513 = vcmp.gt.f32.partialorder %v3497, 0.0
        %vm3514 = vcmp.gt.f32.partialorder %v3498, 0.0
        %vm3515 = vcmp.gt.f32.partialorder %v3499, 0.0
        %vm3516 = vcmp.gt.f32.partialorder %v3500, 0.0
        %vm3517 = vcmp.gt.f32.partialorder %v3501, 0.0
        %vm3518 = vcmp.gt.f32.partialorder %v3502, 0.0
        %vm3519 = vcmp.gt.f32.partialorder %v3503, 0.0
        %vm3520 = vcmp.gt.f32.partialorder %v3504, 0.0
        %v3521 = vmul.f32 %v3489, 0.2
        %v3522 = vmul.f32 %v3490, 0.2
        %v3523 = vmul.f32 %v3491, 0.2
        %v3524 = vmul.f32 %v3492, 0.2
        %v3525 = vmul.f32 %v3493, 0.2
        %v3526 = vmul.f32 %v3494, 0.2
        %v3527 = vmul.f32 %v3495, 0.2
        %v3528 = vmul.f32 %v3496, 0.2
        %v3529 = vmul.f32 %v3497, 0.2
        %v3530 = vmul.f32 %v3498, 0.2
        %v3531 = vmul.f32 %v3499, 0.2
        %v3532 = vmul.f32 %v3500, 0.2
        %v3533 = vmul.f32 %v3501, 0.2
        %v3534 = vmul.f32 %v3502, 0.2
        %v3535 = vmul.f32 %v3503, 0.2
        %v3536 = vmul.f32 %v3504, 0.2
        %v3537 = vsel %vm3505, %v3489, %v3521
        %v3538 = vsel %vm3506, %v3490, %v3522
        %v3539 = vsel %vm3507, %v3491, %v3523
        %v3540 = vsel %vm3508, %v3492, %v3524
        %v3541 = vsel %vm3509, %v3493, %v3525
        %v3542 = vsel %vm3510, %v3494, %v3526
        %v3543 = vsel %vm3511, %v3495, %v3527
        %v3544 = vsel %vm3512, %v3496, %v3528
        %v3545 = vsel %vm3513, %v3497, %v3529
        %v3546 = vsel %vm3514, %v3498, %v3530
        %v3547 = vsel %vm3515, %v3499, %v3531
        %v3548 = vsel %vm3516, %v3500, %v3532
        %v3549 = vsel %vm3517, %v3501, %v3533
        %v3550 = vsel %vm3518, %v3502, %v3534
        %v3551 = vsel %vm3519, %v3503, %v3535
        %v3552 = vsel %vm3520, %v3504, %v3536
        %v3553 = vadd.f32 %v3537, %v1099
        %v3554 = vadd.f32 %v3538, %v1100
        %v3555 = vadd.f32 %v3539, %v1101
        %v3556 = vadd.f32 %v3540, %v1102
        %v3557 = vadd.f32 %v3541, %v1103
        %v3558 = vadd.f32 %v3542, %v1104
        %v3559 = vadd.f32 %v3543, %v1105
        %v3560 = vadd.f32 %v3544, %v1106
        %v3561 = vadd.f32 %v3545, %v1107
        %v3562 = vadd.f32 %v3546, %v1108
        %v3563 = vadd.f32 %v3547, %v1109
        %v3564 = vadd.f32 %v3548, %v1110
        %v3565 = vadd.f32 %v3549, %v1111
        %v3566 = vadd.f32 %v3550, %v1112
        %v3567 = vadd.f32 %v3551, %v1113
        %v3568 = vadd.f32 %v3552, %v1114
        %3569 = vmax.xlane.f32.xlu0 %v3553
        %v3570 = vpop.xlane.xlu0 %3569
        %3571 = vmax.xlane.f32.xlu0 %v3554
        %v3572 = vpop.xlane.xlu0 %3571
        %3573 = vmax.xlane.f32.xlu0 %v3555
        %v3574 = vpop.xlane.xlu0 %3573
        %3575 = vmax.xlane.f32.xlu0 %v3556
        %v3576 = vpop.xlane.xlu0 %3575
        %3577 = vmax.xlane.f32.xlu0 %v3557
        %v3578 = vpop.xlane.xlu0 %3577
        %3579 = vmax.xlane.f32.xlu0 %v3558
        %v3580 = vpop.xlane.xlu0 %3579
        %3581 = vmax.xlane.f32.xlu0 %v3559
        %v3582 = vpop.xlane.xlu0 %3581
        %3583 = vmax.xlane.f32.xlu0 %v3560
        %v3584 = vpop.xlane.xlu0 %3583
        %3585 = vmax.xlane.f32.xlu0 %v3561
        %v3586 = vpop.xlane.xlu0 %3585
        %3587 = vmax.xlane.f32.xlu0 %v3562
        %v3588 = vpop.xlane.xlu0 %3587
        %3589 = vmax.xlane.f32.xlu0 %v3563
        %v3590 = vpop.xlane.xlu0 %3589
        %3591 = vmax.xlane.f32.xlu0 %v3564
        %v3592 = vpop.xlane.xlu0 %3591
        %3593 = vmax.xlane.f32.xlu0 %v3565
        %v3594 = vpop.xlane.xlu0 %3593
        %3595 = vmax.xlane.f32.xlu0 %v3566
        %v3596 = vpop.xlane.xlu0 %3595
        %3597 = vmax.xlane.f32.xlu0 %v3567
        %v3598 = vpop.xlane.xlu0 %3597
        %3599 = vmax.xlane.f32.xlu0 %v3568
        %v3600 = vpop.xlane.xlu0 %3599
        %v3601 = vsub.f32 %v3553, %v3570
        %v3602 = vsub.f32 %v3554, %v3572
        %v3603 = vsub.f32 %v3555, %v3574
        %v3604 = vsub.f32 %v3556, %v3576
        %v3605 = vsub.f32 %v3557, %v3578
        %v3606 = vsub.f32 %v3558, %v3580
        %v3607 = vsub.f32 %v3559, %v3582
        %v3608 = vsub.f32 %v3560, %v3584
        %v3609 = vsub.f32 %v3561, %v3586
        %v3610 = vsub.f32 %v3562, %v3588
        %v3611 = vsub.f32 %v3563, %v3590
        %v3612 = vsub.f32 %v3564, %v3592
        %v3613 = vsub.f32 %v3565, %v3594
        %v3614 = vsub.f32 %v3566, %v3596
        %v3615 = vsub.f32 %v3567, %v3598
        %v3616 = vsub.f32 %v3568, %v3600
        %v3617 = vmul.f32 %v3601, 1.442695
        %v3618 = vpow.pop %v3617
        %v3619 = vmul.f32 %v3602, 1.442695
        %v3620 = vpow.pop %v3619
        %v3621 = vmul.f32 %v3603, 1.442695
        %v3622 = vpow.pop %v3621
        %v3623 = vmul.f32 %v3604, 1.442695
        %v3624 = vpow.pop %v3623
        %v3625 = vmul.f32 %v3605, 1.442695
        %v3626 = vpow.pop %v3625
        %v3627 = vmul.f32 %v3606, 1.442695
        %v3628 = vpow.pop %v3627
        %v3629 = vmul.f32 %v3607, 1.442695
        %v3630 = vpow.pop %v3629
        %v3631 = vmul.f32 %v3608, 1.442695
        %v3632 = vpow.pop %v3631
        %v3633 = vmul.f32 %v3609, 1.442695
        %v3634 = vpow.pop %v3633
        %v3635 = vmul.f32 %v3610, 1.442695
        %v3636 = vpow.pop %v3635
        %v3637 = vmul.f32 %v3611, 1.442695
        %v3638 = vpow.pop %v3637
        %v3639 = vmul.f32 %v3612, 1.442695
        %v3640 = vpow.pop %v3639
        %v3641 = vmul.f32 %v3613, 1.442695
        %v3642 = vpow.pop %v3641
        %v3643 = vmul.f32 %v3614, 1.442695
        %v3644 = vpow.pop %v3643
        %v3645 = vmul.f32 %v3615, 1.442695
        %v3646 = vpow.pop %v3645
        %v3647 = vmul.f32 %v3616, 1.442695
        %v3648 = vpow.pop %v3647
        %3649 = vadd.xlane.f32.xlu0 %v3618
        %v3650 = vpop.xlane.xlu0 %3649
        %3651 = vadd.xlane.f32.xlu0 %v3620
        %v3652 = vpop.xlane.xlu0 %3651
        %3653 = vadd.xlane.f32.xlu0 %v3622
        %v3654 = vpop.xlane.xlu0 %3653
        %3655 = vadd.xlane.f32.xlu0 %v3624
        %v3656 = vpop.xlane.xlu0 %3655
        %3657 = vadd.xlane.f32.xlu0 %v3626
        %v3658 = vpop.xlane.xlu0 %3657
        %3659 = vadd.xlane.f32.xlu0 %v3628
        %v3660 = vpop.xlane.xlu0 %3659
        %3661 = vadd.xlane.f32.xlu0 %v3630
        %v3662 = vpop.xlane.xlu0 %3661
        %3663 = vadd.xlane.f32.xlu0 %v3632
        %v3664 = vpop.xlane.xlu0 %3663
        %3665 = vadd.xlane.f32.xlu0 %v3634
        %v3666 = vpop.xlane.xlu0 %3665
        %3667 = vadd.xlane.f32.xlu0 %v3636
        %v3668 = vpop.xlane.xlu0 %3667
        %3669 = vadd.xlane.f32.xlu0 %v3638
        %v3670 = vpop.xlane.xlu0 %3669
        %3671 = vadd.xlane.f32.xlu0 %v3640
        %v3672 = vpop.xlane.xlu0 %3671
        %3673 = vadd.xlane.f32.xlu0 %v3642
        %v3674 = vpop.xlane.xlu0 %3673
        %3675 = vadd.xlane.f32.xlu0 %v3644
        %v3676 = vpop.xlane.xlu0 %3675
        %3677 = vadd.xlane.f32.xlu0 %v3646
        %v3678 = vpop.xlane.xlu0 %3677
        %3679 = vadd.xlane.f32.xlu0 %v3648
        %v3680 = vpop.xlane.xlu0 %3679
        %v3681 = vrcp.pop %v3650
        %v3682 = vrcp.pop %v3652
        %v3683 = vrcp.pop %v3654
        %v3684 = vrcp.pop %v3656
        %v3685 = vrcp.pop %v3658
        %v3686 = vrcp.pop %v3660
        %v3687 = vrcp.pop %v3662
        %v3688 = vrcp.pop %v3664
        %v3689 = vrcp.pop %v3666
        %v3690 = vrcp.pop %v3668
        %v3691 = vrcp.pop %v3670
        %v3692 = vrcp.pop %v3672
        %v3693 = vrcp.pop %v3674
        %v3694 = vrcp.pop %v3676
        %v3695 = vrcp.pop %v3678
        %v3696 = vrcp.pop %v3680
        %v3697 = vmul.f32 %v3618, %v3681
        %v3698 = vmul.f32 %v3620, %v3682
        %v3699 = vmul.f32 %v3622, %v3683
        %v3700 = vmul.f32 %v3624, %v3684
        %v3701 = vmul.f32 %v3626, %v3685
        %v3702 = vmul.f32 %v3628, %v3686
        %v3703 = vmul.f32 %v3630, %v3687
        %v3704 = vmul.f32 %v3632, %v3688
        %v3705 = vmul.f32 %v3634, %v3689
        %v3706 = vmul.f32 %v3636, %v3690
        %v3707 = vmul.f32 %v3638, %v3691
        %v3708 = vmul.f32 %v3640, %v3692
        %v3709 = vmul.f32 %v3642, %v3693
        %v3710 = vmul.f32 %v3644, %v3694
        %v3711 = vmul.f32 %v3646, %v3695
        %v3712 = vmul.f32 %v3648, %v3696
        %v3713 = vpack.c.bf16 %v3698, %v3697
        %v3714 = vpack.c.bf16 %v3700, %v3699
        %v3715 = vpack.c.bf16 %v3702, %v3701
        %v3716 = vpack.c.bf16 %v3704, %v3703
        %v3717 = vpack.c.bf16 %v3706, %v3705
        %v3718 = vpack.c.bf16 %v3708, %v3707
        %v3719 = vpack.c.bf16 %v3710, %v3709
        %v3720 = vpack.c.bf16 %v3712, %v3711
        %v3721 = vunpack.c.h.b16 %v2982
        %v3722 = vunpack.c.h.b16 %v2984
        %v3723 = vunpack.c.h.b16 %v2986
        %v3724 = vunpack.c.h.b16 %v2988
        %v3725 = vunpack.c.h.b16 %v2990
        %v3726 = vunpack.c.h.b16 %v2992
        %v3727 = vunpack.c.h.b16 %v2994
        %v3728 = vunpack.c.h.b16 %v2996
        %v3729 = vunpack.c.h.b16 %v2998
        %v3730 = vunpack.c.h.b16 %v3000
        %v3731 = vunpack.c.h.b16 %v3002
        %v3732 = vunpack.c.h.b16 %v3004
        %v3733 = vunpack.c.h.b16 %v3006
        %v3734 = vunpack.c.h.b16 %v3008
        %v3735 = vunpack.c.h.b16 %v3010
        %v3736 = vunpack.c.h.b16 %v3012
        %v3737 = vpack.c.b16 %v3722, %v3721
        %v3738 = vpack.c.b16 %v3724, %v3723
        %v3739 = vpack.c.b16 %v3726, %v3725
        %v3740 = vpack.c.b16 %v3728, %v3727
        %v3741 = vpack.c.b16 %v3730, %v3729
        %v3742 = vpack.c.b16 %v3732, %v3731
        %v3743 = vpack.c.b16 %v3734, %v3733
        %v3744 = vpack.c.b16 %v3736, %v3735
        %3753 = vmatpush.bf16.msra.mxu0 %v3744
        %3754 = vmatpush.bf16.msra.mxu0 %v3743
        %3755 = vmatpush.bf16.msra.mxu0 %v3742
        %3756 = vmatpush.bf16.msra.mxu0 %v3741
        %3757 = vmatpush.bf16.msra.mxu0 %v3740
        %3758 = vmatpush.bf16.msra.mxu0 %v3739
        %3759 = vmatpush.bf16.msra.mxu0 %v3738
        %3760 = vmatpush.bf16.msra.mxu0 %v3737
        %3761 = vmatmul.bf16.gmra.mxu0 %v3713
        %v3762 = vpop.f32.mrf.mxu0
        %v3763 = vadd.f32 0.0, %v3762
        %v3764 = vpop.f32.mrf.mxu0
        %v3765 = vadd.f32 0.0, %v3764
        %3766 = vmatmul.bf16.gmra.mxu0 %v3714
        %v3767 = vpop.f32.mrf.mxu0
        %v3768 = vadd.f32 0.0, %v3767
        %v3769 = vpop.f32.mrf.mxu0
        %v3770 = vadd.f32 0.0, %v3769
        %3771 = vmatmul.bf16.gmra.mxu0 %v3715
        %v3772 = vpop.f32.mrf.mxu0
        %v3773 = vadd.f32 0.0, %v3772
        %v3774 = vpop.f32.mrf.mxu0
        %v3775 = vadd.f32 0.0, %v3774
        %3776 = vmatmul.bf16.gmra.mxu0 %v3716
        %v3777 = vpop.f32.mrf.mxu0
        %v3778 = vadd.f32 0.0, %v3777
        %v3779 = vpop.f32.mrf.mxu0
        %v3780 = vadd.f32 0.0, %v3779
        %3781 = vmatmul.bf16.gmra.mxu0 %v3717
        %v3782 = vpop.f32.mrf.mxu0
        %v3783 = vadd.f32 0.0, %v3782
        %v3784 = vpop.f32.mrf.mxu0
        %v3785 = vadd.f32 0.0, %v3784
        %3786 = vmatmul.bf16.gmra.mxu0 %v3718
        %v3787 = vpop.f32.mrf.mxu0
        %v3788 = vadd.f32 0.0, %v3787
        %v3789 = vpop.f32.mrf.mxu0
        %v3790 = vadd.f32 0.0, %v3789
        %3791 = vmatmul.bf16.gmra.mxu0 %v3719
        %v3792 = vpop.f32.mrf.mxu0
        %v3793 = vadd.f32 0.0, %v3792
        %v3794 = vpop.f32.mrf.mxu0
        %v3795 = vadd.f32 0.0, %v3794
        %3796 = vmatmul.bf16.gmra.mxu0 %v3720
        %v3797 = vpop.f32.mrf.mxu0
        %v3798 = vadd.f32 0.0, %v3797
        %v3799 = vpop.f32.mrf.mxu0
        %v3800 = vadd.f32 0.0, %v3799
        %3801 = vdwg.mxu0
        %3802 = vset.pattern.permute.xlu0 2
        %3803 = vperm.xlu0 %3802, %v2840
        %v3804 = vpop.permute.xlu0 %3803
        %3806 = vset.pattern.permute.xlu0 2
        %3807 = vperm.xlu0 %3806, %v2843
        %v3808 = vpop.permute.xlu0 %3807
        %3810 = vset.pattern.permute.xlu0 2
        %3811 = vperm.xlu0 %3810, %v2846
        %v3812 = vpop.permute.xlu0 %3811
        %3814 = vset.pattern.permute.xlu0 2
        %3815 = vperm.xlu0 %3814, %v2849
        %v3816 = vpop.permute.xlu0 %3815
        %3818 = vset.pattern.permute.xlu0 2
        %3819 = vperm.xlu0 %3818, %v2852
        %v3820 = vpop.permute.xlu0 %3819
        %3822 = vset.pattern.permute.xlu0 2
        %3823 = vperm.xlu0 %3822, %v2855
        %v3824 = vpop.permute.xlu0 %3823
        %3826 = vset.pattern.permute.xlu0 2
        %3827 = vperm.xlu0 %3826, %v2858
        %v3828 = vpop.permute.xlu0 %3827
        %3830 = vset.pattern.permute.xlu0 2
        %3831 = vperm.xlu0 %3830, %v2861
        %v3832 = vpop.permute.xlu0 %3831
        %3834 = vset.pattern.permute.xlu0 2
        %3835 = vperm.xlu0 %3834, %v2864
        %v3836 = vpop.permute.xlu0 %3835
        %3838 = vset.pattern.permute.xlu0 2
        %3839 = vperm.xlu0 %3838, %v2867
        %v3840 = vpop.permute.xlu0 %3839
        %3842 = vset.pattern.permute.xlu0 2
        %3843 = vperm.xlu0 %3842, %v2870
        %v3844 = vpop.permute.xlu0 %3843
        %3846 = vset.pattern.permute.xlu0 2
        %3847 = vperm.xlu0 %3846, %v2873
        %v3848 = vpop.permute.xlu0 %3847
        %3850 = vset.pattern.permute.xlu0 2
        %3851 = vperm.xlu0 %3850, %v2876
        %v3852 = vpop.permute.xlu0 %3851
        %3854 = vset.pattern.permute.xlu0 2
        %3855 = vperm.xlu0 %3854, %v2879
        %v3856 = vpop.permute.xlu0 %3855
        %3858 = vset.pattern.permute.xlu0 2
        %3859 = vperm.xlu0 %3858, %v2882
        %v3860 = vpop.permute.xlu0 %3859
        %3862 = vset.pattern.permute.xlu0 2
        %3863 = vperm.xlu0 %3862, %v2885
        %v3864 = vpop.permute.xlu0 %3863
        %v3866 = vperm.slane %v2980, 2
        %v3867 = vadd.f32 %v3804, %v3866
        %v3868 = vadd.f32 %v3808, %v3866
        %v3869 = vadd.f32 %v3812, %v3866
        %v3870 = vadd.f32 %v3816, %v3866
        %v3871 = vadd.f32 %v3820, %v3866
        %v3872 = vadd.f32 %v3824, %v3866
        %v3873 = vadd.f32 %v3828, %v3866
        %v3874 = vadd.f32 %v3832, %v3866
        %v3875 = vadd.f32 %v3836, %v3866
        %v3876 = vadd.f32 %v3840, %v3866
        %v3877 = vadd.f32 %v3844, %v3866
        %v3878 = vadd.f32 %v3848, %v3866
        %v3879 = vadd.f32 %v3852, %v3866
        %v3880 = vadd.f32 %v3856, %v3866
        %v3881 = vadd.f32 %v3860, %v3866
        %v3882 = vadd.f32 %v3864, %v3866
        %vm3883 = vcmp.gt.f32.partialorder %v3867, 0.0
        %vm3884 = vcmp.gt.f32.partialorder %v3868, 0.0
        %vm3885 = vcmp.gt.f32.partialorder %v3869, 0.0
        %vm3886 = vcmp.gt.f32.partialorder %v3870, 0.0
        %vm3887 = vcmp.gt.f32.partialorder %v3871, 0.0
        %vm3888 = vcmp.gt.f32.partialorder %v3872, 0.0
        %vm3889 = vcmp.gt.f32.partialorder %v3873, 0.0
        %vm3890 = vcmp.gt.f32.partialorder %v3874, 0.0
        %vm3891 = vcmp.gt.f32.partialorder %v3875, 0.0
        %vm3892 = vcmp.gt.f32.partialorder %v3876, 0.0
        %vm3893 = vcmp.gt.f32.partialorder %v3877, 0.0
        %vm3894 = vcmp.gt.f32.partialorder %v3878, 0.0
        %vm3895 = vcmp.gt.f32.partialorder %v3879, 0.0
        %vm3896 = vcmp.gt.f32.partialorder %v3880, 0.0
        %vm3897 = vcmp.gt.f32.partialorder %v3881, 0.0
        %vm3898 = vcmp.gt.f32.partialorder %v3882, 0.0
        %v3899 = vmul.f32 %v3867, 0.2
        %v3900 = vmul.f32 %v3868, 0.2
        %v3901 = vmul.f32 %v3869, 0.2
        %v3902 = vmul.f32 %v3870, 0.2
        %v3903 = vmul.f32 %v3871, 0.2
        %v3904 = vmul.f32 %v3872, 0.2
        %v3905 = vmul.f32 %v3873, 0.2
        %v3906 = vmul.f32 %v3874, 0.2
        %v3907 = vmul.f32 %v3875, 0.2
        %v3908 = vmul.f32 %v3876, 0.2
        %v3909 = vmul.f32 %v3877, 0.2
        %v3910 = vmul.f32 %v3878, 0.2
        %v3911 = vmul.f32 %v3879, 0.2
        %v3912 = vmul.f32 %v3880, 0.2
        %v3913 = vmul.f32 %v3881, 0.2
        %v3914 = vmul.f32 %v3882, 0.2
        %v3915 = vsel %vm3883, %v3867, %v3899
        %v3916 = vsel %vm3884, %v3868, %v3900
        %v3917 = vsel %vm3885, %v3869, %v3901
        %v3918 = vsel %vm3886, %v3870, %v3902
        %v3919 = vsel %vm3887, %v3871, %v3903
        %v3920 = vsel %vm3888, %v3872, %v3904
        %v3921 = vsel %vm3889, %v3873, %v3905
        %v3922 = vsel %vm3890, %v3874, %v3906
        %v3923 = vsel %vm3891, %v3875, %v3907
        %v3924 = vsel %vm3892, %v3876, %v3908
        %v3925 = vsel %vm3893, %v3877, %v3909
        %v3926 = vsel %vm3894, %v3878, %v3910
        %v3927 = vsel %vm3895, %v3879, %v3911
        %v3928 = vsel %vm3896, %v3880, %v3912
        %v3929 = vsel %vm3897, %v3881, %v3913
        %v3930 = vsel %vm3898, %v3882, %v3914
        %v3931 = vadd.f32 %v3915, %v1099
        %v3932 = vadd.f32 %v3916, %v1100
        %v3933 = vadd.f32 %v3917, %v1101
        %v3934 = vadd.f32 %v3918, %v1102
        %v3935 = vadd.f32 %v3919, %v1103
        %v3936 = vadd.f32 %v3920, %v1104
        %v3937 = vadd.f32 %v3921, %v1105
        %v3938 = vadd.f32 %v3922, %v1106
        %v3939 = vadd.f32 %v3923, %v1107
        %v3940 = vadd.f32 %v3924, %v1108
        %v3941 = vadd.f32 %v3925, %v1109
        %v3942 = vadd.f32 %v3926, %v1110
        %v3943 = vadd.f32 %v3927, %v1111
        %v3944 = vadd.f32 %v3928, %v1112
        %v3945 = vadd.f32 %v3929, %v1113
        %v3946 = vadd.f32 %v3930, %v1114
        %3947 = vmax.xlane.f32.xlu0 %v3931
        %v3948 = vpop.xlane.xlu0 %3947
        %3949 = vmax.xlane.f32.xlu0 %v3932
        %v3950 = vpop.xlane.xlu0 %3949
        %3951 = vmax.xlane.f32.xlu0 %v3933
        %v3952 = vpop.xlane.xlu0 %3951
        %3953 = vmax.xlane.f32.xlu0 %v3934
        %v3954 = vpop.xlane.xlu0 %3953
        %3955 = vmax.xlane.f32.xlu0 %v3935
        %v3956 = vpop.xlane.xlu0 %3955
        %3957 = vmax.xlane.f32.xlu0 %v3936
        %v3958 = vpop.xlane.xlu0 %3957
        %3959 = vmax.xlane.f32.xlu0 %v3937
        %v3960 = vpop.xlane.xlu0 %3959
        %3961 = vmax.xlane.f32.xlu0 %v3938
        %v3962 = vpop.xlane.xlu0 %3961
        %3963 = vmax.xlane.f32.xlu0 %v3939
        %v3964 = vpop.xlane.xlu0 %3963
        %3965 = vmax.xlane.f32.xlu0 %v3940
        %v3966 = vpop.xlane.xlu0 %3965
        %3967 = vmax.xlane.f32.xlu0 %v3941
        %v3968 = vpop.xlane.xlu0 %3967
        %3969 = vmax.xlane.f32.xlu0 %v3942
        %v3970 = vpop.xlane.xlu0 %3969
        %3971 = vmax.xlane.f32.xlu0 %v3943
        %v3972 = vpop.xlane.xlu0 %3971
        %3973 = vmax.xlane.f32.xlu0 %v3944
        %v3974 = vpop.xlane.xlu0 %3973
        %3975 = vmax.xlane.f32.xlu0 %v3945
        %v3976 = vpop.xlane.xlu0 %3975
        %3977 = vmax.xlane.f32.xlu0 %v3946
        %v3978 = vpop.xlane.xlu0 %3977
        %v3979 = vsub.f32 %v3931, %v3948
        %v3980 = vsub.f32 %v3932, %v3950
        %v3981 = vsub.f32 %v3933, %v3952
        %v3982 = vsub.f32 %v3934, %v3954
        %v3983 = vsub.f32 %v3935, %v3956
        %v3984 = vsub.f32 %v3936, %v3958
        %v3985 = vsub.f32 %v3937, %v3960
        %v3986 = vsub.f32 %v3938, %v3962
        %v3987 = vsub.f32 %v3939, %v3964
        %v3988 = vsub.f32 %v3940, %v3966
        %v3989 = vsub.f32 %v3941, %v3968
        %v3990 = vsub.f32 %v3942, %v3970
        %v3991 = vsub.f32 %v3943, %v3972
        %v3992 = vsub.f32 %v3944, %v3974
        %v3993 = vsub.f32 %v3945, %v3976
        %v3994 = vsub.f32 %v3946, %v3978
        %v3995 = vmul.f32 %v3979, 1.442695
        %v3996 = vpow.pop %v3995
        %v3997 = vmul.f32 %v3980, 1.442695
        %v3998 = vpow.pop %v3997
        %v3999 = vmul.f32 %v3981, 1.442695
        %v4000 = vpow.pop %v3999
        %v4001 = vmul.f32 %v3982, 1.442695
        %v4002 = vpow.pop %v4001
        %v4003 = vmul.f32 %v3983, 1.442695
        %v4004 = vpow.pop %v4003
        %v4005 = vmul.f32 %v3984, 1.442695
        %v4006 = vpow.pop %v4005
        %v4007 = vmul.f32 %v3985, 1.442695
        %v4008 = vpow.pop %v4007
        %v4009 = vmul.f32 %v3986, 1.442695
        %v4010 = vpow.pop %v4009
        %v4011 = vmul.f32 %v3987, 1.442695
        %v4012 = vpow.pop %v4011
        %v4013 = vmul.f32 %v3988, 1.442695
        %v4014 = vpow.pop %v4013
        %v4015 = vmul.f32 %v3989, 1.442695
        %v4016 = vpow.pop %v4015
        %v4017 = vmul.f32 %v3990, 1.442695
        %v4018 = vpow.pop %v4017
        %v4019 = vmul.f32 %v3991, 1.442695
        %v4020 = vpow.pop %v4019
        %v4021 = vmul.f32 %v3992, 1.442695
        %v4022 = vpow.pop %v4021
        %v4023 = vmul.f32 %v3993, 1.442695
        %v4024 = vpow.pop %v4023
        %v4025 = vmul.f32 %v3994, 1.442695
        %v4026 = vpow.pop %v4025
        %4027 = vadd.xlane.f32.xlu0 %v3996
        %v4028 = vpop.xlane.xlu0 %4027
        %4029 = vadd.xlane.f32.xlu0 %v3998
        %v4030 = vpop.xlane.xlu0 %4029
        %4031 = vadd.xlane.f32.xlu0 %v4000
        %v4032 = vpop.xlane.xlu0 %4031
        %4033 = vadd.xlane.f32.xlu0 %v4002
        %v4034 = vpop.xlane.xlu0 %4033
        %4035 = vadd.xlane.f32.xlu0 %v4004
        %v4036 = vpop.xlane.xlu0 %4035
        %4037 = vadd.xlane.f32.xlu0 %v4006
        %v4038 = vpop.xlane.xlu0 %4037
        %4039 = vadd.xlane.f32.xlu0 %v4008
        %v4040 = vpop.xlane.xlu0 %4039
        %4041 = vadd.xlane.f32.xlu0 %v4010
        %v4042 = vpop.xlane.xlu0 %4041
        %4043 = vadd.xlane.f32.xlu0 %v4012
        %v4044 = vpop.xlane.xlu0 %4043
        %4045 = vadd.xlane.f32.xlu0 %v4014
        %v4046 = vpop.xlane.xlu0 %4045
        %4047 = vadd.xlane.f32.xlu0 %v4016
        %v4048 = vpop.xlane.xlu0 %4047
        %4049 = vadd.xlane.f32.xlu0 %v4018
        %v4050 = vpop.xlane.xlu0 %4049
        %4051 = vadd.xlane.f32.xlu0 %v4020
        %v4052 = vpop.xlane.xlu0 %4051
        %4053 = vadd.xlane.f32.xlu0 %v4022
        %v4054 = vpop.xlane.xlu0 %4053
        %4055 = vadd.xlane.f32.xlu0 %v4024
        %v4056 = vpop.xlane.xlu0 %4055
        %4057 = vadd.xlane.f32.xlu0 %v4026
        %v4058 = vpop.xlane.xlu0 %4057
        %v4059 = vrcp.pop %v4028
        %v4060 = vrcp.pop %v4030
        %v4061 = vrcp.pop %v4032
        %v4062 = vrcp.pop %v4034
        %v4063 = vrcp.pop %v4036
        %v4064 = vrcp.pop %v4038
        %v4065 = vrcp.pop %v4040
        %v4066 = vrcp.pop %v4042
        %v4067 = vrcp.pop %v4044
        %v4068 = vrcp.pop %v4046
        %v4069 = vrcp.pop %v4048
        %v4070 = vrcp.pop %v4050
        %v4071 = vrcp.pop %v4052
        %v4072 = vrcp.pop %v4054
        %v4073 = vrcp.pop %v4056
        %v4074 = vrcp.pop %v4058
        %v4075 = vmul.f32 %v3996, %v4059
        %v4076 = vmul.f32 %v3998, %v4060
        %v4077 = vmul.f32 %v4000, %v4061
        %v4078 = vmul.f32 %v4002, %v4062
        %v4079 = vmul.f32 %v4004, %v4063
        %v4080 = vmul.f32 %v4006, %v4064
        %v4081 = vmul.f32 %v4008, %v4065
        %v4082 = vmul.f32 %v4010, %v4066
        %v4083 = vmul.f32 %v4012, %v4067
        %v4084 = vmul.f32 %v4014, %v4068
        %v4085 = vmul.f32 %v4016, %v4069
        %v4086 = vmul.f32 %v4018, %v4070
        %v4087 = vmul.f32 %v4020, %v4071
        %v4088 = vmul.f32 %v4022, %v4072
        %v4089 = vmul.f32 %v4024, %v4073
        %v4090 = vmul.f32 %v4026, %v4074
        %v4091 = vpack.c.bf16 %v4076, %v4075
        %v4092 = vpack.c.bf16 %v4078, %v4077
        %v4093 = vpack.c.bf16 %v4080, %v4079
        %v4094 = vpack.c.bf16 %v4082, %v4081
        %v4095 = vpack.c.bf16 %v4084, %v4083
        %v4096 = vpack.c.bf16 %v4086, %v4085
        %v4097 = vpack.c.bf16 %v4088, %v4087
        %v4098 = vpack.c.bf16 %v4090, %v4089
        %v4115 = vunpack.c.l.b16 %v2983
        %v4116 = vunpack.c.l.b16 %v2985
        %v4117 = vunpack.c.l.b16 %v2987
        %v4118 = vunpack.c.l.b16 %v2989
        %v4119 = vunpack.c.l.b16 %v2991
        %v4120 = vunpack.c.l.b16 %v2993
        %v4121 = vunpack.c.l.b16 %v2995
        %v4122 = vunpack.c.l.b16 %v2997
        %v4123 = vunpack.c.l.b16 %v2999
        %v4124 = vunpack.c.l.b16 %v3001
        %v4125 = vunpack.c.l.b16 %v3003
        %v4126 = vunpack.c.l.b16 %v3005
        %v4127 = vunpack.c.l.b16 %v3007
        %v4128 = vunpack.c.l.b16 %v3009
        %v4129 = vunpack.c.l.b16 %v3011
        %v4130 = vunpack.c.l.b16 %v3013
        %v4131 = vpack.c.b16 %v4116, %v4115
        %v4132 = vpack.c.b16 %v4118, %v4117
        %v4133 = vpack.c.b16 %v4120, %v4119
        %v4134 = vpack.c.b16 %v4122, %v4121
        %v4135 = vpack.c.b16 %v4124, %v4123
        %v4136 = vpack.c.b16 %v4126, %v4125
        %v4137 = vpack.c.b16 %v4128, %v4127
        %v4138 = vpack.c.b16 %v4130, %v4129
        %4147 = vmatpush.bf16.msra.mxu0 %v4138
        %4148 = vmatpush.bf16.msra.mxu0 %v4137
        %4149 = vmatpush.bf16.msra.mxu0 %v4136
        %4150 = vmatpush.bf16.msra.mxu0 %v4135
        %4151 = vmatpush.bf16.msra.mxu0 %v4134
        %4152 = vmatpush.bf16.msra.mxu0 %v4133
        %4153 = vmatpush.bf16.msra.mxu0 %v4132
        %4154 = vmatpush.bf16.msra.mxu0 %v4131
        %4155 = vmatmul.bf16.gmra.mxu0 %v4091
        %v4156 = vpop.f32.mrf.mxu0
        %v4157 = vadd.f32 0.0, %v4156
        %v4158 = vpop.f32.mrf.mxu0
        %v4159 = vadd.f32 0.0, %v4158
        %4160 = vmatmul.bf16.gmra.mxu0 %v4092
        %v4161 = vpop.f32.mrf.mxu0
        %v4162 = vadd.f32 0.0, %v4161
        %v4163 = vpop.f32.mrf.mxu0
        %v4164 = vadd.f32 0.0, %v4163
        %4165 = vmatmul.bf16.gmra.mxu0 %v4093
        %v4166 = vpop.f32.mrf.mxu0
        %v4167 = vadd.f32 0.0, %v4166
        %v4168 = vpop.f32.mrf.mxu0
        %v4169 = vadd.f32 0.0, %v4168
        %4170 = vmatmul.bf16.gmra.mxu0 %v4094
        %v4171 = vpop.f32.mrf.mxu0
        %v4172 = vadd.f32 0.0, %v4171
        %v4173 = vpop.f32.mrf.mxu0
        %v4174 = vadd.f32 0.0, %v4173
        %4175 = vmatmul.bf16.gmra.mxu0 %v4095
        %v4176 = vpop.f32.mrf.mxu0
        %v4177 = vadd.f32 0.0, %v4176
        %v4178 = vpop.f32.mrf.mxu0
        %v4179 = vadd.f32 0.0, %v4178
        %4180 = vmatmul.bf16.gmra.mxu0 %v4096
        %v4181 = vpop.f32.mrf.mxu0
        %v4182 = vadd.f32 0.0, %v4181
        %v4183 = vpop.f32.mrf.mxu0
        %v4184 = vadd.f32 0.0, %v4183
        %4185 = vmatmul.bf16.gmra.mxu0 %v4097
        %v4186 = vpop.f32.mrf.mxu0
        %v4187 = vadd.f32 0.0, %v4186
        %v4188 = vpop.f32.mrf.mxu0
        %v4189 = vadd.f32 0.0, %v4188
        %4190 = vmatmul.bf16.gmra.mxu0 %v4098
        %v4191 = vpop.f32.mrf.mxu0
        %v4192 = vadd.f32 0.0, %v4191
        %v4193 = vpop.f32.mrf.mxu0
        %v4194 = vadd.f32 0.0, %v4193
        %4195 = vdwg.mxu0
        %4196 = vset.pattern.permute.xlu0 3
        %4197 = vperm.xlu0 %4196, %v2840
        %v4198 = vpop.permute.xlu0 %4197
        %4200 = vset.pattern.permute.xlu0 3
        %4201 = vperm.xlu0 %4200, %v2843
        %v4202 = vpop.permute.xlu0 %4201
        %4204 = vset.pattern.permute.xlu0 3
        %4205 = vperm.xlu0 %4204, %v2846
        %v4206 = vpop.permute.xlu0 %4205
        %4208 = vset.pattern.permute.xlu0 3
        %4209 = vperm.xlu0 %4208, %v2849
        %v4210 = vpop.permute.xlu0 %4209
        %4212 = vset.pattern.permute.xlu0 3
        %4213 = vperm.xlu0 %4212, %v2852
        %v4214 = vpop.permute.xlu0 %4213
        %4216 = vset.pattern.permute.xlu0 3
        %4217 = vperm.xlu0 %4216, %v2855
        %v4218 = vpop.permute.xlu0 %4217
        %4220 = vset.pattern.permute.xlu0 3
        %4221 = vperm.xlu0 %4220, %v2858
        %v4222 = vpop.permute.xlu0 %4221
        %4224 = vset.pattern.permute.xlu0 3
        %4225 = vperm.xlu0 %4224, %v2861
        %v4226 = vpop.permute.xlu0 %4225
        %4228 = vset.pattern.permute.xlu0 3
        %4229 = vperm.xlu0 %4228, %v2864
        %v4230 = vpop.permute.xlu0 %4229
        %4232 = vset.pattern.permute.xlu0 3
        %4233 = vperm.xlu0 %4232, %v2867
        %v4234 = vpop.permute.xlu0 %4233
        %4236 = vset.pattern.permute.xlu0 3
        %4237 = vperm.xlu0 %4236, %v2870
        %v4238 = vpop.permute.xlu0 %4237
        %4240 = vset.pattern.permute.xlu0 3
        %4241 = vperm.xlu0 %4240, %v2873
        %v4242 = vpop.permute.xlu0 %4241
        %4244 = vset.pattern.permute.xlu0 3
        %4245 = vperm.xlu0 %4244, %v2876
        %v4246 = vpop.permute.xlu0 %4245
        %4248 = vset.pattern.permute.xlu0 3
        %4249 = vperm.xlu0 %4248, %v2879
        %v4250 = vpop.permute.xlu0 %4249
        %4252 = vset.pattern.permute.xlu0 3
        %4253 = vperm.xlu0 %4252, %v2882
        %v4254 = vpop.permute.xlu0 %4253
        %4256 = vset.pattern.permute.xlu0 3
        %4257 = vperm.xlu0 %4256, %v2885
        %v4258 = vpop.permute.xlu0 %4257
        %v4260 = vperm.slane %v2980, 3
        %v4261 = vadd.f32 %v4198, %v4260
        %v4262 = vadd.f32 %v4202, %v4260
        %v4263 = vadd.f32 %v4206, %v4260
        %v4264 = vadd.f32 %v4210, %v4260
        %v4265 = vadd.f32 %v4214, %v4260
        %v4266 = vadd.f32 %v4218, %v4260
        %v4267 = vadd.f32 %v4222, %v4260
        %v4268 = vadd.f32 %v4226, %v4260
        %v4269 = vadd.f32 %v4230, %v4260
        %v4270 = vadd.f32 %v4234, %v4260
        %v4271 = vadd.f32 %v4238, %v4260
        %v4272 = vadd.f32 %v4242, %v4260
        %v4273 = vadd.f32 %v4246, %v4260
        %v4274 = vadd.f32 %v4250, %v4260
        %v4275 = vadd.f32 %v4254, %v4260
        %v4276 = vadd.f32 %v4258, %v4260
        %vm4277 = vcmp.gt.f32.partialorder %v4261, 0.0
        %vm4278 = vcmp.gt.f32.partialorder %v4262, 0.0
        %vm4279 = vcmp.gt.f32.partialorder %v4263, 0.0
        %vm4280 = vcmp.gt.f32.partialorder %v4264, 0.0
        %vm4281 = vcmp.gt.f32.partialorder %v4265, 0.0
        %vm4282 = vcmp.gt.f32.partialorder %v4266, 0.0
        %vm4283 = vcmp.gt.f32.partialorder %v4267, 0.0
        %vm4284 = vcmp.gt.f32.partialorder %v4268, 0.0
        %vm4285 = vcmp.gt.f32.partialorder %v4269, 0.0
        %vm4286 = vcmp.gt.f32.partialorder %v4270, 0.0
        %vm4287 = vcmp.gt.f32.partialorder %v4271, 0.0
        %vm4288 = vcmp.gt.f32.partialorder %v4272, 0.0
        %vm4289 = vcmp.gt.f32.partialorder %v4273, 0.0
        %vm4290 = vcmp.gt.f32.partialorder %v4274, 0.0
        %vm4291 = vcmp.gt.f32.partialorder %v4275, 0.0
        %vm4292 = vcmp.gt.f32.partialorder %v4276, 0.0
        %v4293 = vmul.f32 %v4261, 0.2
        %v4294 = vmul.f32 %v4262, 0.2
        %v4295 = vmul.f32 %v4263, 0.2
        %v4296 = vmul.f32 %v4264, 0.2
        %v4297 = vmul.f32 %v4265, 0.2
        %v4298 = vmul.f32 %v4266, 0.2
        %v4299 = vmul.f32 %v4267, 0.2
        %v4300 = vmul.f32 %v4268, 0.2
        %v4301 = vmul.f32 %v4269, 0.2
        %v4302 = vmul.f32 %v4270, 0.2
        %v4303 = vmul.f32 %v4271, 0.2
        %v4304 = vmul.f32 %v4272, 0.2
        %v4305 = vmul.f32 %v4273, 0.2
        %v4306 = vmul.f32 %v4274, 0.2
        %v4307 = vmul.f32 %v4275, 0.2
        %v4308 = vmul.f32 %v4276, 0.2
        %v4309 = vsel %vm4277, %v4261, %v4293
        %v4310 = vsel %vm4278, %v4262, %v4294
        %v4311 = vsel %vm4279, %v4263, %v4295
        %v4312 = vsel %vm4280, %v4264, %v4296
        %v4313 = vsel %vm4281, %v4265, %v4297
        %v4314 = vsel %vm4282, %v4266, %v4298
        %v4315 = vsel %vm4283, %v4267, %v4299
        %v4316 = vsel %vm4284, %v4268, %v4300
        %v4317 = vsel %vm4285, %v4269, %v4301
        %v4318 = vsel %vm4286, %v4270, %v4302
        %v4319 = vsel %vm4287, %v4271, %v4303
        %v4320 = vsel %vm4288, %v4272, %v4304
        %v4321 = vsel %vm4289, %v4273, %v4305
        %v4322 = vsel %vm4290, %v4274, %v4306
        %v4323 = vsel %vm4291, %v4275, %v4307
        %v4324 = vsel %vm4292, %v4276, %v4308
        %v4325 = vadd.f32 %v4309, %v1099
        %v4326 = vadd.f32 %v4310, %v1100
        %v4327 = vadd.f32 %v4311, %v1101
        %v4328 = vadd.f32 %v4312, %v1102
        %v4329 = vadd.f32 %v4313, %v1103
        %v4330 = vadd.f32 %v4314, %v1104
        %v4331 = vadd.f32 %v4315, %v1105
        %v4332 = vadd.f32 %v4316, %v1106
        %v4333 = vadd.f32 %v4317, %v1107
        %v4334 = vadd.f32 %v4318, %v1108
        %v4335 = vadd.f32 %v4319, %v1109
        %v4336 = vadd.f32 %v4320, %v1110
        %v4337 = vadd.f32 %v4321, %v1111
        %v4338 = vadd.f32 %v4322, %v1112
        %v4339 = vadd.f32 %v4323, %v1113
        %v4340 = vadd.f32 %v4324, %v1114
        %4341 = vmax.xlane.f32.xlu0 %v4325
        %v4342 = vpop.xlane.xlu0 %4341
        %4343 = vmax.xlane.f32.xlu0 %v4326
        %v4344 = vpop.xlane.xlu0 %4343
        %4345 = vmax.xlane.f32.xlu0 %v4327
        %v4346 = vpop.xlane.xlu0 %4345
        %4347 = vmax.xlane.f32.xlu0 %v4328
        %v4348 = vpop.xlane.xlu0 %4347
        %4349 = vmax.xlane.f32.xlu0 %v4329
        %v4350 = vpop.xlane.xlu0 %4349
        %4351 = vmax.xlane.f32.xlu0 %v4330
        %v4352 = vpop.xlane.xlu0 %4351
        %4353 = vmax.xlane.f32.xlu0 %v4331
        %v4354 = vpop.xlane.xlu0 %4353
        %4355 = vmax.xlane.f32.xlu0 %v4332
        %v4356 = vpop.xlane.xlu0 %4355
        %4357 = vmax.xlane.f32.xlu0 %v4333
        %v4358 = vpop.xlane.xlu0 %4357
        %4359 = vmax.xlane.f32.xlu0 %v4334
        %v4360 = vpop.xlane.xlu0 %4359
        %4361 = vmax.xlane.f32.xlu0 %v4335
        %v4362 = vpop.xlane.xlu0 %4361
        %4363 = vmax.xlane.f32.xlu0 %v4336
        %v4364 = vpop.xlane.xlu0 %4363
        %4365 = vmax.xlane.f32.xlu0 %v4337
        %v4366 = vpop.xlane.xlu0 %4365
        %4367 = vmax.xlane.f32.xlu0 %v4338
        %v4368 = vpop.xlane.xlu0 %4367
        %4369 = vmax.xlane.f32.xlu0 %v4339
        %v4370 = vpop.xlane.xlu0 %4369
        %4371 = vmax.xlane.f32.xlu0 %v4340
        %v4372 = vpop.xlane.xlu0 %4371
        %v4373 = vsub.f32 %v4325, %v4342
        %v4374 = vsub.f32 %v4326, %v4344
        %v4375 = vsub.f32 %v4327, %v4346
        %v4376 = vsub.f32 %v4328, %v4348
        %v4377 = vsub.f32 %v4329, %v4350
        %v4378 = vsub.f32 %v4330, %v4352
        %v4379 = vsub.f32 %v4331, %v4354
        %v4380 = vsub.f32 %v4332, %v4356
        %v4381 = vsub.f32 %v4333, %v4358
        %v4382 = vsub.f32 %v4334, %v4360
        %v4383 = vsub.f32 %v4335, %v4362
        %v4384 = vsub.f32 %v4336, %v4364
        %v4385 = vsub.f32 %v4337, %v4366
        %v4386 = vsub.f32 %v4338, %v4368
        %v4387 = vsub.f32 %v4339, %v4370
        %v4388 = vsub.f32 %v4340, %v4372
        %v4389 = vmul.f32 %v4373, 1.442695
        %v4390 = vpow.pop %v4389
        %v4391 = vmul.f32 %v4374, 1.442695
        %v4392 = vpow.pop %v4391
        %v4393 = vmul.f32 %v4375, 1.442695
        %v4394 = vpow.pop %v4393
        %v4395 = vmul.f32 %v4376, 1.442695
        %v4396 = vpow.pop %v4395
        %v4397 = vmul.f32 %v4377, 1.442695
        %v4398 = vpow.pop %v4397
        %v4399 = vmul.f32 %v4378, 1.442695
        %v4400 = vpow.pop %v4399
        %v4401 = vmul.f32 %v4379, 1.442695
        %v4402 = vpow.pop %v4401
        %v4403 = vmul.f32 %v4380, 1.442695
        %v4404 = vpow.pop %v4403
        %v4405 = vmul.f32 %v4381, 1.442695
        %v4406 = vpow.pop %v4405
        %v4407 = vmul.f32 %v4382, 1.442695
        %v4408 = vpow.pop %v4407
        %v4409 = vmul.f32 %v4383, 1.442695
        %v4410 = vpow.pop %v4409
        %v4411 = vmul.f32 %v4384, 1.442695
        %v4412 = vpow.pop %v4411
        %v4413 = vmul.f32 %v4385, 1.442695
        %v4414 = vpow.pop %v4413
        %v4415 = vmul.f32 %v4386, 1.442695
        %v4416 = vpow.pop %v4415
        %v4417 = vmul.f32 %v4387, 1.442695
        %v4418 = vpow.pop %v4417
        %v4419 = vmul.f32 %v4388, 1.442695
        %v4420 = vpow.pop %v4419
        %4421 = vadd.xlane.f32.xlu0 %v4390
        %v4422 = vpop.xlane.xlu0 %4421
        %4423 = vadd.xlane.f32.xlu0 %v4392
        %v4424 = vpop.xlane.xlu0 %4423
        %4425 = vadd.xlane.f32.xlu0 %v4394
        %v4426 = vpop.xlane.xlu0 %4425
        %4427 = vadd.xlane.f32.xlu0 %v4396
        %v4428 = vpop.xlane.xlu0 %4427
        %4429 = vadd.xlane.f32.xlu0 %v4398
        %v4430 = vpop.xlane.xlu0 %4429
        %4431 = vadd.xlane.f32.xlu0 %v4400
        %v4432 = vpop.xlane.xlu0 %4431
        %4433 = vadd.xlane.f32.xlu0 %v4402
        %v4434 = vpop.xlane.xlu0 %4433
        %4435 = vadd.xlane.f32.xlu0 %v4404
        %v4436 = vpop.xlane.xlu0 %4435
        %4437 = vadd.xlane.f32.xlu0 %v4406
        %v4438 = vpop.xlane.xlu0 %4437
        %4439 = vadd.xlane.f32.xlu0 %v4408
        %v4440 = vpop.xlane.xlu0 %4439
        %4441 = vadd.xlane.f32.xlu0 %v4410
        %v4442 = vpop.xlane.xlu0 %4441
        %4443 = vadd.xlane.f32.xlu0 %v4412
        %v4444 = vpop.xlane.xlu0 %4443
        %4445 = vadd.xlane.f32.xlu0 %v4414
        %v4446 = vpop.xlane.xlu0 %4445
        %4447 = vadd.xlane.f32.xlu0 %v4416
        %v4448 = vpop.xlane.xlu0 %4447
        %4449 = vadd.xlane.f32.xlu0 %v4418
        %v4450 = vpop.xlane.xlu0 %4449
        %4451 = vadd.xlane.f32.xlu0 %v4420
        %v4452 = vpop.xlane.xlu0 %4451
        %v4453 = vrcp.pop %v4422
        %v4454 = vrcp.pop %v4424
        %v4455 = vrcp.pop %v4426
        %v4456 = vrcp.pop %v4428
        %v4457 = vrcp.pop %v4430
        %v4458 = vrcp.pop %v4432
        %v4459 = vrcp.pop %v4434
        %v4460 = vrcp.pop %v4436
        %v4461 = vrcp.pop %v4438
        %v4462 = vrcp.pop %v4440
        %v4463 = vrcp.pop %v4442
        %v4464 = vrcp.pop %v4444
        %v4465 = vrcp.pop %v4446
        %v4466 = vrcp.pop %v4448
        %v4467 = vrcp.pop %v4450
        %v4468 = vrcp.pop %v4452
        %v4469 = vmul.f32 %v4390, %v4453
        %v4470 = vmul.f32 %v4392, %v4454
        %v4471 = vmul.f32 %v4394, %v4455
        %v4472 = vmul.f32 %v4396, %v4456
        %v4473 = vmul.f32 %v4398, %v4457
        %v4474 = vmul.f32 %v4400, %v4458
        %v4475 = vmul.f32 %v4402, %v4459
        %v4476 = vmul.f32 %v4404, %v4460
        %v4477 = vmul.f32 %v4406, %v4461
        %v4478 = vmul.f32 %v4408, %v4462
        %v4479 = vmul.f32 %v4410, %v4463
        %v4480 = vmul.f32 %v4412, %v4464
        %v4481 = vmul.f32 %v4414, %v4465
        %v4482 = vmul.f32 %v4416, %v4466
        %v4483 = vmul.f32 %v4418, %v4467
        %v4484 = vmul.f32 %v4420, %v4468
        %v4485 = vpack.c.bf16 %v4470, %v4469
        %v4486 = vpack.c.bf16 %v4472, %v4471
        %v4487 = vpack.c.bf16 %v4474, %v4473
        %v4488 = vpack.c.bf16 %v4476, %v4475
        %v4489 = vpack.c.bf16 %v4478, %v4477
        %v4490 = vpack.c.bf16 %v4480, %v4479
        %v4491 = vpack.c.bf16 %v4482, %v4481
        %v4492 = vpack.c.bf16 %v4484, %v4483
        %v4493 = vunpack.c.h.b16 %v2983
        %v4494 = vunpack.c.h.b16 %v2985
        %v4495 = vunpack.c.h.b16 %v2987
        %v4496 = vunpack.c.h.b16 %v2989
        %v4497 = vunpack.c.h.b16 %v2991
        %v4498 = vunpack.c.h.b16 %v2993
        %v4499 = vunpack.c.h.b16 %v2995
        %v4500 = vunpack.c.h.b16 %v2997
        %v4501 = vunpack.c.h.b16 %v2999
        %v4502 = vunpack.c.h.b16 %v3001
        %v4503 = vunpack.c.h.b16 %v3003
        %v4504 = vunpack.c.h.b16 %v3005
        %v4505 = vunpack.c.h.b16 %v3007
        %v4506 = vunpack.c.h.b16 %v3009
        %v4507 = vunpack.c.h.b16 %v3011
        %v4508 = vunpack.c.h.b16 %v3013
        %v4509 = vpack.c.b16 %v4494, %v4493
        %v4510 = vpack.c.b16 %v4496, %v4495
        %v4511 = vpack.c.b16 %v4498, %v4497
        %v4512 = vpack.c.b16 %v4500, %v4499
        %v4513 = vpack.c.b16 %v4502, %v4501
        %v4514 = vpack.c.b16 %v4504, %v4503
        %v4515 = vpack.c.b16 %v4506, %v4505
        %v4516 = vpack.c.b16 %v4508, %v4507
        %4525 = vmatpush.bf16.msra.mxu0 %v4516
        %4526 = vmatpush.bf16.msra.mxu0 %v4515
        %4527 = vmatpush.bf16.msra.mxu0 %v4514
        %4528 = vmatpush.bf16.msra.mxu0 %v4513
        %4529 = vmatpush.bf16.msra.mxu0 %v4512
        %4530 = vmatpush.bf16.msra.mxu0 %v4511
        %4531 = vmatpush.bf16.msra.mxu0 %v4510
        %4532 = vmatpush.bf16.msra.mxu0 %v4509
        %4533 = vmatmul.bf16.gmra.mxu0 %v4485
        %v4534 = vpop.f32.mrf.mxu0
        %v4535 = vadd.f32 0.0, %v4534
        %v4536 = vpop.f32.mrf.mxu0
        %v4537 = vadd.f32 0.0, %v4536
        %4538 = vmatmul.bf16.gmra.mxu0 %v4486
        %v4539 = vpop.f32.mrf.mxu0
        %v4540 = vadd.f32 0.0, %v4539
        %v4541 = vpop.f32.mrf.mxu0
        %v4542 = vadd.f32 0.0, %v4541
        %4543 = vmatmul.bf16.gmra.mxu0 %v4487
        %v4544 = vpop.f32.mrf.mxu0
        %v4545 = vadd.f32 0.0, %v4544
        %v4546 = vpop.f32.mrf.mxu0
        %v4547 = vadd.f32 0.0, %v4546
        %4548 = vmatmul.bf16.gmra.mxu0 %v4488
        %v4549 = vpop.f32.mrf.mxu0
        %v4550 = vadd.f32 0.0, %v4549
        %v4551 = vpop.f32.mrf.mxu0
        %v4552 = vadd.f32 0.0, %v4551
        %4553 = vmatmul.bf16.gmra.mxu0 %v4489
        %v4554 = vpop.f32.mrf.mxu0
        %v4555 = vadd.f32 0.0, %v4554
        %v4556 = vpop.f32.mrf.mxu0
        %v4557 = vadd.f32 0.0, %v4556
        %4558 = vmatmul.bf16.gmra.mxu0 %v4490
        %v4559 = vpop.f32.mrf.mxu0
        %v4560 = vadd.f32 0.0, %v4559
        %v4561 = vpop.f32.mrf.mxu0
        %v4562 = vadd.f32 0.0, %v4561
        %4563 = vmatmul.bf16.gmra.mxu0 %v4491
        %v4564 = vpop.f32.mrf.mxu0
        %v4565 = vadd.f32 0.0, %v4564
        %v4566 = vpop.f32.mrf.mxu0
        %v4567 = vadd.f32 0.0, %v4566
        %4568 = vmatmul.bf16.gmra.mxu0 %v4492
        %v4569 = vpop.f32.mrf.mxu0
        %v4570 = vadd.f32 0.0, %v4569
        %v4571 = vpop.f32.mrf.mxu0
        %v4572 = vadd.f32 0.0, %v4571
        %4573 = vdwg.mxu0
        %v4574 = vld [vmem:[%s1069] sm:$0xf]
        %v4576 = vperm.slane %v4574, 0
        %v4577 = vperm.slane %v4574, 1
        %v4578 = vperm.slane %v4574, 2
        %v4579 = vperm.slane %v4574, 3
        %v4584 = vadd.f32 %v3385, %v4576
        %v4585 = vadd.f32 %v3763, %v4577
        %v4586 = vadd.f32 %v4157, %v4578
        %v4587 = vadd.f32 %v4535, %v4579
        %v4588 = vadd.f32 %v3387, %v4576
        %v4589 = vadd.f32 %v3765, %v4577
        %v4590 = vadd.f32 %v4159, %v4578
        %v4591 = vadd.f32 %v4537, %v4579
        %v4592 = vadd.f32 %v3390, %v4576
        %v4593 = vadd.f32 %v3768, %v4577
        %v4594 = vadd.f32 %v4162, %v4578
        %v4595 = vadd.f32 %v4540, %v4579
        %v4596 = vadd.f32 %v3392, %v4576
        %v4597 = vadd.f32 %v3770, %v4577
        %v4598 = vadd.f32 %v4164, %v4578
        %v4599 = vadd.f32 %v4542, %v4579
        %v4600 = vadd.f32 %v3395, %v4576
        %v4601 = vadd.f32 %v3773, %v4577
        %v4602 = vadd.f32 %v4167, %v4578
        %v4603 = vadd.f32 %v4545, %v4579
        %v4604 = vadd.f32 %v3397, %v4576
        %v4605 = vadd.f32 %v3775, %v4577
        %v4606 = vadd.f32 %v4169, %v4578
        %v4607 = vadd.f32 %v4547, %v4579
        %v4608 = vadd.f32 %v3400, %v4576
        %v4609 = vadd.f32 %v3778, %v4577
        %v4610 = vadd.f32 %v4172, %v4578
        %v4611 = vadd.f32 %v4550, %v4579
        %v4612 = vadd.f32 %v3402, %v4576
        %v4613 = vadd.f32 %v3780, %v4577
        %v4614 = vadd.f32 %v4174, %v4578
        %v4615 = vadd.f32 %v4552, %v4579
        %v4616 = vadd.f32 %v3405, %v4576
        %v4617 = vadd.f32 %v3783, %v4577
        %v4618 = vadd.f32 %v4177, %v4578
        %v4619 = vadd.f32 %v4555, %v4579
        %v4620 = vadd.f32 %v3407, %v4576
        %v4621 = vadd.f32 %v3785, %v4577
        %v4622 = vadd.f32 %v4179, %v4578
        %v4623 = vadd.f32 %v4557, %v4579
        %v4624 = vadd.f32 %v3410, %v4576
        %v4625 = vadd.f32 %v3788, %v4577
        %v4626 = vadd.f32 %v4182, %v4578
        %v4627 = vadd.f32 %v4560, %v4579
        %v4628 = vadd.f32 %v3412, %v4576
        %v4629 = vadd.f32 %v3790, %v4577
        %v4630 = vadd.f32 %v4184, %v4578
        %v4631 = vadd.f32 %v4562, %v4579
        %v4632 = vadd.f32 %v3415, %v4576
        %v4633 = vadd.f32 %v3793, %v4577
        %v4634 = vadd.f32 %v4187, %v4578
        %v4635 = vadd.f32 %v4565, %v4579
        %v4636 = vadd.f32 %v3417, %v4576
        %v4637 = vadd.f32 %v3795, %v4577
        %v4638 = vadd.f32 %v4189, %v4578
        %v4639 = vadd.f32 %v4567, %v4579
        %v4640 = vadd.f32 %v3420, %v4576
        %v4641 = vadd.f32 %v3798, %v4577
        %v4642 = vadd.f32 %v4192, %v4578
        %v4643 = vadd.f32 %v4570, %v4579
        %v4644 = vadd.f32 %v3422, %v4576
        %v4645 = vadd.f32 %v3800, %v4577
        %v4646 = vadd.f32 %v4194, %v4578
        %v4647 = vadd.f32 %v4572, %v4579
        %vm4648 = vcmp.gt.f32.partialorder %v4584, 0.0
        %vm4649 = vcmp.gt.f32.partialorder %v4585, 0.0
        %vm4650 = vcmp.gt.f32.partialorder %v4586, 0.0
        %vm4651 = vcmp.gt.f32.partialorder %v4587, 0.0
        %vm4652 = vcmp.gt.f32.partialorder %v4588, 0.0
        %vm4653 = vcmp.gt.f32.partialorder %v4589, 0.0
        %vm4654 = vcmp.gt.f32.partialorder %v4590, 0.0
        %vm4655 = vcmp.gt.f32.partialorder %v4591, 0.0
        %vm4656 = vcmp.gt.f32.partialorder %v4592, 0.0
        %vm4657 = vcmp.gt.f32.partialorder %v4593, 0.0
        %vm4658 = vcmp.gt.f32.partialorder %v4594, 0.0
        %vm4659 = vcmp.gt.f32.partialorder %v4595, 0.0
        %vm4660 = vcmp.gt.f32.partialorder %v4596, 0.0
        %vm4661 = vcmp.gt.f32.partialorder %v4597, 0.0
        %vm4662 = vcmp.gt.f32.partialorder %v4598, 0.0
        %vm4663 = vcmp.gt.f32.partialorder %v4599, 0.0
        %vm4664 = vcmp.gt.f32.partialorder %v4600, 0.0
        %vm4665 = vcmp.gt.f32.partialorder %v4601, 0.0
        %vm4666 = vcmp.gt.f32.partialorder %v4602, 0.0
        %vm4667 = vcmp.gt.f32.partialorder %v4603, 0.0
        %vm4668 = vcmp.gt.f32.partialorder %v4604, 0.0
        %vm4669 = vcmp.gt.f32.partialorder %v4605, 0.0
        %vm4670 = vcmp.gt.f32.partialorder %v4606, 0.0
        %vm4671 = vcmp.gt.f32.partialorder %v4607, 0.0
        %vm4672 = vcmp.gt.f32.partialorder %v4608, 0.0
        %vm4673 = vcmp.gt.f32.partialorder %v4609, 0.0
        %vm4674 = vcmp.gt.f32.partialorder %v4610, 0.0
        %vm4675 = vcmp.gt.f32.partialorder %v4611, 0.0
        %vm4676 = vcmp.gt.f32.partialorder %v4612, 0.0
        %vm4677 = vcmp.gt.f32.partialorder %v4613, 0.0
        %vm4678 = vcmp.gt.f32.partialorder %v4614, 0.0
        %vm4679 = vcmp.gt.f32.partialorder %v4615, 0.0
        %vm4680 = vcmp.gt.f32.partialorder %v4616, 0.0
        %vm4681 = vcmp.gt.f32.partialorder %v4617, 0.0
        %vm4682 = vcmp.gt.f32.partialorder %v4618, 0.0
        %vm4683 = vcmp.gt.f32.partialorder %v4619, 0.0
        %vm4684 = vcmp.gt.f32.partialorder %v4620, 0.0
        %vm4685 = vcmp.gt.f32.partialorder %v4621, 0.0
        %vm4686 = vcmp.gt.f32.partialorder %v4622, 0.0
        %vm4687 = vcmp.gt.f32.partialorder %v4623, 0.0
        %vm4688 = vcmp.gt.f32.partialorder %v4624, 0.0
        %vm4689 = vcmp.gt.f32.partialorder %v4625, 0.0
        %vm4690 = vcmp.gt.f32.partialorder %v4626, 0.0
        %vm4691 = vcmp.gt.f32.partialorder %v4627, 0.0
        %vm4692 = vcmp.gt.f32.partialorder %v4628, 0.0
        %vm4693 = vcmp.gt.f32.partialorder %v4629, 0.0
        %vm4694 = vcmp.gt.f32.partialorder %v4630, 0.0
        %vm4695 = vcmp.gt.f32.partialorder %v4631, 0.0
        %vm4696 = vcmp.gt.f32.partialorder %v4632, 0.0
        %vm4697 = vcmp.gt.f32.partialorder %v4633, 0.0
        %vm4698 = vcmp.gt.f32.partialorder %v4634, 0.0
        %vm4699 = vcmp.gt.f32.partialorder %v4635, 0.0
        %vm4700 = vcmp.gt.f32.partialorder %v4636, 0.0
        %vm4701 = vcmp.gt.f32.partialorder %v4637, 0.0
        %vm4702 = vcmp.gt.f32.partialorder %v4638, 0.0
        %vm4703 = vcmp.gt.f32.partialorder %v4639, 0.0
        %vm4704 = vcmp.gt.f32.partialorder %v4640, 0.0
        %vm4705 = vcmp.gt.f32.partialorder %v4641, 0.0
        %vm4706 = vcmp.gt.f32.partialorder %v4642, 0.0
        %vm4707 = vcmp.gt.f32.partialorder %v4643, 0.0
        %vm4708 = vcmp.gt.f32.partialorder %v4644, 0.0
        %vm4709 = vcmp.gt.f32.partialorder %v4645, 0.0
        %vm4710 = vcmp.gt.f32.partialorder %v4646, 0.0
        %vm4711 = vcmp.gt.f32.partialorder %v4647, 0.0
        %v4712 = vmul.f32 %v4584, 1.442695
        %v4713 = vpow.pop %v4712
        %v4714 = vmul.f32 %v4585, 1.442695
        %v4715 = vpow.pop %v4714
        %v4716 = vmul.f32 %v4586, 1.442695
        %v4717 = vpow.pop %v4716
        %v4718 = vmul.f32 %v4587, 1.442695
        %v4719 = vpow.pop %v4718
        %v4720 = vmul.f32 %v4588, 1.442695
        %v4721 = vpow.pop %v4720
        %v4722 = vmul.f32 %v4589, 1.442695
        %v4723 = vpow.pop %v4722
        %v4724 = vmul.f32 %v4590, 1.442695
        %v4725 = vpow.pop %v4724
        %v4726 = vmul.f32 %v4591, 1.442695
        %v4727 = vpow.pop %v4726
        %v4728 = vmul.f32 %v4592, 1.442695
        %v4729 = vpow.pop %v4728
        %v4730 = vmul.f32 %v4593, 1.442695
        %v4731 = vpow.pop %v4730
        %v4732 = vmul.f32 %v4594, 1.442695
        %v4733 = vpow.pop %v4732
        %v4734 = vmul.f32 %v4595, 1.442695
        %v4735 = vpow.pop %v4734
        %v4736 = vmul.f32 %v4596, 1.442695
        %v4737 = vpow.pop %v4736
        %v4738 = vmul.f32 %v4597, 1.442695
        %v4739 = vpow.pop %v4738
        %v4740 = vmul.f32 %v4598, 1.442695
        %v4741 = vpow.pop %v4740
        %v4742 = vmul.f32 %v4599, 1.442695
        %v4743 = vpow.pop %v4742
        %v4744 = vmul.f32 %v4600, 1.442695
        %v4745 = vpow.pop %v4744
        %v4746 = vmul.f32 %v4601, 1.442695
        %v4747 = vpow.pop %v4746
        %v4748 = vmul.f32 %v4602, 1.442695
        %v4749 = vpow.pop %v4748
        %v4750 = vmul.f32 %v4603, 1.442695
        %v4751 = vpow.pop %v4750
        %v4752 = vmul.f32 %v4604, 1.442695
        %v4753 = vpow.pop %v4752
        %v4754 = vmul.f32 %v4605, 1.442695
        %v4755 = vpow.pop %v4754
        %v4756 = vmul.f32 %v4606, 1.442695
        %v4757 = vpow.pop %v4756
        %v4758 = vmul.f32 %v4607, 1.442695
        %v4759 = vpow.pop %v4758
        %v4760 = vmul.f32 %v4608, 1.442695
        %v4761 = vpow.pop %v4760
        %v4762 = vmul.f32 %v4609, 1.442695
        %v4763 = vpow.pop %v4762
        %v4764 = vmul.f32 %v4610, 1.442695
        %v4765 = vpow.pop %v4764
        %v4766 = vmul.f32 %v4611, 1.442695
        %v4767 = vpow.pop %v4766
        %v4768 = vmul.f32 %v4612, 1.442695
        %v4769 = vpow.pop %v4768
        %v4770 = vmul.f32 %v4613, 1.442695
        %v4771 = vpow.pop %v4770
        %v4772 = vmul.f32 %v4614, 1.442695
        %v4773 = vpow.pop %v4772
        %v4774 = vmul.f32 %v4615, 1.442695
        %v4775 = vpow.pop %v4774
        %v4776 = vmul.f32 %v4616, 1.442695
        %v4777 = vpow.pop %v4776
        %v4778 = vmul.f32 %v4617, 1.442695
        %v4779 = vpow.pop %v4778
        %v4780 = vmul.f32 %v4618, 1.442695
        %v4781 = vpow.pop %v4780
        %v4782 = vmul.f32 %v4619, 1.442695
        %v4783 = vpow.pop %v4782
        %v4784 = vmul.f32 %v4620, 1.442695
        %v4785 = vpow.pop %v4784
        %v4786 = vmul.f32 %v4621, 1.442695
        %v4787 = vpow.pop %v4786
        %v4788 = vmul.f32 %v4622, 1.442695
        %v4789 = vpow.pop %v4788
        %v4790 = vmul.f32 %v4623, 1.442695
        %v4791 = vpow.pop %v4790
        %v4792 = vmul.f32 %v4624, 1.442695
        %v4793 = vpow.pop %v4792
        %v4794 = vmul.f32 %v4625, 1.442695
        %v4795 = vpow.pop %v4794
        %v4796 = vmul.f32 %v4626, 1.442695
        %v4797 = vpow.pop %v4796
        %v4798 = vmul.f32 %v4627, 1.442695
        %v4799 = vpow.pop %v4798
        %v4800 = vmul.f32 %v4628, 1.442695
        %v4801 = vpow.pop %v4800
        %v4802 = vmul.f32 %v4629, 1.442695
        %v4803 = vpow.pop %v4802
        %v4804 = vmul.f32 %v4630, 1.442695
        %v4805 = vpow.pop %v4804
        %v4806 = vmul.f32 %v4631, 1.442695
        %v4807 = vpow.pop %v4806
        %v4808 = vmul.f32 %v4632, 1.442695
        %v4809 = vpow.pop %v4808
        %v4810 = vmul.f32 %v4633, 1.442695
        %v4811 = vpow.pop %v4810
        %v4812 = vmul.f32 %v4634, 1.442695
        %v4813 = vpow.pop %v4812
        %v4814 = vmul.f32 %v4635, 1.442695
        %v4815 = vpow.pop %v4814
        %v4816 = vmul.f32 %v4636, 1.442695
        %v4817 = vpow.pop %v4816
        %v4818 = vmul.f32 %v4637, 1.442695
        %v4819 = vpow.pop %v4818
        %v4820 = vmul.f32 %v4638, 1.442695
        %v4821 = vpow.pop %v4820
        %v4822 = vmul.f32 %v4639, 1.442695
        %v4823 = vpow.pop %v4822
        %v4824 = vmul.f32 %v4640, 1.442695
        %v4825 = vpow.pop %v4824
        %v4826 = vmul.f32 %v4641, 1.442695
        %v4827 = vpow.pop %v4826
        %v4828 = vmul.f32 %v4642, 1.442695
        %v4829 = vpow.pop %v4828
        %v4830 = vmul.f32 %v4643, 1.442695
        %v4831 = vpow.pop %v4830
        %v4832 = vmul.f32 %v4644, 1.442695
        %v4833 = vpow.pop %v4832
        %v4834 = vmul.f32 %v4645, 1.442695
        %v4835 = vpow.pop %v4834
        %v4836 = vmul.f32 %v4646, 1.442695
        %v4837 = vpow.pop %v4836
        %v4838 = vmul.f32 %v4647, 1.442695
        %v4839 = vpow.pop %v4838
        %v4840 = vsub.f32 %v4713, 1.0
        %v4841 = vsub.f32 %v4715, 1.0
        %v4842 = vsub.f32 %v4717, 1.0
        %v4843 = vsub.f32 %v4719, 1.0
        %v4844 = vsub.f32 %v4721, 1.0
        %v4845 = vsub.f32 %v4723, 1.0
        %v4846 = vsub.f32 %v4725, 1.0
        %v4847 = vsub.f32 %v4727, 1.0
        %v4848 = vsub.f32 %v4729, 1.0
        %v4849 = vsub.f32 %v4731, 1.0
        %v4850 = vsub.f32 %v4733, 1.0
        %v4851 = vsub.f32 %v4735, 1.0
        %v4852 = vsub.f32 %v4737, 1.0
        %v4853 = vsub.f32 %v4739, 1.0
        %v4854 = vsub.f32 %v4741, 1.0
        %v4855 = vsub.f32 %v4743, 1.0
        %v4856 = vsub.f32 %v4745, 1.0
        %v4857 = vsub.f32 %v4747, 1.0
        %v4858 = vsub.f32 %v4749, 1.0
        %v4859 = vsub.f32 %v4751, 1.0
        %v4860 = vsub.f32 %v4753, 1.0
        %v4861 = vsub.f32 %v4755, 1.0
        %v4862 = vsub.f32 %v4757, 1.0
        %v4863 = vsub.f32 %v4759, 1.0
        %v4864 = vsub.f32 %v4761, 1.0
        %v4865 = vsub.f32 %v4763, 1.0
        %v4866 = vsub.f32 %v4765, 1.0
        %v4867 = vsub.f32 %v4767, 1.0
        %v4868 = vsub.f32 %v4769, 1.0
        %v4869 = vsub.f32 %v4771, 1.0
        %v4870 = vsub.f32 %v4773, 1.0
        %v4871 = vsub.f32 %v4775, 1.0
        %v4872 = vsub.f32 %v4777, 1.0
        %v4873 = vsub.f32 %v4779, 1.0
        %v4874 = vsub.f32 %v4781, 1.0
        %v4875 = vsub.f32 %v4783, 1.0
        %v4876 = vsub.f32 %v4785, 1.0
        %v4877 = vsub.f32 %v4787, 1.0
        %v4878 = vsub.f32 %v4789, 1.0
        %v4879 = vsub.f32 %v4791, 1.0
        %v4880 = vsub.f32 %v4793, 1.0
        %v4881 = vsub.f32 %v4795, 1.0
        %v4882 = vsub.f32 %v4797, 1.0
        %v4883 = vsub.f32 %v4799, 1.0
        %v4884 = vsub.f32 %v4801, 1.0
        %v4885 = vsub.f32 %v4803, 1.0
        %v4886 = vsub.f32 %v4805, 1.0
        %v4887 = vsub.f32 %v4807, 1.0
        %v4888 = vsub.f32 %v4809, 1.0
        %v4889 = vsub.f32 %v4811, 1.0
        %v4890 = vsub.f32 %v4813, 1.0
        %v4891 = vsub.f32 %v4815, 1.0
        %v4892 = vsub.f32 %v4817, 1.0
        %v4893 = vsub.f32 %v4819, 1.0
        %v4894 = vsub.f32 %v4821, 1.0
        %v4895 = vsub.f32 %v4823, 1.0
        %v4896 = vsub.f32 %v4825, 1.0
        %v4897 = vsub.f32 %v4827, 1.0
        %v4898 = vsub.f32 %v4829, 1.0
        %v4899 = vsub.f32 %v4831, 1.0
        %v4900 = vsub.f32 %v4833, 1.0
        %v4901 = vsub.f32 %v4835, 1.0
        %v4902 = vsub.f32 %v4837, 1.0
        %v4903 = vsub.f32 %v4839, 1.0
        %v4904 = vsel %vm4648, %v4584, %v4840
        %v4905 = vsel %vm4649, %v4585, %v4841
        %v4906 = vsel %vm4650, %v4586, %v4842
        %v4907 = vsel %vm4651, %v4587, %v4843
        %v4908 = vsel %vm4652, %v4588, %v4844
        %v4909 = vsel %vm4653, %v4589, %v4845
        %v4910 = vsel %vm4654, %v4590, %v4846
        %v4911 = vsel %vm4655, %v4591, %v4847
        %v4912 = vsel %vm4656, %v4592, %v4848
        %v4913 = vsel %vm4657, %v4593, %v4849
        %v4914 = vsel %vm4658, %v4594, %v4850
        %v4915 = vsel %vm4659, %v4595, %v4851
        %v4916 = vsel %vm4660, %v4596, %v4852
        %v4917 = vsel %vm4661, %v4597, %v4853
        %v4918 = vsel %vm4662, %v4598, %v4854
        %v4919 = vsel %vm4663, %v4599, %v4855
        %v4920 = vsel %vm4664, %v4600, %v4856
        %v4921 = vsel %vm4665, %v4601, %v4857
        %v4922 = vsel %vm4666, %v4602, %v4858
        %v4923 = vsel %vm4667, %v4603, %v4859
        %v4924 = vsel %vm4668, %v4604, %v4860
        %v4925 = vsel %vm4669, %v4605, %v4861
        %v4926 = vsel %vm4670, %v4606, %v4862
        %v4927 = vsel %vm4671, %v4607, %v4863
        %v4928 = vsel %vm4672, %v4608, %v4864
        %v4929 = vsel %vm4673, %v4609, %v4865
        %v4930 = vsel %vm4674, %v4610, %v4866
        %v4931 = vsel %vm4675, %v4611, %v4867
        %v4932 = vsel %vm4676, %v4612, %v4868
        %v4933 = vsel %vm4677, %v4613, %v4869
        %v4934 = vsel %vm4678, %v4614, %v4870
        %v4935 = vsel %vm4679, %v4615, %v4871
        %v4936 = vsel %vm4680, %v4616, %v4872
        %v4937 = vsel %vm4681, %v4617, %v4873
        %v4938 = vsel %vm4682, %v4618, %v4874
        %v4939 = vsel %vm4683, %v4619, %v4875
        %v4940 = vsel %vm4684, %v4620, %v4876
        %v4941 = vsel %vm4685, %v4621, %v4877
        %v4942 = vsel %vm4686, %v4622, %v4878
        %v4943 = vsel %vm4687, %v4623, %v4879
        %v4944 = vsel %vm4688, %v4624, %v4880
        %v4945 = vsel %vm4689, %v4625, %v4881
        %v4946 = vsel %vm4690, %v4626, %v4882
        %v4947 = vsel %vm4691, %v4627, %v4883
        %v4948 = vsel %vm4692, %v4628, %v4884
        %v4949 = vsel %vm4693, %v4629, %v4885
        %v4950 = vsel %vm4694, %v4630, %v4886
        %v4951 = vsel %vm4695, %v4631, %v4887
        %v4952 = vsel %vm4696, %v4632, %v4888
        %v4953 = vsel %vm4697, %v4633, %v4889
        %v4954 = vsel %vm4698, %v4634, %v4890
        %v4955 = vsel %vm4699, %v4635, %v4891
        %v4956 = vsel %vm4700, %v4636, %v4892
        %v4957 = vsel %vm4701, %v4637, %v4893
        %v4958 = vsel %vm4702, %v4638, %v4894
        %v4959 = vsel %vm4703, %v4639, %v4895
        %v4960 = vsel %vm4704, %v4640, %v4896
        %v4961 = vsel %vm4705, %v4641, %v4897
        %v4962 = vsel %vm4706, %v4642, %v4898
        %v4963 = vsel %vm4707, %v4643, %v4899
        %v4964 = vsel %vm4708, %v4644, %v4900
        %v4965 = vsel %vm4709, %v4645, %v4901
        %v4966 = vsel %vm4710, %v4646, %v4902
        %v4967 = vsel %vm4711, %v4647, %v4903
        %v4968 = vpack.c.bf16 %v4908, %v4904
        %v4969 = vpack.c.bf16 %v4909, %v4905
        %v4970 = vpack.c.bf16 %v4910, %v4906
        %v4971 = vpack.c.bf16 %v4911, %v4907
        %v4972 = vpack.c.bf16 %v4916, %v4912
        %v4973 = vpack.c.bf16 %v4917, %v4913
        %v4974 = vpack.c.bf16 %v4918, %v4914
        %v4975 = vpack.c.bf16 %v4919, %v4915
        %v4976 = vpack.c.bf16 %v4924, %v4920
        %v4977 = vpack.c.bf16 %v4925, %v4921
        %v4978 = vpack.c.bf16 %v4926, %v4922
        %v4979 = vpack.c.bf16 %v4927, %v4923
        %v4980 = vpack.c.bf16 %v4932, %v4928
        %v4981 = vpack.c.bf16 %v4933, %v4929
        %v4982 = vpack.c.bf16 %v4934, %v4930
        %v4983 = vpack.c.bf16 %v4935, %v4931
        %v4984 = vpack.c.bf16 %v4940, %v4936
        %v4985 = vpack.c.bf16 %v4941, %v4937
        %v4986 = vpack.c.bf16 %v4942, %v4938
        %v4987 = vpack.c.bf16 %v4943, %v4939
        %v4988 = vpack.c.bf16 %v4948, %v4944
        %v4989 = vpack.c.bf16 %v4949, %v4945
        %v4990 = vpack.c.bf16 %v4950, %v4946
        %v4991 = vpack.c.bf16 %v4951, %v4947
        %v4992 = vpack.c.bf16 %v4956, %v4952
        %v4993 = vpack.c.bf16 %v4957, %v4953
        %v4994 = vpack.c.bf16 %v4958, %v4954
        %v4995 = vpack.c.bf16 %v4959, %v4955
        %v4996 = vpack.c.bf16 %v4964, %v4960
        %v4997 = vpack.c.bf16 %v4965, %v4961
        %v4998 = vpack.c.bf16 %v4966, %v4962
        %v4999 = vpack.c.bf16 %v4967, %v4963
        %v5000 = vld [vmem:[%s849] sm:$0xff]
        %v5001 = vld [vmem:[%s849 + $0x8] sm:$0xff]
        %v5002 = vld [vmem:[%s849 + $0x10] sm:$0xff]
        %v5003 = vld [vmem:[%s849 + $0x18] sm:$0xff]
        %v5004 = vld [vmem:[%s849 + $0x20] sm:$0xff]
        %v5005 = vld [vmem:[%s849 + $0x28] sm:$0xff]
        %v5006 = vld [vmem:[%s849 + $0x30] sm:$0xff]
        %v5007 = vld [vmem:[%s849 + $0x38] sm:$0xff]
        %v5008 = vld [vmem:[%s849 + $0x40] sm:$0xff]
        %v5009 = vld [vmem:[%s849 + $0x48] sm:$0xff]
        %v5010 = vld [vmem:[%s849 + $0x50] sm:$0xff]
        %v5011 = vld [vmem:[%s849 + $0x58] sm:$0xff]
        %v5012 = vld [vmem:[%s849 + $0x60] sm:$0xff]
        %v5013 = vld [vmem:[%s849 + $0x68] sm:$0xff]
        %v5014 = vld [vmem:[%s849 + $0x70] sm:$0xff]
        %v5015 = vld [vmem:[%s849 + $0x78] sm:$0xff]
        %v5016 = vld [vmem:[%s849 + $0x80] sm:$0xff]
        %v5017 = vld [vmem:[%s849 + $0x88] sm:$0xff]
        %v5018 = vld [vmem:[%s849 + $0x90] sm:$0xff]
        %v5019 = vld [vmem:[%s849 + $0x98] sm:$0xff]
        %v5020 = vld [vmem:[%s849 + $0xa0] sm:$0xff]
        %v5021 = vld [vmem:[%s849 + $0xa8] sm:$0xff]
        %v5022 = vld [vmem:[%s849 + $0xb0] sm:$0xff]
        %v5023 = vld [vmem:[%s849 + $0xb8] sm:$0xff]
        %v5024 = vld [vmem:[%s849 + $0xc0] sm:$0xff]
        %v5025 = vld [vmem:[%s849 + $0xc8] sm:$0xff]
        %v5026 = vld [vmem:[%s849 + $0xd0] sm:$0xff]
        %v5027 = vld [vmem:[%s849 + $0xd8] sm:$0xff]
        %v5028 = vld [vmem:[%s849 + $0xe0] sm:$0xff]
        %v5029 = vld [vmem:[%s849 + $0xe8] sm:$0xff]
        %v5030 = vld [vmem:[%s849 + $0xf0] sm:$0xff]
        %v5031 = vld [vmem:[%s849 + $0xf8] sm:$0xff]
        %v5032 = vld [vmem:[%s849 + $0x100] sm:$0xff]
        %v5033 = vld [vmem:[%s849 + $0x108] sm:$0xff]
        %v5034 = vld [vmem:[%s849 + $0x110] sm:$0xff]
        %v5035 = vld [vmem:[%s849 + $0x118] sm:$0xff]
        %v5036 = vld [vmem:[%s849 + $0x120] sm:$0xff]
        %v5037 = vld [vmem:[%s849 + $0x128] sm:$0xff]
        %v5038 = vld [vmem:[%s849 + $0x130] sm:$0xff]
        %v5039 = vld [vmem:[%s849 + $0x138] sm:$0xff]
        %v5040 = vld [vmem:[%s849 + $0x140] sm:$0xff]
        %v5041 = vld [vmem:[%s849 + $0x148] sm:$0xff]
        %v5042 = vld [vmem:[%s849 + $0x150] sm:$0xff]
        %v5043 = vld [vmem:[%s849 + $0x158] sm:$0xff]
        %v5044 = vld [vmem:[%s849 + $0x160] sm:$0xff]
        %v5045 = vld [vmem:[%s849 + $0x168] sm:$0xff]
        %v5046 = vld [vmem:[%s849 + $0x170] sm:$0xff]
        %v5047 = vld [vmem:[%s849 + $0x178] sm:$0xff]
        %v5048 = vld [vmem:[%s849 + $0x180] sm:$0xff]
        %v5049 = vld [vmem:[%s849 + $0x188] sm:$0xff]
        %v5050 = vld [vmem:[%s849 + $0x190] sm:$0xff]
        %v5051 = vld [vmem:[%s849 + $0x198] sm:$0xff]
        %v5052 = vld [vmem:[%s849 + $0x1a0] sm:$0xff]
        %v5053 = vld [vmem:[%s849 + $0x1a8] sm:$0xff]
        %v5054 = vld [vmem:[%s849 + $0x1b0] sm:$0xff]
        %v5055 = vld [vmem:[%s849 + $0x1b8] sm:$0xff]
        %v5056 = vld [vmem:[%s849 + $0x1c0] sm:$0xff]
        %v5057 = vld [vmem:[%s849 + $0x1c8] sm:$0xff]
        %v5058 = vld [vmem:[%s849 + $0x1d0] sm:$0xff]
        %v5059 = vld [vmem:[%s849 + $0x1d8] sm:$0xff]
        %v5060 = vld [vmem:[%s849 + $0x1e0] sm:$0xff]
        %v5061 = vld [vmem:[%s849 + $0x1e8] sm:$0xff]
        %v5062 = vld [vmem:[%s849 + $0x1f0] sm:$0xff]
        %v5063 = vld [vmem:[%s849 + $0x1f8] sm:$0xff]
        %v5128 = vunpack.c.l.b16 %v5000
        %v5129 = vunpack.c.h.b16 %v5000
        %v5130 = vunpack.c.l.b16 %v5001
        %v5131 = vunpack.c.h.b16 %v5001
        %v5132 = vunpack.c.l.b16 %v5002
        %v5133 = vunpack.c.h.b16 %v5002
        %v5134 = vunpack.c.l.b16 %v5003
        %v5135 = vunpack.c.h.b16 %v5003
        %v5136 = vunpack.c.l.b16 %v5004
        %v5137 = vunpack.c.h.b16 %v5004
        %v5138 = vunpack.c.l.b16 %v5005
        %v5139 = vunpack.c.h.b16 %v5005
        %v5140 = vunpack.c.l.b16 %v5006
        %v5141 = vunpack.c.h.b16 %v5006
        %v5142 = vunpack.c.l.b16 %v5007
        %v5143 = vunpack.c.h.b16 %v5007
        %v5144 = vunpack.c.l.b16 %v5008
        %v5145 = vunpack.c.h.b16 %v5008
        %v5146 = vunpack.c.l.b16 %v5009
        %v5147 = vunpack.c.h.b16 %v5009
        %v5148 = vunpack.c.l.b16 %v5010
        %v5149 = vunpack.c.h.b16 %v5010
        %v5150 = vunpack.c.l.b16 %v5011
        %v5151 = vunpack.c.h.b16 %v5011
        %v5152 = vunpack.c.l.b16 %v5012
        %v5153 = vunpack.c.h.b16 %v5012
        %v5154 = vunpack.c.l.b16 %v5013
        %v5155 = vunpack.c.h.b16 %v5013
        %v5156 = vunpack.c.l.b16 %v5014
        %v5157 = vunpack.c.h.b16 %v5014
        %v5158 = vunpack.c.l.b16 %v5015
        %v5159 = vunpack.c.h.b16 %v5015
        %v5160 = vunpack.c.l.b16 %v5016
        %v5161 = vunpack.c.h.b16 %v5016
        %v5162 = vunpack.c.l.b16 %v5017
        %v5163 = vunpack.c.h.b16 %v5017
        %v5164 = vunpack.c.l.b16 %v5018
        %v5165 = vunpack.c.h.b16 %v5018
        %v5166 = vunpack.c.l.b16 %v5019
        %v5167 = vunpack.c.h.b16 %v5019
        %v5168 = vunpack.c.l.b16 %v5020
        %v5169 = vunpack.c.h.b16 %v5020
        %v5170 = vunpack.c.l.b16 %v5021
        %v5171 = vunpack.c.h.b16 %v5021
        %v5172 = vunpack.c.l.b16 %v5022
        %v5173 = vunpack.c.h.b16 %v5022
        %v5174 = vunpack.c.l.b16 %v5023
        %v5175 = vunpack.c.h.b16 %v5023
        %v5176 = vunpack.c.l.b16 %v5024
        %v5177 = vunpack.c.h.b16 %v5024
        %v5178 = vunpack.c.l.b16 %v5025
        %v5179 = vunpack.c.h.b16 %v5025
        %v5180 = vunpack.c.l.b16 %v5026
        %v5181 = vunpack.c.h.b16 %v5026
        %v5182 = vunpack.c.l.b16 %v5027
        %v5183 = vunpack.c.h.b16 %v5027
        %v5184 = vunpack.c.l.b16 %v5028
        %v5185 = vunpack.c.h.b16 %v5028
        %v5186 = vunpack.c.l.b16 %v5029
        %v5187 = vunpack.c.h.b16 %v5029
        %v5188 = vunpack.c.l.b16 %v5030
        %v5189 = vunpack.c.h.b16 %v5030
        %v5190 = vunpack.c.l.b16 %v5031
        %v5191 = vunpack.c.h.b16 %v5031
        %v5192 = vunpack.c.l.b16 %v5032
        %v5193 = vunpack.c.h.b16 %v5032
        %v5194 = vunpack.c.l.b16 %v5033
        %v5195 = vunpack.c.h.b16 %v5033
        %v5196 = vunpack.c.l.b16 %v5034
        %v5197 = vunpack.c.h.b16 %v5034
        %v5198 = vunpack.c.l.b16 %v5035
        %v5199 = vunpack.c.h.b16 %v5035
        %v5200 = vunpack.c.l.b16 %v5036
        %v5201 = vunpack.c.h.b16 %v5036
        %v5202 = vunpack.c.l.b16 %v5037
        %v5203 = vunpack.c.h.b16 %v5037
        %v5204 = vunpack.c.l.b16 %v5038
        %v5205 = vunpack.c.h.b16 %v5038
        %v5206 = vunpack.c.l.b16 %v5039
        %v5207 = vunpack.c.h.b16 %v5039
        %v5208 = vunpack.c.l.b16 %v5040
        %v5209 = vunpack.c.h.b16 %v5040
        %v5210 = vunpack.c.l.b16 %v5041
        %v5211 = vunpack.c.h.b16 %v5041
        %v5212 = vunpack.c.l.b16 %v5042
        %v5213 = vunpack.c.h.b16 %v5042
        %v5214 = vunpack.c.l.b16 %v5043
        %v5215 = vunpack.c.h.b16 %v5043
        %v5216 = vunpack.c.l.b16 %v5044
        %v5217 = vunpack.c.h.b16 %v5044
        %v5218 = vunpack.c.l.b16 %v5045
        %v5219 = vunpack.c.h.b16 %v5045
        %v5220 = vunpack.c.l.b16 %v5046
        %v5221 = vunpack.c.h.b16 %v5046
        %v5222 = vunpack.c.l.b16 %v5047
        %v5223 = vunpack.c.h.b16 %v5047
        %v5224 = vunpack.c.l.b16 %v5048
        %v5225 = vunpack.c.h.b16 %v5048
        %v5226 = vunpack.c.l.b16 %v5049
        %v5227 = vunpack.c.h.b16 %v5049
        %v5228 = vunpack.c.l.b16 %v5050
        %v5229 = vunpack.c.h.b16 %v5050
        %v5230 = vunpack.c.l.b16 %v5051
        %v5231 = vunpack.c.h.b16 %v5051
        %v5232 = vunpack.c.l.b16 %v5052
        %v5233 = vunpack.c.h.b16 %v5052
        %v5234 = vunpack.c.l.b16 %v5053
        %v5235 = vunpack.c.h.b16 %v5053
        %v5236 = vunpack.c.l.b16 %v5054
        %v5237 = vunpack.c.h.b16 %v5054
        %v5238 = vunpack.c.l.b16 %v5055
        %v5239 = vunpack.c.h.b16 %v5055
        %v5240 = vunpack.c.l.b16 %v5056
        %v5241 = vunpack.c.h.b16 %v5056
        %v5242 = vunpack.c.l.b16 %v5057
        %v5243 = vunpack.c.h.b16 %v5057
        %v5244 = vunpack.c.l.b16 %v5058
        %v5245 = vunpack.c.h.b16 %v5058
        %v5246 = vunpack.c.l.b16 %v5059
        %v5247 = vunpack.c.h.b16 %v5059
        %v5248 = vunpack.c.l.b16 %v5060
        %v5249 = vunpack.c.h.b16 %v5060
        %v5250 = vunpack.c.l.b16 %v5061
        %v5251 = vunpack.c.h.b16 %v5061
        %v5252 = vunpack.c.l.b16 %v5062
        %v5253 = vunpack.c.h.b16 %v5062
        %v5254 = vunpack.c.l.b16 %v5063
        %v5255 = vunpack.c.h.b16 %v5063
        %v5256 = vpack.c.b16 %v5130, %v5128
        %v5257 = vpack.c.b16 %v5131, %v5129
        %v5258 = vpack.c.b16 %v5134, %v5132
        %v5259 = vpack.c.b16 %v5135, %v5133
        %v5260 = vpack.c.b16 %v5138, %v5136
        %v5261 = vpack.c.b16 %v5139, %v5137
        %v5262 = vpack.c.b16 %v5142, %v5140
        %v5263 = vpack.c.b16 %v5143, %v5141
        %v5264 = vpack.c.b16 %v5146, %v5144
        %v5265 = vpack.c.b16 %v5147, %v5145
        %v5266 = vpack.c.b16 %v5150, %v5148
        %v5267 = vpack.c.b16 %v5151, %v5149
        %v5268 = vpack.c.b16 %v5154, %v5152
        %v5269 = vpack.c.b16 %v5155, %v5153
        %v5270 = vpack.c.b16 %v5158, %v5156
        %v5271 = vpack.c.b16 %v5159, %v5157
        %v5272 = vpack.c.b16 %v5162, %v5160
        %v5273 = vpack.c.b16 %v5163, %v5161
        %v5274 = vpack.c.b16 %v5166, %v5164
        %v5275 = vpack.c.b16 %v5167, %v5165
        %v5276 = vpack.c.b16 %v5170, %v5168
        %v5277 = vpack.c.b16 %v5171, %v5169
        %v5278 = vpack.c.b16 %v5174, %v5172
        %v5279 = vpack.c.b16 %v5175, %v5173
        %v5280 = vpack.c.b16 %v5178, %v5176
        %v5281 = vpack.c.b16 %v5179, %v5177
        %v5282 = vpack.c.b16 %v5182, %v5180
        %v5283 = vpack.c.b16 %v5183, %v5181
        %v5284 = vpack.c.b16 %v5186, %v5184
        %v5285 = vpack.c.b16 %v5187, %v5185
        %v5286 = vpack.c.b16 %v5190, %v5188
        %v5287 = vpack.c.b16 %v5191, %v5189
        %v5288 = vpack.c.b16 %v5194, %v5192
        %v5289 = vpack.c.b16 %v5195, %v5193
        %v5290 = vpack.c.b16 %v5198, %v5196
        %v5291 = vpack.c.b16 %v5199, %v5197
        %v5292 = vpack.c.b16 %v5202, %v5200
        %v5293 = vpack.c.b16 %v5203, %v5201
        %v5294 = vpack.c.b16 %v5206, %v5204
        %v5295 = vpack.c.b16 %v5207, %v5205
        %v5296 = vpack.c.b16 %v5210, %v5208
        %v5297 = vpack.c.b16 %v5211, %v5209
        %v5298 = vpack.c.b16 %v5214, %v5212
        %v5299 = vpack.c.b16 %v5215, %v5213
        %v5300 = vpack.c.b16 %v5218, %v5216
        %v5301 = vpack.c.b16 %v5219, %v5217
        %v5302 = vpack.c.b16 %v5222, %v5220
        %v5303 = vpack.c.b16 %v5223, %v5221
        %v5304 = vpack.c.b16 %v5226, %v5224
        %v5305 = vpack.c.b16 %v5227, %v5225
        %v5306 = vpack.c.b16 %v5230, %v5228
        %v5307 = vpack.c.b16 %v5231, %v5229
        %v5308 = vpack.c.b16 %v5234, %v5232
        %v5309 = vpack.c.b16 %v5235, %v5233
        %v5310 = vpack.c.b16 %v5238, %v5236
        %v5311 = vpack.c.b16 %v5239, %v5237
        %v5312 = vpack.c.b16 %v5242, %v5240
        %v5313 = vpack.c.b16 %v5243, %v5241
        %v5314 = vpack.c.b16 %v5246, %v5244
        %v5315 = vpack.c.b16 %v5247, %v5245
        %v5316 = vpack.c.b16 %v5250, %v5248
        %v5317 = vpack.c.b16 %v5251, %v5249
        %v5318 = vpack.c.b16 %v5254, %v5252
        %v5319 = vpack.c.b16 %v5255, %v5253
        %5384 = vmatpush.bf16.msra.mxu0 %v5270
        %5385 = vmatpush.bf16.msra.mxu0 %v5268
        %5386 = vmatpush.bf16.msra.mxu0 %v5266
        %5387 = vmatpush.bf16.msra.mxu0 %v5264
        %5388 = vmatpush.bf16.msra.mxu0 %v5262
        %5389 = vmatpush.bf16.msra.mxu0 %v5260
        %5390 = vmatpush.bf16.msra.mxu0 %v5258
        %5391 = vmatpush.bf16.msra.mxu0 %v5256
        %5392 = vmatmul.bf16.gmra.mxu0 %v4968
        %v5393 = vpop.f32.mrf.mxu0
        %v5394 = vadd.f32 0.0, %v5393
        %v5395 = vpop.f32.mrf.mxu0
        %v5396 = vadd.f32 0.0, %v5395
        %5397 = vmatmul.bf16.gmra.mxu0 %v4972
        %v5398 = vpop.f32.mrf.mxu0
        %v5399 = vadd.f32 0.0, %v5398
        %v5400 = vpop.f32.mrf.mxu0
        %v5401 = vadd.f32 0.0, %v5400
        %5402 = vmatmul.bf16.gmra.mxu0 %v4976
        %v5403 = vpop.f32.mrf.mxu0
        %v5404 = vadd.f32 0.0, %v5403
        %v5405 = vpop.f32.mrf.mxu0
        %v5406 = vadd.f32 0.0, %v5405
        %5407 = vmatmul.bf16.gmra.mxu0 %v4980
        %v5408 = vpop.f32.mrf.mxu0
        %v5409 = vadd.f32 0.0, %v5408
        %v5410 = vpop.f32.mrf.mxu0
        %v5411 = vadd.f32 0.0, %v5410
        %5412 = vmatmul.bf16.gmra.mxu0 %v4984
        %v5413 = vpop.f32.mrf.mxu0
        %v5414 = vadd.f32 0.0, %v5413
        %v5415 = vpop.f32.mrf.mxu0
        %v5416 = vadd.f32 0.0, %v5415
        %5417 = vmatmul.bf16.gmra.mxu0 %v4988
        %v5418 = vpop.f32.mrf.mxu0
        %v5419 = vadd.f32 0.0, %v5418
        %v5420 = vpop.f32.mrf.mxu0
        %v5421 = vadd.f32 0.0, %v5420
        %5422 = vmatmul.bf16.gmra.mxu0 %v4992
        %v5423 = vpop.f32.mrf.mxu0
        %v5424 = vadd.f32 0.0, %v5423
        %v5425 = vpop.f32.mrf.mxu0
        %v5426 = vadd.f32 0.0, %v5425
        %5427 = vmatmul.bf16.gmra.mxu0 %v4996
        %v5428 = vpop.f32.mrf.mxu0
        %v5429 = vadd.f32 0.0, %v5428
        %v5430 = vpop.f32.mrf.mxu0
        %v5431 = vadd.f32 0.0, %v5430
        %5432 = vdwg.mxu0
        %5433 = vmatpush.bf16.msra.mxu0 %v5286
        %5434 = vmatpush.bf16.msra.mxu0 %v5284
        %5435 = vmatpush.bf16.msra.mxu0 %v5282
        %5436 = vmatpush.bf16.msra.mxu0 %v5280
        %5437 = vmatpush.bf16.msra.mxu0 %v5278
        %5438 = vmatpush.bf16.msra.mxu0 %v5276
        %5439 = vmatpush.bf16.msra.mxu0 %v5274
        %5440 = vmatpush.bf16.msra.mxu0 %v5272
        %5441 = vmatmul.bf16.gmra.mxu0 %v4969
        %v5442 = vpop.f32.mrf.mxu0
        %v5443 = vadd.f32 %v5394, %v5442
        %v5444 = vpop.f32.mrf.mxu0
        %v5445 = vadd.f32 %v5396, %v5444
        %5446 = vmatmul.bf16.gmra.mxu0 %v4973
        %v5447 = vpop.f32.mrf.mxu0
        %v5448 = vadd.f32 %v5399, %v5447
        %v5449 = vpop.f32.mrf.mxu0
        %v5450 = vadd.f32 %v5401, %v5449
        %5451 = vmatmul.bf16.gmra.mxu0 %v4977
        %v5452 = vpop.f32.mrf.mxu0
        %v5453 = vadd.f32 %v5404, %v5452
        %v5454 = vpop.f32.mrf.mxu0
        %v5455 = vadd.f32 %v5406, %v5454
        %5456 = vmatmul.bf16.gmra.mxu0 %v4981
        %v5457 = vpop.f32.mrf.mxu0
        %v5458 = vadd.f32 %v5409, %v5457
        %v5459 = vpop.f32.mrf.mxu0
        %v5460 = vadd.f32 %v5411, %v5459
        %5461 = vmatmul.bf16.gmra.mxu0 %v4985
        %v5462 = vpop.f32.mrf.mxu0
        %v5463 = vadd.f32 %v5414, %v5462
        %v5464 = vpop.f32.mrf.mxu0
        %v5465 = vadd.f32 %v5416, %v5464
        %5466 = vmatmul.bf16.gmra.mxu0 %v4989
        %v5467 = vpop.f32.mrf.mxu0
        %v5468 = vadd.f32 %v5419, %v5467
        %v5469 = vpop.f32.mrf.mxu0
        %v5470 = vadd.f32 %v5421, %v5469
        %5471 = vmatmul.bf16.gmra.mxu0 %v4993
        %v5472 = vpop.f32.mrf.mxu0
        %v5473 = vadd.f32 %v5424, %v5472
        %v5474 = vpop.f32.mrf.mxu0
        %v5475 = vadd.f32 %v5426, %v5474
        %5476 = vmatmul.bf16.gmra.mxu0 %v4997
        %v5477 = vpop.f32.mrf.mxu0
        %v5478 = vadd.f32 %v5429, %v5477
        %v5479 = vpop.f32.mrf.mxu0
        %v5480 = vadd.f32 %v5431, %v5479
        %5481 = vdwg.mxu0
        %5482 = vmatpush.bf16.msra.mxu0 %v5302
        %5483 = vmatpush.bf16.msra.mxu0 %v5300
        %5484 = vmatpush.bf16.msra.mxu0 %v5298
        %5485 = vmatpush.bf16.msra.mxu0 %v5296
        %5486 = vmatpush.bf16.msra.mxu0 %v5294
        %5487 = vmatpush.bf16.msra.mxu0 %v5292
        %5488 = vmatpush.bf16.msra.mxu0 %v5290
        %5489 = vmatpush.bf16.msra.mxu0 %v5288
        %5490 = vmatmul.bf16.gmra.mxu0 %v4970
        %v5491 = vpop.f32.mrf.mxu0
        %v5492 = vadd.f32 %v5443, %v5491
        %v5493 = vpop.f32.mrf.mxu0
        %v5494 = vadd.f32 %v5445, %v5493
        %5495 = vmatmul.bf16.gmra.mxu0 %v4974
        %v5496 = vpop.f32.mrf.mxu0
        %v5497 = vadd.f32 %v5448, %v5496
        %v5498 = vpop.f32.mrf.mxu0
        %v5499 = vadd.f32 %v5450, %v5498
        %5500 = vmatmul.bf16.gmra.mxu0 %v4978
        %v5501 = vpop.f32.mrf.mxu0
        %v5502 = vadd.f32 %v5453, %v5501
        %v5503 = vpop.f32.mrf.mxu0
        %v5504 = vadd.f32 %v5455, %v5503
        %5505 = vmatmul.bf16.gmra.mxu0 %v4982
        %v5506 = vpop.f32.mrf.mxu0
        %v5507 = vadd.f32 %v5458, %v5506
        %v5508 = vpop.f32.mrf.mxu0
        %v5509 = vadd.f32 %v5460, %v5508
        %5510 = vmatmul.bf16.gmra.mxu0 %v4986
        %v5511 = vpop.f32.mrf.mxu0
        %v5512 = vadd.f32 %v5463, %v5511
        %v5513 = vpop.f32.mrf.mxu0
        %v5514 = vadd.f32 %v5465, %v5513
        %5515 = vmatmul.bf16.gmra.mxu0 %v4990
        %v5516 = vpop.f32.mrf.mxu0
        %v5517 = vadd.f32 %v5468, %v5516
        %v5518 = vpop.f32.mrf.mxu0
        %v5519 = vadd.f32 %v5470, %v5518
        %5520 = vmatmul.bf16.gmra.mxu0 %v4994
        %v5521 = vpop.f32.mrf.mxu0
        %v5522 = vadd.f32 %v5473, %v5521
        %v5523 = vpop.f32.mrf.mxu0
        %v5524 = vadd.f32 %v5475, %v5523
        %5525 = vmatmul.bf16.gmra.mxu0 %v4998
        %v5526 = vpop.f32.mrf.mxu0
        %v5527 = vadd.f32 %v5478, %v5526
        %v5528 = vpop.f32.mrf.mxu0
        %v5529 = vadd.f32 %v5480, %v5528
        %5530 = vdwg.mxu0
        %5531 = vmatpush.bf16.msra.mxu0 %v5318
        %5532 = vmatpush.bf16.msra.mxu0 %v5316
        %5533 = vmatpush.bf16.msra.mxu0 %v5314
        %5534 = vmatpush.bf16.msra.mxu0 %v5312
        %5535 = vmatpush.bf16.msra.mxu0 %v5310
        %5536 = vmatpush.bf16.msra.mxu0 %v5308
        %5537 = vmatpush.bf16.msra.mxu0 %v5306
        %5538 = vmatpush.bf16.msra.mxu0 %v5304
        %5539 = vmatmul.bf16.gmra.mxu0 %v4971
        %v5540 = vpop.f32.mrf.mxu0
        %v5541 = vadd.f32 %v5492, %v5540
        %v5542 = vpop.f32.mrf.mxu0
        %v5543 = vadd.f32 %v5494, %v5542
        %5544 = vmatmul.bf16.gmra.mxu0 %v4975
        %v5545 = vpop.f32.mrf.mxu0
        %v5546 = vadd.f32 %v5497, %v5545
        %v5547 = vpop.f32.mrf.mxu0
        %v5548 = vadd.f32 %v5499, %v5547
        %5549 = vmatmul.bf16.gmra.mxu0 %v4979
        %v5550 = vpop.f32.mrf.mxu0
        %v5551 = vadd.f32 %v5502, %v5550
        %v5552 = vpop.f32.mrf.mxu0
        %v5553 = vadd.f32 %v5504, %v5552
        %5554 = vmatmul.bf16.gmra.mxu0 %v4983
        %v5555 = vpop.f32.mrf.mxu0
        %v5556 = vadd.f32 %v5507, %v5555
        %v5557 = vpop.f32.mrf.mxu0
        %v5558 = vadd.f32 %v5509, %v5557
        %5559 = vmatmul.bf16.gmra.mxu0 %v4987
        %v5560 = vpop.f32.mrf.mxu0
        %v5561 = vadd.f32 %v5512, %v5560
        %v5562 = vpop.f32.mrf.mxu0
        %v5563 = vadd.f32 %v5514, %v5562
        %5564 = vmatmul.bf16.gmra.mxu0 %v4991
        %v5565 = vpop.f32.mrf.mxu0
        %v5566 = vadd.f32 %v5517, %v5565
        %v5567 = vpop.f32.mrf.mxu0
        %v5568 = vadd.f32 %v5519, %v5567
        %5569 = vmatmul.bf16.gmra.mxu0 %v4995
        %v5570 = vpop.f32.mrf.mxu0
        %v5571 = vadd.f32 %v5522, %v5570
        %v5572 = vpop.f32.mrf.mxu0
        %v5573 = vadd.f32 %v5524, %v5572
        %5574 = vmatmul.bf16.gmra.mxu0 %v4999
        %v5575 = vpop.f32.mrf.mxu0
        %v5576 = vadd.f32 %v5527, %v5575
        %v5577 = vpop.f32.mrf.mxu0
        %v5578 = vadd.f32 %v5529, %v5577
        %5579 = vdwg.mxu0
        %5580 = vmatpush.bf16.msra.mxu0 %v5271
        %5581 = vmatpush.bf16.msra.mxu0 %v5269
        %5582 = vmatpush.bf16.msra.mxu0 %v5267
        %5583 = vmatpush.bf16.msra.mxu0 %v5265
        %5584 = vmatpush.bf16.msra.mxu0 %v5263
        %5585 = vmatpush.bf16.msra.mxu0 %v5261
        %5586 = vmatpush.bf16.msra.mxu0 %v5259
        %5587 = vmatpush.bf16.msra.mxu0 %v5257
        %5588 = vmatmul.bf16.gmra.mxu0 %v4968
        %v5589 = vpop.f32.mrf.mxu0
        %v5590 = vadd.f32 0.0, %v5589
        %v5591 = vpop.f32.mrf.mxu0
        %v5592 = vadd.f32 0.0, %v5591
        %5593 = vmatmul.bf16.gmra.mxu0 %v4972
        %v5594 = vpop.f32.mrf.mxu0
        %v5595 = vadd.f32 0.0, %v5594
        %v5596 = vpop.f32.mrf.mxu0
        %v5597 = vadd.f32 0.0, %v5596
        %5598 = vmatmul.bf16.gmra.mxu0 %v4976
        %v5599 = vpop.f32.mrf.mxu0
        %v5600 = vadd.f32 0.0, %v5599
        %v5601 = vpop.f32.mrf.mxu0
        %v5602 = vadd.f32 0.0, %v5601
        %5603 = vmatmul.bf16.gmra.mxu0 %v4980
        %v5604 = vpop.f32.mrf.mxu0
        %v5605 = vadd.f32 0.0, %v5604
        %v5606 = vpop.f32.mrf.mxu0
        %v5607 = vadd.f32 0.0, %v5606
        %5608 = vmatmul.bf16.gmra.mxu0 %v4984
        %v5609 = vpop.f32.mrf.mxu0
        %v5610 = vadd.f32 0.0, %v5609
        %v5611 = vpop.f32.mrf.mxu0
        %v5612 = vadd.f32 0.0, %v5611
        %5613 = vmatmul.bf16.gmra.mxu0 %v4988
        %v5614 = vpop.f32.mrf.mxu0
        %v5615 = vadd.f32 0.0, %v5614
        %v5616 = vpop.f32.mrf.mxu0
        %v5617 = vadd.f32 0.0, %v5616
        %5618 = vmatmul.bf16.gmra.mxu0 %v4992
        %v5619 = vpop.f32.mrf.mxu0
        %v5620 = vadd.f32 0.0, %v5619
        %v5621 = vpop.f32.mrf.mxu0
        %v5622 = vadd.f32 0.0, %v5621
        %5623 = vmatmul.bf16.gmra.mxu0 %v4996
        %v5624 = vpop.f32.mrf.mxu0
        %v5625 = vadd.f32 0.0, %v5624
        %v5626 = vpop.f32.mrf.mxu0
        %v5627 = vadd.f32 0.0, %v5626
        %5628 = vdwg.mxu0
        %5629 = vmatpush.bf16.msra.mxu0 %v5287
        %5630 = vmatpush.bf16.msra.mxu0 %v5285
        %5631 = vmatpush.bf16.msra.mxu0 %v5283
        %5632 = vmatpush.bf16.msra.mxu0 %v5281
        %5633 = vmatpush.bf16.msra.mxu0 %v5279
        %5634 = vmatpush.bf16.msra.mxu0 %v5277
        %5635 = vmatpush.bf16.msra.mxu0 %v5275
        %5636 = vmatpush.bf16.msra.mxu0 %v5273
        %5637 = vmatmul.bf16.gmra.mxu0 %v4969
        %v5638 = vpop.f32.mrf.mxu0
        %v5639 = vadd.f32 %v5590, %v5638
        %v5640 = vpop.f32.mrf.mxu0
        %v5641 = vadd.f32 %v5592, %v5640
        %5642 = vmatmul.bf16.gmra.mxu0 %v4973
        %v5643 = vpop.f32.mrf.mxu0
        %v5644 = vadd.f32 %v5595, %v5643
        %v5645 = vpop.f32.mrf.mxu0
        %v5646 = vadd.f32 %v5597, %v5645
        %5647 = vmatmul.bf16.gmra.mxu0 %v4977
        %v5648 = vpop.f32.mrf.mxu0
        %v5649 = vadd.f32 %v5600, %v5648
        %v5650 = vpop.f32.mrf.mxu0
        %v5651 = vadd.f32 %v5602, %v5650
        %5652 = vmatmul.bf16.gmra.mxu0 %v4981
        %v5653 = vpop.f32.mrf.mxu0
        %v5654 = vadd.f32 %v5605, %v5653
        %v5655 = vpop.f32.mrf.mxu0
        %v5656 = vadd.f32 %v5607, %v5655
        %5657 = vmatmul.bf16.gmra.mxu0 %v4985
        %v5658 = vpop.f32.mrf.mxu0
        %v5659 = vadd.f32 %v5610, %v5658
        %v5660 = vpop.f32.mrf.mxu0
        %v5661 = vadd.f32 %v5612, %v5660
        %5662 = vmatmul.bf16.gmra.mxu0 %v4989
        %v5663 = vpop.f32.mrf.mxu0
        %v5664 = vadd.f32 %v5615, %v5663
        %v5665 = vpop.f32.mrf.mxu0
        %v5666 = vadd.f32 %v5617, %v5665
        %5667 = vmatmul.bf16.gmra.mxu0 %v4993
        %v5668 = vpop.f32.mrf.mxu0
        %v5669 = vadd.f32 %v5620, %v5668
        %v5670 = vpop.f32.mrf.mxu0
        %v5671 = vadd.f32 %v5622, %v5670
        %5672 = vmatmul.bf16.gmra.mxu0 %v4997
        %v5673 = vpop.f32.mrf.mxu0
        %v5674 = vadd.f32 %v5625, %v5673
        %v5675 = vpop.f32.mrf.mxu0
        %v5676 = vadd.f32 %v5627, %v5675
        %5677 = vdwg.mxu0
        %5678 = vmatpush.bf16.msra.mxu0 %v5303
        %5679 = vmatpush.bf16.msra.mxu0 %v5301
        %5680 = vmatpush.bf16.msra.mxu0 %v5299
        %5681 = vmatpush.bf16.msra.mxu0 %v5297
        %5682 = vmatpush.bf16.msra.mxu0 %v5295
        %5683 = vmatpush.bf16.msra.mxu0 %v5293
        %5684 = vmatpush.bf16.msra.mxu0 %v5291
        %5685 = vmatpush.bf16.msra.mxu0 %v5289
        %5686 = vmatmul.bf16.gmra.mxu0 %v4970
        %v5687 = vpop.f32.mrf.mxu0
        %v5688 = vadd.f32 %v5639, %v5687
        %v5689 = vpop.f32.mrf.mxu0
        %v5690 = vadd.f32 %v5641, %v5689
        %5691 = vmatmul.bf16.gmra.mxu0 %v4974
        %v5692 = vpop.f32.mrf.mxu0
        %v5693 = vadd.f32 %v5644, %v5692
        %v5694 = vpop.f32.mrf.mxu0
        %v5695 = vadd.f32 %v5646, %v5694
        %5696 = vmatmul.bf16.gmra.mxu0 %v4978
        %v5697 = vpop.f32.mrf.mxu0
        %v5698 = vadd.f32 %v5649, %v5697
        %v5699 = vpop.f32.mrf.mxu0
        %v5700 = vadd.f32 %v5651, %v5699
        %5701 = vmatmul.bf16.gmra.mxu0 %v4982
        %v5702 = vpop.f32.mrf.mxu0
        %v5703 = vadd.f32 %v5654, %v5702
        %v5704 = vpop.f32.mrf.mxu0
        %v5705 = vadd.f32 %v5656, %v5704
        %5706 = vmatmul.bf16.gmra.mxu0 %v4986
        %v5707 = vpop.f32.mrf.mxu0
        %v5708 = vadd.f32 %v5659, %v5707
        %v5709 = vpop.f32.mrf.mxu0
        %v5710 = vadd.f32 %v5661, %v5709
        %5711 = vmatmul.bf16.gmra.mxu0 %v4990
        %v5712 = vpop.f32.mrf.mxu0
        %v5713 = vadd.f32 %v5664, %v5712
        %v5714 = vpop.f32.mrf.mxu0
        %v5715 = vadd.f32 %v5666, %v5714
        %5716 = vmatmul.bf16.gmra.mxu0 %v4994
        %v5717 = vpop.f32.mrf.mxu0
        %v5718 = vadd.f32 %v5669, %v5717
        %v5719 = vpop.f32.mrf.mxu0
        %v5720 = vadd.f32 %v5671, %v5719
        %5721 = vmatmul.bf16.gmra.mxu0 %v4998
        %v5722 = vpop.f32.mrf.mxu0
        %v5723 = vadd.f32 %v5674, %v5722
        %v5724 = vpop.f32.mrf.mxu0
        %v5725 = vadd.f32 %v5676, %v5724
        %5726 = vdwg.mxu0
        %5727 = vmatpush.bf16.msra.mxu0 %v5319
        %5728 = vmatpush.bf16.msra.mxu0 %v5317
        %5729 = vmatpush.bf16.msra.mxu0 %v5315
        %5730 = vmatpush.bf16.msra.mxu0 %v5313
        %5731 = vmatpush.bf16.msra.mxu0 %v5311
        %5732 = vmatpush.bf16.msra.mxu0 %v5309
        %5733 = vmatpush.bf16.msra.mxu0 %v5307
        %5734 = vmatpush.bf16.msra.mxu0 %v5305
        %5735 = vmatmul.bf16.gmra.mxu0 %v4971
        %v5736 = vpop.f32.mrf.mxu0
        %v5737 = vadd.f32 %v5688, %v5736
        %v5738 = vpop.f32.mrf.mxu0
        %v5739 = vadd.f32 %v5690, %v5738
        %5740 = vmatmul.bf16.gmra.mxu0 %v4975
        %v5741 = vpop.f32.mrf.mxu0
        %v5742 = vadd.f32 %v5693, %v5741
        %v5743 = vpop.f32.mrf.mxu0
        %v5744 = vadd.f32 %v5695, %v5743
        %5745 = vmatmul.bf16.gmra.mxu0 %v4979
        %v5746 = vpop.f32.mrf.mxu0
        %v5747 = vadd.f32 %v5698, %v5746
        %v5748 = vpop.f32.mrf.mxu0
        %v5749 = vadd.f32 %v5700, %v5748
        %5750 = vmatmul.bf16.gmra.mxu0 %v4983
        %v5751 = vpop.f32.mrf.mxu0
        %v5752 = vadd.f32 %v5703, %v5751
        %v5753 = vpop.f32.mrf.mxu0
        %v5754 = vadd.f32 %v5705, %v5753
        %5755 = vmatmul.bf16.gmra.mxu0 %v4987
        %v5756 = vpop.f32.mrf.mxu0
        %v5757 = vadd.f32 %v5708, %v5756
        %v5758 = vpop.f32.mrf.mxu0
        %v5759 = vadd.f32 %v5710, %v5758
        %5760 = vmatmul.bf16.gmra.mxu0 %v4991
        %v5761 = vpop.f32.mrf.mxu0
        %v5762 = vadd.f32 %v5713, %v5761
        %v5763 = vpop.f32.mrf.mxu0
        %v5764 = vadd.f32 %v5715, %v5763
        %5765 = vmatmul.bf16.gmra.mxu0 %v4995
        %v5766 = vpop.f32.mrf.mxu0
        %v5767 = vadd.f32 %v5718, %v5766
        %v5768 = vpop.f32.mrf.mxu0
        %v5769 = vadd.f32 %v5720, %v5768
        %5770 = vmatmul.bf16.gmra.mxu0 %v4999
        %v5771 = vpop.f32.mrf.mxu0
        %v5772 = vadd.f32 %v5723, %v5771
        %v5773 = vpop.f32.mrf.mxu0
        %v5774 = vadd.f32 %v5725, %v5773
        %5775 = vdwg.mxu0
        %v5776 = vld [vmem:[%s1074] sm:$0xff]
        %v5777 = vld [vmem:[%s1074 + $0x8] sm:$0xff]
        %v5778 = vld [vmem:[%s1074 + $0x10] sm:$0xff]
        %v5779 = vld [vmem:[%s1074 + $0x18] sm:$0xff]
        %v5780 = vld [vmem:[%s1074 + $0x20] sm:$0xff]
        %v5781 = vld [vmem:[%s1074 + $0x28] sm:$0xff]
        %v5782 = vld [vmem:[%s1074 + $0x30] sm:$0xff]
        %v5783 = vld [vmem:[%s1074 + $0x38] sm:$0xff]
        %v5784 = vld [vmem:[%s1074 + $0x40] sm:$0xff]
        %v5785 = vld [vmem:[%s1074 + $0x48] sm:$0xff]
        %v5786 = vld [vmem:[%s1074 + $0x50] sm:$0xff]
        %v5787 = vld [vmem:[%s1074 + $0x58] sm:$0xff]
        %v5788 = vld [vmem:[%s1074 + $0x60] sm:$0xff]
        %v5789 = vld [vmem:[%s1074 + $0x68] sm:$0xff]
        %v5790 = vld [vmem:[%s1074 + $0x70] sm:$0xff]
        %v5791 = vld [vmem:[%s1074 + $0x78] sm:$0xff]
        %v5792 = vld [vmem:[%s1074 + $0x80] sm:$0xff]
        %v5793 = vld [vmem:[%s1074 + $0x88] sm:$0xff]
        %v5794 = vld [vmem:[%s1074 + $0x90] sm:$0xff]
        %v5795 = vld [vmem:[%s1074 + $0x98] sm:$0xff]
        %v5796 = vld [vmem:[%s1074 + $0xa0] sm:$0xff]
        %v5797 = vld [vmem:[%s1074 + $0xa8] sm:$0xff]
        %v5798 = vld [vmem:[%s1074 + $0xb0] sm:$0xff]
        %v5799 = vld [vmem:[%s1074 + $0xb8] sm:$0xff]
        %v5800 = vld [vmem:[%s1074 + $0xc0] sm:$0xff]
        %v5801 = vld [vmem:[%s1074 + $0xc8] sm:$0xff]
        %v5802 = vld [vmem:[%s1074 + $0xd0] sm:$0xff]
        %v5803 = vld [vmem:[%s1074 + $0xd8] sm:$0xff]
        %v5804 = vld [vmem:[%s1074 + $0xe0] sm:$0xff]
        %v5805 = vld [vmem:[%s1074 + $0xe8] sm:$0xff]
        %v5806 = vld [vmem:[%s1074 + $0xf0] sm:$0xff]
        %v5807 = vld [vmem:[%s1074 + $0xf8] sm:$0xff]
        %5808 = vmatpush.msra.mxu0 %v5791
        %5809 = vmatpush.msra.mxu0 %v5790
        %5810 = vmatpush.msra.mxu0 %v5789
        %5811 = vmatpush.msra.mxu0 %v5788
        %5812 = vmatpush.msra.mxu0 %v5787
        %5813 = vmatpush.msra.mxu0 %v5786
        %5814 = vmatpush.msra.mxu0 %v5785
        %5815 = vmatpush.msra.mxu0 %v5784
        %5816 = vmatpush.msra.mxu0 %v5783
        %5817 = vmatpush.msra.mxu0 %v5782
        %5818 = vmatpush.msra.mxu0 %v5781
        %5819 = vmatpush.msra.mxu0 %v5780
        %5820 = vmatpush.msra.mxu0 %v5779
        %5821 = vmatpush.msra.mxu0 %v5778
        %5822 = vmatpush.msra.mxu0 %v5777
        %5823 = vmatpush.msra.mxu0 %v5776
        %5824 = vmatmul.f32.gmra.mxu0 %v5541
        %v5825 = vpop.f32.mrf.mxu0
        %v5826 = vadd.f32 0.0, %v5825
        %5827 = vmatmul.f32.gmra.mxu0 %v5543
        %v5828 = vpop.f32.mrf.mxu0
        %v5829 = vadd.f32 0.0, %v5828
        %5830 = vmatmul.f32.gmra.mxu0 %v5546
        %v5831 = vpop.f32.mrf.mxu0
        %v5832 = vadd.f32 0.0, %v5831
        %5833 = vmatmul.f32.gmra.mxu0 %v5548
        %v5834 = vpop.f32.mrf.mxu0
        %v5835 = vadd.f32 0.0, %v5834
        %5836 = vmatmul.f32.gmra.mxu0 %v5551
        %v5837 = vpop.f32.mrf.mxu0
        %v5838 = vadd.f32 0.0, %v5837
        %5839 = vmatmul.f32.gmra.mxu0 %v5553
        %v5840 = vpop.f32.mrf.mxu0
        %v5841 = vadd.f32 0.0, %v5840
        %5842 = vmatmul.f32.gmra.mxu0 %v5556
        %v5843 = vpop.f32.mrf.mxu0
        %v5844 = vadd.f32 0.0, %v5843
        %5845 = vmatmul.f32.gmra.mxu0 %v5558
        %v5846 = vpop.f32.mrf.mxu0
        %v5847 = vadd.f32 0.0, %v5846
        %5848 = vmatmul.f32.gmra.mxu0 %v5561
        %v5849 = vpop.f32.mrf.mxu0
        %v5850 = vadd.f32 0.0, %v5849
        %5851 = vmatmul.f32.gmra.mxu0 %v5563
        %v5852 = vpop.f32.mrf.mxu0
        %v5853 = vadd.f32 0.0, %v5852
        %5854 = vmatmul.f32.gmra.mxu0 %v5566
        %v5855 = vpop.f32.mrf.mxu0
        %v5856 = vadd.f32 0.0, %v5855
        %5857 = vmatmul.f32.gmra.mxu0 %v5568
        %v5858 = vpop.f32.mrf.mxu0
        %v5859 = vadd.f32 0.0, %v5858
        %5860 = vmatmul.f32.gmra.mxu0 %v5571
        %v5861 = vpop.f32.mrf.mxu0
        %v5862 = vadd.f32 0.0, %v5861
        %5863 = vmatmul.f32.gmra.mxu0 %v5573
        %v5864 = vpop.f32.mrf.mxu0
        %v5865 = vadd.f32 0.0, %v5864
        %5866 = vmatmul.f32.gmra.mxu0 %v5576
        %v5867 = vpop.f32.mrf.mxu0
        %v5868 = vadd.f32 0.0, %v5867
        %5869 = vmatmul.f32.gmra.mxu0 %v5578
        %v5870 = vpop.f32.mrf.mxu0
        %v5871 = vadd.f32 0.0, %v5870
        %5872 = vdwg.mxu0
        %5873 = vmatpush.msra.mxu0 %v5807
        %5874 = vmatpush.msra.mxu0 %v5806
        %5875 = vmatpush.msra.mxu0 %v5805
        %5876 = vmatpush.msra.mxu0 %v5804
        %5877 = vmatpush.msra.mxu0 %v5803
        %5878 = vmatpush.msra.mxu0 %v5802
        %5879 = vmatpush.msra.mxu0 %v5801
        %5880 = vmatpush.msra.mxu0 %v5800
        %5881 = vmatpush.msra.mxu0 %v5799
        %5882 = vmatpush.msra.mxu0 %v5798
        %5883 = vmatpush.msra.mxu0 %v5797
        %5884 = vmatpush.msra.mxu0 %v5796
        %5885 = vmatpush.msra.mxu0 %v5795
        %5886 = vmatpush.msra.mxu0 %v5794
        %5887 = vmatpush.msra.mxu0 %v5793
        %5888 = vmatpush.msra.mxu0 %v5792
        %5889 = vmatmul.f32.gmra.mxu0 %v5737
        %v5890 = vpop.f32.mrf.mxu0
        %v5891 = vadd.f32 %v5826, %v5890
        %5892 = vmatmul.f32.gmra.mxu0 %v5739
        %v5893 = vpop.f32.mrf.mxu0
        %v5894 = vadd.f32 %v5829, %v5893
        %5895 = vmatmul.f32.gmra.mxu0 %v5742
        %v5896 = vpop.f32.mrf.mxu0
        %v5897 = vadd.f32 %v5832, %v5896
        %5898 = vmatmul.f32.gmra.mxu0 %v5744
        %v5899 = vpop.f32.mrf.mxu0
        %v5900 = vadd.f32 %v5835, %v5899
        %5901 = vmatmul.f32.gmra.mxu0 %v5747
        %v5902 = vpop.f32.mrf.mxu0
        %v5903 = vadd.f32 %v5838, %v5902
        %5904 = vmatmul.f32.gmra.mxu0 %v5749
        %v5905 = vpop.f32.mrf.mxu0
        %v5906 = vadd.f32 %v5841, %v5905
        %5907 = vmatmul.f32.gmra.mxu0 %v5752
        %v5908 = vpop.f32.mrf.mxu0
        %v5909 = vadd.f32 %v5844, %v5908
        %5910 = vmatmul.f32.gmra.mxu0 %v5754
        %v5911 = vpop.f32.mrf.mxu0
        %v5912 = vadd.f32 %v5847, %v5911
        %5913 = vmatmul.f32.gmra.mxu0 %v5757
        %v5914 = vpop.f32.mrf.mxu0
        %v5915 = vadd.f32 %v5850, %v5914
        %5916 = vmatmul.f32.gmra.mxu0 %v5759
        %v5917 = vpop.f32.mrf.mxu0
        %v5918 = vadd.f32 %v5853, %v5917
        %5919 = vmatmul.f32.gmra.mxu0 %v5762
        %v5920 = vpop.f32.mrf.mxu0
        %v5921 = vadd.f32 %v5856, %v5920
        %5922 = vmatmul.f32.gmra.mxu0 %v5764
        %v5923 = vpop.f32.mrf.mxu0
        %v5924 = vadd.f32 %v5859, %v5923
        %5925 = vmatmul.f32.gmra.mxu0 %v5767
        %v5926 = vpop.f32.mrf.mxu0
        %v5927 = vadd.f32 %v5862, %v5926
        %5928 = vmatmul.f32.gmra.mxu0 %v5769
        %v5929 = vpop.f32.mrf.mxu0
        %v5930 = vadd.f32 %v5865, %v5929
        %5931 = vmatmul.f32.gmra.mxu0 %v5772
        %v5932 = vpop.f32.mrf.mxu0
        %v5933 = vadd.f32 %v5868, %v5932
        %5934 = vmatmul.f32.gmra.mxu0 %v5774
        %v5935 = vpop.f32.mrf.mxu0
        %v5936 = vadd.f32 %v5871, %v5935
        %5937 = vdwg.mxu0
        %v5938 = vld [vmem:[%s859] sm:$0x3]
        %v5940 = vperm.slane %v5938, 0
        %v5941 = vperm.slane %v5938, 1
        %5944 = vmatpush.xpose.msra.mxu0 %v5578
        %5945 = vmatpush.xpose.msra.mxu0 %v5576
        %5946 = vmatpush.xpose.msra.mxu0 %v5573
        %5947 = vmatpush.xpose.msra.mxu0 %v5571
        %5948 = vmatpush.xpose.msra.mxu0 %v5568
        %5949 = vmatpush.xpose.msra.mxu0 %v5566
        %5950 = vmatpush.xpose.msra.mxu0 %v5563
        %5951 = vmatpush.xpose.msra.mxu0 %v5561
        %5952 = vmatpush.xpose.msra.mxu0 %v5558
        %5953 = vmatpush.xpose.msra.mxu0 %v5556
        %5954 = vmatpush.xpose.msra.mxu0 %v5553
        %5955 = vmatpush.xpose.msra.mxu0 %v5551
        %5956 = vmatpush.xpose.msra.mxu0 %v5548
        %5957 = vmatpush.xpose.msra.mxu0 %v5546
        %5958 = vmatpush.xpose.msra.mxu0 %v5543
        %5959 = vmatpush.xpose.msra.mxu0 %v5541
        %5960 = vmatmul.f32.gmra.mxu0 %v5940
        %v5961 = vpop.f32.mrf.mxu0
        %v5962 = vadd.f32 0.0, %v5961
        %5963 = vdwg.mxu0
        %5964 = vmatpush.xpose.msra.mxu0 %v5774
        %5965 = vmatpush.xpose.msra.mxu0 %v5772
        %5966 = vmatpush.xpose.msra.mxu0 %v5769
        %5967 = vmatpush.xpose.msra.mxu0 %v5767
        %5968 = vmatpush.xpose.msra.mxu0 %v5764
        %5969 = vmatpush.xpose.msra.mxu0 %v5762
        %5970 = vmatpush.xpose.msra.mxu0 %v5759
        %5971 = vmatpush.xpose.msra.mxu0 %v5757
        %5972 = vmatpush.xpose.msra.mxu0 %v5754
        %5973 = vmatpush.xpose.msra.mxu0 %v5752
        %5974 = vmatpush.xpose.msra.mxu0 %v5749
        %5975 = vmatpush.xpose.msra.mxu0 %v5747
        %5976 = vmatpush.xpose.msra.mxu0 %v5744
        %5977 = vmatpush.xpose.msra.mxu0 %v5742
        %5978 = vmatpush.xpose.msra.mxu0 %v5739
        %5979 = vmatpush.xpose.msra.mxu0 %v5737
        %5980 = vmatmul.f32.gmra.mxu0 %v5941
        %v5981 = vpop.f32.mrf.mxu0
        %v5982 = vadd.f32 %v5962, %v5981
        %5983 = vdwg.mxu0
        %v5984 = vpack.c.bf16 %v5543, %v5541
        %v5985 = vpack.c.bf16 %v5739, %v5737
        %v5986 = vpack.c.bf16 %v5548, %v5546
        %v5987 = vpack.c.bf16 %v5744, %v5742
        %v5988 = vpack.c.bf16 %v5553, %v5551
        %v5989 = vpack.c.bf16 %v5749, %v5747
        %v5990 = vpack.c.bf16 %v5558, %v5556
        %v5991 = vpack.c.bf16 %v5754, %v5752
        %v5992 = vpack.c.bf16 %v5563, %v5561
        %v5993 = vpack.c.bf16 %v5759, %v5757
        %v5994 = vpack.c.bf16 %v5568, %v5566
        %v5995 = vpack.c.bf16 %v5764, %v5762
        %v5996 = vpack.c.bf16 %v5573, %v5571
        %v5997 = vpack.c.bf16 %v5769, %v5767
        %v5998 = vpack.c.bf16 %v5578, %v5576
        %v5999 = vpack.c.bf16 %v5774, %v5772
        %6001 = vset.pattern.permute.xlu0 0
        %6002 = vperm.xlu0 %6001, %v5891
        %v6003 = vpop.permute.xlu0 %6002
        %6006 = vset.pattern.permute.xlu0 0
        %6007 = vperm.xlu0 %6006, %v5894
        %v6008 = vpop.permute.xlu0 %6007
        %6011 = vset.pattern.permute.xlu0 0
        %6012 = vperm.xlu0 %6011, %v5897
        %v6013 = vpop.permute.xlu0 %6012
        %6016 = vset.pattern.permute.xlu0 0
        %6017 = vperm.xlu0 %6016, %v5900
        %v6018 = vpop.permute.xlu0 %6017
        %6021 = vset.pattern.permute.xlu0 0
        %6022 = vperm.xlu0 %6021, %v5903
        %v6023 = vpop.permute.xlu0 %6022
        %6026 = vset.pattern.permute.xlu0 0
        %6027 = vperm.xlu0 %6026, %v5906
        %v6028 = vpop.permute.xlu0 %6027
        %6031 = vset.pattern.permute.xlu0 0
        %6032 = vperm.xlu0 %6031, %v5909
        %v6033 = vpop.permute.xlu0 %6032
        %6036 = vset.pattern.permute.xlu0 0
        %6037 = vperm.xlu0 %6036, %v5912
        %v6038 = vpop.permute.xlu0 %6037
        %6041 = vset.pattern.permute.xlu0 0
        %6042 = vperm.xlu0 %6041, %v5915
        %v6043 = vpop.permute.xlu0 %6042
        %6046 = vset.pattern.permute.xlu0 0
        %6047 = vperm.xlu0 %6046, %v5918
        %v6048 = vpop.permute.xlu0 %6047
        %6051 = vset.pattern.permute.xlu0 0
        %6052 = vperm.xlu0 %6051, %v5921
        %v6053 = vpop.permute.xlu0 %6052
        %6056 = vset.pattern.permute.xlu0 0
        %6057 = vperm.xlu0 %6056, %v5924
        %v6058 = vpop.permute.xlu0 %6057
        %6061 = vset.pattern.permute.xlu0 0
        %6062 = vperm.xlu0 %6061, %v5927
        %v6063 = vpop.permute.xlu0 %6062
        %6066 = vset.pattern.permute.xlu0 0
        %6067 = vperm.xlu0 %6066, %v5930
        %v6068 = vpop.permute.xlu0 %6067
        %6071 = vset.pattern.permute.xlu0 0
        %6072 = vperm.xlu0 %6071, %v5933
        %v6073 = vpop.permute.xlu0 %6072
        %6076 = vset.pattern.permute.xlu0 0
        %6077 = vperm.xlu0 %6076, %v5936
        %v6078 = vpop.permute.xlu0 %6077
        %v6080 = vperm.slane %v5982, 0
        %v6081 = vadd.f32 %v6003, %v6080
        %v6082 = vadd.f32 %v6008, %v6080
        %v6083 = vadd.f32 %v6013, %v6080
        %v6084 = vadd.f32 %v6018, %v6080
        %v6085 = vadd.f32 %v6023, %v6080
        %v6086 = vadd.f32 %v6028, %v6080
        %v6087 = vadd.f32 %v6033, %v6080
        %v6088 = vadd.f32 %v6038, %v6080
        %v6089 = vadd.f32 %v6043, %v6080
        %v6090 = vadd.f32 %v6048, %v6080
        %v6091 = vadd.f32 %v6053, %v6080
        %v6092 = vadd.f32 %v6058, %v6080
        %v6093 = vadd.f32 %v6063, %v6080
        %v6094 = vadd.f32 %v6068, %v6080
        %v6095 = vadd.f32 %v6073, %v6080
        %v6096 = vadd.f32 %v6078, %v6080
        %vm6097 = vcmp.gt.f32.partialorder %v6081, 0.0
        %vm6098 = vcmp.gt.f32.partialorder %v6082, 0.0
        %vm6099 = vcmp.gt.f32.partialorder %v6083, 0.0
        %vm6100 = vcmp.gt.f32.partialorder %v6084, 0.0
        %vm6101 = vcmp.gt.f32.partialorder %v6085, 0.0
        %vm6102 = vcmp.gt.f32.partialorder %v6086, 0.0
        %vm6103 = vcmp.gt.f32.partialorder %v6087, 0.0
        %vm6104 = vcmp.gt.f32.partialorder %v6088, 0.0
        %vm6105 = vcmp.gt.f32.partialorder %v6089, 0.0
        %vm6106 = vcmp.gt.f32.partialorder %v6090, 0.0
        %vm6107 = vcmp.gt.f32.partialorder %v6091, 0.0
        %vm6108 = vcmp.gt.f32.partialorder %v6092, 0.0
        %vm6109 = vcmp.gt.f32.partialorder %v6093, 0.0
        %vm6110 = vcmp.gt.f32.partialorder %v6094, 0.0
        %vm6111 = vcmp.gt.f32.partialorder %v6095, 0.0
        %vm6112 = vcmp.gt.f32.partialorder %v6096, 0.0
        %v6113 = vmul.f32 %v6081, 0.2
        %v6114 = vmul.f32 %v6082, 0.2
        %v6115 = vmul.f32 %v6083, 0.2
        %v6116 = vmul.f32 %v6084, 0.2
        %v6117 = vmul.f32 %v6085, 0.2
        %v6118 = vmul.f32 %v6086, 0.2
        %v6119 = vmul.f32 %v6087, 0.2
        %v6120 = vmul.f32 %v6088, 0.2
        %v6121 = vmul.f32 %v6089, 0.2
        %v6122 = vmul.f32 %v6090, 0.2
        %v6123 = vmul.f32 %v6091, 0.2
        %v6124 = vmul.f32 %v6092, 0.2
        %v6125 = vmul.f32 %v6093, 0.2
        %v6126 = vmul.f32 %v6094, 0.2
        %v6127 = vmul.f32 %v6095, 0.2
        %v6128 = vmul.f32 %v6096, 0.2
        %v6129 = vsel %vm6097, %v6081, %v6113
        %v6130 = vsel %vm6098, %v6082, %v6114
        %v6131 = vsel %vm6099, %v6083, %v6115
        %v6132 = vsel %vm6100, %v6084, %v6116
        %v6133 = vsel %vm6101, %v6085, %v6117
        %v6134 = vsel %vm6102, %v6086, %v6118
        %v6135 = vsel %vm6103, %v6087, %v6119
        %v6136 = vsel %vm6104, %v6088, %v6120
        %v6137 = vsel %vm6105, %v6089, %v6121
        %v6138 = vsel %vm6106, %v6090, %v6122
        %v6139 = vsel %vm6107, %v6091, %v6123
        %v6140 = vsel %vm6108, %v6092, %v6124
        %v6141 = vsel %vm6109, %v6093, %v6125
        %v6142 = vsel %vm6110, %v6094, %v6126
        %v6143 = vsel %vm6111, %v6095, %v6127
        %v6144 = vsel %vm6112, %v6096, %v6128
        %v6145 = vadd.f32 %v6129, %v1099
        %v6146 = vadd.f32 %v6130, %v1100
        %v6147 = vadd.f32 %v6131, %v1101
        %v6148 = vadd.f32 %v6132, %v1102
        %v6149 = vadd.f32 %v6133, %v1103
        %v6150 = vadd.f32 %v6134, %v1104
        %v6151 = vadd.f32 %v6135, %v1105
        %v6152 = vadd.f32 %v6136, %v1106
        %v6153 = vadd.f32 %v6137, %v1107
        %v6154 = vadd.f32 %v6138, %v1108
        %v6155 = vadd.f32 %v6139, %v1109
        %v6156 = vadd.f32 %v6140, %v1110
        %v6157 = vadd.f32 %v6141, %v1111
        %v6158 = vadd.f32 %v6142, %v1112
        %v6159 = vadd.f32 %v6143, %v1113
        %v6160 = vadd.f32 %v6144, %v1114
        %6161 = vmax.xlane.f32.xlu0 %v6145
        %v6162 = vpop.xlane.xlu0 %6161
        %6163 = vmax.xlane.f32.xlu0 %v6146
        %v6164 = vpop.xlane.xlu0 %6163
        %6165 = vmax.xlane.f32.xlu0 %v6147
        %v6166 = vpop.xlane.xlu0 %6165
        %6167 = vmax.xlane.f32.xlu0 %v6148
        %v6168 = vpop.xlane.xlu0 %6167
        %6169 = vmax.xlane.f32.xlu0 %v6149
        %v6170 = vpop.xlane.xlu0 %6169
        %6171 = vmax.xlane.f32.xlu0 %v6150
        %v6172 = vpop.xlane.xlu0 %6171
        %6173 = vmax.xlane.f32.xlu0 %v6151
        %v6174 = vpop.xlane.xlu0 %6173
        %6175 = vmax.xlane.f32.xlu0 %v6152
        %v6176 = vpop.xlane.xlu0 %6175
        %6177 = vmax.xlane.f32.xlu0 %v6153
        %v6178 = vpop.xlane.xlu0 %6177
        %6179 = vmax.xlane.f32.xlu0 %v6154
        %v6180 = vpop.xlane.xlu0 %6179
        %6181 = vmax.xlane.f32.xlu0 %v6155
        %v6182 = vpop.xlane.xlu0 %6181
        %6183 = vmax.xlane.f32.xlu0 %v6156
        %v6184 = vpop.xlane.xlu0 %6183
        %6185 = vmax.xlane.f32.xlu0 %v6157
        %v6186 = vpop.xlane.xlu0 %6185
        %6187 = vmax.xlane.f32.xlu0 %v6158
        %v6188 = vpop.xlane.xlu0 %6187
        %6189 = vmax.xlane.f32.xlu0 %v6159
        %v6190 = vpop.xlane.xlu0 %6189
        %6191 = vmax.xlane.f32.xlu0 %v6160
        %v6192 = vpop.xlane.xlu0 %6191
        %v6193 = vsub.f32 %v6145, %v6162
        %v6194 = vsub.f32 %v6146, %v6164
        %v6195 = vsub.f32 %v6147, %v6166
        %v6196 = vsub.f32 %v6148, %v6168
        %v6197 = vsub.f32 %v6149, %v6170
        %v6198 = vsub.f32 %v6150, %v6172
        %v6199 = vsub.f32 %v6151, %v6174
        %v6200 = vsub.f32 %v6152, %v6176
        %v6201 = vsub.f32 %v6153, %v6178
        %v6202 = vsub.f32 %v6154, %v6180
        %v6203 = vsub.f32 %v6155, %v6182
        %v6204 = vsub.f32 %v6156, %v6184
        %v6205 = vsub.f32 %v6157, %v6186
        %v6206 = vsub.f32 %v6158, %v6188
        %v6207 = vsub.f32 %v6159, %v6190
        %v6208 = vsub.f32 %v6160, %v6192
        %v6209 = vmul.f32 %v6193, 1.442695
        %v6210 = vpow.pop %v6209
        %v6211 = vmul.f32 %v6194, 1.442695
        %v6212 = vpow.pop %v6211
        %v6213 = vmul.f32 %v6195, 1.442695
        %v6214 = vpow.pop %v6213
        %v6215 = vmul.f32 %v6196, 1.442695
        %v6216 = vpow.pop %v6215
        %v6217 = vmul.f32 %v6197, 1.442695
        %v6218 = vpow.pop %v6217
        %v6219 = vmul.f32 %v6198, 1.442695
        %v6220 = vpow.pop %v6219
        %v6221 = vmul.f32 %v6199, 1.442695
        %v6222 = vpow.pop %v6221
        %v6223 = vmul.f32 %v6200, 1.442695
        %v6224 = vpow.pop %v6223
        %v6225 = vmul.f32 %v6201, 1.442695
        %v6226 = vpow.pop %v6225
        %v6227 = vmul.f32 %v6202, 1.442695
        %v6228 = vpow.pop %v6227
        %v6229 = vmul.f32 %v6203, 1.442695
        %v6230 = vpow.pop %v6229
        %v6231 = vmul.f32 %v6204, 1.442695
        %v6232 = vpow.pop %v6231
        %v6233 = vmul.f32 %v6205, 1.442695
        %v6234 = vpow.pop %v6233
        %v6235 = vmul.f32 %v6206, 1.442695
        %v6236 = vpow.pop %v6235
        %v6237 = vmul.f32 %v6207, 1.442695
        %v6238 = vpow.pop %v6237
        %v6239 = vmul.f32 %v6208, 1.442695
        %v6240 = vpow.pop %v6239
        %6241 = vadd.xlane.f32.xlu0 %v6210
        %v6242 = vpop.xlane.xlu0 %6241
        %6243 = vadd.xlane.f32.xlu0 %v6212
        %v6244 = vpop.xlane.xlu0 %6243
        %6245 = vadd.xlane.f32.xlu0 %v6214
        %v6246 = vpop.xlane.xlu0 %6245
        %6247 = vadd.xlane.f32.xlu0 %v6216
        %v6248 = vpop.xlane.xlu0 %6247
        %6249 = vadd.xlane.f32.xlu0 %v6218
        %v6250 = vpop.xlane.xlu0 %6249
        %6251 = vadd.xlane.f32.xlu0 %v6220
        %v6252 = vpop.xlane.xlu0 %6251
        %6253 = vadd.xlane.f32.xlu0 %v6222
        %v6254 = vpop.xlane.xlu0 %6253
        %6255 = vadd.xlane.f32.xlu0 %v6224
        %v6256 = vpop.xlane.xlu0 %6255
        %6257 = vadd.xlane.f32.xlu0 %v6226
        %v6258 = vpop.xlane.xlu0 %6257
        %6259 = vadd.xlane.f32.xlu0 %v6228
        %v6260 = vpop.xlane.xlu0 %6259
        %6261 = vadd.xlane.f32.xlu0 %v6230
        %v6262 = vpop.xlane.xlu0 %6261
        %6263 = vadd.xlane.f32.xlu0 %v6232
        %v6264 = vpop.xlane.xlu0 %6263
        %6265 = vadd.xlane.f32.xlu0 %v6234
        %v6266 = vpop.xlane.xlu0 %6265
        %6267 = vadd.xlane.f32.xlu0 %v6236
        %v6268 = vpop.xlane.xlu0 %6267
        %6269 = vadd.xlane.f32.xlu0 %v6238
        %v6270 = vpop.xlane.xlu0 %6269
        %6271 = vadd.xlane.f32.xlu0 %v6240
        %v6272 = vpop.xlane.xlu0 %6271
        %v6273 = vrcp.pop %v6242
        %v6274 = vrcp.pop %v6244
        %v6275 = vrcp.pop %v6246
        %v6276 = vrcp.pop %v6248
        %v6277 = vrcp.pop %v6250
        %v6278 = vrcp.pop %v6252
        %v6279 = vrcp.pop %v6254
        %v6280 = vrcp.pop %v6256
        %v6281 = vrcp.pop %v6258
        %v6282 = vrcp.pop %v6260
        %v6283 = vrcp.pop %v6262
        %v6284 = vrcp.pop %v6264
        %v6285 = vrcp.pop %v6266
        %v6286 = vrcp.pop %v6268
        %v6287 = vrcp.pop %v6270
        %v6288 = vrcp.pop %v6272
        %v6289 = vmul.f32 %v6210, %v6273
        %v6290 = vmul.f32 %v6212, %v6274
        %v6291 = vmul.f32 %v6214, %v6275
        %v6292 = vmul.f32 %v6216, %v6276
        %v6293 = vmul.f32 %v6218, %v6277
        %v6294 = vmul.f32 %v6220, %v6278
        %v6295 = vmul.f32 %v6222, %v6279
        %v6296 = vmul.f32 %v6224, %v6280
        %v6297 = vmul.f32 %v6226, %v6281
        %v6298 = vmul.f32 %v6228, %v6282
        %v6299 = vmul.f32 %v6230, %v6283
        %v6300 = vmul.f32 %v6232, %v6284
        %v6301 = vmul.f32 %v6234, %v6285
        %v6302 = vmul.f32 %v6236, %v6286
        %v6303 = vmul.f32 %v6238, %v6287
        %v6304 = vmul.f32 %v6240, %v6288
        %v6305 = vpack.c.bf16 %v6290, %v6289
        %v6306 = vpack.c.bf16 %v6292, %v6291
        %v6307 = vpack.c.bf16 %v6294, %v6293
        %v6308 = vpack.c.bf16 %v6296, %v6295
        %v6309 = vpack.c.bf16 %v6298, %v6297
        %v6310 = vpack.c.bf16 %v6300, %v6299
        %v6311 = vpack.c.bf16 %v6302, %v6301
        %v6312 = vpack.c.bf16 %v6304, %v6303
        %v6313 = vld [vmem:[%s869] sm:$0x3]
        %v6315 = vperm.slane %v6313, 0
        %v6316 = vperm.slane %v6313, 1
        %6319 = vmatpush.bf16.msra.mxu0 %v5998
        %6320 = vmatpush.bf16.msra.mxu0 %v5996
        %6321 = vmatpush.bf16.msra.mxu0 %v5994
        %6322 = vmatpush.bf16.msra.mxu0 %v5992
        %6323 = vmatpush.bf16.msra.mxu0 %v5990
        %6324 = vmatpush.bf16.msra.mxu0 %v5988
        %6325 = vmatpush.bf16.msra.mxu0 %v5986
        %6326 = vmatpush.bf16.msra.mxu0 %v5984
        %6327 = vmatmul.bf16.gmra.mxu0 %v6305
        %v6328 = vpop.f32.mrf.mxu0
        %v6329 = vadd.f32 %v6315, %v6328
        %v6330 = vpop.f32.mrf.mxu0
        %v6331 = vadd.f32 %v6315, %v6330
        %6332 = vmatmul.bf16.gmra.mxu0 %v6306
        %v6333 = vpop.f32.mrf.mxu0
        %v6334 = vadd.f32 %v6315, %v6333
        %v6335 = vpop.f32.mrf.mxu0
        %v6336 = vadd.f32 %v6315, %v6335
        %6337 = vmatmul.bf16.gmra.mxu0 %v6307
        %v6338 = vpop.f32.mrf.mxu0
        %v6339 = vadd.f32 %v6315, %v6338
        %v6340 = vpop.f32.mrf.mxu0
        %v6341 = vadd.f32 %v6315, %v6340
        %6342 = vmatmul.bf16.gmra.mxu0 %v6308
        %v6343 = vpop.f32.mrf.mxu0
        %v6344 = vadd.f32 %v6315, %v6343
        %v6345 = vpop.f32.mrf.mxu0
        %v6346 = vadd.f32 %v6315, %v6345
        %6347 = vmatmul.bf16.gmra.mxu0 %v6309
        %v6348 = vpop.f32.mrf.mxu0
        %v6349 = vadd.f32 %v6315, %v6348
        %v6350 = vpop.f32.mrf.mxu0
        %v6351 = vadd.f32 %v6315, %v6350
        %6352 = vmatmul.bf16.gmra.mxu0 %v6310
        %v6353 = vpop.f32.mrf.mxu0
        %v6354 = vadd.f32 %v6315, %v6353
        %v6355 = vpop.f32.mrf.mxu0
        %v6356 = vadd.f32 %v6315, %v6355
        %6357 = vmatmul.bf16.gmra.mxu0 %v6311
        %v6358 = vpop.f32.mrf.mxu0
        %v6359 = vadd.f32 %v6315, %v6358
        %v6360 = vpop.f32.mrf.mxu0
        %v6361 = vadd.f32 %v6315, %v6360
        %6362 = vmatmul.bf16.gmra.mxu0 %v6312
        %v6363 = vpop.f32.mrf.mxu0
        %v6364 = vadd.f32 %v6315, %v6363
        %v6365 = vpop.f32.mrf.mxu0
        %v6366 = vadd.f32 %v6315, %v6365
        %6367 = vdwg.mxu0
        %6368 = vmatpush.bf16.msra.mxu0 %v5999
        %6369 = vmatpush.bf16.msra.mxu0 %v5997
        %6370 = vmatpush.bf16.msra.mxu0 %v5995
        %6371 = vmatpush.bf16.msra.mxu0 %v5993
        %6372 = vmatpush.bf16.msra.mxu0 %v5991
        %6373 = vmatpush.bf16.msra.mxu0 %v5989
        %6374 = vmatpush.bf16.msra.mxu0 %v5987
        %6375 = vmatpush.bf16.msra.mxu0 %v5985
        %6376 = vmatmul.bf16.gmra.mxu0 %v6305
        %v6377 = vpop.f32.mrf.mxu0
        %v6378 = vadd.f32 %v6316, %v6377
        %v6379 = vpop.f32.mrf.mxu0
        %v6380 = vadd.f32 %v6316, %v6379
        %6381 = vmatmul.bf16.gmra.mxu0 %v6306
        %v6382 = vpop.f32.mrf.mxu0
        %v6383 = vadd.f32 %v6316, %v6382
        %v6384 = vpop.f32.mrf.mxu0
        %v6385 = vadd.f32 %v6316, %v6384
        %6386 = vmatmul.bf16.gmra.mxu0 %v6307
        %v6387 = vpop.f32.mrf.mxu0
        %v6388 = vadd.f32 %v6316, %v6387
        %v6389 = vpop.f32.mrf.mxu0
        %v6390 = vadd.f32 %v6316, %v6389
        %6391 = vmatmul.bf16.gmra.mxu0 %v6308
        %v6392 = vpop.f32.mrf.mxu0
        %v6393 = vadd.f32 %v6316, %v6392
        %v6394 = vpop.f32.mrf.mxu0
        %v6395 = vadd.f32 %v6316, %v6394
        %6396 = vmatmul.bf16.gmra.mxu0 %v6309
        %v6397 = vpop.f32.mrf.mxu0
        %v6398 = vadd.f32 %v6316, %v6397
        %v6399 = vpop.f32.mrf.mxu0
        %v6400 = vadd.f32 %v6316, %v6399
        %6401 = vmatmul.bf16.gmra.mxu0 %v6310
        %v6402 = vpop.f32.mrf.mxu0
        %v6403 = vadd.f32 %v6316, %v6402
        %v6404 = vpop.f32.mrf.mxu0
        %v6405 = vadd.f32 %v6316, %v6404
        %6406 = vmatmul.bf16.gmra.mxu0 %v6311
        %v6407 = vpop.f32.mrf.mxu0
        %v6408 = vadd.f32 %v6316, %v6407
        %v6409 = vpop.f32.mrf.mxu0
        %v6410 = vadd.f32 %v6316, %v6409
        %6411 = vmatmul.bf16.gmra.mxu0 %v6312
        %v6412 = vpop.f32.mrf.mxu0
        %v6413 = vadd.f32 %v6316, %v6412
        %v6414 = vpop.f32.mrf.mxu0
        %v6415 = vadd.f32 %v6316, %v6414
        %6416 = vdwg.mxu0
        %v6417 = vmax.f32 %v6329, %v6378
        %6418 = vmax.xlane.f32.xlu0 %v6417
        %v6419 = vpop.xlane.xlu0 %6418
        %v6420 = vmax.f32 %v6331, %v6380
        %6421 = vmax.xlane.f32.xlu0 %v6420
        %v6422 = vpop.xlane.xlu0 %6421
        %v6423 = vmax.f32 %v6334, %v6383
        %6424 = vmax.xlane.f32.xlu0 %v6423
        %v6425 = vpop.xlane.xlu0 %6424
        %v6426 = vmax.f32 %v6336, %v6385
        %6427 = vmax.xlane.f32.xlu0 %v6426
        %v6428 = vpop.xlane.xlu0 %6427
        %v6429 = vmax.f32 %v6339, %v6388
        %6430 = vmax.xlane.f32.xlu0 %v6429
        %v6431 = vpop.xlane.xlu0 %6430
        %v6432 = vmax.f32 %v6341, %v6390
        %6433 = vmax.xlane.f32.xlu0 %v6432
        %v6434 = vpop.xlane.xlu0 %6433
        %v6435 = vmax.f32 %v6344, %v6393
        %6436 = vmax.xlane.f32.xlu0 %v6435
        %v6437 = vpop.xlane.xlu0 %6436
        %v6438 = vmax.f32 %v6346, %v6395
        %6439 = vmax.xlane.f32.xlu0 %v6438
        %v6440 = vpop.xlane.xlu0 %6439
        %v6441 = vmax.f32 %v6349, %v6398
        %6442 = vmax.xlane.f32.xlu0 %v6441
        %v6443 = vpop.xlane.xlu0 %6442
        %v6444 = vmax.f32 %v6351, %v6400
        %6445 = vmax.xlane.f32.xlu0 %v6444
        %v6446 = vpop.xlane.xlu0 %6445
        %v6447 = vmax.f32 %v6354, %v6403
        %6448 = vmax.xlane.f32.xlu0 %v6447
        %v6449 = vpop.xlane.xlu0 %6448
        %v6450 = vmax.f32 %v6356, %v6405
        %6451 = vmax.xlane.f32.xlu0 %v6450
        %v6452 = vpop.xlane.xlu0 %6451
        %v6453 = vmax.f32 %v6359, %v6408
        %6454 = vmax.xlane.f32.xlu0 %v6453
        %v6455 = vpop.xlane.xlu0 %6454
        %v6456 = vmax.f32 %v6361, %v6410
        %6457 = vmax.xlane.f32.xlu0 %v6456
        %v6458 = vpop.xlane.xlu0 %6457
        %v6459 = vmax.f32 %v6364, %v6413
        %6460 = vmax.xlane.f32.xlu0 %v6459
        %v6461 = vpop.xlane.xlu0 %6460
        %v6462 = vmax.f32 %v6366, %v6415
        %6463 = vmax.xlane.f32.xlu0 %v6462
        %v6464 = vpop.xlane.xlu0 %6463
        %v6465 = vsub.f32 %v6329, %v6419
        %v6466 = vsub.f32 %v6378, %v6419
        %v6467 = vsub.f32 %v6331, %v6422
        %v6468 = vsub.f32 %v6380, %v6422
        %v6469 = vsub.f32 %v6334, %v6425
        %v6470 = vsub.f32 %v6383, %v6425
        %v6471 = vsub.f32 %v6336, %v6428
        %v6472 = vsub.f32 %v6385, %v6428
        %v6473 = vsub.f32 %v6339, %v6431
        %v6474 = vsub.f32 %v6388, %v6431
        %v6475 = vsub.f32 %v6341, %v6434
        %v6476 = vsub.f32 %v6390, %v6434
        %v6477 = vsub.f32 %v6344, %v6437
        %v6478 = vsub.f32 %v6393, %v6437
        %v6479 = vsub.f32 %v6346, %v6440
        %v6480 = vsub.f32 %v6395, %v6440
        %v6481 = vsub.f32 %v6349, %v6443
        %v6482 = vsub.f32 %v6398, %v6443
        %v6483 = vsub.f32 %v6351, %v6446
        %v6484 = vsub.f32 %v6400, %v6446
        %v6485 = vsub.f32 %v6354, %v6449
        %v6486 = vsub.f32 %v6403, %v6449
        %v6487 = vsub.f32 %v6356, %v6452
        %v6488 = vsub.f32 %v6405, %v6452
        %v6489 = vsub.f32 %v6359, %v6455
        %v6490 = vsub.f32 %v6408, %v6455
        %v6491 = vsub.f32 %v6361, %v6458
        %v6492 = vsub.f32 %v6410, %v6458
        %v6493 = vsub.f32 %v6364, %v6461
        %v6494 = vsub.f32 %v6413, %v6461
        %v6495 = vsub.f32 %v6366, %v6464
        %v6496 = vsub.f32 %v6415, %v6464
        %v6497 = vmul.f32 %v6465, 1.442695
        %v6498 = vpow.pop %v6497
        %v6499 = vmul.f32 %v6466, 1.442695
        %v6500 = vpow.pop %v6499
        %v6501 = vmul.f32 %v6467, 1.442695
        %v6502 = vpow.pop %v6501
        %v6503 = vmul.f32 %v6468, 1.442695
        %v6504 = vpow.pop %v6503
        %v6505 = vmul.f32 %v6469, 1.442695
        %v6506 = vpow.pop %v6505
        %v6507 = vmul.f32 %v6470, 1.442695
        %v6508 = vpow.pop %v6507
        %v6509 = vmul.f32 %v6471, 1.442695
        %v6510 = vpow.pop %v6509
        %v6511 = vmul.f32 %v6472, 1.442695
        %v6512 = vpow.pop %v6511
        %v6513 = vmul.f32 %v6473, 1.442695
        %v6514 = vpow.pop %v6513
        %v6515 = vmul.f32 %v6474, 1.442695
        %v6516 = vpow.pop %v6515
        %v6517 = vmul.f32 %v6475, 1.442695
        %v6518 = vpow.pop %v6517
        %v6519 = vmul.f32 %v6476, 1.442695
        %v6520 = vpow.pop %v6519
        %v6521 = vmul.f32 %v6477, 1.442695
        %v6522 = vpow.pop %v6521
        %v6523 = vmul.f32 %v6478, 1.442695
        %v6524 = vpow.pop %v6523
        %v6525 = vmul.f32 %v6479, 1.442695
        %v6526 = vpow.pop %v6525
        %v6527 = vmul.f32 %v6480, 1.442695
        %v6528 = vpow.pop %v6527
        %v6529 = vmul.f32 %v6481, 1.442695
        %v6530 = vpow.pop %v6529
        %v6531 = vmul.f32 %v6482, 1.442695
        %v6532 = vpow.pop %v6531
        %v6533 = vmul.f32 %v6483, 1.442695
        %v6534 = vpow.pop %v6533
        %v6535 = vmul.f32 %v6484, 1.442695
        %v6536 = vpow.pop %v6535
        %v6537 = vmul.f32 %v6485, 1.442695
        %v6538 = vpow.pop %v6537
        %v6539 = vmul.f32 %v6486, 1.442695
        %v6540 = vpow.pop %v6539
        %v6541 = vmul.f32 %v6487, 1.442695
        %v6542 = vpow.pop %v6541
        %v6543 = vmul.f32 %v6488, 1.442695
        %v6544 = vpow.pop %v6543
        %v6545 = vmul.f32 %v6489, 1.442695
        %v6546 = vpow.pop %v6545
        %v6547 = vmul.f32 %v6490, 1.442695
        %v6548 = vpow.pop %v6547
        %v6549 = vmul.f32 %v6491, 1.442695
        %v6550 = vpow.pop %v6549
        %v6551 = vmul.f32 %v6492, 1.442695
        %v6552 = vpow.pop %v6551
        %v6553 = vmul.f32 %v6493, 1.442695
        %v6554 = vpow.pop %v6553
        %v6555 = vmul.f32 %v6494, 1.442695
        %v6556 = vpow.pop %v6555
        %v6557 = vmul.f32 %v6495, 1.442695
        %v6558 = vpow.pop %v6557
        %v6559 = vmul.f32 %v6496, 1.442695
        %v6560 = vpow.pop %v6559
        %v6561 = vadd.f32 %v6498, %v6500
        %6562 = vadd.xlane.f32.xlu0 %v6561
        %v6563 = vpop.xlane.xlu0 %6562
        %v6564 = vadd.f32 %v6502, %v6504
        %6565 = vadd.xlane.f32.xlu0 %v6564
        %v6566 = vpop.xlane.xlu0 %6565
        %v6567 = vadd.f32 %v6506, %v6508
        %6568 = vadd.xlane.f32.xlu0 %v6567
        %v6569 = vpop.xlane.xlu0 %6568
        %v6570 = vadd.f32 %v6510, %v6512
        %6571 = vadd.xlane.f32.xlu0 %v6570
        %v6572 = vpop.xlane.xlu0 %6571
        %v6573 = vadd.f32 %v6514, %v6516
        %6574 = vadd.xlane.f32.xlu0 %v6573
        %v6575 = vpop.xlane.xlu0 %6574
        %v6576 = vadd.f32 %v6518, %v6520
        %6577 = vadd.xlane.f32.xlu0 %v6576
        %v6578 = vpop.xlane.xlu0 %6577
        %v6579 = vadd.f32 %v6522, %v6524
        %6580 = vadd.xlane.f32.xlu0 %v6579
        %v6581 = vpop.xlane.xlu0 %6580
        %v6582 = vadd.f32 %v6526, %v6528
        %6583 = vadd.xlane.f32.xlu0 %v6582
        %v6584 = vpop.xlane.xlu0 %6583
        %v6585 = vadd.f32 %v6530, %v6532
        %6586 = vadd.xlane.f32.xlu0 %v6585
        %v6587 = vpop.xlane.xlu0 %6586
        %v6588 = vadd.f32 %v6534, %v6536
        %6589 = vadd.xlane.f32.xlu0 %v6588
        %v6590 = vpop.xlane.xlu0 %6589
        %v6591 = vadd.f32 %v6538, %v6540
        %6592 = vadd.xlane.f32.xlu0 %v6591
        %v6593 = vpop.xlane.xlu0 %6592
        %v6594 = vadd.f32 %v6542, %v6544
        %6595 = vadd.xlane.f32.xlu0 %v6594
        %v6596 = vpop.xlane.xlu0 %6595
        %v6597 = vadd.f32 %v6546, %v6548
        %6598 = vadd.xlane.f32.xlu0 %v6597
        %v6599 = vpop.xlane.xlu0 %6598
        %v6600 = vadd.f32 %v6550, %v6552
        %6601 = vadd.xlane.f32.xlu0 %v6600
        %v6602 = vpop.xlane.xlu0 %6601
        %v6603 = vadd.f32 %v6554, %v6556
        %6604 = vadd.xlane.f32.xlu0 %v6603
        %v6605 = vpop.xlane.xlu0 %6604
        %v6606 = vadd.f32 %v6558, %v6560
        %6607 = vadd.xlane.f32.xlu0 %v6606
        %v6608 = vpop.xlane.xlu0 %6607
        %v6609 = vlog2.pop %v6563
        %v6610 = vmul.f32 %v6609, 0.6931472
        %v6611 = vlog2.pop %v6566
        %v6612 = vmul.f32 %v6611, 0.6931472
        %v6613 = vlog2.pop %v6569
        %v6614 = vmul.f32 %v6613, 0.6931472
        %v6615 = vlog2.pop %v6572
        %v6616 = vmul.f32 %v6615, 0.6931472
        %v6617 = vlog2.pop %v6575
        %v6618 = vmul.f32 %v6617, 0.6931472
        %v6619 = vlog2.pop %v6578
        %v6620 = vmul.f32 %v6619, 0.6931472
        %v6621 = vlog2.pop %v6581
        %v6622 = vmul.f32 %v6621, 0.6931472
        %v6623 = vlog2.pop %v6584
        %v6624 = vmul.f32 %v6623, 0.6931472
        %v6625 = vlog2.pop %v6587
        %v6626 = vmul.f32 %v6625, 0.6931472
        %v6627 = vlog2.pop %v6590
        %v6628 = vmul.f32 %v6627, 0.6931472
        %v6629 = vlog2.pop %v6593
        %v6630 = vmul.f32 %v6629, 0.6931472
        %v6631 = vlog2.pop %v6596
        %v6632 = vmul.f32 %v6631, 0.6931472
        %v6633 = vlog2.pop %v6599
        %v6634 = vmul.f32 %v6633, 0.6931472
        %v6635 = vlog2.pop %v6602
        %v6636 = vmul.f32 %v6635, 0.6931472
        %v6637 = vlog2.pop %v6605
        %v6638 = vmul.f32 %v6637, 0.6931472
        %v6639 = vlog2.pop %v6608
        %v6640 = vmul.f32 %v6639, 0.6931472
        %v6641 = vsub.f32 %v6465, %v6610
        %v6642 = vsub.f32 %v6466, %v6610
        %v6643 = vsub.f32 %v6467, %v6612
        %v6644 = vsub.f32 %v6468, %v6612
        %v6645 = vsub.f32 %v6469, %v6614
        %v6646 = vsub.f32 %v6470, %v6614
        %v6647 = vsub.f32 %v6471, %v6616
        %v6648 = vsub.f32 %v6472, %v6616
        %v6649 = vsub.f32 %v6473, %v6618
        %v6650 = vsub.f32 %v6474, %v6618
        %v6651 = vsub.f32 %v6475, %v6620
        %v6652 = vsub.f32 %v6476, %v6620
        %v6653 = vsub.f32 %v6477, %v6622
        %v6654 = vsub.f32 %v6478, %v6622
        %v6655 = vsub.f32 %v6479, %v6624
        %v6656 = vsub.f32 %v6480, %v6624
        %v6657 = vsub.f32 %v6481, %v6626
        %v6658 = vsub.f32 %v6482, %v6626
        %v6659 = vsub.f32 %v6483, %v6628
        %v6660 = vsub.f32 %v6484, %v6628
        %v6661 = vsub.f32 %v6485, %v6630
        %v6662 = vsub.f32 %v6486, %v6630
        %v6663 = vsub.f32 %v6487, %v6632
        %v6664 = vsub.f32 %v6488, %v6632
        %v6665 = vsub.f32 %v6489, %v6634
        %v6666 = vsub.f32 %v6490, %v6634
        %v6667 = vsub.f32 %v6491, %v6636
        %v6668 = vsub.f32 %v6492, %v6636
        %v6669 = vsub.f32 %v6493, %v6638
        %v6670 = vsub.f32 %v6494, %v6638
        %v6671 = vsub.f32 %v6495, %v6640
        %v6672 = vsub.f32 %v6496, %v6640
        %v6673 = vmax.f32 %v6641, 0.0
        %v6674 = vmax.f32 %v6642, 0.0
        %v6675 = vmax.f32 %v6643, 0.0
        %v6676 = vmax.f32 %v6644, 0.0
        %v6677 = vmax.f32 %v6645, 0.0
        %v6678 = vmax.f32 %v6646, 0.0
        %v6679 = vmax.f32 %v6647, 0.0
        %v6680 = vmax.f32 %v6648, 0.0
        %v6681 = vmax.f32 %v6649, 0.0
        %v6682 = vmax.f32 %v6650, 0.0
        %v6683 = vmax.f32 %v6651, 0.0
        %v6684 = vmax.f32 %v6652, 0.0
        %v6685 = vmax.f32 %v6653, 0.0
        %v6686 = vmax.f32 %v6654, 0.0
        %v6687 = vmax.f32 %v6655, 0.0
        %v6688 = vmax.f32 %v6656, 0.0
        %v6689 = vmax.f32 %v6657, 0.0
        %v6690 = vmax.f32 %v6658, 0.0
        %v6691 = vmax.f32 %v6659, 0.0
        %v6692 = vmax.f32 %v6660, 0.0
        %v6693 = vmax.f32 %v6661, 0.0
        %v6694 = vmax.f32 %v6662, 0.0
        %v6695 = vmax.f32 %v6663, 0.0
        %v6696 = vmax.f32 %v6664, 0.0
        %v6697 = vmax.f32 %v6665, 0.0
        %v6698 = vmax.f32 %v6666, 0.0
        %v6699 = vmax.f32 %v6667, 0.0
        %v6700 = vmax.f32 %v6668, 0.0
        %v6701 = vmax.f32 %v6669, 0.0
        %v6702 = vmax.f32 %v6670, 0.0
        %v6703 = vmax.f32 %v6671, 0.0
        %v6704 = vmax.f32 %v6672, 0.0
        %v6705 = vpack.c.bf16 %v6675, %v6673
        %v6706 = vpack.c.bf16 %v6676, %v6674
        %v6707 = vpack.c.bf16 %v6679, %v6677
        %v6708 = vpack.c.bf16 %v6680, %v6678
        %v6709 = vpack.c.bf16 %v6683, %v6681
        %v6710 = vpack.c.bf16 %v6684, %v6682
        %v6711 = vpack.c.bf16 %v6687, %v6685
        %v6712 = vpack.c.bf16 %v6688, %v6686
        %v6713 = vpack.c.bf16 %v6691, %v6689
        %v6714 = vpack.c.bf16 %v6692, %v6690
        %v6715 = vpack.c.bf16 %v6695, %v6693
        %v6716 = vpack.c.bf16 %v6696, %v6694
        %v6717 = vpack.c.bf16 %v6699, %v6697
        %v6718 = vpack.c.bf16 %v6700, %v6698
        %v6719 = vpack.c.bf16 %v6703, %v6701
        %v6720 = vpack.c.bf16 %v6704, %v6702
        %v6721 = vld [vmem:[%s879] sm:$0xf]
        %v6722 = vld [vmem:[%s879 + $0x4] sm:$0xf]
        %v6723 = vld [vmem:[%s879 + $0x8] sm:$0xf]
        %v6724 = vld [vmem:[%s879 + $0xc] sm:$0xf]
        %v6725 = vld [vmem:[%s879 + $0x10] sm:$0xf]
        %v6726 = vld [vmem:[%s879 + $0x14] sm:$0xf]
        %v6727 = vld [vmem:[%s879 + $0x18] sm:$0xf]
        %v6728 = vld [vmem:[%s879 + $0x1c] sm:$0xf]
        %v6729 = vld [vmem:[%s879 + $0x20] sm:$0xf]
        %v6730 = vld [vmem:[%s879 + $0x24] sm:$0xf]
        %v6731 = vld [vmem:[%s879 + $0x28] sm:$0xf]
        %v6732 = vld [vmem:[%s879 + $0x2c] sm:$0xf]
        %v6733 = vld [vmem:[%s879 + $0x30] sm:$0xf]
        %v6734 = vld [vmem:[%s879 + $0x34] sm:$0xf]
        %v6735 = vld [vmem:[%s879 + $0x38] sm:$0xf]
        %v6736 = vld [vmem:[%s879 + $0x3c] sm:$0xf]
        %v6737 = vld [vmem:[%s879 + $0x40] sm:$0xf]
        %v6738 = vld [vmem:[%s879 + $0x44] sm:$0xf]
        %v6739 = vld [vmem:[%s879 + $0x48] sm:$0xf]
        %v6740 = vld [vmem:[%s879 + $0x4c] sm:$0xf]
        %v6741 = vld [vmem:[%s879 + $0x50] sm:$0xf]
        %v6742 = vld [vmem:[%s879 + $0x54] sm:$0xf]
        %v6743 = vld [vmem:[%s879 + $0x58] sm:$0xf]
        %v6744 = vld [vmem:[%s879 + $0x5c] sm:$0xf]
        %v6745 = vld [vmem:[%s879 + $0x60] sm:$0xf]
        %v6746 = vld [vmem:[%s879 + $0x64] sm:$0xf]
        %v6747 = vld [vmem:[%s879 + $0x68] sm:$0xf]
        %v6748 = vld [vmem:[%s879 + $0x6c] sm:$0xf]
        %v6749 = vld [vmem:[%s879 + $0x70] sm:$0xf]
        %v6750 = vld [vmem:[%s879 + $0x74] sm:$0xf]
        %v6751 = vld [vmem:[%s879 + $0x78] sm:$0xf]
        %v6752 = vld [vmem:[%s879 + $0x7c] sm:$0xf]
        %v6785 = vunpack.c.l.b16 %v6721
        %v6786 = vunpack.c.l.b16 %v6722
        %v6787 = vunpack.c.l.b16 %v6723
        %v6788 = vunpack.c.l.b16 %v6724
        %v6789 = vunpack.c.l.b16 %v6725
        %v6790 = vunpack.c.l.b16 %v6726
        %v6791 = vunpack.c.l.b16 %v6727
        %v6792 = vunpack.c.l.b16 %v6728
        %v6793 = vunpack.c.l.b16 %v6729
        %v6794 = vunpack.c.l.b16 %v6730
        %v6795 = vunpack.c.l.b16 %v6731
        %v6796 = vunpack.c.l.b16 %v6732
        %v6797 = vunpack.c.l.b16 %v6733
        %v6798 = vunpack.c.l.b16 %v6734
        %v6799 = vunpack.c.l.b16 %v6735
        %v6800 = vunpack.c.l.b16 %v6736
        %v6801 = vunpack.c.l.b16 %v6737
        %v6802 = vunpack.c.l.b16 %v6738
        %v6803 = vunpack.c.l.b16 %v6739
        %v6804 = vunpack.c.l.b16 %v6740
        %v6805 = vunpack.c.l.b16 %v6741
        %v6806 = vunpack.c.l.b16 %v6742
        %v6807 = vunpack.c.l.b16 %v6743
        %v6808 = vunpack.c.l.b16 %v6744
        %v6809 = vunpack.c.l.b16 %v6745
        %v6810 = vunpack.c.l.b16 %v6746
        %v6811 = vunpack.c.l.b16 %v6747
        %v6812 = vunpack.c.l.b16 %v6748
        %v6813 = vunpack.c.l.b16 %v6749
        %v6814 = vunpack.c.l.b16 %v6750
        %v6815 = vunpack.c.l.b16 %v6751
        %v6816 = vunpack.c.l.b16 %v6752
        %v6817 = vpack.c.b16 %v6786, %v6785
        %v6818 = vpack.c.b16 %v6788, %v6787
        %v6819 = vpack.c.b16 %v6790, %v6789
        %v6820 = vpack.c.b16 %v6792, %v6791
        %v6821 = vpack.c.b16 %v6794, %v6793
        %v6822 = vpack.c.b16 %v6796, %v6795
        %v6823 = vpack.c.b16 %v6798, %v6797
        %v6824 = vpack.c.b16 %v6800, %v6799
        %v6825 = vpack.c.b16 %v6802, %v6801
        %v6826 = vpack.c.b16 %v6804, %v6803
        %v6827 = vpack.c.b16 %v6806, %v6805
        %v6828 = vpack.c.b16 %v6808, %v6807
        %v6829 = vpack.c.b16 %v6810, %v6809
        %v6830 = vpack.c.b16 %v6812, %v6811
        %v6831 = vpack.c.b16 %v6814, %v6813
        %v6832 = vpack.c.b16 %v6816, %v6815
        %6849 = vmatpush.bf16.msra.mxu0 %v6824
        %6850 = vmatpush.bf16.msra.mxu0 %v6823
        %6851 = vmatpush.bf16.msra.mxu0 %v6822
        %6852 = vmatpush.bf16.msra.mxu0 %v6821
        %6853 = vmatpush.bf16.msra.mxu0 %v6820
        %6854 = vmatpush.bf16.msra.mxu0 %v6819
        %6855 = vmatpush.bf16.msra.mxu0 %v6818
        %6856 = vmatpush.bf16.msra.mxu0 %v6817
        %6857 = vmatmul.bf16.gmra.mxu0 %v6705
        %v6858 = vpop.f32.mrf.mxu0
        %v6859 = vadd.f32 0.0, %v6858
        %v6860 = vpop.f32.mrf.mxu0
        %v6861 = vadd.f32 0.0, %v6860
        %6862 = vmatmul.bf16.gmra.mxu0 %v6707
        %v6863 = vpop.f32.mrf.mxu0
        %v6864 = vadd.f32 0.0, %v6863
        %v6865 = vpop.f32.mrf.mxu0
        %v6866 = vadd.f32 0.0, %v6865
        %6867 = vmatmul.bf16.gmra.mxu0 %v6709
        %v6868 = vpop.f32.mrf.mxu0
        %v6869 = vadd.f32 0.0, %v6868
        %v6870 = vpop.f32.mrf.mxu0
        %v6871 = vadd.f32 0.0, %v6870
        %6872 = vmatmul.bf16.gmra.mxu0 %v6711
        %v6873 = vpop.f32.mrf.mxu0
        %v6874 = vadd.f32 0.0, %v6873
        %v6875 = vpop.f32.mrf.mxu0
        %v6876 = vadd.f32 0.0, %v6875
        %6877 = vmatmul.bf16.gmra.mxu0 %v6713
        %v6878 = vpop.f32.mrf.mxu0
        %v6879 = vadd.f32 0.0, %v6878
        %v6880 = vpop.f32.mrf.mxu0
        %v6881 = vadd.f32 0.0, %v6880
        %6882 = vmatmul.bf16.gmra.mxu0 %v6715
        %v6883 = vpop.f32.mrf.mxu0
        %v6884 = vadd.f32 0.0, %v6883
        %v6885 = vpop.f32.mrf.mxu0
        %v6886 = vadd.f32 0.0, %v6885
        %6887 = vmatmul.bf16.gmra.mxu0 %v6717
        %v6888 = vpop.f32.mrf.mxu0
        %v6889 = vadd.f32 0.0, %v6888
        %v6890 = vpop.f32.mrf.mxu0
        %v6891 = vadd.f32 0.0, %v6890
        %6892 = vmatmul.bf16.gmra.mxu0 %v6719
        %v6893 = vpop.f32.mrf.mxu0
        %v6894 = vadd.f32 0.0, %v6893
        %v6895 = vpop.f32.mrf.mxu0
        %v6896 = vadd.f32 0.0, %v6895
        %6897 = vdwg.mxu0
        %6898 = vmatpush.bf16.msra.mxu0 %v6832
        %6899 = vmatpush.bf16.msra.mxu0 %v6831
        %6900 = vmatpush.bf16.msra.mxu0 %v6830
        %6901 = vmatpush.bf16.msra.mxu0 %v6829
        %6902 = vmatpush.bf16.msra.mxu0 %v6828
        %6903 = vmatpush.bf16.msra.mxu0 %v6827
        %6904 = vmatpush.bf16.msra.mxu0 %v6826
        %6905 = vmatpush.bf16.msra.mxu0 %v6825
        %6906 = vmatmul.bf16.gmra.mxu0 %v6706
        %v6907 = vpop.f32.mrf.mxu0
        %v6908 = vadd.f32 %v6859, %v6907
        %v6909 = vpop.f32.mrf.mxu0
        %v6910 = vadd.f32 %v6861, %v6909
        %6911 = vmatmul.bf16.gmra.mxu0 %v6708
        %v6912 = vpop.f32.mrf.mxu0
        %v6913 = vadd.f32 %v6864, %v6912
        %v6914 = vpop.f32.mrf.mxu0
        %v6915 = vadd.f32 %v6866, %v6914
        %6916 = vmatmul.bf16.gmra.mxu0 %v6710
        %v6917 = vpop.f32.mrf.mxu0
        %v6918 = vadd.f32 %v6869, %v6917
        %v6919 = vpop.f32.mrf.mxu0
        %v6920 = vadd.f32 %v6871, %v6919
        %6921 = vmatmul.bf16.gmra.mxu0 %v6712
        %v6922 = vpop.f32.mrf.mxu0
        %v6923 = vadd.f32 %v6874, %v6922
        %v6924 = vpop.f32.mrf.mxu0
        %v6925 = vadd.f32 %v6876, %v6924
        %6926 = vmatmul.bf16.gmra.mxu0 %v6714
        %v6927 = vpop.f32.mrf.mxu0
        %v6928 = vadd.f32 %v6879, %v6927
        %v6929 = vpop.f32.mrf.mxu0
        %v6930 = vadd.f32 %v6881, %v6929
        %6931 = vmatmul.bf16.gmra.mxu0 %v6716
        %v6932 = vpop.f32.mrf.mxu0
        %v6933 = vadd.f32 %v6884, %v6932
        %v6934 = vpop.f32.mrf.mxu0
        %v6935 = vadd.f32 %v6886, %v6934
        %6936 = vmatmul.bf16.gmra.mxu0 %v6718
        %v6937 = vpop.f32.mrf.mxu0
        %v6938 = vadd.f32 %v6889, %v6937
        %v6939 = vpop.f32.mrf.mxu0
        %v6940 = vadd.f32 %v6891, %v6939
        %6941 = vmatmul.bf16.gmra.mxu0 %v6720
        %v6942 = vpop.f32.mrf.mxu0
        %v6943 = vadd.f32 %v6894, %v6942
        %v6944 = vpop.f32.mrf.mxu0
        %v6945 = vadd.f32 %v6896, %v6944
        %6946 = vdwg.mxu0
        %v6947 = vpack.c.bf16 %v6910, %v6908
        %v6948 = vpack.c.bf16 %v6915, %v6913
        %v6949 = vpack.c.bf16 %v6920, %v6918
        %v6950 = vpack.c.bf16 %v6925, %v6923
        %v6951 = vpack.c.bf16 %v6930, %v6928
        %v6952 = vpack.c.bf16 %v6935, %v6933
        %v6953 = vpack.c.bf16 %v6940, %v6938
        %v6954 = vpack.c.bf16 %v6945, %v6943
        %v6955 = vld [vmem:[%s1077] sm:$0x1]
        %v6957 = vperm.slane %v6955, 0
        %6959 = vmatpush.bf16.msra.mxu0 %v6954
        %6960 = vmatpush.bf16.msra.mxu0 %v6953
        %6961 = vmatpush.bf16.msra.mxu0 %v6952
        %6962 = vmatpush.bf16.msra.mxu0 %v6951
        %6963 = vmatpush.bf16.msra.mxu0 %v6950
        %6964 = vmatpush.bf16.msra.mxu0 %v6949
        %6965 = vmatpush.bf16.msra.mxu0 %v6948
        %6966 = vmatpush.bf16.msra.mxu0 %v6947
        %6967 = vmatmul.bf16.gmra.mxu0 %v1336
        %v6968 = vpop.f32.mrf.mxu0
        %v6969 = vadd.f32 %v6957, %v6968
        %v6970 = vpop.f32.mrf.mxu0
        %v6971 = vadd.f32 %v6957, %v6970
        %6972 = vmatmul.bf16.gmra.mxu0 %v1337
        %v6973 = vpop.f32.mrf.mxu0
        %v6974 = vadd.f32 %v6957, %v6973
        %v6975 = vpop.f32.mrf.mxu0
        %v6976 = vadd.f32 %v6957, %v6975
        %6977 = vmatmul.bf16.gmra.mxu0 %v1338
        %v6978 = vpop.f32.mrf.mxu0
        %v6979 = vadd.f32 %v6957, %v6978
        %v6980 = vpop.f32.mrf.mxu0
        %v6981 = vadd.f32 %v6957, %v6980
        %6982 = vmatmul.bf16.gmra.mxu0 %v1339
        %v6983 = vpop.f32.mrf.mxu0
        %v6984 = vadd.f32 %v6957, %v6983
        %v6985 = vpop.f32.mrf.mxu0
        %v6986 = vadd.f32 %v6957, %v6985
        %6987 = vmatmul.bf16.gmra.mxu0 %v1340
        %v6988 = vpop.f32.mrf.mxu0
        %v6989 = vadd.f32 %v6957, %v6988
        %v6990 = vpop.f32.mrf.mxu0
        %v6991 = vadd.f32 %v6957, %v6990
        %6992 = vmatmul.bf16.gmra.mxu0 %v1341
        %v6993 = vpop.f32.mrf.mxu0
        %v6994 = vadd.f32 %v6957, %v6993
        %v6995 = vpop.f32.mrf.mxu0
        %v6996 = vadd.f32 %v6957, %v6995
        %6997 = vmatmul.bf16.gmra.mxu0 %v1342
        %v6998 = vpop.f32.mrf.mxu0
        %v6999 = vadd.f32 %v6957, %v6998
        %v7000 = vpop.f32.mrf.mxu0
        %v7001 = vadd.f32 %v6957, %v7000
        %7002 = vmatmul.bf16.gmra.mxu0 %v1343
        %v7003 = vpop.f32.mrf.mxu0
        %v7004 = vadd.f32 %v6957, %v7003
        %v7005 = vpop.f32.mrf.mxu0
        %v7006 = vadd.f32 %v6957, %v7005
        %7007 = vdwg.mxu0
        %v7008 = vmax.f32 %v6969, 0.0
        %v7009 = vmax.f32 %v6971, 0.0
        %v7010 = vmax.f32 %v6974, 0.0
        %v7011 = vmax.f32 %v6976, 0.0
        %v7012 = vmax.f32 %v6979, 0.0
        %v7013 = vmax.f32 %v6981, 0.0
        %v7014 = vmax.f32 %v6984, 0.0
        %v7015 = vmax.f32 %v6986, 0.0
        %v7016 = vmax.f32 %v6989, 0.0
        %v7017 = vmax.f32 %v6991, 0.0
        %v7018 = vmax.f32 %v6994, 0.0
        %v7019 = vmax.f32 %v6996, 0.0
        %v7020 = vmax.f32 %v6999, 0.0
        %v7021 = vmax.f32 %v7001, 0.0
        %v7022 = vmax.f32 %v7004, 0.0
        %v7023 = vmax.f32 %v7006, 0.0
        %v7024 = vpack.c.bf16 %v7009, %v7008
        %v7025 = vpack.c.bf16 %v7011, %v7010
        %v7026 = vpack.c.bf16 %v7013, %v7012
        %v7027 = vpack.c.bf16 %v7015, %v7014
        %v7028 = vpack.c.bf16 %v7017, %v7016
        %v7029 = vpack.c.bf16 %v7019, %v7018
        %v7030 = vpack.c.bf16 %v7021, %v7020
        %v7031 = vpack.c.bf16 %v7023, %v7022
        %v7032 = vld [vmem:[%s889] sm:$0xff]
        %v7033 = vld [vmem:[%s889 + $0x8] sm:$0xff]
        %v7034 = vld [vmem:[%s889 + $0x10] sm:$0xff]
        %v7035 = vld [vmem:[%s889 + $0x18] sm:$0xff]
        %v7036 = vld [vmem:[%s889 + $0x20] sm:$0xff]
        %v7037 = vld [vmem:[%s889 + $0x28] sm:$0xff]
        %v7038 = vld [vmem:[%s889 + $0x30] sm:$0xff]
        %v7039 = vld [vmem:[%s889 + $0x38] sm:$0xff]
        %v7040 = vld [vmem:[%s889 + $0x40] sm:$0xff]
        %v7041 = vld [vmem:[%s889 + $0x48] sm:$0xff]
        %v7042 = vld [vmem:[%s889 + $0x50] sm:$0xff]
        %v7043 = vld [vmem:[%s889 + $0x58] sm:$0xff]
        %v7044 = vld [vmem:[%s889 + $0x60] sm:$0xff]
        %v7045 = vld [vmem:[%s889 + $0x68] sm:$0xff]
        %v7046 = vld [vmem:[%s889 + $0x70] sm:$0xff]
        %v7047 = vld [vmem:[%s889 + $0x78] sm:$0xff]
        %v7064 = vunpack.c.l.b16 %v7032
        %v7065 = vunpack.c.h.b16 %v7032
        %v7066 = vunpack.c.l.b16 %v7033
        %v7067 = vunpack.c.h.b16 %v7033
        %v7068 = vunpack.c.l.b16 %v7034
        %v7069 = vunpack.c.h.b16 %v7034
        %v7070 = vunpack.c.l.b16 %v7035
        %v7071 = vunpack.c.h.b16 %v7035
        %v7072 = vunpack.c.l.b16 %v7036
        %v7073 = vunpack.c.h.b16 %v7036
        %v7074 = vunpack.c.l.b16 %v7037
        %v7075 = vunpack.c.h.b16 %v7037
        %v7076 = vunpack.c.l.b16 %v7038
        %v7077 = vunpack.c.h.b16 %v7038
        %v7078 = vunpack.c.l.b16 %v7039
        %v7079 = vunpack.c.h.b16 %v7039
        %v7080 = vunpack.c.l.b16 %v7040
        %v7081 = vunpack.c.h.b16 %v7040
        %v7082 = vunpack.c.l.b16 %v7041
        %v7083 = vunpack.c.h.b16 %v7041
        %v7084 = vunpack.c.l.b16 %v7042
        %v7085 = vunpack.c.h.b16 %v7042
        %v7086 = vunpack.c.l.b16 %v7043
        %v7087 = vunpack.c.h.b16 %v7043
        %v7088 = vunpack.c.l.b16 %v7044
        %v7089 = vunpack.c.h.b16 %v7044
        %v7090 = vunpack.c.l.b16 %v7045
        %v7091 = vunpack.c.h.b16 %v7045
        %v7092 = vunpack.c.l.b16 %v7046
        %v7093 = vunpack.c.h.b16 %v7046
        %v7094 = vunpack.c.l.b16 %v7047
        %v7095 = vunpack.c.h.b16 %v7047
        %v7096 = vpack.c.b16 %v7066, %v7064
        %v7097 = vpack.c.b16 %v7067, %v7065
        %v7098 = vpack.c.b16 %v7070, %v7068
        %v7099 = vpack.c.b16 %v7071, %v7069
        %v7100 = vpack.c.b16 %v7074, %v7072
        %v7101 = vpack.c.b16 %v7075, %v7073
        %v7102 = vpack.c.b16 %v7078, %v7076
        %v7103 = vpack.c.b16 %v7079, %v7077
        %v7104 = vpack.c.b16 %v7082, %v7080
        %v7105 = vpack.c.b16 %v7083, %v7081
        %v7106 = vpack.c.b16 %v7086, %v7084
        %v7107 = vpack.c.b16 %v7087, %v7085
        %v7108 = vpack.c.b16 %v7090, %v7088
        %v7109 = vpack.c.b16 %v7091, %v7089
        %v7110 = vpack.c.b16 %v7094, %v7092
        %v7111 = vpack.c.b16 %v7095, %v7093
        %7128 = vmatpush.bf16.msra.mxu0 %v7110
        %7129 = vmatpush.bf16.msra.mxu0 %v7108
        %7130 = vmatpush.bf16.msra.mxu0 %v7106
        %7131 = vmatpush.bf16.msra.mxu0 %v7104
        %7132 = vmatpush.bf16.msra.mxu0 %v7102
        %7133 = vmatpush.bf16.msra.mxu0 %v7100
        %7134 = vmatpush.bf16.msra.mxu0 %v7098
        %7135 = vmatpush.bf16.msra.mxu0 %v7096
        %7136 = vmatmul.bf16.gmra.mxu0 %v7024
        %v7137 = vpop.f32.mrf.mxu0
        %v7138 = vadd.f32 0.0, %v7137
        %v7139 = vpop.f32.mrf.mxu0
        %v7140 = vadd.f32 0.0, %v7139
        %7141 = vmatmul.bf16.gmra.mxu0 %v7025
        %v7142 = vpop.f32.mrf.mxu0
        %v7143 = vadd.f32 0.0, %v7142
        %v7144 = vpop.f32.mrf.mxu0
        %v7145 = vadd.f32 0.0, %v7144
        %7146 = vmatmul.bf16.gmra.mxu0 %v7026
        %v7147 = vpop.f32.mrf.mxu0
        %v7148 = vadd.f32 0.0, %v7147
        %v7149 = vpop.f32.mrf.mxu0
        %v7150 = vadd.f32 0.0, %v7149
        %7151 = vmatmul.bf16.gmra.mxu0 %v7027
        %v7152 = vpop.f32.mrf.mxu0
        %v7153 = vadd.f32 0.0, %v7152
        %v7154 = vpop.f32.mrf.mxu0
        %v7155 = vadd.f32 0.0, %v7154
        %7156 = vmatmul.bf16.gmra.mxu0 %v7028
        %v7157 = vpop.f32.mrf.mxu0
        %v7158 = vadd.f32 0.0, %v7157
        %v7159 = vpop.f32.mrf.mxu0
        %v7160 = vadd.f32 0.0, %v7159
        %7161 = vmatmul.bf16.gmra.mxu0 %v7029
        %v7162 = vpop.f32.mrf.mxu0
        %v7163 = vadd.f32 0.0, %v7162
        %v7164 = vpop.f32.mrf.mxu0
        %v7165 = vadd.f32 0.0, %v7164
        %7166 = vmatmul.bf16.gmra.mxu0 %v7030
        %v7167 = vpop.f32.mrf.mxu0
        %v7168 = vadd.f32 0.0, %v7167
        %v7169 = vpop.f32.mrf.mxu0
        %v7170 = vadd.f32 0.0, %v7169
        %7171 = vmatmul.bf16.gmra.mxu0 %v7031
        %v7172 = vpop.f32.mrf.mxu0
        %v7173 = vadd.f32 0.0, %v7172
        %v7174 = vpop.f32.mrf.mxu0
        %v7175 = vadd.f32 0.0, %v7174
        %7176 = vdwg.mxu0
        %7177 = vmatpush.bf16.msra.mxu0 %v7111
        %7178 = vmatpush.bf16.msra.mxu0 %v7109
        %7179 = vmatpush.bf16.msra.mxu0 %v7107
        %7180 = vmatpush.bf16.msra.mxu0 %v7105
        %7181 = vmatpush.bf16.msra.mxu0 %v7103
        %7182 = vmatpush.bf16.msra.mxu0 %v7101
        %7183 = vmatpush.bf16.msra.mxu0 %v7099
        %7184 = vmatpush.bf16.msra.mxu0 %v7097
        %7185 = vmatmul.bf16.gmra.mxu0 %v7024
        %v7186 = vpop.f32.mrf.mxu0
        %v7187 = vadd.f32 0.0, %v7186
        %v7188 = vpop.f32.mrf.mxu0
        %v7189 = vadd.f32 0.0, %v7188
        %7190 = vmatmul.bf16.gmra.mxu0 %v7025
        %v7191 = vpop.f32.mrf.mxu0
        %v7192 = vadd.f32 0.0, %v7191
        %v7193 = vpop.f32.mrf.mxu0
        %v7194 = vadd.f32 0.0, %v7193
        %7195 = vmatmul.bf16.gmra.mxu0 %v7026
        %v7196 = vpop.f32.mrf.mxu0
        %v7197 = vadd.f32 0.0, %v7196
        %v7198 = vpop.f32.mrf.mxu0
        %v7199 = vadd.f32 0.0, %v7198
        %7200 = vmatmul.bf16.gmra.mxu0 %v7027
        %v7201 = vpop.f32.mrf.mxu0
        %v7202 = vadd.f32 0.0, %v7201
        %v7203 = vpop.f32.mrf.mxu0
        %v7204 = vadd.f32 0.0, %v7203
        %7205 = vmatmul.bf16.gmra.mxu0 %v7028
        %v7206 = vpop.f32.mrf.mxu0
        %v7207 = vadd.f32 0.0, %v7206
        %v7208 = vpop.f32.mrf.mxu0
        %v7209 = vadd.f32 0.0, %v7208
        %7210 = vmatmul.bf16.gmra.mxu0 %v7029
        %v7211 = vpop.f32.mrf.mxu0
        %v7212 = vadd.f32 0.0, %v7211
        %v7213 = vpop.f32.mrf.mxu0
        %v7214 = vadd.f32 0.0, %v7213
        %7215 = vmatmul.bf16.gmra.mxu0 %v7030
        %v7216 = vpop.f32.mrf.mxu0
        %v7217 = vadd.f32 0.0, %v7216
        %v7218 = vpop.f32.mrf.mxu0
        %v7219 = vadd.f32 0.0, %v7218
        %7220 = vmatmul.bf16.gmra.mxu0 %v7031
        %v7221 = vpop.f32.mrf.mxu0
        %v7222 = vadd.f32 0.0, %v7221
        %v7223 = vpop.f32.mrf.mxu0
        %v7224 = vadd.f32 0.0, %v7223
        %7225 = vdwg.mxu0
        %v7226 = vpack.c.bf16 %v7140, %v7138
        %v7227 = vpack.c.bf16 %v7189, %v7187
        %v7228 = vpack.c.bf16 %v7145, %v7143
        %v7229 = vpack.c.bf16 %v7194, %v7192
        %v7230 = vpack.c.bf16 %v7150, %v7148
        %v7231 = vpack.c.bf16 %v7199, %v7197
        %v7232 = vpack.c.bf16 %v7155, %v7153
        %v7233 = vpack.c.bf16 %v7204, %v7202
        %v7234 = vpack.c.bf16 %v7160, %v7158
        %v7235 = vpack.c.bf16 %v7209, %v7207
        %v7236 = vpack.c.bf16 %v7165, %v7163
        %v7237 = vpack.c.bf16 %v7214, %v7212
        %v7238 = vpack.c.bf16 %v7170, %v7168
        %v7239 = vpack.c.bf16 %v7219, %v7217
        %v7240 = vpack.c.bf16 %v7175, %v7173
        %v7241 = vpack.c.bf16 %v7224, %v7222
        %v7242 = vld [vmem:[%s899] sm:$0x3]
        %v7244 = vperm.slane %v7242, 0
        %v7245 = vperm.slane %v7242, 1
        %7248 = vmatpush.bf16.msra.mxu0 %v7240
        %7249 = vmatpush.bf16.msra.mxu0 %v7238
        %7250 = vmatpush.bf16.msra.mxu0 %v7236
        %7251 = vmatpush.bf16.msra.mxu0 %v7234
        %7252 = vmatpush.bf16.msra.mxu0 %v7232
        %7253 = vmatpush.bf16.msra.mxu0 %v7230
        %7254 = vmatpush.bf16.msra.mxu0 %v7228
        %7255 = vmatpush.bf16.msra.mxu0 %v7226
        %7256 = vmatmul.bf16.gmra.mxu0 %v1336
        %v7257 = vpop.f32.mrf.mxu0
        %v7258 = vadd.f32 %v7244, %v7257
        %v7259 = vpop.f32.mrf.mxu0
        %v7260 = vadd.f32 %v7244, %v7259
        %7261 = vmatmul.bf16.gmra.mxu0 %v1337
        %v7262 = vpop.f32.mrf.mxu0
        %v7263 = vadd.f32 %v7244, %v7262
        %v7264 = vpop.f32.mrf.mxu0
        %v7265 = vadd.f32 %v7244, %v7264
        %7266 = vmatmul.bf16.gmra.mxu0 %v1338
        %v7267 = vpop.f32.mrf.mxu0
        %v7268 = vadd.f32 %v7244, %v7267
        %v7269 = vpop.f32.mrf.mxu0
        %v7270 = vadd.f32 %v7244, %v7269
        %7271 = vmatmul.bf16.gmra.mxu0 %v1339
        %v7272 = vpop.f32.mrf.mxu0
        %v7273 = vadd.f32 %v7244, %v7272
        %v7274 = vpop.f32.mrf.mxu0
        %v7275 = vadd.f32 %v7244, %v7274
        %7276 = vmatmul.bf16.gmra.mxu0 %v1340
        %v7277 = vpop.f32.mrf.mxu0
        %v7278 = vadd.f32 %v7244, %v7277
        %v7279 = vpop.f32.mrf.mxu0
        %v7280 = vadd.f32 %v7244, %v7279
        %7281 = vmatmul.bf16.gmra.mxu0 %v1341
        %v7282 = vpop.f32.mrf.mxu0
        %v7283 = vadd.f32 %v7244, %v7282
        %v7284 = vpop.f32.mrf.mxu0
        %v7285 = vadd.f32 %v7244, %v7284
        %7286 = vmatmul.bf16.gmra.mxu0 %v1342
        %v7287 = vpop.f32.mrf.mxu0
        %v7288 = vadd.f32 %v7244, %v7287
        %v7289 = vpop.f32.mrf.mxu0
        %v7290 = vadd.f32 %v7244, %v7289
        %7291 = vmatmul.bf16.gmra.mxu0 %v1343
        %v7292 = vpop.f32.mrf.mxu0
        %v7293 = vadd.f32 %v7244, %v7292
        %v7294 = vpop.f32.mrf.mxu0
        %v7295 = vadd.f32 %v7244, %v7294
        %7296 = vdwg.mxu0
        %7297 = vmatpush.bf16.msra.mxu0 %v7241
        %7298 = vmatpush.bf16.msra.mxu0 %v7239
        %7299 = vmatpush.bf16.msra.mxu0 %v7237
        %7300 = vmatpush.bf16.msra.mxu0 %v7235
        %7301 = vmatpush.bf16.msra.mxu0 %v7233
        %7302 = vmatpush.bf16.msra.mxu0 %v7231
        %7303 = vmatpush.bf16.msra.mxu0 %v7229
        %7304 = vmatpush.bf16.msra.mxu0 %v7227
        %7305 = vmatmul.bf16.gmra.mxu0 %v1336
        %v7306 = vpop.f32.mrf.mxu0
        %v7307 = vadd.f32 %v7245, %v7306
        %v7308 = vpop.f32.mrf.mxu0
        %v7309 = vadd.f32 %v7245, %v7308
        %7310 = vmatmul.bf16.gmra.mxu0 %v1337
        %v7311 = vpop.f32.mrf.mxu0
        %v7312 = vadd.f32 %v7245, %v7311
        %v7313 = vpop.f32.mrf.mxu0
        %v7314 = vadd.f32 %v7245, %v7313
        %7315 = vmatmul.bf16.gmra.mxu0 %v1338
        %v7316 = vpop.f32.mrf.mxu0
        %v7317 = vadd.f32 %v7245, %v7316
        %v7318 = vpop.f32.mrf.mxu0
        %v7319 = vadd.f32 %v7245, %v7318
        %7320 = vmatmul.bf16.gmra.mxu0 %v1339
        %v7321 = vpop.f32.mrf.mxu0
        %v7322 = vadd.f32 %v7245, %v7321
        %v7323 = vpop.f32.mrf.mxu0
        %v7324 = vadd.f32 %v7245, %v7323
        %7325 = vmatmul.bf16.gmra.mxu0 %v1340
        %v7326 = vpop.f32.mrf.mxu0
        %v7327 = vadd.f32 %v7245, %v7326
        %v7328 = vpop.f32.mrf.mxu0
        %v7329 = vadd.f32 %v7245, %v7328
        %7330 = vmatmul.bf16.gmra.mxu0 %v1341
        %v7331 = vpop.f32.mrf.mxu0
        %v7332 = vadd.f32 %v7245, %v7331
        %v7333 = vpop.f32.mrf.mxu0
        %v7334 = vadd.f32 %v7245, %v7333
        %7335 = vmatmul.bf16.gmra.mxu0 %v1342
        %v7336 = vpop.f32.mrf.mxu0
        %v7337 = vadd.f32 %v7245, %v7336
        %v7338 = vpop.f32.mrf.mxu0
        %v7339 = vadd.f32 %v7245, %v7338
        %7340 = vmatmul.bf16.gmra.mxu0 %v1343
        %v7341 = vpop.f32.mrf.mxu0
        %v7342 = vadd.f32 %v7245, %v7341
        %v7343 = vpop.f32.mrf.mxu0
        %v7344 = vadd.f32 %v7245, %v7343
        %7345 = vdwg.mxu0
        %v7346 = vmax.f32 %v7258, 0.0
        %v7347 = vmax.f32 %v7307, 0.0
        %v7348 = vmax.f32 %v7260, 0.0
        %v7349 = vmax.f32 %v7309, 0.0
        %v7350 = vmax.f32 %v7263, 0.0
        %v7351 = vmax.f32 %v7312, 0.0
        %v7352 = vmax.f32 %v7265, 0.0
        %v7353 = vmax.f32 %v7314, 0.0
        %v7354 = vmax.f32 %v7268, 0.0
        %v7355 = vmax.f32 %v7317, 0.0
        %v7356 = vmax.f32 %v7270, 0.0
        %v7357 = vmax.f32 %v7319, 0.0
        %v7358 = vmax.f32 %v7273, 0.0
        %v7359 = vmax.f32 %v7322, 0.0
        %v7360 = vmax.f32 %v7275, 0.0
        %v7361 = vmax.f32 %v7324, 0.0
        %v7362 = vmax.f32 %v7278, 0.0
        %v7363 = vmax.f32 %v7327, 0.0
        %v7364 = vmax.f32 %v7280, 0.0
        %v7365 = vmax.f32 %v7329, 0.0
        %v7366 = vmax.f32 %v7283, 0.0
        %v7367 = vmax.f32 %v7332, 0.0
        %v7368 = vmax.f32 %v7285, 0.0
        %v7369 = vmax.f32 %v7334, 0.0
        %v7370 = vmax.f32 %v7288, 0.0
        %v7371 = vmax.f32 %v7337, 0.0
        %v7372 = vmax.f32 %v7290, 0.0
        %v7373 = vmax.f32 %v7339, 0.0
        %v7374 = vmax.f32 %v7293, 0.0
        %v7375 = vmax.f32 %v7342, 0.0
        %v7376 = vmax.f32 %v7295, 0.0
        %v7377 = vmax.f32 %v7344, 0.0
        %7378 = vst [vmem:[%s1082] sm:$0xff] %v1739
        %7379 = vst [vmem:[%s1082 + $0x8] sm:$0xff] %v1740
        %7380 = vst [vmem:[%s1082 + $0x10] sm:$0xff] %v7346
        %7381 = vst [vmem:[%s1082 + $0x18] sm:$0xff] %v7347
        %7382 = vst [vmem:[%s1082 + $0x20] sm:$0xff] %v1741
        %7383 = vst [vmem:[%s1082 + $0x28] sm:$0xff] %v1742
        %7384 = vst [vmem:[%s1082 + $0x30] sm:$0xff] %v7348
        %7385 = vst [vmem:[%s1082 + $0x38] sm:$0xff] %v7349
        %7386 = vst [vmem:[%s1082 + $0x40] sm:$0xff] %v1743
        %7387 = vst [vmem:[%s1082 + $0x48] sm:$0xff] %v1744
        %7388 = vst [vmem:[%s1082 + $0x50] sm:$0xff] %v7350
        %7389 = vst [vmem:[%s1082 + $0x58] sm:$0xff] %v7351
        %7390 = vst [vmem:[%s1082 + $0x60] sm:$0xff] %v1745
        %7391 = vst [vmem:[%s1082 + $0x68] sm:$0xff] %v1746
        %7392 = vst [vmem:[%s1082 + $0x70] sm:$0xff] %v7352
        %7393 = vst [vmem:[%s1082 + $0x78] sm:$0xff] %v7353
        %7394 = vst [vmem:[%s1082 + $0x80] sm:$0xff] %v1747
        %7395 = vst [vmem:[%s1082 + $0x88] sm:$0xff] %v1748
        %7396 = vst [vmem:[%s1082 + $0x90] sm:$0xff] %v7354
        %7397 = vst [vmem:[%s1082 + $0x98] sm:$0xff] %v7355
        %7398 = vst [vmem:[%s1082 + $0xa0] sm:$0xff] %v1749
        %7399 = vst [vmem:[%s1082 + $0xa8] sm:$0xff] %v1750
        %7400 = vst [vmem:[%s1082 + $0xb0] sm:$0xff] %v7356
        %7401 = vst [vmem:[%s1082 + $0xb8] sm:$0xff] %v7357
        %7402 = vst [vmem:[%s1082 + $0xc0] sm:$0xff] %v1751
        %7403 = vst [vmem:[%s1082 + $0xc8] sm:$0xff] %v1752
        %7404 = vst [vmem:[%s1082 + $0xd0] sm:$0xff] %v7358
        %7405 = vst [vmem:[%s1082 + $0xd8] sm:$0xff] %v7359
        %7406 = vst [vmem:[%s1082 + $0xe0] sm:$0xff] %v1753
        %7407 = vst [vmem:[%s1082 + $0xe8] sm:$0xff] %v1754
        %7408 = vst [vmem:[%s1082 + $0xf0] sm:$0xff] %v7360
        %7409 = vst [vmem:[%s1082 + $0xf8] sm:$0xff] %v7361
        %7410 = vst [vmem:[%s1082 + $0x100] sm:$0xff] %v1755
        %7411 = vst [vmem:[%s1082 + $0x108] sm:$0xff] %v1756
        %7412 = vst [vmem:[%s1082 + $0x110] sm:$0xff] %v7362
        %7413 = vst [vmem:[%s1082 + $0x118] sm:$0xff] %v7363
        %7414 = vst [vmem:[%s1082 + $0x120] sm:$0xff] %v1757
        %7415 = vst [vmem:[%s1082 + $0x128] sm:$0xff] %v1758
        %7416 = vst [vmem:[%s1082 + $0x130] sm:$0xff] %v7364
        %7417 = vst [vmem:[%s1082 + $0x138] sm:$0xff] %v7365
        %7418 = vst [vmem:[%s1082 + $0x140] sm:$0xff] %v1759
        %7419 = vst [vmem:[%s1082 + $0x148] sm:$0xff] %v1760
        %7420 = vst [vmem:[%s1082 + $0x150] sm:$0xff] %v7366
        %7421 = vst [vmem:[%s1082 + $0x158] sm:$0xff] %v7367
        %7422 = vst [vmem:[%s1082 + $0x160] sm:$0xff] %v1761
        %7423 = vst [vmem:[%s1082 + $0x168] sm:$0xff] %v1762
        %7424 = vst [vmem:[%s1082 + $0x170] sm:$0xff] %v7368
        %7425 = vst [vmem:[%s1082 + $0x178] sm:$0xff] %v7369
        %7426 = vst [vmem:[%s1082 + $0x180] sm:$0xff] %v1763
        %7427 = vst [vmem:[%s1082 + $0x188] sm:$0xff] %v1764
        %7428 = vst [vmem:[%s1082 + $0x190] sm:$0xff] %v7370
        %7429 = vst [vmem:[%s1082 + $0x198] sm:$0xff] %v7371
        %7430 = vst [vmem:[%s1082 + $0x1a0] sm:$0xff] %v1765
        %7431 = vst [vmem:[%s1082 + $0x1a8] sm:$0xff] %v1766
        %7432 = vst [vmem:[%s1082 + $0x1b0] sm:$0xff] %v7372
        %7433 = vst [vmem:[%s1082 + $0x1b8] sm:$0xff] %v7373
        %7434 = vst [vmem:[%s1082 + $0x1c0] sm:$0xff] %v1767
        %7435 = vst [vmem:[%s1082 + $0x1c8] sm:$0xff] %v1768
        %7436 = vst [vmem:[%s1082 + $0x1d0] sm:$0xff] %v7374
        %7437 = vst [vmem:[%s1082 + $0x1d8] sm:$0xff] %v7375
        %7438 = vst [vmem:[%s1082 + $0x1e0] sm:$0xff] %v1769
        %7439 = vst [vmem:[%s1082 + $0x1e8] sm:$0xff] %v1770
        %7440 = vst [vmem:[%s1082 + $0x1f0] sm:$0xff] %v7376
        %7441 = vst [vmem:[%s1082 + $0x1f8] sm:$0xff] %v7377
        %p7442 = scmp.lt.s32.totalorder %s45, 1
        %s7443 = scalar_select %p7442, %s45, 1
        %s7444 = smul.addr %s7443, 64
        %s7445 = smul.addr %s7444, 8
        %s7446 = scalar_lea.vmem %s19, %s7445
        // Predicated region
        $region129: #{higldp_forward.2} parent=95 // pred_check
          %p7447 = pneg %p552
        $region130: #{higldp_forward.2} parent=95 // pred_check_branch
          %7449 = sbr.rel (%p7447) target = $region132
        $region131: #{higldp_forward.2} parent=95 // pred_region
          _
        $region132: #{higldp_forward.2} parent=95 // pred_fallthru
          _
      $region96: #{higldp_forward.2} parent=5 // pred_fallthru
        _
      %p7450 = scmp.le.s32.totalorder 2, %s40
      // Predicated region
      $region133: #{higldp_forward.2} parent=5 // pred_check
        %p7451 = pneg %p7450
      $region134: #{higldp_forward.2} parent=5 // pred_check_branch
        %7453 = sbr.rel (%p7451) target = $region136
      $region135: #{higldp_forward.2} parent=5 // pred_region
        %s7454 = ssub.s32 %s40, 2
        // Predicated region
        $region137: #{higldp_forward.2} parent=135 // pred_check
          %p7455 = pneg %p558
        $region138: #{higldp_forward.2} parent=135 // pred_check_branch
          %7457 = sbr.rel (%p7455) target = $region140
        $region139: #{higldp_forward.2} parent=135 // pred_region
          %p7458 = scmp.lt.s32.totalorder %s46, 1
          %s7459 = scalar_select %p7458, %s46, 1
          %s7460 = smul.addr %s7459, 64
          %s7461 = smul.addr %s7460, 8
          %s7462 = scalar_lea.vmem %s19, %s7461
        $region140: #{higldp_forward.2} parent=135 // pred_fallthru
          _
      $region136: #{higldp_forward.2} parent=5 // pred_fallthru
        _
    $region6: #{higldp_forward.2} parent=1 // loop_footer
      %s44 = sadd.s32 1, %s40
    $region7: #{higldp_forward.2} parent=1 // loop_footer_branch
      %39 = sbr.rel target = $region3
    $region8: #{higldp_forward.2} parent=1 // loop_exit
      _
    %7463 = vsyncpa [#allocation3], 1
    %s7464 = scalar_lea.sflag [#allocation3], 1
    %7465 = vsyncpa %s7464, 1
    %7466 = vsyncpa [#allocation5], 1
    %s7467 = scalar_lea.sflag [#allocation5], 1
    %7468 = vsyncpa %s7467, 1
    %7469 = vsyncpa [#allocation8], 1
    %s7470 = scalar_lea.sflag [#allocation8], 1
    %7471 = vsyncpa %s7470, 1
    %7472 = vsyncpa [#allocation11], 1
    %s7473 = scalar_lea.sflag [#allocation11], 1
    %7474 = vsyncpa %s7473, 1
    %7475 = vsyncpa [#allocation14], 1
    %s7476 = scalar_lea.sflag [#allocation14], 1
    %7477 = vsyncpa %s7476, 1

</llo_original>
